<compile_context>
chip_gen: v6e
topology: v6e:2x2x1
jax: 0.10.0
libtpu: 0.0.40
codegen_flags: <defaults>
</compile_context>

<pallas_src>
import jax
import jax.numpy as jnp
import numpy as np
from jax.experimental import pallas as pl
from jax.experimental.pallas import tpu as pltpu

STATE_DIM = 382 + 6 + 4          # 392
ACTION_DIM = 2
HIDDEN_DIM = 500
IN_DIM = STATE_DIM + ACTION_DIM  # 394

IN_PAD = 512                     # 394 -> 512 (zero padded, exact)
HID_PAD = 512                    # 500 -> 512 (zero padded, exact)


def _qnet_kernel(x_ref, w1_ref, w2_ref, w3_ref, w4_ref, b_ref, out_ref):
    """One grid step = one batch tile, BOTH Q-heads.

    Feature-major layout (features on sublanes, batch on lanes):
      x_ref  : (IN_PAD, TB)           bf16  x^T tile
      w1_ref : (2*HID_PAD, IN_PAD)    bf16  both heads' layer-1, (out, in)
      w2_ref : (2, HID_PAD, HID_PAD)  bf16  per-head layer-2, (out, in)
      w3_ref : (2, HID_PAD, HID_PAD)  bf16  per-head layer-3, (out, in)
      w4_ref : (2, 8, HID_PAD)        bf16  per-head layer-4; row 0 is real
      b_ref  : (2, HID_PAD, 8)        f32   cols 0..2 = b1..b3, [h,0,3] = b4
      out_ref: (2, TB)                f32   row h = q_h, lane-dense in batch
    """
    x = x_ref[...]

    # Layer 1, both heads in one MXU pass: (2*HID, IN) @ (IN, TB) -> (2*HID, TB)
    h1 = jnp.dot(w1_ref[...], x, preferred_element_type=jnp.float32)

    def q_head(h, h1_h):
        b1 = b_ref[h, :, 0:1]                     # (HID, 1), broadcast over lanes
        b2 = b_ref[h, :, 1:2]
        b3 = b_ref[h, :, 2:3]
        b4 = b_ref[h, 0:1, 3:4]                   # (1, 1)

        a1 = jnp.maximum(h1_h + b1, 0.0).astype(jnp.bfloat16)
        a2 = jnp.dot(w2_ref[h], a1, preferred_element_type=jnp.float32)
        a2 = jnp.maximum(a2 + b2, 0.0).astype(jnp.bfloat16)
        a3 = jnp.dot(w3_ref[h], a2, preferred_element_type=jnp.float32)
        a3 = jnp.maximum(a3 + b3, 0.0).astype(jnp.bfloat16)
        # Final layer: (8, HID) @ (HID, TB) -> (8, TB); row 0 is the real q.
        q = jnp.dot(w4_ref[h], a3, preferred_element_type=jnp.float32)
        return q[0:1, :] + b4                     # (1, TB), lane-dense

    out_ref[0:1, :] = q_head(0, h1[0:HID_PAD, :])
    out_ref[1:2, :] = q_head(1, h1[HID_PAD:2 * HID_PAD, :])


def _batch_tiling(B):
    """(B_pad, TB): TB multiple of 128, B_pad multiple of TB, >= 2 grid steps."""
    if B <= 256:
        return 256, 128
    if B <= 2048:
        return -(-B // 256) * 256, 256
    return -(-B // 512) * 512, 512


def qnetwork_forward(state, action, packed):
    """Pallas twin-Q forward. Returns (q1, q2), each (B, 1) float32."""
    B = state.shape[0]
    B_pad, TB = _batch_tiling(B)
    nb = B_pad // TB

    # Feature-major bf16 input: x^T, zero-padded to (IN_PAD, B_pad).
    x = jnp.concatenate([state, action], axis=1).astype(jnp.float32)
    xT = jnp.pad(x.T, ((0, IN_PAD - IN_DIM), (0, B_pad - B))).astype(jnp.bfloat16)

    out = pl.pallas_call(
        _qnet_kernel,
        out_shape=jax.ShapeDtypeStruct((2, B_pad), jnp.float32),
        grid=(nb,),
        in_specs=[
            pl.BlockSpec((IN_PAD, TB), lambda ib: (0, ib)),
            pl.BlockSpec((2 * HID_PAD, IN_PAD), lambda ib: (0, 0)),
            pl.BlockSpec((2, HID_PAD, HID_PAD), lambda ib: (0, 0, 0)),
            pl.BlockSpec((2, HID_PAD, HID_PAD), lambda ib: (0, 0, 0)),
            pl.BlockSpec((2, 8, HID_PAD), lambda ib: (0, 0, 0)),
            pl.BlockSpec((2, HID_PAD, 8), lambda ib: (0, 0, 0)),
        ],
        out_specs=pl.BlockSpec((2, TB), lambda ib: (0, ib)),
        compiler_params=pltpu.CompilerParams(
            dimension_semantics=("parallel",),
            vmem_limit_bytes=32 << 20),
    )(xT, packed["w1"], packed["w2"], packed["w3"], packed["w4"], packed["b"])

    q1 = out[0, :B, None]
    q2 = out[1, :B, None]
    return q1, q2


# ----------------------- parameter init / packing ---------------------------

def xavier_uniform(key, fan_in, fan_out):
    # matches torch.nn.init.xavier_uniform_ (gain=1); stored as (in, out)
    limit = np.sqrt(6.0 / (fan_in + fan_out))
    return jax.random.uniform(key, (fan_in, fan_out), jnp.float32, -limit, limit)


def init_params(key):
    """Raw f32 parameters at the true (unpadded) shapes, (in, out) layout."""
    dims = [(IN_DIM, HIDDEN_DIM), (HIDDEN_DIM, HIDDEN_DIM),
            (HIDDEN_DIM, HIDDEN_DIM), (HIDDEN_DIM, 1)]
    keys = jax.random.split(key, 8)
    params = {}
    k = 0
    for head in ("q1", "q2"):
        for layer, (fi, fo) in enumerate(dims, start=1):
            params[f"w{layer}_{head}"] = xavier_uniform(keys[k], fi, fo)
            params[f"b{layer}_{head}"] = jnp.zeros((fo,), jnp.float32)
            k += 1
    return params


def pack_params(params):
    """Transpose to (out, in), zero-pad to aligned shapes, cast weights bf16."""
    def pad_t(w, in_pad, out_pad):
        wp = jnp.pad(w, ((0, in_pad - w.shape[0]), (0, out_pad - w.shape[1])))
        return wp.T                                            # (out_pad, in_pad)

    w1 = jnp.concatenate(
        [pad_t(params["w1_q1"], IN_PAD, HID_PAD),
         pad_t(params["w1_q2"], IN_PAD, HID_PAD)], axis=0).astype(jnp.bfloat16)

    def stack_t(name):
        return jnp.stack([pad_t(params[f"{name}_q1"], HID_PAD, HID_PAD),
                          pad_t(params[f"{name}_q2"], HID_PAD, HID_PAD)]
                         ).astype(jnp.bfloat16)

    w2, w3 = stack_t("w2"), stack_t("w3")

    def w4_rows(head):
        wt = pad_t(params[f"w4_{head}"], HID_PAD, 1)           # (1, HID_PAD)
        return jnp.pad(wt, ((0, 7), (0, 0)))                   # (8, HID_PAD)

    w4 = jnp.stack([w4_rows("q1"), w4_rows("q2")]).astype(jnp.bfloat16)

    def bias_block(head):
        cols = [jnp.pad(params[f"b{l}_{head}"],
                        (0, HID_PAD - params[f"b{l}_{head}"].shape[0]))
                for l in (1, 2, 3)]
        cols.append(jnp.pad(params[f"b4_{head}"], (0, HID_PAD - 1)))  # b4 at row 0
        cols += [jnp.zeros((HID_PAD,), jnp.float32)] * 4              # pad to 8 cols
        return jnp.stack(cols, axis=1)                                # (HID_PAD, 8)

    b = jnp.stack([bias_block("q1"), bias_block("q2")])               # (2, HID_PAD, 8)
    return {"w1": w1, "w2": w2, "w3": w3, "w4": w4, "b": b}


# ------------------------------ reference -----------------------------------

def reference_forward(state, action, params):
    """Pure-JAX reference mirroring the kernel's bf16-weight / f32-accum math."""
    x = jnp.concatenate([state, action], axis=1).astype(jnp.float32)

    def bf(a):
        return a.astype(jnp.bfloat16).astype(jnp.float32)

    def head(sfx):
        h = x
        for layer in (1, 2, 3):
            h = jnp.maximum(
                bf(h) @ bf(params[f"w{layer}_{sfx}"]) + params[f"b{layer}_{sfx}"],
                0.0)
        return bf(h) @ bf(params[f"w4_{sfx}"]) + params[f"b4_{sfx}"]

    return head("q1"), head("q2")


if __name__ == "__main__":
    key = jax.random.PRNGKey(0)
    k_params, k_bias, k_state, k_action = jax.random.split(key, 4)

    batch = 8
    params = init_params(k_params)

    # The torch module initialises biases to 0; use small random biases here so
    # the bias path is actually exercised by the numerical check.
    bias_keys = jax.random.split(k_bias, 8)
    i = 0
    for head in ("q1", "q2"):
        for layer in range(1, 5):
            name = f"b{layer}_{head}"
            params[name] = 0.1 * jax.random.normal(
                bias_keys[i], params[name].shape, jnp.float32)
            i += 1

    packed = pack_params(params)
    state = jax.random.normal(k_state, (batch, STATE_DIM), jnp.float32)
    action = jax.random.uniform(k_action, (batch, ACTION_DIM), jnp.float32,
                                minval=-1.0, maxval=1.0)

    fwd = jax.jit(qnetwork_forward)
    q1, q2 = fwd(state, action, packed)
    jax.block_until_ready((q1, q2))

    r1, r2 = reference_forward(state, action, params)
    assert q1.shape == (batch, 1) and q2.shape == (batch, 1)
    # bf16 weights/activations in both kernel and reference: only f32
    # accumulation-order differences remain.
    np.testing.assert_allclose(np.asarray(q1), np.asarray(r1), rtol=2e-3, atol=2e-3)
    np.testing.assert_allclose(np.asarray(q2), np.asarray(r2), rtol=2e-3, atol=2e-3)

    print("KERNEL_OK")
</pallas_src>

<mosaic_0001>
module attributes {stable_mosaic.version = 11 : i64} {
  func.func @_qnet_kernel(%arg0: i32, %arg1: memref<512x128xbf16, #tpu.memory_space<vmem>>, %arg2: memref<1024x512xbf16, #tpu.memory_space<vmem>>, %arg3: memref<2x512x512xbf16, #tpu.memory_space<vmem>>, %arg4: memref<2x512x512xbf16, #tpu.memory_space<vmem>>, %arg5: memref<2x8x512xbf16, #tpu.memory_space<vmem>>, %arg6: memref<2x512x8xf32, #tpu.memory_space<vmem>>, %arg7: memref<2x128xf32, #tpu.memory_space<vmem>>) attributes {dimension_semantics = [#tpu.dimension_semantics<parallel>], iteration_bounds = array<i64: 2>, scalar_prefetch = 0 : i64, scratch_operands = 0 : i64, tpu.core_type = #tpu.core_type<tc>, window_params = [{transform_indices = @transform_0, window_bounds = array<i64: 512, 128>}, {pipeline_mode = #tpu.pipeline_mode<synchronous>, transform_indices = @transform_1, window_bounds = array<i64: 1024, 512>}, {pipeline_mode = #tpu.pipeline_mode<synchronous>, transform_indices = @transform_2, window_bounds = array<i64: 2, 512, 512>}, {pipeline_mode = #tpu.pipeline_mode<synchronous>, transform_indices = @transform_3, window_bounds = array<i64: 2, 512, 512>}, {pipeline_mode = #tpu.pipeline_mode<synchronous>, transform_indices = @transform_4, window_bounds = array<i64: 2, 8, 512>}, {pipeline_mode = #tpu.pipeline_mode<synchronous>, transform_indices = @transform_5, window_bounds = array<i64: 2, 512, 8>}, {transform_indices = @transform_6, window_bounds = array<i64: 2, 128>}]} {
    %c0 = arith.constant 0 : index
    %c0_0 = arith.constant 0 : index
    %0 = vector.load %arg1[%c0, %c0_0] : memref<512x128xbf16, #tpu.memory_space<vmem>>, vector<512x128xbf16>
    %c0_1 = arith.constant 0 : index
    %c0_2 = arith.constant 0 : index
    %1 = vector.load %arg2[%c0_1, %c0_2] : memref<1024x512xbf16, #tpu.memory_space<vmem>>, vector<1024x512xbf16>
    %cst = arith.constant dense<0.000000e+00> : vector<1024x128xf32>
    %2 = tpu.matmul %1, %0, %cst {dimension_numbers = #tpu.dot_dimension_numbers<[1], [0], [0], [1], [0, 0, 1, 1], [], []>} : vector<1024x512xbf16>, vector<512x128xbf16>, vector<1024x128xf32> -> vector<1024x128xf32>
    %3 = vector.extract_strided_slice %2 {offsets = [0, 0], sizes = [512, 128], strides = [1, 1]} : vector<1024x128xf32> to vector<512x128xf32>
    %c0_3 = arith.constant 0 : index
    %c0_4 = arith.constant 0 : index
    %c0_5 = arith.constant 0 : index
    %4 = vector.load %arg6[%c0_3, %c0_4, %c0_5] : memref<2x512x8xf32, #tpu.memory_space<vmem>>, vector<1x512x1xf32>
    %5 = vector.shape_cast %4 : vector<1x512x1xf32> to vector<512x1xf32>
    %c0_6 = arith.constant 0 : index
    %c0_7 = arith.constant 0 : index
    %c1 = arith.constant 1 : index
    %6 = vector.load %arg6[%c0_6, %c0_7, %c1] : memref<2x512x8xf32, #tpu.memory_space<vmem>>, vector<1x512x1xf32>
    %7 = vector.shape_cast %6 : vector<1x512x1xf32> to vector<512x1xf32>
    %c0_8 = arith.constant 0 : index
    %c0_9 = arith.constant 0 : index
    %c2 = arith.constant 2 : index
    %8 = vector.load %arg6[%c0_8, %c0_9, %c2] : memref<2x512x8xf32, #tpu.memory_space<vmem>>, vector<1x512x1xf32>
    %9 = vector.shape_cast %8 : vector<1x512x1xf32> to vector<512x1xf32>
    %c0_10 = arith.constant 0 : index
    %c0_11 = arith.constant 0 : index
    %c3 = arith.constant 3 : index
    %10 = vector.load %arg6[%c0_10, %c0_11, %c3] : memref<2x512x8xf32, #tpu.memory_space<vmem>>, vector<1x1x1xf32>
    %11 = vector.shape_cast %10 : vector<1x1x1xf32> to vector<1x1xf32>
    %12 = vector.broadcast %5 : vector<512x1xf32> to vector<512x128xf32>
    %13 = arith.addf %3, %12 : vector<512x128xf32>
    %cst_12 = arith.constant 0.000000e+00 : f32
    %14 = vector.broadcast %cst_12 : f32 to vector<512x128xf32>
    %15 = arith.maximumf %13, %14 : vector<512x128xf32>
    %16 = arith.truncf %15 : vector<512x128xf32> to vector<512x128xbf16>
    %c0_13 = arith.constant 0 : index
    %c0_14 = arith.constant 0 : index
    %c0_15 = arith.constant 0 : index
    %17 = vector.load %arg3[%c0_13, %c0_14, %c0_15] : memref<2x512x512xbf16, #tpu.memory_space<vmem>>, vector<1x512x512xbf16>
    %18 = vector.shape_cast %17 : vector<1x512x512xbf16> to vector<512x512xbf16>
    %cst_16 = arith.constant dense<0.000000e+00> : vector<512x128xf32>
    %19 = tpu.matmul %18, %16, %cst_16 {dimension_numbers = #tpu.dot_dimension_numbers<[1], [0], [0], [1], [0, 0, 1, 1], [], []>} : vector<512x512xbf16>, vector<512x128xbf16>, vector<512x128xf32> -> vector<512x128xf32>
    %20 = vector.broadcast %7 : vector<512x1xf32> to vector<512x128xf32>
    %21 = arith.addf %19, %20 : vector<512x128xf32>
    %cst_17 = arith.constant 0.000000e+00 : f32
    %22 = vector.broadcast %cst_17 : f32 to vector<512x128xf32>
    %23 = arith.maximumf %21, %22 : vector<512x128xf32>
    %24 = arith.truncf %23 : vector<512x128xf32> to vector<512x128xbf16>
    %c0_18 = arith.constant 0 : index
    %c0_19 = arith.constant 0 : index
    %c0_20 = arith.constant 0 : index
    %25 = vector.load %arg4[%c0_18, %c0_19, %c0_20] : memref<2x512x512xbf16, #tpu.memory_space<vmem>>, vector<1x512x512xbf16>
    %26 = vector.shape_cast %25 : vector<1x512x512xbf16> to vector<512x512xbf16>
    %cst_21 = arith.constant dense<0.000000e+00> : vector<512x128xf32>
    %27 = tpu.matmul %26, %24, %cst_21 {dimension_numbers = #tpu.dot_dimension_numbers<[1], [0], [0], [1], [0, 0, 1, 1], [], []>} : vector<512x512xbf16>, vector<512x128xbf16>, vector<512x128xf32> -> vector<512x128xf32>
    %28 = vector.broadcast %9 : vector<512x1xf32> to vector<512x128xf32>
    %29 = arith.addf %27, %28 : vector<512x128xf32>
    %cst_22 = arith.constant 0.000000e+00 : f32
    %30 = vector.broadcast %cst_22 : f32 to vector<512x128xf32>
    %31 = arith.maximumf %29, %30 : vector<512x128xf32>
    %32 = arith.truncf %31 : vector<512x128xf32> to vector<512x128xbf16>
    %c0_23 = arith.constant 0 : index
    %c0_24 = arith.constant 0 : index
    %c0_25 = arith.constant 0 : index
    %33 = vector.load %arg5[%c0_23, %c0_24, %c0_25] : memref<2x8x512xbf16, #tpu.memory_space<vmem>>, vector<1x8x512xbf16>
    %34 = vector.shape_cast %33 : vector<1x8x512xbf16> to vector<8x512xbf16>
    %cst_26 = arith.constant dense<0.000000e+00> : vector<8x128xf32>
    %35 = tpu.matmul %34, %32, %cst_26 {dimension_numbers = #tpu.dot_dimension_numbers<[1], [0], [0], [1], [0, 0, 1, 1], [], []>} : vector<8x512xbf16>, vector<512x128xbf16>, vector<8x128xf32> -> vector<8x128xf32>
    %36 = vector.extract_strided_slice %35 {offsets = [0, 0], sizes = [1, 128], strides = [1, 1]} : vector<8x128xf32> to vector<1x128xf32>
    %37 = vector.broadcast %11 : vector<1x1xf32> to vector<1x128xf32>
    %38 = arith.addf %36, %37 : vector<1x128xf32>
    %c0_27 = arith.constant 0 : index
    %c0_28 = arith.constant 0 : index
    %39 = vector.load %arg7[%c0_27, %c0_28] : memref<2x128xf32, #tpu.memory_space<vmem>>, vector<1x128xf32>
    tpu.vector_store %arg7[%c0_27, %c0_28], %38 {strides = array<i32>} : memref<2x128xf32, #tpu.memory_space<vmem>>, vector<1x128xf32>,
    %40 = vector.extract_strided_slice %2 {offsets = [512, 0], sizes = [512, 128], strides = [1, 1]} : vector<1024x128xf32> to vector<512x128xf32>
    %c1_29 = arith.constant 1 : index
    %c0_30 = arith.constant 0 : index
    %c0_31 = arith.constant 0 : index
    %41 = vector.load %arg6[%c1_29, %c0_30, %c0_31] : memref<2x512x8xf32, #tpu.memory_space<vmem>>, vector<1x512x1xf32>
    %42 = vector.shape_cast %41 : vector<1x512x1xf32> to vector<512x1xf32>
    %c1_32 = arith.constant 1 : index
    %c0_33 = arith.constant 0 : index
    %c1_34 = arith.constant 1 : index
    %43 = vector.load %arg6[%c1_32, %c0_33, %c1_34] : memref<2x512x8xf32, #tpu.memory_space<vmem>>, vector<1x512x1xf32>
    %44 = vector.shape_cast %43 : vector<1x512x1xf32> to vector<512x1xf32>
    %c1_35 = arith.constant 1 : index
    %c0_36 = arith.constant 0 : index
    %c2_37 = arith.constant 2 : index
    %45 = vector.load %arg6[%c1_35, %c0_36, %c2_37] : memref<2x512x8xf32, #tpu.memory_space<vmem>>, vector<1x512x1xf32>
    %46 = vector.shape_cast %45 : vector<1x512x1xf32> to vector<512x1xf32>
    %c1_38 = arith.constant 1 : index
    %c0_39 = arith.constant 0 : index
    %c3_40 = arith.constant 3 : index
    %47 = vector.load %arg6[%c1_38, %c0_39, %c3_40] : memref<2x512x8xf32, #tpu.memory_space<vmem>>, vector<1x1x1xf32>
    %48 = vector.shape_cast %47 : vector<1x1x1xf32> to vector<1x1xf32>
    %49 = vector.broadcast %42 : vector<512x1xf32> to vector<512x128xf32>
    %50 = arith.addf %40, %49 : vector<512x128xf32>
    %cst_41 = arith.constant 0.000000e+00 : f32
    %51 = vector.broadcast %cst_41 : f32 to vector<512x128xf32>
    %52 = arith.maximumf %50, %51 : vector<512x128xf32>
    %53 = arith.truncf %52 : vector<512x128xf32> to vector<512x128xbf16>
    %c1_42 = arith.constant 1 : index
    %c0_43 = arith.constant 0 : index
    %c0_44 = arith.constant 0 : index
    %54 = vector.load %arg3[%c1_42, %c0_43, %c0_44] : memref<2x512x512xbf16, #tpu.memory_space<vmem>>, vector<1x512x512xbf16>
    %55 = vector.shape_cast %54 : vector<1x512x512xbf16> to vector<512x512xbf16>
    %cst_45 = arith.constant dense<0.000000e+00> : vector<512x128xf32>
    %56 = tpu.matmul %55, %53, %cst_45 {dimension_numbers = #tpu.dot_dimension_numbers<[1], [0], [0], [1], [0, 0, 1, 1], [], []>} : vector<512x512xbf16>, vector<512x128xbf16>, vector<512x128xf32> -> vector<512x128xf32>
    %57 = vector.broadcast %44 : vector<512x1xf32> to vector<512x128xf32>
    %58 = arith.addf %56, %57 : vector<512x128xf32>
    %cst_46 = arith.constant 0.000000e+00 : f32
    %59 = vector.broadcast %cst_46 : f32 to vector<512x128xf32>
    %60 = arith.maximumf %58, %59 : vector<512x128xf32>
    %61 = arith.truncf %60 : vector<512x128xf32> to vector<512x128xbf16>
    %c1_47 = arith.constant 1 : index
    %c0_48 = arith.constant 0 : index
    %c0_49 = arith.constant 0 : index
    %62 = vector.load %arg4[%c1_47, %c0_48, %c0_49] : memref<2x512x512xbf16, #tpu.memory_space<vmem>>, vector<1x512x512xbf16>
    %63 = vector.shape_cast %62 : vector<1x512x512xbf16> to vector<512x512xbf16>
    %cst_50 = arith.constant dense<0.000000e+00> : vector<512x128xf32>
    %64 = tpu.matmul %63, %61, %cst_50 {dimension_numbers = #tpu.dot_dimension_numbers<[1], [0], [0], [1], [0, 0, 1, 1], [], []>} : vector<512x512xbf16>, vector<512x128xbf16>, vector<512x128xf32> -> vector<512x128xf32>
    %65 = vector.broadcast %46 : vector<512x1xf32> to vector<512x128xf32>
    %66 = arith.addf %64, %65 : vector<512x128xf32>
    %cst_51 = arith.constant 0.000000e+00 : f32
    %67 = vector.broadcast %cst_51 : f32 to vector<512x128xf32>
    %68 = arith.maximumf %66, %67 : vector<512x128xf32>
    %69 = arith.truncf %68 : vector<512x128xf32> to vector<512x128xbf16>
    %c1_52 = arith.constant 1 : index
    %c0_53 = arith.constant 0 : index
    %c0_54 = arith.constant 0 : index
    %70 = vector.load %arg5[%c1_52, %c0_53, %c0_54] : memref<2x8x512xbf16, #tpu.memory_space<vmem>>, vector<1x8x512xbf16>
    %71 = vector.shape_cast %70 : vector<1x8x512xbf16> to vector<8x512xbf16>
    %cst_55 = arith.constant dense<0.000000e+00> : vector<8x128xf32>
    %72 = tpu.matmul %71, %69, %cst_55 {dimension_numbers = #tpu.dot_dimension_numbers<[1], [0], [0], [1], [0, 0, 1, 1], [], []>} : vector<8x512xbf16>, vector<512x128xbf16>, vector<8x128xf32> -> vector<8x128xf32>
    %73 = vector.extract_strided_slice %72 {offsets = [0, 0], sizes = [1, 128], strides = [1, 1]} : vector<8x128xf32> to vector<1x128xf32>
    %74 = vector.broadcast %48 : vector<1x1xf32> to vector<1x128xf32>
    %75 = arith.addf %73, %74 : vector<1x128xf32>
    %c1_56 = arith.constant 1 : index
    %c0_57 = arith.constant 0 : index
    %76 = vector.load %arg7[%c1_56, %c0_57] : memref<2x128xf32, #tpu.memory_space<vmem>>, vector<1x128xf32>
    tpu.vector_store %arg7[%c1_56, %c0_57], %75 {strides = array<i32>} : memref<2x128xf32, #tpu.memory_space<vmem>>, vector<1x128xf32>,
    return
  }
  func.func @transform_0(%arg0: i32) -> (i32, i32) {
    %c0_i32 = arith.constant 0 : i32
    %c0_i32_0 = arith.constant 0 : i32
    return %c0_i32, %arg0 : i32, i32
  }
  func.func @transform_1(%arg0: i32) -> (i32, i32) {
    %c0_i32 = arith.constant 0 : i32
    %c0_i32_0 = arith.constant 0 : i32
    %c0_i32_1 = arith.constant 0 : i32
    return %c0_i32, %c0_i32_0 : i32, i32
  }
  func.func @transform_2(%arg0: i32) -> (i32, i32, i32) {
    %c0_i32 = arith.constant 0 : i32
    %c0_i32_0 = arith.constant 0 : i32
    %c0_i32_1 = arith.constant 0 : i32
    %c0_i32_2 = arith.constant 0 : i32
    return %c0_i32, %c0_i32_0, %c0_i32_1 : i32, i32, i32
  }
  func.func @transform_3(%arg0: i32) -> (i32, i32, i32) {
    %c0_i32 = arith.constant 0 : i32
    %c0_i32_0 = arith.constant 0 : i32
    %c0_i32_1 = arith.constant 0 : i32
    %c0_i32_2 = arith.constant 0 : i32
    return %c0_i32, %c0_i32_0, %c0_i32_1 : i32, i32, i32
  }
  func.func @transform_4(%arg0: i32) -> (i32, i32, i32) {
    %c0_i32 = arith.constant 0 : i32
    %c0_i32_0 = arith.constant 0 : i32
    %c0_i32_1 = arith.constant 0 : i32
    %c0_i32_2 = arith.constant 0 : i32
    return %c0_i32, %c0_i32_0, %c0_i32_1 : i32, i32, i32
  }
  func.func @transform_5(%arg0: i32) -> (i32, i32, i32) {
    %c0_i32 = arith.constant 0 : i32
    %c0_i32_0 = arith.constant 0 : i32
    %c0_i32_1 = arith.constant 0 : i32
    %c0_i32_2 = arith.constant 0 : i32
    return %c0_i32, %c0_i32_0, %c0_i32_1 : i32, i32, i32
  }
  func.func @transform_6(%arg0: i32) -> (i32, i32) {
    %c0_i32 = arith.constant 0 : i32
    %c0_i32_0 = arith.constant 0 : i32
    return %c0_i32, %arg0 : i32, i32
  }
}

</mosaic_0001>

<llo_original>
// kernel: qnetwork_forward.1
$region0: #{qnetwork_forward.1}
  #allocation0 [shape = 'u32[]', space=smem, size = 0x4, offset = 0x4, fixed_abs, tag = 'smem constant byte address 0x4 - core index']
  #allocation1 [shape = 'u32[144,128]{1,0:T(1,128)}', space=vmem, size = 0x12000, scoped, tag = 'internal scratch']
  %s0 = inlined_call_operand.vmem [shape: bf16[512,256], index: 0, kind: input, shape index: {}]
  %s1 = inlined_call_operand.vmem [shape: bf16[1024,512], index: 1, kind: input, shape index: {}]
  %s2 = inlined_call_operand.hbm [shape: bf16[2,512,512], index: 2, kind: input, shape index: {}]
  %s3 = inlined_call_operand.hbm [shape: bf16[2,512,512], index: 3, kind: input, shape index: {}]
  %s4 = inlined_call_operand.vmem [shape: bf16[2,8,512], index: 4, kind: input, shape index: {}]
  %s5 = inlined_call_operand.vmem [shape: f32[2,512,8], index: 5, kind: input, shape index: {}]
  %s6 = inlined_call_operand.vmem [shape: f32[2,256], index: 6, kind: output, shape index: {}]
  %s7 = sld [smem:[#allocation0]]
  $region106: #{qnetwork_forward.1} parent=0
    _
  %s9 = ssub.s32 1, %s7
  %s10 = scalar_select 0, %s9, %s7
  $region1: #{qnetwork_forward.1} parent=0
    #allocation2 [shape = 'u8[262144]{0}', space=vmem, size = 0x40000, scoped, tag = 'input window, operand 0']
    #allocation3 [shape = 'u8[1048576]{0}', space=vmem, size = 0x100000, scoped, tag = 'input window, operand 2, single buffered']
    #allocation4 [shape = 's32[2]{0}', space=sflag, size = 0x8, scoped, tag = 'scoped memory for qnetwork_forward.1']
    #allocation5 [shape = 'u8[1048576]{0}', space=vmem, size = 0x100000, scoped, tag = 'input window, operand 3, single buffered']
    #allocation6 [shape = 's32[1]{0}', space=sflag, size = 0x4, scoped, tag = 'scoped memory for qnetwork_forward.1']
    %11 = vsyncpa [#allocation4], 0
    %12 = vsyncpa [#allocation6], 0
    loop: start=0, step=1, limit=4
    $region2: #{qnetwork_forward.1} parent=1 // loop_pre_header
      _
    $region3: #{qnetwork_forward.1} parent=1 // loop_header
      %s14 = sphi 0, %s18
      %p15 = scmp.ge.s32.totalorder %s14, 4
      %s24 = sphi 0, %s26
      %s27 = sphi 0, %s24
      %s28 = sphi 0, %s27
      %s44 = sphi 0, %s28
      %s48 = sphi 0, %s48
      %s50 = sphi 0, %s48
      %s51 = sphi 0, %s50
      %s65 = sphi 0, %s51
      %s69 = sphi 0, %s69
      %s71 = sphi 0, %s69
      %s72 = sphi 0, %s71
      %s86 = sphi 0, %s72
      %s90 = sphi 0, %s90
      %s92 = sphi 0, %s90
      %s93 = sphi 0, %s92
      %s107 = sphi 0, %s93
      %s111 = sphi 0, %s111
      %s113 = sphi 0, %s111
      %s114 = sphi 0, %s113
      %s128 = sphi 0, %s114
      %s132 = sphi 0, %s132
      %s134 = sphi 0, %s132
      %s135 = sphi 0, %s134
      %s149 = sphi 0, %s135
      %s155 = sphi 0, %s157
      %s158 = sphi 0, %s155
      %s159 = sphi 0, %s158
      %s175 = sphi 0, %s159
    $region4: #{qnetwork_forward.1} parent=1 // loop_header_branch
      %17 = sbr.rel (%p15) target = $region8
    $region5: #{qnetwork_forward.1} parent=1 // loop_body
      %s19 = ssub.s32 %s14, 1
      %s20 = ssub.s32 %s14, 2
      %s21 = sadd.s32 %s14, 1
      %s22 = ssub.s32 %s14, %s21
      %p23 = scmp.eq.s32.totalorder %s22, 0
      %s25 = sadd.s32 %s24, 1
      %s26 = scalar_select %p23, %s24, %s25
      %p29 = pneg %p23
      %p30 = scmp.eq.s32.totalorder %s14, 1
      %p31 = por %p29, %p30
      %p32 = scmp.ne.s32.totalorder %s24, %s27
      %p33 = scmp.eq.s32.totalorder %s14, 0
      %p34 = por %p32, %p33
      %p35 = scmp.ne.s32.totalorder %s24, %s27
      %p36 = scmp.eq.s32.totalorder %s19, 1
      %p37 = por %p35, %p36
      %p38 = scmp.ne.s32.totalorder %s27, %s28
      %p39 = scmp.eq.s32.totalorder %s19, 0
      %p40 = por %p38, %p39
      %p41 = scmp.ne.s32.totalorder %s27, %s28
      %p42 = scmp.eq.s32.totalorder %s20, 1
      %p43 = por %p41, %p42
      %p45 = scmp.ne.s32.totalorder %s28, %s44
      %p46 = scmp.eq.s32.totalorder %s20, 0
      %p47 = por %p45, %p46
      %s49 = sadd.s32 %s48, 1
      %p52 = scmp.eq.s32.totalorder %s14, 1
      %p53 = scmp.ne.s32.totalorder %s48, %s50
      %p54 = scmp.eq.s32.totalorder %s14, 0
      %p55 = por %p53, %p54
      %p56 = scmp.ne.s32.totalorder %s48, %s50
      %p57 = scmp.eq.s32.totalorder %s19, 1
      %p58 = por %p56, %p57
      %p59 = scmp.ne.s32.totalorder %s50, %s51
      %p60 = scmp.eq.s32.totalorder %s19, 0
      %p61 = por %p59, %p60
      %p62 = scmp.ne.s32.totalorder %s50, %s51
      %p63 = scmp.eq.s32.totalorder %s20, 1
      %p64 = por %p62, %p63
      %p66 = scmp.ne.s32.totalorder %s51, %s65
      %p67 = scmp.eq.s32.totalorder %s20, 0
      %p68 = por %p66, %p67
      %s70 = sadd.s32 %s69, 1
      %p73 = scmp.eq.s32.totalorder %s14, 1
      %p74 = scmp.ne.s32.totalorder %s69, %s71
      %p75 = scmp.eq.s32.totalorder %s14, 0
      %p76 = por %p74, %p75
      %p77 = scmp.ne.s32.totalorder %s69, %s71
      %p78 = scmp.eq.s32.totalorder %s19, 1
      %p79 = por %p77, %p78
      %p80 = scmp.ne.s32.totalorder %s71, %s72
      %p81 = scmp.eq.s32.totalorder %s19, 0
      %p82 = por %p80, %p81
      %p83 = scmp.ne.s32.totalorder %s71, %s72
      %p84 = scmp.eq.s32.totalorder %s20, 1
      %p85 = por %p83, %p84
      %p87 = scmp.ne.s32.totalorder %s72, %s86
      %p88 = scmp.eq.s32.totalorder %s20, 0
      %p89 = por %p87, %p88
      %s91 = sadd.s32 %s90, 1
      %p94 = scmp.eq.s32.totalorder %s14, 1
      %p95 = scmp.ne.s32.totalorder %s90, %s92
      %p96 = scmp.eq.s32.totalorder %s14, 0
      %p97 = por %p95, %p96
      %p98 = scmp.ne.s32.totalorder %s90, %s92
      %p99 = scmp.eq.s32.totalorder %s19, 1
      %p100 = por %p98, %p99
      %p101 = scmp.ne.s32.totalorder %s92, %s93
      %p102 = scmp.eq.s32.totalorder %s19, 0
      %p103 = por %p101, %p102
      %p104 = scmp.ne.s32.totalorder %s92, %s93
      %p105 = scmp.eq.s32.totalorder %s20, 1
      %p106 = por %p104, %p105
      %p108 = scmp.ne.s32.totalorder %s93, %s107
      %p109 = scmp.eq.s32.totalorder %s20, 0
      %p110 = por %p108, %p109
      %s112 = sadd.s32 %s111, 1
      %p115 = scmp.eq.s32.totalorder %s14, 1
      %p116 = scmp.ne.s32.totalorder %s111, %s113
      %p117 = scmp.eq.s32.totalorder %s14, 0
      %p118 = por %p116, %p117
      %p119 = scmp.ne.s32.totalorder %s111, %s113
      %p120 = scmp.eq.s32.totalorder %s19, 1
      %p121 = por %p119, %p120
      %p122 = scmp.ne.s32.totalorder %s113, %s114
      %p123 = scmp.eq.s32.totalorder %s19, 0
      %p124 = por %p122, %p123
      %p125 = scmp.ne.s32.totalorder %s113, %s114
      %p126 = scmp.eq.s32.totalorder %s20, 1
      %p127 = por %p125, %p126
      %p129 = scmp.ne.s32.totalorder %s114, %s128
      %p130 = scmp.eq.s32.totalorder %s20, 0
      %p131 = por %p129, %p130
      %s133 = sadd.s32 %s132, 1
      %p136 = scmp.eq.s32.totalorder %s14, 1
      %p137 = scmp.ne.s32.totalorder %s132, %s134
      %p138 = scmp.eq.s32.totalorder %s14, 0
      %p139 = por %p137, %p138
      %p140 = scmp.ne.s32.totalorder %s132, %s134
      %p141 = scmp.eq.s32.totalorder %s19, 1
      %p142 = por %p140, %p141
      %p143 = scmp.ne.s32.totalorder %s134, %s135
      %p144 = scmp.eq.s32.totalorder %s19, 0
      %p145 = por %p143, %p144
      %p146 = scmp.ne.s32.totalorder %s134, %s135
      %p147 = scmp.eq.s32.totalorder %s20, 1
      %p148 = por %p146, %p147
      %p150 = scmp.ne.s32.totalorder %s135, %s149
      %p151 = scmp.eq.s32.totalorder %s20, 0
      %p152 = por %p150, %p151
      %s153 = ssub.s32 %s14, %s21
      %p154 = scmp.eq.s32.totalorder %s153, 0
      %s156 = sadd.s32 %s155, 1
      %s157 = scalar_select %p154, %s155, %s156
      %p160 = pneg %p154
      %p161 = scmp.eq.s32.totalorder %s14, 1
      %p162 = por %p160, %p161
      %p163 = scmp.ne.s32.totalorder %s155, %s158
      %p164 = scmp.eq.s32.totalorder %s14, 0
      %p165 = por %p163, %p164
      %p166 = scmp.ne.s32.totalorder %s155, %s158
      %p167 = scmp.eq.s32.totalorder %s19, 1
      %p168 = por %p166, %p167
      %p169 = scmp.ne.s32.totalorder %s158, %s159
      %p170 = scmp.eq.s32.totalorder %s19, 0
      %p171 = por %p169, %p170
      %p172 = scmp.ne.s32.totalorder %s158, %s159
      %p173 = scmp.eq.s32.totalorder %s20, 1
      %p174 = por %p172, %p173
      %p176 = scmp.ne.s32.totalorder %s159, %s175
      %p177 = scmp.eq.s32.totalorder %s20, 0
      %p178 = por %p176, %p177
      %p179 = scmp.le.s32.totalorder 1, %s14
      %p180 = scmp.lt.s32.totalorder %s14, 3
      %p181 = pnand %p179, %p180
      %p182 = pneg %p181
      // Predicated region
      $region9: #{qnetwork_forward.1} parent=5 // pred_check
        _
      $region10: #{qnetwork_forward.1} parent=5 // pred_check_branch
        %184 = sbr.rel (%p181) target = $region12
      $region11: #{qnetwork_forward.1} parent=5 // pred_region
        %s185 = ssub.s32 %s14, 1
        // Predicated region
        $region13: #{qnetwork_forward.1} parent=11 // pred_check
          %p186 = pneg %p61
        $region14: #{qnetwork_forward.1} parent=11 // pred_check_branch
          %188 = sbr.rel (%p186) target = $region16
        $region15: #{qnetwork_forward.1} parent=11 // pred_region
          _
        $region16: #{qnetwork_forward.1} parent=11 // pred_fallthru
          _
        // Predicated region
        $region17: #{qnetwork_forward.1} parent=11 // pred_check
          %p189 = pneg %p82
        $region18: #{qnetwork_forward.1} parent=11 // pred_check_branch
          %191 = sbr.rel (%p189) target = $region20
        $region19: #{qnetwork_forward.1} parent=11 // pred_region
          %s193 = ssub.s32 32768, 32768
          %194 = vsyncadd [#allocation4], %s193
          %s195 = sshll.u32 [#allocation3], 4
          %s196 = int_to_ptr.vmem [resolvable:$true] %s195
          %201 = dma.hbm_to_vmem [thread:$0]  %s2, 32768, %s196, [#allocation4], 256, 256, 16
        $region20: #{qnetwork_forward.1} parent=11 // pred_fallthru
          _
        // Predicated region
        $region21: #{qnetwork_forward.1} parent=11 // pred_check
          %p202 = pneg %p103
        $region22: #{qnetwork_forward.1} parent=11 // pred_check_branch
          %204 = sbr.rel (%p202) target = $region24
        $region23: #{qnetwork_forward.1} parent=11 // pred_region
          %s206 = ssub.s32 32768, 32768
          %207 = vsyncadd [#allocation6], %s206
          %s208 = sshll.u32 [#allocation5], 4
          %s209 = int_to_ptr.vmem [resolvable:$true] %s208
          %214 = dma.hbm_to_vmem [thread:$0]  %s3, 32768, %s209, [#allocation6], 256, 256, 16
        $region24: #{qnetwork_forward.1} parent=11 // pred_fallthru
          _
        // Predicated region
        $region25: #{qnetwork_forward.1} parent=11 // pred_check
          %p215 = pneg %p124
        $region26: #{qnetwork_forward.1} parent=11 // pred_check_branch
          %217 = sbr.rel (%p215) target = $region28
        $region27: #{qnetwork_forward.1} parent=11 // pred_region
          _
        $region28: #{qnetwork_forward.1} parent=11 // pred_fallthru
          _
        // Predicated region
        $region29: #{qnetwork_forward.1} parent=11 // pred_check
          %p218 = pneg %p145
        $region30: #{qnetwork_forward.1} parent=11 // pred_check_branch
          %220 = sbr.rel (%p218) target = $region32
        $region31: #{qnetwork_forward.1} parent=11 // pred_region
          _
        $region32: #{qnetwork_forward.1} parent=11 // pred_fallthru
          _
      $region12: #{qnetwork_forward.1} parent=5 // pred_fallthru
        _
      %p221 = scmp.lt.s32.totalorder %s14, 2
      // Predicated region
      $region33: #{qnetwork_forward.1} parent=5 // pred_check
        %p222 = pneg %p221
      $region34: #{qnetwork_forward.1} parent=5 // pred_check_branch
        %224 = sbr.rel (%p222) target = $region36
      $region35: #{qnetwork_forward.1} parent=5 // pred_region
        // Predicated region
        $region37: #{qnetwork_forward.1} parent=35 // pred_check
          %p225 = pneg %p34
        $region38: #{qnetwork_forward.1} parent=35 // pred_check_branch
          %227 = sbr.rel (%p225) target = $region40
        $region39: #{qnetwork_forward.1} parent=35 // pred_region
          %s228 = sand.u32 %s24, 1
          %s229 = sand.u32 %s24, 1
          %s230 = smul.addr %s229, 256
          %s231 = scalar_lea.vmem [#allocation2], %s230
          %s232 = smul.addr %s14, 4
          %s233 = scalar_lea.vmem %s0, %s232
          // Predicated region
          $region41: #{qnetwork_forward.1} parent=39 // pred_check
            _
          $region42: #{qnetwork_forward.1} parent=39 // pred_check_branch
            %235 = sbr.rel (0) target = $region44
          $region43: #{qnetwork_forward.1} parent=39 // pred_region
            // Predicated region
            $region45: #{qnetwork_forward.1} parent=43 // pred_check
              _
            $region46: #{qnetwork_forward.1} parent=43 // pred_check_branch
              %237 = sbr.rel target = $region48
            $region47: #{qnetwork_forward.1} parent=43 // pred_region
              // Predicated region
              $region60: #{qnetwork_forward.1} parent=47 // pred_check
                _
              $region61: #{qnetwork_forward.1} parent=47 // pred_check_branch
                %379 = sbr.rel (0) target = $region63
              $region62: #{qnetwork_forward.1} parent=47 // pred_region
                loop: start=0, step=1, limit=1
                $region64: #{qnetwork_forward.1} parent=62 // loop_pre_header
                  _
                $region65: #{qnetwork_forward.1} parent=62 // loop_header
                  %s381 = sphi 0, %s385
                  %p382 = scmp.ge.s32.totalorder %s381, 1
                  %s386 = sphi %s233, %s233
                  %s387 = sphi %s231, %s231
                $region66: #{qnetwork_forward.1} parent=62 // loop_header_branch
                  %384 = sbr.rel (%p382) target = $region70
                $region67: #{qnetwork_forward.1} parent=62 // loop_body
                  _
                $region68: #{qnetwork_forward.1} parent=62 // loop_footer
                  %s385 = sadd.s32 1, %s381
                $region69: #{qnetwork_forward.1} parent=62 // loop_footer_branch
                  %380 = sbr.rel target = $region65
                $region70: #{qnetwork_forward.1} parent=62 // loop_exit
                  _
                %s389 = ssub.s32 16, 1
                loop: start=0, step=1, limit=1
                $region71: #{qnetwork_forward.1} parent=62 // loop_pre_header
                  _
                $region72: #{qnetwork_forward.1} parent=62 // loop_header
                  %s391 = sphi 0, %s395
                  %p392 = scmp.ge.s32.totalorder %s391, 1
                  %s396 = sphi %s233, %s233
                  %s397 = sphi %s231, %s231
                $region73: #{qnetwork_forward.1} parent=62 // loop_header_branch
                  %394 = sbr.rel (%p392) target = $region77
                $region74: #{qnetwork_forward.1} parent=62 // loop_body
                  %v398 = vld [vmem:[%s396] sm:%s389]
                  %399 = vst [vmem:[%s397] sm:%s389] %v398
                  %v400 = vld [vmem:[%s396 + $0x8] sm:%s389]
                  %401 = vst [vmem:[%s397 + $0x4] sm:%s389] %v400
                  %v402 = vld [vmem:[%s396 + $0x10] sm:%s389]
                  %403 = vst [vmem:[%s397 + $0x8] sm:%s389] %v402
                  %v404 = vld [vmem:[%s396 + $0x18] sm:%s389]
                  %405 = vst [vmem:[%s397 + $0xc] sm:%s389] %v404
                  %v406 = vld [vmem:[%s396 + $0x20] sm:%s389]
                  %407 = vst [vmem:[%s397 + $0x10] sm:%s389] %v406
                  %v408 = vld [vmem:[%s396 + $0x28] sm:%s389]
                  %409 = vst [vmem:[%s397 + $0x14] sm:%s389] %v408
                  %v410 = vld [vmem:[%s396 + $0x30] sm:%s389]
                  %411 = vst [vmem:[%s397 + $0x18] sm:%s389] %v410
                  %v412 = vld [vmem:[%s396 + $0x38] sm:%s389]
                  %413 = vst [vmem:[%s397 + $0x1c] sm:%s389] %v412
                  %v414 = vld [vmem:[%s396 + $0x40] sm:%s389]
                  %415 = vst [vmem:[%s397 + $0x20] sm:%s389] %v414
                  %v416 = vld [vmem:[%s396 + $0x48] sm:%s389]
                  %417 = vst [vmem:[%s397 + $0x24] sm:%s389] %v416
                  %v418 = vld [vmem:[%s396 + $0x50] sm:%s389]
                  %419 = vst [vmem:[%s397 + $0x28] sm:%s389] %v418
                  %v420 = vld [vmem:[%s396 + $0x58] sm:%s389]
                  %421 = vst [vmem:[%s397 + $0x2c] sm:%s389] %v420
                  %v422 = vld [vmem:[%s396 + $0x60] sm:%s389]
                  %423 = vst [vmem:[%s397 + $0x30] sm:%s389] %v422
                  %v424 = vld [vmem:[%s396 + $0x68] sm:%s389]
                  %425 = vst [vmem:[%s397 + $0x34] sm:%s389] %v424
                  %v426 = vld [vmem:[%s396 + $0x70] sm:%s389]
                  %427 = vst [vmem:[%s397 + $0x38] sm:%s389] %v426
                  %v428 = vld [vmem:[%s396 + $0x78] sm:%s389]
                  %429 = vst [vmem:[%s397 + $0x3c] sm:%s389] %v428
                  %v430 = vld [vmem:[%s396 + $0x80] sm:%s389]
                  %431 = vst [vmem:[%s397 + $0x40] sm:%s389] %v430
                  %v432 = vld [vmem:[%s396 + $0x88] sm:%s389]
                  %433 = vst [vmem:[%s397 + $0x44] sm:%s389] %v432
                  %v434 = vld [vmem:[%s396 + $0x90] sm:%s389]
                  %435 = vst [vmem:[%s397 + $0x48] sm:%s389] %v434
                  %v436 = vld [vmem:[%s396 + $0x98] sm:%s389]
                  %437 = vst [vmem:[%s397 + $0x4c] sm:%s389] %v436
                  %v438 = vld [vmem:[%s396 + $0xa0] sm:%s389]
                  %439 = vst [vmem:[%s397 + $0x50] sm:%s389] %v438
                  %v440 = vld [vmem:[%s396 + $0xa8] sm:%s389]
                  %441 = vst [vmem:[%s397 + $0x54] sm:%s389] %v440
                  %v442 = vld [vmem:[%s396 + $0xb0] sm:%s389]
                  %443 = vst [vmem:[%s397 + $0x58] sm:%s389] %v442
                  %v444 = vld [vmem:[%s396 + $0xb8] sm:%s389]
                  %445 = vst [vmem:[%s397 + $0x5c] sm:%s389] %v444
                  %v446 = vld [vmem:[%s396 + $0xc0] sm:%s389]
                  %447 = vst [vmem:[%s397 + $0x60] sm:%s389] %v446
                  %v448 = vld [vmem:[%s396 + $0xc8] sm:%s389]
                  %449 = vst [vmem:[%s397 + $0x64] sm:%s389] %v448
                  %v450 = vld [vmem:[%s396 + $0xd0] sm:%s389]
                  %451 = vst [vmem:[%s397 + $0x68] sm:%s389] %v450
                  %v452 = vld [vmem:[%s396 + $0xd8] sm:%s389]
                  %453 = vst [vmem:[%s397 + $0x6c] sm:%s389] %v452
                  %v454 = vld [vmem:[%s396 + $0xe0] sm:%s389]
                  %455 = vst [vmem:[%s397 + $0x70] sm:%s389] %v454
                  %v456 = vld [vmem:[%s396 + $0xe8] sm:%s389]
                  %457 = vst [vmem:[%s397 + $0x74] sm:%s389] %v456
                  %v458 = vld [vmem:[%s396 + $0xf0] sm:%s389]
                  %459 = vst [vmem:[%s397 + $0x78] sm:%s389] %v458
                  %v460 = vld [vmem:[%s396 + $0xf8] sm:%s389]
                  %461 = vst [vmem:[%s397 + $0x7c] sm:%s389] %v460
                  %v462 = vld [vmem:[%s396 + $0x100] sm:%s389]
                  %463 = vst [vmem:[%s397 + $0x80] sm:%s389] %v462
                  %v464 = vld [vmem:[%s396 + $0x108] sm:%s389]
                  %465 = vst [vmem:[%s397 + $0x84] sm:%s389] %v464
                  %v466 = vld [vmem:[%s396 + $0x110] sm:%s389]
                  %467 = vst [vmem:[%s397 + $0x88] sm:%s389] %v466
                  %v468 = vld [vmem:[%s396 + $0x118] sm:%s389]
                  %469 = vst [vmem:[%s397 + $0x8c] sm:%s389] %v468
                  %v470 = vld [vmem:[%s396 + $0x120] sm:%s389]
                  %471 = vst [vmem:[%s397 + $0x90] sm:%s389] %v470
                  %v472 = vld [vmem:[%s396 + $0x128] sm:%s389]
                  %473 = vst [vmem:[%s397 + $0x94] sm:%s389] %v472
                  %v474 = vld [vmem:[%s396 + $0x130] sm:%s389]
                  %475 = vst [vmem:[%s397 + $0x98] sm:%s389] %v474
                  %v476 = vld [vmem:[%s396 + $0x138] sm:%s389]
                  %477 = vst [vmem:[%s397 + $0x9c] sm:%s389] %v476
                  %v478 = vld [vmem:[%s396 + $0x140] sm:%s389]
                  %479 = vst [vmem:[%s397 + $0xa0] sm:%s389] %v478
                  %v480 = vld [vmem:[%s396 + $0x148] sm:%s389]
                  %481 = vst [vmem:[%s397 + $0xa4] sm:%s389] %v480
                  %v482 = vld [vmem:[%s396 + $0x150] sm:%s389]
                  %483 = vst [vmem:[%s397 + $0xa8] sm:%s389] %v482
                  %v484 = vld [vmem:[%s396 + $0x158] sm:%s389]
                  %485 = vst [vmem:[%s397 + $0xac] sm:%s389] %v484
                  %v486 = vld [vmem:[%s396 + $0x160] sm:%s389]
                  %487 = vst [vmem:[%s397 + $0xb0] sm:%s389] %v486
                  %v488 = vld [vmem:[%s396 + $0x168] sm:%s389]
                  %489 = vst [vmem:[%s397 + $0xb4] sm:%s389] %v488
                  %v490 = vld [vmem:[%s396 + $0x170] sm:%s389]
                  %491 = vst [vmem:[%s397 + $0xb8] sm:%s389] %v490
                  %v492 = vld [vmem:[%s396 + $0x178] sm:%s389]
                  %493 = vst [vmem:[%s397 + $0xbc] sm:%s389] %v492
                  %v494 = vld [vmem:[%s396 + $0x180] sm:%s389]
                  %495 = vst [vmem:[%s397 + $0xc0] sm:%s389] %v494
                  %v496 = vld [vmem:[%s396 + $0x188] sm:%s389]
                  %497 = vst [vmem:[%s397 + $0xc4] sm:%s389] %v496
                  %v498 = vld [vmem:[%s396 + $0x190] sm:%s389]
                  %499 = vst [vmem:[%s397 + $0xc8] sm:%s389] %v498
                  %v500 = vld [vmem:[%s396 + $0x198] sm:%s389]
                  %501 = vst [vmem:[%s397 + $0xcc] sm:%s389] %v500
                  %v502 = vld [vmem:[%s396 + $0x1a0] sm:%s389]
                  %503 = vst [vmem:[%s397 + $0xd0] sm:%s389] %v502
                  %v504 = vld [vmem:[%s396 + $0x1a8] sm:%s389]
                  %505 = vst [vmem:[%s397 + $0xd4] sm:%s389] %v504
                  %v506 = vld [vmem:[%s396 + $0x1b0] sm:%s389]
                  %507 = vst [vmem:[%s397 + $0xd8] sm:%s389] %v506
                  %v508 = vld [vmem:[%s396 + $0x1b8] sm:%s389]
                  %509 = vst [vmem:[%s397 + $0xdc] sm:%s389] %v508
                  %v510 = vld [vmem:[%s396 + $0x1c0] sm:%s389]
                  %511 = vst [vmem:[%s397 + $0xe0] sm:%s389] %v510
                  %v512 = vld [vmem:[%s396 + $0x1c8] sm:%s389]
                  %513 = vst [vmem:[%s397 + $0xe4] sm:%s389] %v512
                  %v514 = vld [vmem:[%s396 + $0x1d0] sm:%s389]
                  %515 = vst [vmem:[%s397 + $0xe8] sm:%s389] %v514
                  %v516 = vld [vmem:[%s396 + $0x1d8] sm:%s389]
                  %517 = vst [vmem:[%s397 + $0xec] sm:%s389] %v516
                  %v518 = vld [vmem:[%s396 + $0x1e0] sm:%s389]
                  %519 = vst [vmem:[%s397 + $0xf0] sm:%s389] %v518
                  %v520 = vld [vmem:[%s396 + $0x1e8] sm:%s389]
                  %521 = vst [vmem:[%s397 + $0xf4] sm:%s389] %v520
                  %v522 = vld [vmem:[%s396 + $0x1f0] sm:%s389]
                  %523 = vst [vmem:[%s397 + $0xf8] sm:%s389] %v522
                  %v524 = vld [vmem:[%s396 + $0x1f8] sm:%s389]
                  %525 = vst [vmem:[%s397 + $0xfc] sm:%s389] %v524
                $region75: #{qnetwork_forward.1} parent=62 // loop_footer
                  %s395 = sadd.s32 1, %s391
                $region76: #{qnetwork_forward.1} parent=62 // loop_footer_branch
                  %390 = sbr.rel target = $region72
                $region77: #{qnetwork_forward.1} parent=62 // loop_exit
                  _
              $region63: #{qnetwork_forward.1} parent=47 // pred_fallthru
                _
            $region48: #{qnetwork_forward.1} parent=43 // pred_fallthru
              _
            // Predicated region
            $region49: #{qnetwork_forward.1} parent=43 // pred_check
              _
            $region50: #{qnetwork_forward.1} parent=43 // pred_check_branch
              %239 = sbr.rel (0) target = $region52
            $region51: #{qnetwork_forward.1} parent=43 // pred_region
              %s241 = ssub.s32 16, 1
              loop: start=0, step=1, limit=1
              $region53: #{qnetwork_forward.1} parent=51 // loop_pre_header
                _
              $region54: #{qnetwork_forward.1} parent=51 // loop_header
                %s243 = sphi 0, %s247
                %p244 = scmp.ge.s32.totalorder %s243, 1
                %s248 = sphi %s233, %s233
                %s249 = sphi %s231, %s231
              $region55: #{qnetwork_forward.1} parent=51 // loop_header_branch
                %246 = sbr.rel (%p244) target = $region59
              $region56: #{qnetwork_forward.1} parent=51 // loop_body
                %v250 = vld [vmem:[%s248] sm:%s241]
                %251 = vst [vmem:[%s249] sm:%s241] %v250
                %v252 = vld [vmem:[%s248 + $0x8] sm:%s241]
                %253 = vst [vmem:[%s249 + $0x4] sm:%s241] %v252
                %v254 = vld [vmem:[%s248 + $0x10] sm:%s241]
                %255 = vst [vmem:[%s249 + $0x8] sm:%s241] %v254
                %v256 = vld [vmem:[%s248 + $0x18] sm:%s241]
                %257 = vst [vmem:[%s249 + $0xc] sm:%s241] %v256
                %v258 = vld [vmem:[%s248 + $0x20] sm:%s241]
                %259 = vst [vmem:[%s249 + $0x10] sm:%s241] %v258
                %v260 = vld [vmem:[%s248 + $0x28] sm:%s241]
                %261 = vst [vmem:[%s249 + $0x14] sm:%s241] %v260
                %v262 = vld [vmem:[%s248 + $0x30] sm:%s241]
                %263 = vst [vmem:[%s249 + $0x18] sm:%s241] %v262
                %v264 = vld [vmem:[%s248 + $0x38] sm:%s241]
                %265 = vst [vmem:[%s249 + $0x1c] sm:%s241] %v264
                %v266 = vld [vmem:[%s248 + $0x40] sm:%s241]
                %267 = vst [vmem:[%s249 + $0x20] sm:%s241] %v266
                %v268 = vld [vmem:[%s248 + $0x48] sm:%s241]
                %269 = vst [vmem:[%s249 + $0x24] sm:%s241] %v268
                %v270 = vld [vmem:[%s248 + $0x50] sm:%s241]
                %271 = vst [vmem:[%s249 + $0x28] sm:%s241] %v270
                %v272 = vld [vmem:[%s248 + $0x58] sm:%s241]
                %273 = vst [vmem:[%s249 + $0x2c] sm:%s241] %v272
                %v274 = vld [vmem:[%s248 + $0x60] sm:%s241]
                %275 = vst [vmem:[%s249 + $0x30] sm:%s241] %v274
                %v276 = vld [vmem:[%s248 + $0x68] sm:%s241]
                %277 = vst [vmem:[%s249 + $0x34] sm:%s241] %v276
                %v278 = vld [vmem:[%s248 + $0x70] sm:%s241]
                %279 = vst [vmem:[%s249 + $0x38] sm:%s241] %v278
                %v280 = vld [vmem:[%s248 + $0x78] sm:%s241]
                %281 = vst [vmem:[%s249 + $0x3c] sm:%s241] %v280
                %v282 = vld [vmem:[%s248 + $0x80] sm:%s241]
                %283 = vst [vmem:[%s249 + $0x40] sm:%s241] %v282
                %v284 = vld [vmem:[%s248 + $0x88] sm:%s241]
                %285 = vst [vmem:[%s249 + $0x44] sm:%s241] %v284
                %v286 = vld [vmem:[%s248 + $0x90] sm:%s241]
                %287 = vst [vmem:[%s249 + $0x48] sm:%s241] %v286
                %v288 = vld [vmem:[%s248 + $0x98] sm:%s241]
                %289 = vst [vmem:[%s249 + $0x4c] sm:%s241] %v288
                %v290 = vld [vmem:[%s248 + $0xa0] sm:%s241]
                %291 = vst [vmem:[%s249 + $0x50] sm:%s241] %v290
                %v292 = vld [vmem:[%s248 + $0xa8] sm:%s241]
                %293 = vst [vmem:[%s249 + $0x54] sm:%s241] %v292
                %v294 = vld [vmem:[%s248 + $0xb0] sm:%s241]
                %295 = vst [vmem:[%s249 + $0x58] sm:%s241] %v294
                %v296 = vld [vmem:[%s248 + $0xb8] sm:%s241]
                %297 = vst [vmem:[%s249 + $0x5c] sm:%s241] %v296
                %v298 = vld [vmem:[%s248 + $0xc0] sm:%s241]
                %299 = vst [vmem:[%s249 + $0x60] sm:%s241] %v298
                %v300 = vld [vmem:[%s248 + $0xc8] sm:%s241]
                %301 = vst [vmem:[%s249 + $0x64] sm:%s241] %v300
                %v302 = vld [vmem:[%s248 + $0xd0] sm:%s241]
                %303 = vst [vmem:[%s249 + $0x68] sm:%s241] %v302
                %v304 = vld [vmem:[%s248 + $0xd8] sm:%s241]
                %305 = vst [vmem:[%s249 + $0x6c] sm:%s241] %v304
                %v306 = vld [vmem:[%s248 + $0xe0] sm:%s241]
                %307 = vst [vmem:[%s249 + $0x70] sm:%s241] %v306
                %v308 = vld [vmem:[%s248 + $0xe8] sm:%s241]
                %309 = vst [vmem:[%s249 + $0x74] sm:%s241] %v308
                %v310 = vld [vmem:[%s248 + $0xf0] sm:%s241]
                %311 = vst [vmem:[%s249 + $0x78] sm:%s241] %v310
                %v312 = vld [vmem:[%s248 + $0xf8] sm:%s241]
                %313 = vst [vmem:[%s249 + $0x7c] sm:%s241] %v312
                %v314 = vld [vmem:[%s248 + $0x100] sm:%s241]
                %315 = vst [vmem:[%s249 + $0x80] sm:%s241] %v314
                %v316 = vld [vmem:[%s248 + $0x108] sm:%s241]
                %317 = vst [vmem:[%s249 + $0x84] sm:%s241] %v316
                %v318 = vld [vmem:[%s248 + $0x110] sm:%s241]
                %319 = vst [vmem:[%s249 + $0x88] sm:%s241] %v318
                %v320 = vld [vmem:[%s248 + $0x118] sm:%s241]
                %321 = vst [vmem:[%s249 + $0x8c] sm:%s241] %v320
                %v322 = vld [vmem:[%s248 + $0x120] sm:%s241]
                %323 = vst [vmem:[%s249 + $0x90] sm:%s241] %v322
                %v324 = vld [vmem:[%s248 + $0x128] sm:%s241]
                %325 = vst [vmem:[%s249 + $0x94] sm:%s241] %v324
                %v326 = vld [vmem:[%s248 + $0x130] sm:%s241]
                %327 = vst [vmem:[%s249 + $0x98] sm:%s241] %v326
                %v328 = vld [vmem:[%s248 + $0x138] sm:%s241]
                %329 = vst [vmem:[%s249 + $0x9c] sm:%s241] %v328
                %v330 = vld [vmem:[%s248 + $0x140] sm:%s241]
                %331 = vst [vmem:[%s249 + $0xa0] sm:%s241] %v330
                %v332 = vld [vmem:[%s248 + $0x148] sm:%s241]
                %333 = vst [vmem:[%s249 + $0xa4] sm:%s241] %v332
                %v334 = vld [vmem:[%s248 + $0x150] sm:%s241]
                %335 = vst [vmem:[%s249 + $0xa8] sm:%s241] %v334
                %v336 = vld [vmem:[%s248 + $0x158] sm:%s241]
                %337 = vst [vmem:[%s249 + $0xac] sm:%s241] %v336
                %v338 = vld [vmem:[%s248 + $0x160] sm:%s241]
                %339 = vst [vmem:[%s249 + $0xb0] sm:%s241] %v338
                %v340 = vld [vmem:[%s248 + $0x168] sm:%s241]
                %341 = vst [vmem:[%s249 + $0xb4] sm:%s241] %v340
                %v342 = vld [vmem:[%s248 + $0x170] sm:%s241]
                %343 = vst [vmem:[%s249 + $0xb8] sm:%s241] %v342
                %v344 = vld [vmem:[%s248 + $0x178] sm:%s241]
                %345 = vst [vmem:[%s249 + $0xbc] sm:%s241] %v344
                %v346 = vld [vmem:[%s248 + $0x180] sm:%s241]
                %347 = vst [vmem:[%s249 + $0xc0] sm:%s241] %v346
                %v348 = vld [vmem:[%s248 + $0x188] sm:%s241]
                %349 = vst [vmem:[%s249 + $0xc4] sm:%s241] %v348
                %v350 = vld [vmem:[%s248 + $0x190] sm:%s241]
                %351 = vst [vmem:[%s249 + $0xc8] sm:%s241] %v350
                %v352 = vld [vmem:[%s248 + $0x198] sm:%s241]
                %353 = vst [vmem:[%s249 + $0xcc] sm:%s241] %v352
                %v354 = vld [vmem:[%s248 + $0x1a0] sm:%s241]
                %355 = vst [vmem:[%s249 + $0xd0] sm:%s241] %v354
                %v356 = vld [vmem:[%s248 + $0x1a8] sm:%s241]
                %357 = vst [vmem:[%s249 + $0xd4] sm:%s241] %v356
                %v358 = vld [vmem:[%s248 + $0x1b0] sm:%s241]
                %359 = vst [vmem:[%s249 + $0xd8] sm:%s241] %v358
                %v360 = vld [vmem:[%s248 + $0x1b8] sm:%s241]
                %361 = vst [vmem:[%s249 + $0xdc] sm:%s241] %v360
                %v362 = vld [vmem:[%s248 + $0x1c0] sm:%s241]
                %363 = vst [vmem:[%s249 + $0xe0] sm:%s241] %v362
                %v364 = vld [vmem:[%s248 + $0x1c8] sm:%s241]
                %365 = vst [vmem:[%s249 + $0xe4] sm:%s241] %v364
                %v366 = vld [vmem:[%s248 + $0x1d0] sm:%s241]
                %367 = vst [vmem:[%s249 + $0xe8] sm:%s241] %v366
                %v368 = vld [vmem:[%s248 + $0x1d8] sm:%s241]
                %369 = vst [vmem:[%s249 + $0xec] sm:%s241] %v368
                %v370 = vld [vmem:[%s248 + $0x1e0] sm:%s241]
                %371 = vst [vmem:[%s249 + $0xf0] sm:%s241] %v370
                %v372 = vld [vmem:[%s248 + $0x1e8] sm:%s241]
                %373 = vst [vmem:[%s249 + $0xf4] sm:%s241] %v372
                %v374 = vld [vmem:[%s248 + $0x1f0] sm:%s241]
                %375 = vst [vmem:[%s249 + $0xf8] sm:%s241] %v374
                %v376 = vld [vmem:[%s248 + $0x1f8] sm:%s241]
                %377 = vst [vmem:[%s249 + $0xfc] sm:%s241] %v376
              $region57: #{qnetwork_forward.1} parent=51 // loop_footer
                %s247 = sadd.s32 1, %s243
              $region58: #{qnetwork_forward.1} parent=51 // loop_footer_branch
                %242 = sbr.rel target = $region54
              $region59: #{qnetwork_forward.1} parent=51 // loop_exit
                _
            $region52: #{qnetwork_forward.1} parent=43 // pred_fallthru
              _
          $region44: #{qnetwork_forward.1} parent=39 // pred_fallthru
            _
          %526 = vnop
        $region40: #{qnetwork_forward.1} parent=35 // pred_fallthru
          _
      $region36: #{qnetwork_forward.1} parent=5 // pred_fallthru
        _
      %p527 = scmp.le.s32.totalorder 1, %s14
      %p528 = scmp.lt.s32.totalorder %s14, 3
      %p529 = pnand %p527, %p528
      %p530 = pneg %p529
      // Predicated region
      $region78: #{qnetwork_forward.1} parent=5 // pred_check
        _
      $region79: #{qnetwork_forward.1} parent=5 // pred_check_branch
        %532 = sbr.rel (%p529) target = $region81
      $region80: #{qnetwork_forward.1} parent=5 // pred_region
        %s533 = ssub.s32 %s14, 1
        %s534 = sand.u32 %s27, 1
        %s535 = sand.u32 %s27, 1
        %s536 = smul.addr %s535, 256
        %s537 = scalar_lea.vmem [#allocation2], %s536
        // Predicated region
        $region82: #{qnetwork_forward.1} parent=80 // pred_check
          %p538 = pneg %p40
        $region83: #{qnetwork_forward.1} parent=80 // pred_check_branch
          %540 = sbr.rel (%p538) target = $region85
        $region84: #{qnetwork_forward.1} parent=80 // pred_region
          _
        $region85: #{qnetwork_forward.1} parent=80 // pred_fallthru
          _
        // Predicated region
        $region86: #{qnetwork_forward.1} parent=80 // pred_check
          %p541 = pneg %p82
        $region87: #{qnetwork_forward.1} parent=80 // pred_check_branch
          %543 = sbr.rel (%p541) target = $region89
        $region88: #{qnetwork_forward.1} parent=80 // pred_region
          %544 = dma.done [#allocation4], 32768
        $region89: #{qnetwork_forward.1} parent=80 // pred_fallthru
          _
        // Predicated region
        $region90: #{qnetwork_forward.1} parent=80 // pred_check
          %p545 = pneg %p103
        $region91: #{qnetwork_forward.1} parent=80 // pred_check_branch
          %547 = sbr.rel (%p545) target = $region93
        $region92: #{qnetwork_forward.1} parent=80 // pred_region
          %548 = dma.done [#allocation6], 32768
        $region93: #{qnetwork_forward.1} parent=80 // pred_fallthru
          _
        %s549 = sand.u32 %s27, 1
        %s550 = sand.u32 %s27, 1
        %s551 = smul.addr %s550, 256
        %s552 = scalar_lea.vmem [#allocation2], %s551
        %p553 = pneg %p40
        %p554 = pneg %p37
        %p555 = pneg %p61
        %p556 = pneg %p58
        %p557 = pneg %p82
        %p558 = pneg %p79
        %p559 = pneg %p103
        %p560 = pneg %p100
        %p561 = pneg %p124
        %p562 = pneg %p121
        %p563 = pneg %p145
        %p564 = pneg %p142
        %p565 = pneg %p171
        %p566 = pneg %p168
        %p567 = scmp.lt.s32.totalorder %s19, 1
        %s568 = scalar_select %p567, %s19, 1
        %s569 = smul.addr %s568, 2
        %s570 = scalar_lea.vmem %s6, %s569
        %p571 = scmp.lt.s32.totalorder %s19, 1
        %s572 = scalar_select %p571, %s19, 1
        %s573 = smul.addr %s572, 2
        %s574 = scalar_lea.vmem %s6, %s573
        %v576 = vld [vmem:[%s537] sm:$0xf]
        %v577 = vld [vmem:[%s537 + $0x4] sm:$0xf]
        %v578 = vld [vmem:[%s537 + $0x8] sm:$0xf]
        %v579 = vld [vmem:[%s537 + $0xc] sm:$0xf]
        %v580 = vld [vmem:[%s537 + $0x10] sm:$0xf]
        %v581 = vld [vmem:[%s537 + $0x14] sm:$0xf]
        %v582 = vld [vmem:[%s537 + $0x18] sm:$0xf]
        %v583 = vld [vmem:[%s537 + $0x1c] sm:$0xf]
        %v584 = vld [vmem:[%s537 + $0x20] sm:$0xf]
        %v585 = vld [vmem:[%s537 + $0x24] sm:$0xf]
        %v586 = vld [vmem:[%s537 + $0x28] sm:$0xf]
        %v587 = vld [vmem:[%s537 + $0x2c] sm:$0xf]
        %v588 = vld [vmem:[%s537 + $0x30] sm:$0xf]
        %v589 = vld [vmem:[%s537 + $0x34] sm:$0xf]
        %v590 = vld [vmem:[%s537 + $0x38] sm:$0xf]
        %v591 = vld [vmem:[%s537 + $0x3c] sm:$0xf]
        %v592 = vld [vmem:[%s537 + $0x40] sm:$0xf]
        %v593 = vld [vmem:[%s537 + $0x44] sm:$0xf]
        %v594 = vld [vmem:[%s537 + $0x48] sm:$0xf]
        %v595 = vld [vmem:[%s537 + $0x4c] sm:$0xf]
        %v596 = vld [vmem:[%s537 + $0x50] sm:$0xf]
        %v597 = vld [vmem:[%s537 + $0x54] sm:$0xf]
        %v598 = vld [vmem:[%s537 + $0x58] sm:$0xf]
        %v599 = vld [vmem:[%s537 + $0x5c] sm:$0xf]
        %v600 = vld [vmem:[%s537 + $0x60] sm:$0xf]
        %v601 = vld [vmem:[%s537 + $0x64] sm:$0xf]
        %v602 = vld [vmem:[%s537 + $0x68] sm:$0xf]
        %v603 = vld [vmem:[%s537 + $0x6c] sm:$0xf]
        %v604 = vld [vmem:[%s537 + $0x70] sm:$0xf]
        %v605 = vld [vmem:[%s537 + $0x74] sm:$0xf]
        %v606 = vld [vmem:[%s537 + $0x78] sm:$0xf]
        %v607 = vld [vmem:[%s537 + $0x7c] sm:$0xf]
        %v608 = vld [vmem:[%s537 + $0x80] sm:$0xf]
        %v609 = vld [vmem:[%s537 + $0x84] sm:$0xf]
        %v610 = vld [vmem:[%s537 + $0x88] sm:$0xf]
        %v611 = vld [vmem:[%s537 + $0x8c] sm:$0xf]
        %v612 = vld [vmem:[%s537 + $0x90] sm:$0xf]
        %v613 = vld [vmem:[%s537 + $0x94] sm:$0xf]
        %v614 = vld [vmem:[%s537 + $0x98] sm:$0xf]
        %v615 = vld [vmem:[%s537 + $0x9c] sm:$0xf]
        %v616 = vld [vmem:[%s537 + $0xa0] sm:$0xf]
        %v617 = vld [vmem:[%s537 + $0xa4] sm:$0xf]
        %v618 = vld [vmem:[%s537 + $0xa8] sm:$0xf]
        %v619 = vld [vmem:[%s537 + $0xac] sm:$0xf]
        %v620 = vld [vmem:[%s537 + $0xb0] sm:$0xf]
        %v621 = vld [vmem:[%s537 + $0xb4] sm:$0xf]
        %v622 = vld [vmem:[%s537 + $0xb8] sm:$0xf]
        %v623 = vld [vmem:[%s537 + $0xbc] sm:$0xf]
        %v624 = vld [vmem:[%s537 + $0xc0] sm:$0xf]
        %v625 = vld [vmem:[%s537 + $0xc4] sm:$0xf]
        %v626 = vld [vmem:[%s537 + $0xc8] sm:$0xf]
        %v627 = vld [vmem:[%s537 + $0xcc] sm:$0xf]
        %v628 = vld [vmem:[%s537 + $0xd0] sm:$0xf]
        %v629 = vld [vmem:[%s537 + $0xd4] sm:$0xf]
        %v630 = vld [vmem:[%s537 + $0xd8] sm:$0xf]
        %v631 = vld [vmem:[%s537 + $0xdc] sm:$0xf]
        %v632 = vld [vmem:[%s537 + $0xe0] sm:$0xf]
        %v633 = vld [vmem:[%s537 + $0xe4] sm:$0xf]
        %v634 = vld [vmem:[%s537 + $0xe8] sm:$0xf]
        %v635 = vld [vmem:[%s537 + $0xec] sm:$0xf]
        %v636 = vld [vmem:[%s537 + $0xf0] sm:$0xf]
        %v637 = vld [vmem:[%s537 + $0xf4] sm:$0xf]
        %v638 = vld [vmem:[%s537 + $0xf8] sm:$0xf]
        %v639 = vld [vmem:[%s537 + $0xfc] sm:$0xf]
        %v640 = vld [vmem:[%s1] sm:$0xff]
        %v641 = vld [vmem:[%s1 + $0x8] sm:$0xff]
        %v642 = vld [vmem:[%s1 + $0x10] sm:$0xff]
        %v643 = vld [vmem:[%s1 + $0x18] sm:$0xff]
        %v644 = vld [vmem:[%s1 + $0x20] sm:$0xff]
        %v645 = vld [vmem:[%s1 + $0x28] sm:$0xff]
        %v646 = vld [vmem:[%s1 + $0x30] sm:$0xff]
        %v647 = vld [vmem:[%s1 + $0x38] sm:$0xff]
        %v648 = vld [vmem:[%s1 + $0x40] sm:$0xff]
        %v649 = vld [vmem:[%s1 + $0x48] sm:$0xff]
        %v650 = vld [vmem:[%s1 + $0x50] sm:$0xff]
        %v651 = vld [vmem:[%s1 + $0x58] sm:$0xff]
        %v652 = vld [vmem:[%s1 + $0x60] sm:$0xff]
        %v653 = vld [vmem:[%s1 + $0x68] sm:$0xff]
        %v654 = vld [vmem:[%s1 + $0x70] sm:$0xff]
        %v655 = vld [vmem:[%s1 + $0x78] sm:$0xff]
        %v656 = vld [vmem:[%s1 + $0x80] sm:$0xff]
        %v657 = vld [vmem:[%s1 + $0x88] sm:$0xff]
        %v658 = vld [vmem:[%s1 + $0x90] sm:$0xff]
        %v659 = vld [vmem:[%s1 + $0x98] sm:$0xff]
        %v660 = vld [vmem:[%s1 + $0xa0] sm:$0xff]
        %v661 = vld [vmem:[%s1 + $0xa8] sm:$0xff]
        %v662 = vld [vmem:[%s1 + $0xb0] sm:$0xff]
        %v663 = vld [vmem:[%s1 + $0xb8] sm:$0xff]
        %v664 = vld [vmem:[%s1 + $0xc0] sm:$0xff]
        %v665 = vld [vmem:[%s1 + $0xc8] sm:$0xff]
        %v666 = vld [vmem:[%s1 + $0xd0] sm:$0xff]
        %v667 = vld [vmem:[%s1 + $0xd8] sm:$0xff]
        %v668 = vld [vmem:[%s1 + $0xe0] sm:$0xff]
        %v669 = vld [vmem:[%s1 + $0xe8] sm:$0xff]
        %v670 = vld [vmem:[%s1 + $0xf0] sm:$0xff]
        %v671 = vld [vmem:[%s1 + $0xf8] sm:$0xff]
        %v672 = vld [vmem:[%s1 + $0x100] sm:$0xff]
        %v673 = vld [vmem:[%s1 + $0x108] sm:$0xff]
        %v674 = vld [vmem:[%s1 + $0x110] sm:$0xff]
        %v675 = vld [vmem:[%s1 + $0x118] sm:$0xff]
        %v676 = vld [vmem:[%s1 + $0x120] sm:$0xff]
        %v677 = vld [vmem:[%s1 + $0x128] sm:$0xff]
        %v678 = vld [vmem:[%s1 + $0x130] sm:$0xff]
        %v679 = vld [vmem:[%s1 + $0x138] sm:$0xff]
        %v680 = vld [vmem:[%s1 + $0x140] sm:$0xff]
        %v681 = vld [vmem:[%s1 + $0x148] sm:$0xff]
        %v682 = vld [vmem:[%s1 + $0x150] sm:$0xff]
        %v683 = vld [vmem:[%s1 + $0x158] sm:$0xff]
        %v684 = vld [vmem:[%s1 + $0x160] sm:$0xff]
        %v685 = vld [vmem:[%s1 + $0x168] sm:$0xff]
        %v686 = vld [vmem:[%s1 + $0x170] sm:$0xff]
        %v687 = vld [vmem:[%s1 + $0x178] sm:$0xff]
        %v688 = vld [vmem:[%s1 + $0x180] sm:$0xff]
        %v689 = vld [vmem:[%s1 + $0x188] sm:$0xff]
        %v690 = vld [vmem:[%s1 + $0x190] sm:$0xff]
        %v691 = vld [vmem:[%s1 + $0x198] sm:$0xff]
        %v692 = vld [vmem:[%s1 + $0x1a0] sm:$0xff]
        %v693 = vld [vmem:[%s1 + $0x1a8] sm:$0xff]
        %v694 = vld [vmem:[%s1 + $0x1b0] sm:$0xff]
        %v695 = vld [vmem:[%s1 + $0x1b8] sm:$0xff]
        %v696 = vld [vmem:[%s1 + $0x1c0] sm:$0xff]
        %v697 = vld [vmem:[%s1 + $0x1c8] sm:$0xff]
        %v698 = vld [vmem:[%s1 + $0x1d0] sm:$0xff]
        %v699 = vld [vmem:[%s1 + $0x1d8] sm:$0xff]
        %v700 = vld [vmem:[%s1 + $0x1e0] sm:$0xff]
        %v701 = vld [vmem:[%s1 + $0x1e8] sm:$0xff]
        %v702 = vld [vmem:[%s1 + $0x1f0] sm:$0xff]
        %v703 = vld [vmem:[%s1 + $0x1f8] sm:$0xff]
        %v704 = vld [vmem:[%s1 + $0x200] sm:$0xff]
        %v705 = vld [vmem:[%s1 + $0x208] sm:$0xff]
        %v706 = vld [vmem:[%s1 + $0x210] sm:$0xff]
        %v707 = vld [vmem:[%s1 + $0x218] sm:$0xff]
        %v708 = vld [vmem:[%s1 + $0x220] sm:$0xff]
        %v709 = vld [vmem:[%s1 + $0x228] sm:$0xff]
        %v710 = vld [vmem:[%s1 + $0x230] sm:$0xff]
        %v711 = vld [vmem:[%s1 + $0x238] sm:$0xff]
        %v712 = vld [vmem:[%s1 + $0x240] sm:$0xff]
        %v713 = vld [vmem:[%s1 + $0x248] sm:$0xff]
        %v714 = vld [vmem:[%s1 + $0x250] sm:$0xff]
        %v715 = vld [vmem:[%s1 + $0x258] sm:$0xff]
        %v716 = vld [vmem:[%s1 + $0x260] sm:$0xff]
        %v717 = vld [vmem:[%s1 + $0x268] sm:$0xff]
        %v718 = vld [vmem:[%s1 + $0x270] sm:$0xff]
        %v719 = vld [vmem:[%s1 + $0x278] sm:$0xff]
        %v720 = vld [vmem:[%s1 + $0x280] sm:$0xff]
        %v721 = vld [vmem:[%s1 + $0x288] sm:$0xff]
        %v722 = vld [vmem:[%s1 + $0x290] sm:$0xff]
        %v723 = vld [vmem:[%s1 + $0x298] sm:$0xff]
        %v724 = vld [vmem:[%s1 + $0x2a0] sm:$0xff]
        %v725 = vld [vmem:[%s1 + $0x2a8] sm:$0xff]
        %v726 = vld [vmem:[%s1 + $0x2b0] sm:$0xff]
        %v727 = vld [vmem:[%s1 + $0x2b8] sm:$0xff]
        %v728 = vld [vmem:[%s1 + $0x2c0] sm:$0xff]
        %v729 = vld [vmem:[%s1 + $0x2c8] sm:$0xff]
        %v730 = vld [vmem:[%s1 + $0x2d0] sm:$0xff]
        %v731 = vld [vmem:[%s1 + $0x2d8] sm:$0xff]
        %v732 = vld [vmem:[%s1 + $0x2e0] sm:$0xff]
        %v733 = vld [vmem:[%s1 + $0x2e8] sm:$0xff]
        %v734 = vld [vmem:[%s1 + $0x2f0] sm:$0xff]
        %v735 = vld [vmem:[%s1 + $0x2f8] sm:$0xff]
        %v736 = vld [vmem:[%s1 + $0x300] sm:$0xff]
        %v737 = vld [vmem:[%s1 + $0x308] sm:$0xff]
        %v738 = vld [vmem:[%s1 + $0x310] sm:$0xff]
        %v739 = vld [vmem:[%s1 + $0x318] sm:$0xff]
        %v740 = vld [vmem:[%s1 + $0x320] sm:$0xff]
        %v741 = vld [vmem:[%s1 + $0x328] sm:$0xff]
        %v742 = vld [vmem:[%s1 + $0x330] sm:$0xff]
        %v743 = vld [vmem:[%s1 + $0x338] sm:$0xff]
        %v744 = vld [vmem:[%s1 + $0x340] sm:$0xff]
        %v745 = vld [vmem:[%s1 + $0x348] sm:$0xff]
        %v746 = vld [vmem:[%s1 + $0x350] sm:$0xff]
        %v747 = vld [vmem:[%s1 + $0x358] sm:$0xff]
        %v748 = vld [vmem:[%s1 + $0x360] sm:$0xff]
        %v749 = vld [vmem:[%s1 + $0x368] sm:$0xff]
        %v750 = vld [vmem:[%s1 + $0x370] sm:$0xff]
        %v751 = vld [vmem:[%s1 + $0x378] sm:$0xff]
        %v752 = vld [vmem:[%s1 + $0x380] sm:$0xff]
        %v753 = vld [vmem:[%s1 + $0x388] sm:$0xff]
        %v754 = vld [vmem:[%s1 + $0x390] sm:$0xff]
        %v755 = vld [vmem:[%s1 + $0x398] sm:$0xff]
        %v756 = vld [vmem:[%s1 + $0x3a0] sm:$0xff]
        %v757 = vld [vmem:[%s1 + $0x3a8] sm:$0xff]
        %v758 = vld [vmem:[%s1 + $0x3b0] sm:$0xff]
        %v759 = vld [vmem:[%s1 + $0x3b8] sm:$0xff]
        %v760 = vld [vmem:[%s1 + $0x3c0] sm:$0xff]
        %v761 = vld [vmem:[%s1 + $0x3c8] sm:$0xff]
        %v762 = vld [vmem:[%s1 + $0x3d0] sm:$0xff]
        %v763 = vld [vmem:[%s1 + $0x3d8] sm:$0xff]
        %v764 = vld [vmem:[%s1 + $0x3e0] sm:$0xff]
        %v765 = vld [vmem:[%s1 + $0x3e8] sm:$0xff]
        %v766 = vld [vmem:[%s1 + $0x3f0] sm:$0xff]
        %v767 = vld [vmem:[%s1 + $0x3f8] sm:$0xff]
        %v768 = vld [vmem:[%s1 + $0x400] sm:$0xff]
        %v769 = vld [vmem:[%s1 + $0x408] sm:$0xff]
        %v770 = vld [vmem:[%s1 + $0x410] sm:$0xff]
        %v771 = vld [vmem:[%s1 + $0x418] sm:$0xff]
        %v772 = vld [vmem:[%s1 + $0x420] sm:$0xff]
        %v773 = vld [vmem:[%s1 + $0x428] sm:$0xff]
        %v774 = vld [vmem:[%s1 + $0x430] sm:$0xff]
        %v775 = vld [vmem:[%s1 + $0x438] sm:$0xff]
        %v776 = vld [vmem:[%s1 + $0x440] sm:$0xff]
        %v777 = vld [vmem:[%s1 + $0x448] sm:$0xff]
        %v778 = vld [vmem:[%s1 + $0x450] sm:$0xff]
        %v779 = vld [vmem:[%s1 + $0x458] sm:$0xff]
        %v780 = vld [vmem:[%s1 + $0x460] sm:$0xff]
        %v781 = vld [vmem:[%s1 + $0x468] sm:$0xff]
        %v782 = vld [vmem:[%s1 + $0x470] sm:$0xff]
        %v783 = vld [vmem:[%s1 + $0x478] sm:$0xff]
        %v784 = vld [vmem:[%s1 + $0x480] sm:$0xff]
        %v785 = vld [vmem:[%s1 + $0x488] sm:$0xff]
        %v786 = vld [vmem:[%s1 + $0x490] sm:$0xff]
        %v787 = vld [vmem:[%s1 + $0x498] sm:$0xff]
        %v788 = vld [vmem:[%s1 + $0x4a0] sm:$0xff]
        %v789 = vld [vmem:[%s1 + $0x4a8] sm:$0xff]
        %v790 = vld [vmem:[%s1 + $0x4b0] sm:$0xff]
        %v791 = vld [vmem:[%s1 + $0x4b8] sm:$0xff]
        %v792 = vld [vmem:[%s1 + $0x4c0] sm:$0xff]
        %v793 = vld [vmem:[%s1 + $0x4c8] sm:$0xff]
        %v794 = vld [vmem:[%s1 + $0x4d0] sm:$0xff]
        %v795 = vld [vmem:[%s1 + $0x4d8] sm:$0xff]
        %v796 = vld [vmem:[%s1 + $0x4e0] sm:$0xff]
        %v797 = vld [vmem:[%s1 + $0x4e8] sm:$0xff]
        %v798 = vld [vmem:[%s1 + $0x4f0] sm:$0xff]
        %v799 = vld [vmem:[%s1 + $0x4f8] sm:$0xff]
        %v800 = vld [vmem:[%s1 + $0x500] sm:$0xff]
        %v801 = vld [vmem:[%s1 + $0x508] sm:$0xff]
        %v802 = vld [vmem:[%s1 + $0x510] sm:$0xff]
        %v803 = vld [vmem:[%s1 + $0x518] sm:$0xff]
        %v804 = vld [vmem:[%s1 + $0x520] sm:$0xff]
        %v805 = vld [vmem:[%s1 + $0x528] sm:$0xff]
        %v806 = vld [vmem:[%s1 + $0x530] sm:$0xff]
        %v807 = vld [vmem:[%s1 + $0x538] sm:$0xff]
        %v808 = vld [vmem:[%s1 + $0x540] sm:$0xff]
        %v809 = vld [vmem:[%s1 + $0x548] sm:$0xff]
        %v810 = vld [vmem:[%s1 + $0x550] sm:$0xff]
        %v811 = vld [vmem:[%s1 + $0x558] sm:$0xff]
        %v812 = vld [vmem:[%s1 + $0x560] sm:$0xff]
        %v813 = vld [vmem:[%s1 + $0x568] sm:$0xff]
        %v814 = vld [vmem:[%s1 + $0x570] sm:$0xff]
        %v815 = vld [vmem:[%s1 + $0x578] sm:$0xff]
        %v816 = vld [vmem:[%s1 + $0x580] sm:$0xff]
        %v817 = vld [vmem:[%s1 + $0x588] sm:$0xff]
        %v818 = vld [vmem:[%s1 + $0x590] sm:$0xff]
        %v819 = vld [vmem:[%s1 + $0x598] sm:$0xff]
        %v820 = vld [vmem:[%s1 + $0x5a0] sm:$0xff]
        %v821 = vld [vmem:[%s1 + $0x5a8] sm:$0xff]
        %v822 = vld [vmem:[%s1 + $0x5b0] sm:$0xff]
        %v823 = vld [vmem:[%s1 + $0x5b8] sm:$0xff]
        %v824 = vld [vmem:[%s1 + $0x5c0] sm:$0xff]
        %v825 = vld [vmem:[%s1 + $0x5c8] sm:$0xff]
        %v826 = vld [vmem:[%s1 + $0x5d0] sm:$0xff]
        %v827 = vld [vmem:[%s1 + $0x5d8] sm:$0xff]
        %v828 = vld [vmem:[%s1 + $0x5e0] sm:$0xff]
        %v829 = vld [vmem:[%s1 + $0x5e8] sm:$0xff]
        %v830 = vld [vmem:[%s1 + $0x5f0] sm:$0xff]
        %v831 = vld [vmem:[%s1 + $0x5f8] sm:$0xff]
        %v832 = vld [vmem:[%s1 + $0x600] sm:$0xff]
        %v833 = vld [vmem:[%s1 + $0x608] sm:$0xff]
        %v834 = vld [vmem:[%s1 + $0x610] sm:$0xff]
        %v835 = vld [vmem:[%s1 + $0x618] sm:$0xff]
        %v836 = vld [vmem:[%s1 + $0x620] sm:$0xff]
        %v837 = vld [vmem:[%s1 + $0x628] sm:$0xff]
        %v838 = vld [vmem:[%s1 + $0x630] sm:$0xff]
        %v839 = vld [vmem:[%s1 + $0x638] sm:$0xff]
        %v840 = vld [vmem:[%s1 + $0x640] sm:$0xff]
        %v841 = vld [vmem:[%s1 + $0x648] sm:$0xff]
        %v842 = vld [vmem:[%s1 + $0x650] sm:$0xff]
        %v843 = vld [vmem:[%s1 + $0x658] sm:$0xff]
        %v844 = vld [vmem:[%s1 + $0x660] sm:$0xff]
        %v845 = vld [vmem:[%s1 + $0x668] sm:$0xff]
        %v846 = vld [vmem:[%s1 + $0x670] sm:$0xff]
        %v847 = vld [vmem:[%s1 + $0x678] sm:$0xff]
        %v848 = vld [vmem:[%s1 + $0x680] sm:$0xff]
        %v849 = vld [vmem:[%s1 + $0x688] sm:$0xff]
        %v850 = vld [vmem:[%s1 + $0x690] sm:$0xff]
        %v851 = vld [vmem:[%s1 + $0x698] sm:$0xff]
        %v852 = vld [vmem:[%s1 + $0x6a0] sm:$0xff]
        %v853 = vld [vmem:[%s1 + $0x6a8] sm:$0xff]
        %v854 = vld [vmem:[%s1 + $0x6b0] sm:$0xff]
        %v855 = vld [vmem:[%s1 + $0x6b8] sm:$0xff]
        %v856 = vld [vmem:[%s1 + $0x6c0] sm:$0xff]
        %v857 = vld [vmem:[%s1 + $0x6c8] sm:$0xff]
        %v858 = vld [vmem:[%s1 + $0x6d0] sm:$0xff]
        %v859 = vld [vmem:[%s1 + $0x6d8] sm:$0xff]
        %v860 = vld [vmem:[%s1 + $0x6e0] sm:$0xff]
        %v861 = vld [vmem:[%s1 + $0x6e8] sm:$0xff]
        %v862 = vld [vmem:[%s1 + $0x6f0] sm:$0xff]
        %v863 = vld [vmem:[%s1 + $0x6f8] sm:$0xff]
        %v864 = vld [vmem:[%s1 + $0x700] sm:$0xff]
        %v865 = vld [vmem:[%s1 + $0x708] sm:$0xff]
        %v866 = vld [vmem:[%s1 + $0x710] sm:$0xff]
        %v867 = vld [vmem:[%s1 + $0x718] sm:$0xff]
        %v868 = vld [vmem:[%s1 + $0x720] sm:$0xff]
        %v869 = vld [vmem:[%s1 + $0x728] sm:$0xff]
        %v870 = vld [vmem:[%s1 + $0x730] sm:$0xff]
        %v871 = vld [vmem:[%s1 + $0x738] sm:$0xff]
        %v872 = vld [vmem:[%s1 + $0x740] sm:$0xff]
        %v873 = vld [vmem:[%s1 + $0x748] sm:$0xff]
        %v874 = vld [vmem:[%s1 + $0x750] sm:$0xff]
        %v875 = vld [vmem:[%s1 + $0x758] sm:$0xff]
        %v876 = vld [vmem:[%s1 + $0x760] sm:$0xff]
        %v877 = vld [vmem:[%s1 + $0x768] sm:$0xff]
        %v878 = vld [vmem:[%s1 + $0x770] sm:$0xff]
        %v879 = vld [vmem:[%s1 + $0x778] sm:$0xff]
        %v880 = vld [vmem:[%s1 + $0x780] sm:$0xff]
        %v881 = vld [vmem:[%s1 + $0x788] sm:$0xff]
        %v882 = vld [vmem:[%s1 + $0x790] sm:$0xff]
        %v883 = vld [vmem:[%s1 + $0x798] sm:$0xff]
        %v884 = vld [vmem:[%s1 + $0x7a0] sm:$0xff]
        %v885 = vld [vmem:[%s1 + $0x7a8] sm:$0xff]
        %v886 = vld [vmem:[%s1 + $0x7b0] sm:$0xff]
        %v887 = vld [vmem:[%s1 + $0x7b8] sm:$0xff]
        %v888 = vld [vmem:[%s1 + $0x7c0] sm:$0xff]
        %v889 = vld [vmem:[%s1 + $0x7c8] sm:$0xff]
        %v890 = vld [vmem:[%s1 + $0x7d0] sm:$0xff]
        %v891 = vld [vmem:[%s1 + $0x7d8] sm:$0xff]
        %v892 = vld [vmem:[%s1 + $0x7e0] sm:$0xff]
        %v893 = vld [vmem:[%s1 + $0x7e8] sm:$0xff]
        %v894 = vld [vmem:[%s1 + $0x7f0] sm:$0xff]
        %v895 = vld [vmem:[%s1 + $0x7f8] sm:$0xff]
        %v1152 = vunpack.c.l.b16 %v640
        %v1153 = vunpack.c.h.b16 %v640
        %v1154 = vunpack.c.l.b16 %v641
        %v1155 = vunpack.c.h.b16 %v641
        %v1156 = vunpack.c.l.b16 %v642
        %v1157 = vunpack.c.h.b16 %v642
        %v1158 = vunpack.c.l.b16 %v643
        %v1159 = vunpack.c.h.b16 %v643
        %v1160 = vunpack.c.l.b16 %v644
        %v1161 = vunpack.c.h.b16 %v644
        %v1162 = vunpack.c.l.b16 %v645
        %v1163 = vunpack.c.h.b16 %v645
        %v1164 = vunpack.c.l.b16 %v646
        %v1165 = vunpack.c.h.b16 %v646
        %v1166 = vunpack.c.l.b16 %v647
        %v1167 = vunpack.c.h.b16 %v647
        %v1168 = vunpack.c.l.b16 %v648
        %v1169 = vunpack.c.h.b16 %v648
        %v1170 = vunpack.c.l.b16 %v649
        %v1171 = vunpack.c.h.b16 %v649
        %v1172 = vunpack.c.l.b16 %v650
        %v1173 = vunpack.c.h.b16 %v650
        %v1174 = vunpack.c.l.b16 %v651
        %v1175 = vunpack.c.h.b16 %v651
        %v1176 = vunpack.c.l.b16 %v652
        %v1177 = vunpack.c.h.b16 %v652
        %v1178 = vunpack.c.l.b16 %v653
        %v1179 = vunpack.c.h.b16 %v653
        %v1180 = vunpack.c.l.b16 %v654
        %v1181 = vunpack.c.h.b16 %v654
        %v1182 = vunpack.c.l.b16 %v655
        %v1183 = vunpack.c.h.b16 %v655
        %v1184 = vunpack.c.l.b16 %v656
        %v1185 = vunpack.c.h.b16 %v656
        %v1186 = vunpack.c.l.b16 %v657
        %v1187 = vunpack.c.h.b16 %v657
        %v1188 = vunpack.c.l.b16 %v658
        %v1189 = vunpack.c.h.b16 %v658
        %v1190 = vunpack.c.l.b16 %v659
        %v1191 = vunpack.c.h.b16 %v659
        %v1192 = vunpack.c.l.b16 %v660
        %v1193 = vunpack.c.h.b16 %v660
        %v1194 = vunpack.c.l.b16 %v661
        %v1195 = vunpack.c.h.b16 %v661
        %v1196 = vunpack.c.l.b16 %v662
        %v1197 = vunpack.c.h.b16 %v662
        %v1198 = vunpack.c.l.b16 %v663
        %v1199 = vunpack.c.h.b16 %v663
        %v1200 = vunpack.c.l.b16 %v664
        %v1201 = vunpack.c.h.b16 %v664
        %v1202 = vunpack.c.l.b16 %v665
        %v1203 = vunpack.c.h.b16 %v665
        %v1204 = vunpack.c.l.b16 %v666
        %v1205 = vunpack.c.h.b16 %v666
        %v1206 = vunpack.c.l.b16 %v667
        %v1207 = vunpack.c.h.b16 %v667
        %v1208 = vunpack.c.l.b16 %v668
        %v1209 = vunpack.c.h.b16 %v668
        %v1210 = vunpack.c.l.b16 %v669
        %v1211 = vunpack.c.h.b16 %v669
        %v1212 = vunpack.c.l.b16 %v670
        %v1213 = vunpack.c.h.b16 %v670
        %v1214 = vunpack.c.l.b16 %v671
        %v1215 = vunpack.c.h.b16 %v671
        %v1216 = vunpack.c.l.b16 %v672
        %v1217 = vunpack.c.h.b16 %v672
        %v1218 = vunpack.c.l.b16 %v673
        %v1219 = vunpack.c.h.b16 %v673
        %v1220 = vunpack.c.l.b16 %v674
        %v1221 = vunpack.c.h.b16 %v674
        %v1222 = vunpack.c.l.b16 %v675
        %v1223 = vunpack.c.h.b16 %v675
        %v1224 = vunpack.c.l.b16 %v676
        %v1225 = vunpack.c.h.b16 %v676
        %v1226 = vunpack.c.l.b16 %v677
        %v1227 = vunpack.c.h.b16 %v677
        %v1228 = vunpack.c.l.b16 %v678
        %v1229 = vunpack.c.h.b16 %v678
        %v1230 = vunpack.c.l.b16 %v679
        %v1231 = vunpack.c.h.b16 %v679
        %v1232 = vunpack.c.l.b16 %v680
        %v1233 = vunpack.c.h.b16 %v680
        %v1234 = vunpack.c.l.b16 %v681
        %v1235 = vunpack.c.h.b16 %v681
        %v1236 = vunpack.c.l.b16 %v682
        %v1237 = vunpack.c.h.b16 %v682
        %v1238 = vunpack.c.l.b16 %v683
        %v1239 = vunpack.c.h.b16 %v683
        %v1240 = vunpack.c.l.b16 %v684
        %v1241 = vunpack.c.h.b16 %v684
        %v1242 = vunpack.c.l.b16 %v685
        %v1243 = vunpack.c.h.b16 %v685
        %v1244 = vunpack.c.l.b16 %v686
        %v1245 = vunpack.c.h.b16 %v686
        %v1246 = vunpack.c.l.b16 %v687
        %v1247 = vunpack.c.h.b16 %v687
        %v1248 = vunpack.c.l.b16 %v688
        %v1249 = vunpack.c.h.b16 %v688
        %v1250 = vunpack.c.l.b16 %v689
        %v1251 = vunpack.c.h.b16 %v689
        %v1252 = vunpack.c.l.b16 %v690
        %v1253 = vunpack.c.h.b16 %v690
        %v1254 = vunpack.c.l.b16 %v691
        %v1255 = vunpack.c.h.b16 %v691
        %v1256 = vunpack.c.l.b16 %v692
        %v1257 = vunpack.c.h.b16 %v692
        %v1258 = vunpack.c.l.b16 %v693
        %v1259 = vunpack.c.h.b16 %v693
        %v1260 = vunpack.c.l.b16 %v694
        %v1261 = vunpack.c.h.b16 %v694
        %v1262 = vunpack.c.l.b16 %v695
        %v1263 = vunpack.c.h.b16 %v695
        %v1264 = vunpack.c.l.b16 %v696
        %v1265 = vunpack.c.h.b16 %v696
        %v1266 = vunpack.c.l.b16 %v697
        %v1267 = vunpack.c.h.b16 %v697
        %v1268 = vunpack.c.l.b16 %v698
        %v1269 = vunpack.c.h.b16 %v698
        %v1270 = vunpack.c.l.b16 %v699
        %v1271 = vunpack.c.h.b16 %v699
        %v1272 = vunpack.c.l.b16 %v700
        %v1273 = vunpack.c.h.b16 %v700
        %v1274 = vunpack.c.l.b16 %v701
        %v1275 = vunpack.c.h.b16 %v701
        %v1276 = vunpack.c.l.b16 %v702
        %v1277 = vunpack.c.h.b16 %v702
        %v1278 = vunpack.c.l.b16 %v703
        %v1279 = vunpack.c.h.b16 %v703
        %v1280 = vunpack.c.l.b16 %v704
        %v1281 = vunpack.c.h.b16 %v704
        %v1282 = vunpack.c.l.b16 %v705
        %v1283 = vunpack.c.h.b16 %v705
        %v1284 = vunpack.c.l.b16 %v706
        %v1285 = vunpack.c.h.b16 %v706
        %v1286 = vunpack.c.l.b16 %v707
        %v1287 = vunpack.c.h.b16 %v707
        %v1288 = vunpack.c.l.b16 %v708
        %v1289 = vunpack.c.h.b16 %v708
        %v1290 = vunpack.c.l.b16 %v709
        %v1291 = vunpack.c.h.b16 %v709
        %v1292 = vunpack.c.l.b16 %v710
        %v1293 = vunpack.c.h.b16 %v710
        %v1294 = vunpack.c.l.b16 %v711
        %v1295 = vunpack.c.h.b16 %v711
        %v1296 = vunpack.c.l.b16 %v712
        %v1297 = vunpack.c.h.b16 %v712
        %v1298 = vunpack.c.l.b16 %v713
        %v1299 = vunpack.c.h.b16 %v713
        %v1300 = vunpack.c.l.b16 %v714
        %v1301 = vunpack.c.h.b16 %v714
        %v1302 = vunpack.c.l.b16 %v715
        %v1303 = vunpack.c.h.b16 %v715
        %v1304 = vunpack.c.l.b16 %v716
        %v1305 = vunpack.c.h.b16 %v716
        %v1306 = vunpack.c.l.b16 %v717
        %v1307 = vunpack.c.h.b16 %v717
        %v1308 = vunpack.c.l.b16 %v718
        %v1309 = vunpack.c.h.b16 %v718
        %v1310 = vunpack.c.l.b16 %v719
        %v1311 = vunpack.c.h.b16 %v719
        %v1312 = vunpack.c.l.b16 %v720
        %v1313 = vunpack.c.h.b16 %v720
        %v1314 = vunpack.c.l.b16 %v721
        %v1315 = vunpack.c.h.b16 %v721
        %v1316 = vunpack.c.l.b16 %v722
        %v1317 = vunpack.c.h.b16 %v722
        %v1318 = vunpack.c.l.b16 %v723
        %v1319 = vunpack.c.h.b16 %v723
        %v1320 = vunpack.c.l.b16 %v724
        %v1321 = vunpack.c.h.b16 %v724
        %v1322 = vunpack.c.l.b16 %v725
        %v1323 = vunpack.c.h.b16 %v725
        %v1324 = vunpack.c.l.b16 %v726
        %v1325 = vunpack.c.h.b16 %v726
        %v1326 = vunpack.c.l.b16 %v727
        %v1327 = vunpack.c.h.b16 %v727
        %v1328 = vunpack.c.l.b16 %v728
        %v1329 = vunpack.c.h.b16 %v728
        %v1330 = vunpack.c.l.b16 %v729
        %v1331 = vunpack.c.h.b16 %v729
        %v1332 = vunpack.c.l.b16 %v730
        %v1333 = vunpack.c.h.b16 %v730
        %v1334 = vunpack.c.l.b16 %v731
        %v1335 = vunpack.c.h.b16 %v731
        %v1336 = vunpack.c.l.b16 %v732
        %v1337 = vunpack.c.h.b16 %v732
        %v1338 = vunpack.c.l.b16 %v733
        %v1339 = vunpack.c.h.b16 %v733
        %v1340 = vunpack.c.l.b16 %v734
        %v1341 = vunpack.c.h.b16 %v734
        %v1342 = vunpack.c.l.b16 %v735
        %v1343 = vunpack.c.h.b16 %v735
        %v1344 = vunpack.c.l.b16 %v736
        %v1345 = vunpack.c.h.b16 %v736
        %v1346 = vunpack.c.l.b16 %v737
        %v1347 = vunpack.c.h.b16 %v737
        %v1348 = vunpack.c.l.b16 %v738
        %v1349 = vunpack.c.h.b16 %v738
        %v1350 = vunpack.c.l.b16 %v739
        %v1351 = vunpack.c.h.b16 %v739
        %v1352 = vunpack.c.l.b16 %v740
        %v1353 = vunpack.c.h.b16 %v740
        %v1354 = vunpack.c.l.b16 %v741
        %v1355 = vunpack.c.h.b16 %v741
        %v1356 = vunpack.c.l.b16 %v742
        %v1357 = vunpack.c.h.b16 %v742
        %v1358 = vunpack.c.l.b16 %v743
        %v1359 = vunpack.c.h.b16 %v743
        %v1360 = vunpack.c.l.b16 %v744
        %v1361 = vunpack.c.h.b16 %v744
        %v1362 = vunpack.c.l.b16 %v745
        %v1363 = vunpack.c.h.b16 %v745
        %v1364 = vunpack.c.l.b16 %v746
        %v1365 = vunpack.c.h.b16 %v746
        %v1366 = vunpack.c.l.b16 %v747
        %v1367 = vunpack.c.h.b16 %v747
        %v1368 = vunpack.c.l.b16 %v748
        %v1369 = vunpack.c.h.b16 %v748
        %v1370 = vunpack.c.l.b16 %v749
        %v1371 = vunpack.c.h.b16 %v749
        %v1372 = vunpack.c.l.b16 %v750
        %v1373 = vunpack.c.h.b16 %v750
        %v1374 = vunpack.c.l.b16 %v751
        %v1375 = vunpack.c.h.b16 %v751
        %v1376 = vunpack.c.l.b16 %v752
        %v1377 = vunpack.c.h.b16 %v752
        %v1378 = vunpack.c.l.b16 %v753
        %v1379 = vunpack.c.h.b16 %v753
        %v1380 = vunpack.c.l.b16 %v754
        %v1381 = vunpack.c.h.b16 %v754
        %v1382 = vunpack.c.l.b16 %v755
        %v1383 = vunpack.c.h.b16 %v755
        %v1384 = vunpack.c.l.b16 %v756
        %v1385 = vunpack.c.h.b16 %v756
        %v1386 = vunpack.c.l.b16 %v757
        %v1387 = vunpack.c.h.b16 %v757
        %v1388 = vunpack.c.l.b16 %v758
        %v1389 = vunpack.c.h.b16 %v758
        %v1390 = vunpack.c.l.b16 %v759
        %v1391 = vunpack.c.h.b16 %v759
        %v1392 = vunpack.c.l.b16 %v760
        %v1393 = vunpack.c.h.b16 %v760
        %v1394 = vunpack.c.l.b16 %v761
        %v1395 = vunpack.c.h.b16 %v761
        %v1396 = vunpack.c.l.b16 %v762
        %v1397 = vunpack.c.h.b16 %v762
        %v1398 = vunpack.c.l.b16 %v763
        %v1399 = vunpack.c.h.b16 %v763
        %v1400 = vunpack.c.l.b16 %v764
        %v1401 = vunpack.c.h.b16 %v764
        %v1402 = vunpack.c.l.b16 %v765
        %v1403 = vunpack.c.h.b16 %v765
        %v1404 = vunpack.c.l.b16 %v766
        %v1405 = vunpack.c.h.b16 %v766
        %v1406 = vunpack.c.l.b16 %v767
        %v1407 = vunpack.c.h.b16 %v767
        %v1408 = vunpack.c.l.b16 %v768
        %v1409 = vunpack.c.h.b16 %v768
        %v1410 = vunpack.c.l.b16 %v769
        %v1411 = vunpack.c.h.b16 %v769
        %v1412 = vunpack.c.l.b16 %v770
        %v1413 = vunpack.c.h.b16 %v770
        %v1414 = vunpack.c.l.b16 %v771
        %v1415 = vunpack.c.h.b16 %v771
        %v1416 = vunpack.c.l.b16 %v772
        %v1417 = vunpack.c.h.b16 %v772
        %v1418 = vunpack.c.l.b16 %v773
        %v1419 = vunpack.c.h.b16 %v773
        %v1420 = vunpack.c.l.b16 %v774
        %v1421 = vunpack.c.h.b16 %v774
        %v1422 = vunpack.c.l.b16 %v775
        %v1423 = vunpack.c.h.b16 %v775
        %v1424 = vunpack.c.l.b16 %v776
        %v1425 = vunpack.c.h.b16 %v776
        %v1426 = vunpack.c.l.b16 %v777
        %v1427 = vunpack.c.h.b16 %v777
        %v1428 = vunpack.c.l.b16 %v778
        %v1429 = vunpack.c.h.b16 %v778
        %v1430 = vunpack.c.l.b16 %v779
        %v1431 = vunpack.c.h.b16 %v779
        %v1432 = vunpack.c.l.b16 %v780
        %v1433 = vunpack.c.h.b16 %v780
        %v1434 = vunpack.c.l.b16 %v781
        %v1435 = vunpack.c.h.b16 %v781
        %v1436 = vunpack.c.l.b16 %v782
        %v1437 = vunpack.c.h.b16 %v782
        %v1438 = vunpack.c.l.b16 %v783
        %v1439 = vunpack.c.h.b16 %v783
        %v1440 = vunpack.c.l.b16 %v784
        %v1441 = vunpack.c.h.b16 %v784
        %v1442 = vunpack.c.l.b16 %v785
        %v1443 = vunpack.c.h.b16 %v785
        %v1444 = vunpack.c.l.b16 %v786
        %v1445 = vunpack.c.h.b16 %v786
        %v1446 = vunpack.c.l.b16 %v787
        %v1447 = vunpack.c.h.b16 %v787
        %v1448 = vunpack.c.l.b16 %v788
        %v1449 = vunpack.c.h.b16 %v788
        %v1450 = vunpack.c.l.b16 %v789
        %v1451 = vunpack.c.h.b16 %v789
        %v1452 = vunpack.c.l.b16 %v790
        %v1453 = vunpack.c.h.b16 %v790
        %v1454 = vunpack.c.l.b16 %v791
        %v1455 = vunpack.c.h.b16 %v791
        %v1456 = vunpack.c.l.b16 %v792
        %v1457 = vunpack.c.h.b16 %v792
        %v1458 = vunpack.c.l.b16 %v793
        %v1459 = vunpack.c.h.b16 %v793
        %v1460 = vunpack.c.l.b16 %v794
        %v1461 = vunpack.c.h.b16 %v794
        %v1462 = vunpack.c.l.b16 %v795
        %v1463 = vunpack.c.h.b16 %v795
        %v1464 = vunpack.c.l.b16 %v796
        %v1465 = vunpack.c.h.b16 %v796
        %v1466 = vunpack.c.l.b16 %v797
        %v1467 = vunpack.c.h.b16 %v797
        %v1468 = vunpack.c.l.b16 %v798
        %v1469 = vunpack.c.h.b16 %v798
        %v1470 = vunpack.c.l.b16 %v799
        %v1471 = vunpack.c.h.b16 %v799
        %v1472 = vunpack.c.l.b16 %v800
        %v1473 = vunpack.c.h.b16 %v800
        %v1474 = vunpack.c.l.b16 %v801
        %v1475 = vunpack.c.h.b16 %v801
        %v1476 = vunpack.c.l.b16 %v802
        %v1477 = vunpack.c.h.b16 %v802
        %v1478 = vunpack.c.l.b16 %v803
        %v1479 = vunpack.c.h.b16 %v803
        %v1480 = vunpack.c.l.b16 %v804
        %v1481 = vunpack.c.h.b16 %v804
        %v1482 = vunpack.c.l.b16 %v805
        %v1483 = vunpack.c.h.b16 %v805
        %v1484 = vunpack.c.l.b16 %v806
        %v1485 = vunpack.c.h.b16 %v806
        %v1486 = vunpack.c.l.b16 %v807
        %v1487 = vunpack.c.h.b16 %v807
        %v1488 = vunpack.c.l.b16 %v808
        %v1489 = vunpack.c.h.b16 %v808
        %v1490 = vunpack.c.l.b16 %v809
        %v1491 = vunpack.c.h.b16 %v809
        %v1492 = vunpack.c.l.b16 %v810
        %v1493 = vunpack.c.h.b16 %v810
        %v1494 = vunpack.c.l.b16 %v811
        %v1495 = vunpack.c.h.b16 %v811
        %v1496 = vunpack.c.l.b16 %v812
        %v1497 = vunpack.c.h.b16 %v812
        %v1498 = vunpack.c.l.b16 %v813
        %v1499 = vunpack.c.h.b16 %v813
        %v1500 = vunpack.c.l.b16 %v814
        %v1501 = vunpack.c.h.b16 %v814
        %v1502 = vunpack.c.l.b16 %v815
        %v1503 = vunpack.c.h.b16 %v815
        %v1504 = vunpack.c.l.b16 %v816
        %v1505 = vunpack.c.h.b16 %v816
        %v1506 = vunpack.c.l.b16 %v817
        %v1507 = vunpack.c.h.b16 %v817
        %v1508 = vunpack.c.l.b16 %v818
        %v1509 = vunpack.c.h.b16 %v818
        %v1510 = vunpack.c.l.b16 %v819
        %v1511 = vunpack.c.h.b16 %v819
        %v1512 = vunpack.c.l.b16 %v820
        %v1513 = vunpack.c.h.b16 %v820
        %v1514 = vunpack.c.l.b16 %v821
        %v1515 = vunpack.c.h.b16 %v821
        %v1516 = vunpack.c.l.b16 %v822
        %v1517 = vunpack.c.h.b16 %v822
        %v1518 = vunpack.c.l.b16 %v823
        %v1519 = vunpack.c.h.b16 %v823
        %v1520 = vunpack.c.l.b16 %v824
        %v1521 = vunpack.c.h.b16 %v824
        %v1522 = vunpack.c.l.b16 %v825
        %v1523 = vunpack.c.h.b16 %v825
        %v1524 = vunpack.c.l.b16 %v826
        %v1525 = vunpack.c.h.b16 %v826
        %v1526 = vunpack.c.l.b16 %v827
        %v1527 = vunpack.c.h.b16 %v827
        %v1528 = vunpack.c.l.b16 %v828
        %v1529 = vunpack.c.h.b16 %v828
        %v1530 = vunpack.c.l.b16 %v829
        %v1531 = vunpack.c.h.b16 %v829
        %v1532 = vunpack.c.l.b16 %v830
        %v1533 = vunpack.c.h.b16 %v830
        %v1534 = vunpack.c.l.b16 %v831
        %v1535 = vunpack.c.h.b16 %v831
        %v1536 = vunpack.c.l.b16 %v832
        %v1537 = vunpack.c.h.b16 %v832
        %v1538 = vunpack.c.l.b16 %v833
        %v1539 = vunpack.c.h.b16 %v833
        %v1540 = vunpack.c.l.b16 %v834
        %v1541 = vunpack.c.h.b16 %v834
        %v1542 = vunpack.c.l.b16 %v835
        %v1543 = vunpack.c.h.b16 %v835
        %v1544 = vunpack.c.l.b16 %v836
        %v1545 = vunpack.c.h.b16 %v836
        %v1546 = vunpack.c.l.b16 %v837
        %v1547 = vunpack.c.h.b16 %v837
        %v1548 = vunpack.c.l.b16 %v838
        %v1549 = vunpack.c.h.b16 %v838
        %v1550 = vunpack.c.l.b16 %v839
        %v1551 = vunpack.c.h.b16 %v839
        %v1552 = vunpack.c.l.b16 %v840
        %v1553 = vunpack.c.h.b16 %v840
        %v1554 = vunpack.c.l.b16 %v841
        %v1555 = vunpack.c.h.b16 %v841
        %v1556 = vunpack.c.l.b16 %v842
        %v1557 = vunpack.c.h.b16 %v842
        %v1558 = vunpack.c.l.b16 %v843
        %v1559 = vunpack.c.h.b16 %v843
        %v1560 = vunpack.c.l.b16 %v844
        %v1561 = vunpack.c.h.b16 %v844
        %v1562 = vunpack.c.l.b16 %v845
        %v1563 = vunpack.c.h.b16 %v845
        %v1564 = vunpack.c.l.b16 %v846
        %v1565 = vunpack.c.h.b16 %v846
        %v1566 = vunpack.c.l.b16 %v847
        %v1567 = vunpack.c.h.b16 %v847
        %v1568 = vunpack.c.l.b16 %v848
        %v1569 = vunpack.c.h.b16 %v848
        %v1570 = vunpack.c.l.b16 %v849
        %v1571 = vunpack.c.h.b16 %v849
        %v1572 = vunpack.c.l.b16 %v850
        %v1573 = vunpack.c.h.b16 %v850
        %v1574 = vunpack.c.l.b16 %v851
        %v1575 = vunpack.c.h.b16 %v851
        %v1576 = vunpack.c.l.b16 %v852
        %v1577 = vunpack.c.h.b16 %v852
        %v1578 = vunpack.c.l.b16 %v853
        %v1579 = vunpack.c.h.b16 %v853
        %v1580 = vunpack.c.l.b16 %v854
        %v1581 = vunpack.c.h.b16 %v854
        %v1582 = vunpack.c.l.b16 %v855
        %v1583 = vunpack.c.h.b16 %v855
        %v1584 = vunpack.c.l.b16 %v856
        %v1585 = vunpack.c.h.b16 %v856
        %v1586 = vunpack.c.l.b16 %v857
        %v1587 = vunpack.c.h.b16 %v857
        %v1588 = vunpack.c.l.b16 %v858
        %v1589 = vunpack.c.h.b16 %v858
        %v1590 = vunpack.c.l.b16 %v859
        %v1591 = vunpack.c.h.b16 %v859
        %v1592 = vunpack.c.l.b16 %v860
        %v1593 = vunpack.c.h.b16 %v860
        %v1594 = vunpack.c.l.b16 %v861
        %v1595 = vunpack.c.h.b16 %v861
        %v1596 = vunpack.c.l.b16 %v862
        %v1597 = vunpack.c.h.b16 %v862
        %v1598 = vunpack.c.l.b16 %v863
        %v1599 = vunpack.c.h.b16 %v863
        %v1600 = vunpack.c.l.b16 %v864
        %v1601 = vunpack.c.h.b16 %v864
        %v1602 = vunpack.c.l.b16 %v865
        %v1603 = vunpack.c.h.b16 %v865
        %v1604 = vunpack.c.l.b16 %v866
        %v1605 = vunpack.c.h.b16 %v866
        %v1606 = vunpack.c.l.b16 %v867
        %v1607 = vunpack.c.h.b16 %v867
        %v1608 = vunpack.c.l.b16 %v868
        %v1609 = vunpack.c.h.b16 %v868
        %v1610 = vunpack.c.l.b16 %v869
        %v1611 = vunpack.c.h.b16 %v869
        %v1612 = vunpack.c.l.b16 %v870
        %v1613 = vunpack.c.h.b16 %v870
        %v1614 = vunpack.c.l.b16 %v871
        %v1615 = vunpack.c.h.b16 %v871
        %v1616 = vunpack.c.l.b16 %v872
        %v1617 = vunpack.c.h.b16 %v872
        %v1618 = vunpack.c.l.b16 %v873
        %v1619 = vunpack.c.h.b16 %v873
        %v1620 = vunpack.c.l.b16 %v874
        %v1621 = vunpack.c.h.b16 %v874
        %v1622 = vunpack.c.l.b16 %v875
        %v1623 = vunpack.c.h.b16 %v875
        %v1624 = vunpack.c.l.b16 %v876
        %v1625 = vunpack.c.h.b16 %v876
        %v1626 = vunpack.c.l.b16 %v877
        %v1627 = vunpack.c.h.b16 %v877
        %v1628 = vunpack.c.l.b16 %v878
        %v1629 = vunpack.c.h.b16 %v878
        %v1630 = vunpack.c.l.b16 %v879
        %v1631 = vunpack.c.h.b16 %v879
        %v1632 = vunpack.c.l.b16 %v880
        %v1633 = vunpack.c.h.b16 %v880
        %v1634 = vunpack.c.l.b16 %v881
        %v1635 = vunpack.c.h.b16 %v881
        %v1636 = vunpack.c.l.b16 %v882
        %v1637 = vunpack.c.h.b16 %v882
        %v1638 = vunpack.c.l.b16 %v883
        %v1639 = vunpack.c.h.b16 %v883
        %v1640 = vunpack.c.l.b16 %v884
        %v1641 = vunpack.c.h.b16 %v884
        %v1642 = vunpack.c.l.b16 %v885
        %v1643 = vunpack.c.h.b16 %v885
        %v1644 = vunpack.c.l.b16 %v886
        %v1645 = vunpack.c.h.b16 %v886
        %v1646 = vunpack.c.l.b16 %v887
        %v1647 = vunpack.c.h.b16 %v887
        %v1648 = vunpack.c.l.b16 %v888
        %v1649 = vunpack.c.h.b16 %v888
        %v1650 = vunpack.c.l.b16 %v889
        %v1651 = vunpack.c.h.b16 %v889
        %v1652 = vunpack.c.l.b16 %v890
        %v1653 = vunpack.c.h.b16 %v890
        %v1654 = vunpack.c.l.b16 %v891
        %v1655 = vunpack.c.h.b16 %v891
        %v1656 = vunpack.c.l.b16 %v892
        %v1657 = vunpack.c.h.b16 %v892
        %v1658 = vunpack.c.l.b16 %v893
        %v1659 = vunpack.c.h.b16 %v893
        %v1660 = vunpack.c.l.b16 %v894
        %v1661 = vunpack.c.h.b16 %v894
        %v1662 = vunpack.c.l.b16 %v895
        %v1663 = vunpack.c.h.b16 %v895
        %v1664 = vpack.c.b16 %v1156, %v1152
        %v1665 = vpack.c.b16 %v1157, %v1153
        %v1666 = vpack.c.b16 %v1158, %v1154
        %v1667 = vpack.c.b16 %v1159, %v1155
        %v1668 = vpack.c.b16 %v1164, %v1160
        %v1669 = vpack.c.b16 %v1165, %v1161
        %v1670 = vpack.c.b16 %v1166, %v1162
        %v1671 = vpack.c.b16 %v1167, %v1163
        %v1672 = vpack.c.b16 %v1172, %v1168
        %v1673 = vpack.c.b16 %v1173, %v1169
        %v1674 = vpack.c.b16 %v1174, %v1170
        %v1675 = vpack.c.b16 %v1175, %v1171
        %v1676 = vpack.c.b16 %v1180, %v1176
        %v1677 = vpack.c.b16 %v1181, %v1177
        %v1678 = vpack.c.b16 %v1182, %v1178
        %v1679 = vpack.c.b16 %v1183, %v1179
        %v1680 = vpack.c.b16 %v1188, %v1184
        %v1681 = vpack.c.b16 %v1189, %v1185
        %v1682 = vpack.c.b16 %v1190, %v1186
        %v1683 = vpack.c.b16 %v1191, %v1187
        %v1684 = vpack.c.b16 %v1196, %v1192
        %v1685 = vpack.c.b16 %v1197, %v1193
        %v1686 = vpack.c.b16 %v1198, %v1194
        %v1687 = vpack.c.b16 %v1199, %v1195
        %v1688 = vpack.c.b16 %v1204, %v1200
        %v1689 = vpack.c.b16 %v1205, %v1201
        %v1690 = vpack.c.b16 %v1206, %v1202
        %v1691 = vpack.c.b16 %v1207, %v1203
        %v1692 = vpack.c.b16 %v1212, %v1208
        %v1693 = vpack.c.b16 %v1213, %v1209
        %v1694 = vpack.c.b16 %v1214, %v1210
        %v1695 = vpack.c.b16 %v1215, %v1211
        %v1696 = vpack.c.b16 %v1220, %v1216
        %v1697 = vpack.c.b16 %v1221, %v1217
        %v1698 = vpack.c.b16 %v1222, %v1218
        %v1699 = vpack.c.b16 %v1223, %v1219
        %v1700 = vpack.c.b16 %v1228, %v1224
        %v1701 = vpack.c.b16 %v1229, %v1225
        %v1702 = vpack.c.b16 %v1230, %v1226
        %v1703 = vpack.c.b16 %v1231, %v1227
        %v1704 = vpack.c.b16 %v1236, %v1232
        %v1705 = vpack.c.b16 %v1237, %v1233
        %v1706 = vpack.c.b16 %v1238, %v1234
        %v1707 = vpack.c.b16 %v1239, %v1235
        %v1708 = vpack.c.b16 %v1244, %v1240
        %v1709 = vpack.c.b16 %v1245, %v1241
        %v1710 = vpack.c.b16 %v1246, %v1242
        %v1711 = vpack.c.b16 %v1247, %v1243
        %v1712 = vpack.c.b16 %v1252, %v1248
        %v1713 = vpack.c.b16 %v1253, %v1249
        %v1714 = vpack.c.b16 %v1254, %v1250
        %v1715 = vpack.c.b16 %v1255, %v1251
        %v1716 = vpack.c.b16 %v1260, %v1256
        %v1717 = vpack.c.b16 %v1261, %v1257
        %v1718 = vpack.c.b16 %v1262, %v1258
        %v1719 = vpack.c.b16 %v1263, %v1259
        %v1720 = vpack.c.b16 %v1268, %v1264
        %v1721 = vpack.c.b16 %v1269, %v1265
        %v1722 = vpack.c.b16 %v1270, %v1266
        %v1723 = vpack.c.b16 %v1271, %v1267
        %v1724 = vpack.c.b16 %v1276, %v1272
        %v1725 = vpack.c.b16 %v1277, %v1273
        %v1726 = vpack.c.b16 %v1278, %v1274
        %v1727 = vpack.c.b16 %v1279, %v1275
        %v1728 = vpack.c.b16 %v1284, %v1280
        %v1729 = vpack.c.b16 %v1285, %v1281
        %v1730 = vpack.c.b16 %v1286, %v1282
        %v1731 = vpack.c.b16 %v1287, %v1283
        %v1732 = vpack.c.b16 %v1292, %v1288
        %v1733 = vpack.c.b16 %v1293, %v1289
        %v1734 = vpack.c.b16 %v1294, %v1290
        %v1735 = vpack.c.b16 %v1295, %v1291
        %v1736 = vpack.c.b16 %v1300, %v1296
        %v1737 = vpack.c.b16 %v1301, %v1297
        %v1738 = vpack.c.b16 %v1302, %v1298
        %v1739 = vpack.c.b16 %v1303, %v1299
        %v1740 = vpack.c.b16 %v1308, %v1304
        %v1741 = vpack.c.b16 %v1309, %v1305
        %v1742 = vpack.c.b16 %v1310, %v1306
        %v1743 = vpack.c.b16 %v1311, %v1307
        %v1744 = vpack.c.b16 %v1316, %v1312
        %v1745 = vpack.c.b16 %v1317, %v1313
        %v1746 = vpack.c.b16 %v1318, %v1314
        %v1747 = vpack.c.b16 %v1319, %v1315
        %v1748 = vpack.c.b16 %v1324, %v1320
        %v1749 = vpack.c.b16 %v1325, %v1321
        %v1750 = vpack.c.b16 %v1326, %v1322
        %v1751 = vpack.c.b16 %v1327, %v1323
        %v1752 = vpack.c.b16 %v1332, %v1328
        %v1753 = vpack.c.b16 %v1333, %v1329
        %v1754 = vpack.c.b16 %v1334, %v1330
        %v1755 = vpack.c.b16 %v1335, %v1331
        %v1756 = vpack.c.b16 %v1340, %v1336
        %v1757 = vpack.c.b16 %v1341, %v1337
        %v1758 = vpack.c.b16 %v1342, %v1338
        %v1759 = vpack.c.b16 %v1343, %v1339
        %v1760 = vpack.c.b16 %v1348, %v1344
        %v1761 = vpack.c.b16 %v1349, %v1345
        %v1762 = vpack.c.b16 %v1350, %v1346
        %v1763 = vpack.c.b16 %v1351, %v1347
        %v1764 = vpack.c.b16 %v1356, %v1352
        %v1765 = vpack.c.b16 %v1357, %v1353
        %v1766 = vpack.c.b16 %v1358, %v1354
        %v1767 = vpack.c.b16 %v1359, %v1355
        %v1768 = vpack.c.b16 %v1364, %v1360
        %v1769 = vpack.c.b16 %v1365, %v1361
        %v1770 = vpack.c.b16 %v1366, %v1362
        %v1771 = vpack.c.b16 %v1367, %v1363
        %v1772 = vpack.c.b16 %v1372, %v1368
        %v1773 = vpack.c.b16 %v1373, %v1369
        %v1774 = vpack.c.b16 %v1374, %v1370
        %v1775 = vpack.c.b16 %v1375, %v1371
        %v1776 = vpack.c.b16 %v1380, %v1376
        %v1777 = vpack.c.b16 %v1381, %v1377
        %v1778 = vpack.c.b16 %v1382, %v1378
        %v1779 = vpack.c.b16 %v1383, %v1379
        %v1780 = vpack.c.b16 %v1388, %v1384
        %v1781 = vpack.c.b16 %v1389, %v1385
        %v1782 = vpack.c.b16 %v1390, %v1386
        %v1783 = vpack.c.b16 %v1391, %v1387
        %v1784 = vpack.c.b16 %v1396, %v1392
        %v1785 = vpack.c.b16 %v1397, %v1393
        %v1786 = vpack.c.b16 %v1398, %v1394
        %v1787 = vpack.c.b16 %v1399, %v1395
        %v1788 = vpack.c.b16 %v1404, %v1400
        %v1789 = vpack.c.b16 %v1405, %v1401
        %v1790 = vpack.c.b16 %v1406, %v1402
        %v1791 = vpack.c.b16 %v1407, %v1403
        %v1792 = vpack.c.b16 %v1412, %v1408
        %v1793 = vpack.c.b16 %v1413, %v1409
        %v1794 = vpack.c.b16 %v1414, %v1410
        %v1795 = vpack.c.b16 %v1415, %v1411
        %v1796 = vpack.c.b16 %v1420, %v1416
        %v1797 = vpack.c.b16 %v1421, %v1417
        %v1798 = vpack.c.b16 %v1422, %v1418
        %v1799 = vpack.c.b16 %v1423, %v1419
        %v1800 = vpack.c.b16 %v1428, %v1424
        %v1801 = vpack.c.b16 %v1429, %v1425
        %v1802 = vpack.c.b16 %v1430, %v1426
        %v1803 = vpack.c.b16 %v1431, %v1427
        %v1804 = vpack.c.b16 %v1436, %v1432
        %v1805 = vpack.c.b16 %v1437, %v1433
        %v1806 = vpack.c.b16 %v1438, %v1434
        %v1807 = vpack.c.b16 %v1439, %v1435
        %v1808 = vpack.c.b16 %v1444, %v1440
        %v1809 = vpack.c.b16 %v1445, %v1441
        %v1810 = vpack.c.b16 %v1446, %v1442
        %v1811 = vpack.c.b16 %v1447, %v1443
        %v1812 = vpack.c.b16 %v1452, %v1448
        %v1813 = vpack.c.b16 %v1453, %v1449
        %v1814 = vpack.c.b16 %v1454, %v1450
        %v1815 = vpack.c.b16 %v1455, %v1451
        %v1816 = vpack.c.b16 %v1460, %v1456
        %v1817 = vpack.c.b16 %v1461, %v1457
        %v1818 = vpack.c.b16 %v1462, %v1458
        %v1819 = vpack.c.b16 %v1463, %v1459
        %v1820 = vpack.c.b16 %v1468, %v1464
        %v1821 = vpack.c.b16 %v1469, %v1465
        %v1822 = vpack.c.b16 %v1470, %v1466
        %v1823 = vpack.c.b16 %v1471, %v1467
        %v1824 = vpack.c.b16 %v1476, %v1472
        %v1825 = vpack.c.b16 %v1477, %v1473
        %v1826 = vpack.c.b16 %v1478, %v1474
        %v1827 = vpack.c.b16 %v1479, %v1475
        %v1828 = vpack.c.b16 %v1484, %v1480
        %v1829 = vpack.c.b16 %v1485, %v1481
        %v1830 = vpack.c.b16 %v1486, %v1482
        %v1831 = vpack.c.b16 %v1487, %v1483
        %v1832 = vpack.c.b16 %v1492, %v1488
        %v1833 = vpack.c.b16 %v1493, %v1489
        %v1834 = vpack.c.b16 %v1494, %v1490
        %v1835 = vpack.c.b16 %v1495, %v1491
        %v1836 = vpack.c.b16 %v1500, %v1496
        %v1837 = vpack.c.b16 %v1501, %v1497
        %v1838 = vpack.c.b16 %v1502, %v1498
        %v1839 = vpack.c.b16 %v1503, %v1499
        %v1840 = vpack.c.b16 %v1508, %v1504
        %v1841 = vpack.c.b16 %v1509, %v1505
        %v1842 = vpack.c.b16 %v1510, %v1506
        %v1843 = vpack.c.b16 %v1511, %v1507
        %v1844 = vpack.c.b16 %v1516, %v1512
        %v1845 = vpack.c.b16 %v1517, %v1513
        %v1846 = vpack.c.b16 %v1518, %v1514
        %v1847 = vpack.c.b16 %v1519, %v1515
        %v1848 = vpack.c.b16 %v1524, %v1520
        %v1849 = vpack.c.b16 %v1525, %v1521
        %v1850 = vpack.c.b16 %v1526, %v1522
        %v1851 = vpack.c.b16 %v1527, %v1523
        %v1852 = vpack.c.b16 %v1532, %v1528
        %v1853 = vpack.c.b16 %v1533, %v1529
        %v1854 = vpack.c.b16 %v1534, %v1530
        %v1855 = vpack.c.b16 %v1535, %v1531
        %v1856 = vpack.c.b16 %v1540, %v1536
        %v1857 = vpack.c.b16 %v1541, %v1537
        %v1858 = vpack.c.b16 %v1542, %v1538
        %v1859 = vpack.c.b16 %v1543, %v1539
        %v1860 = vpack.c.b16 %v1548, %v1544
        %v1861 = vpack.c.b16 %v1549, %v1545
        %v1862 = vpack.c.b16 %v1550, %v1546
        %v1863 = vpack.c.b16 %v1551, %v1547
        %v1864 = vpack.c.b16 %v1556, %v1552
        %v1865 = vpack.c.b16 %v1557, %v1553
        %v1866 = vpack.c.b16 %v1558, %v1554
        %v1867 = vpack.c.b16 %v1559, %v1555
        %v1868 = vpack.c.b16 %v1564, %v1560
        %v1869 = vpack.c.b16 %v1565, %v1561
        %v1870 = vpack.c.b16 %v1566, %v1562
        %v1871 = vpack.c.b16 %v1567, %v1563
        %v1872 = vpack.c.b16 %v1572, %v1568
        %v1873 = vpack.c.b16 %v1573, %v1569
        %v1874 = vpack.c.b16 %v1574, %v1570
        %v1875 = vpack.c.b16 %v1575, %v1571
        %v1876 = vpack.c.b16 %v1580, %v1576
        %v1877 = vpack.c.b16 %v1581, %v1577
        %v1878 = vpack.c.b16 %v1582, %v1578
        %v1879 = vpack.c.b16 %v1583, %v1579
        %v1880 = vpack.c.b16 %v1588, %v1584
        %v1881 = vpack.c.b16 %v1589, %v1585
        %v1882 = vpack.c.b16 %v1590, %v1586
        %v1883 = vpack.c.b16 %v1591, %v1587
        %v1884 = vpack.c.b16 %v1596, %v1592
        %v1885 = vpack.c.b16 %v1597, %v1593
        %v1886 = vpack.c.b16 %v1598, %v1594
        %v1887 = vpack.c.b16 %v1599, %v1595
        %v1888 = vpack.c.b16 %v1604, %v1600
        %v1889 = vpack.c.b16 %v1605, %v1601
        %v1890 = vpack.c.b16 %v1606, %v1602
        %v1891 = vpack.c.b16 %v1607, %v1603
        %v1892 = vpack.c.b16 %v1612, %v1608
        %v1893 = vpack.c.b16 %v1613, %v1609
        %v1894 = vpack.c.b16 %v1614, %v1610
        %v1895 = vpack.c.b16 %v1615, %v1611
        %v1896 = vpack.c.b16 %v1620, %v1616
        %v1897 = vpack.c.b16 %v1621, %v1617
        %v1898 = vpack.c.b16 %v1622, %v1618
        %v1899 = vpack.c.b16 %v1623, %v1619
        %v1900 = vpack.c.b16 %v1628, %v1624
        %v1901 = vpack.c.b16 %v1629, %v1625
        %v1902 = vpack.c.b16 %v1630, %v1626
        %v1903 = vpack.c.b16 %v1631, %v1627
        %v1904 = vpack.c.b16 %v1636, %v1632
        %v1905 = vpack.c.b16 %v1637, %v1633
        %v1906 = vpack.c.b16 %v1638, %v1634
        %v1907 = vpack.c.b16 %v1639, %v1635
        %v1908 = vpack.c.b16 %v1644, %v1640
        %v1909 = vpack.c.b16 %v1645, %v1641
        %v1910 = vpack.c.b16 %v1646, %v1642
        %v1911 = vpack.c.b16 %v1647, %v1643
        %v1912 = vpack.c.b16 %v1652, %v1648
        %v1913 = vpack.c.b16 %v1653, %v1649
        %v1914 = vpack.c.b16 %v1654, %v1650
        %v1915 = vpack.c.b16 %v1655, %v1651
        %v1916 = vpack.c.b16 %v1660, %v1656
        %v1917 = vpack.c.b16 %v1661, %v1657
        %v1918 = vpack.c.b16 %v1662, %v1658
        %v1919 = vpack.c.b16 %v1663, %v1659
        %v2240 = vunpack.c.l.b16 %v576
        %v2241 = vunpack.c.l.b16 %v577
        %v2242 = vunpack.c.l.b16 %v578
        %v2243 = vunpack.c.l.b16 %v579
        %v2244 = vunpack.c.l.b16 %v580
        %v2245 = vunpack.c.l.b16 %v581
        %v2246 = vunpack.c.l.b16 %v582
        %v2247 = vunpack.c.l.b16 %v583
        %v2248 = vunpack.c.l.b16 %v584
        %v2249 = vunpack.c.l.b16 %v585
        %v2250 = vunpack.c.l.b16 %v586
        %v2251 = vunpack.c.l.b16 %v587
        %v2252 = vunpack.c.l.b16 %v588
        %v2253 = vunpack.c.l.b16 %v589
        %v2254 = vunpack.c.l.b16 %v590
        %v2255 = vunpack.c.l.b16 %v591
        %v2256 = vunpack.c.l.b16 %v592
        %v2257 = vunpack.c.l.b16 %v593
        %v2258 = vunpack.c.l.b16 %v594
        %v2259 = vunpack.c.l.b16 %v595
        %v2260 = vunpack.c.l.b16 %v596
        %v2261 = vunpack.c.l.b16 %v597
        %v2262 = vunpack.c.l.b16 %v598
        %v2263 = vunpack.c.l.b16 %v599
        %v2264 = vunpack.c.l.b16 %v600
        %v2265 = vunpack.c.l.b16 %v601
        %v2266 = vunpack.c.l.b16 %v602
        %v2267 = vunpack.c.l.b16 %v603
        %v2268 = vunpack.c.l.b16 %v604
        %v2269 = vunpack.c.l.b16 %v605
        %v2270 = vunpack.c.l.b16 %v606
        %v2271 = vunpack.c.l.b16 %v607
        %v2272 = vunpack.c.l.b16 %v608
        %v2273 = vunpack.c.l.b16 %v609
        %v2274 = vunpack.c.l.b16 %v610
        %v2275 = vunpack.c.l.b16 %v611
        %v2276 = vunpack.c.l.b16 %v612
        %v2277 = vunpack.c.l.b16 %v613
        %v2278 = vunpack.c.l.b16 %v614
        %v2279 = vunpack.c.l.b16 %v615
        %v2280 = vunpack.c.l.b16 %v616
        %v2281 = vunpack.c.l.b16 %v617
        %v2282 = vunpack.c.l.b16 %v618
        %v2283 = vunpack.c.l.b16 %v619
        %v2284 = vunpack.c.l.b16 %v620
        %v2285 = vunpack.c.l.b16 %v621
        %v2286 = vunpack.c.l.b16 %v622
        %v2287 = vunpack.c.l.b16 %v623
        %v2288 = vunpack.c.l.b16 %v624
        %v2289 = vunpack.c.l.b16 %v625
        %v2290 = vunpack.c.l.b16 %v626
        %v2291 = vunpack.c.l.b16 %v627
        %v2292 = vunpack.c.l.b16 %v628
        %v2293 = vunpack.c.l.b16 %v629
        %v2294 = vunpack.c.l.b16 %v630
        %v2295 = vunpack.c.l.b16 %v631
        %v2296 = vunpack.c.l.b16 %v632
        %v2297 = vunpack.c.l.b16 %v633
        %v2298 = vunpack.c.l.b16 %v634
        %v2299 = vunpack.c.l.b16 %v635
        %v2300 = vunpack.c.l.b16 %v636
        %v2301 = vunpack.c.l.b16 %v637
        %v2302 = vunpack.c.l.b16 %v638
        %v2303 = vunpack.c.l.b16 %v639
        %v2304 = vpack.c.b16 %v2241, %v2240
        %v2305 = vpack.c.b16 %v2243, %v2242
        %v2306 = vpack.c.b16 %v2245, %v2244
        %v2307 = vpack.c.b16 %v2247, %v2246
        %v2308 = vpack.c.b16 %v2249, %v2248
        %v2309 = vpack.c.b16 %v2251, %v2250
        %v2310 = vpack.c.b16 %v2253, %v2252
        %v2311 = vpack.c.b16 %v2255, %v2254
        %v2312 = vpack.c.b16 %v2257, %v2256
        %v2313 = vpack.c.b16 %v2259, %v2258
        %v2314 = vpack.c.b16 %v2261, %v2260
        %v2315 = vpack.c.b16 %v2263, %v2262
        %v2316 = vpack.c.b16 %v2265, %v2264
        %v2317 = vpack.c.b16 %v2267, %v2266
        %v2318 = vpack.c.b16 %v2269, %v2268
        %v2319 = vpack.c.b16 %v2271, %v2270
        %v2320 = vpack.c.b16 %v2273, %v2272
        %v2321 = vpack.c.b16 %v2275, %v2274
        %v2322 = vpack.c.b16 %v2277, %v2276
        %v2323 = vpack.c.b16 %v2279, %v2278
        %v2324 = vpack.c.b16 %v2281, %v2280
        %v2325 = vpack.c.b16 %v2283, %v2282
        %v2326 = vpack.c.b16 %v2285, %v2284
        %v2327 = vpack.c.b16 %v2287, %v2286
        %v2328 = vpack.c.b16 %v2289, %v2288
        %v2329 = vpack.c.b16 %v2291, %v2290
        %v2330 = vpack.c.b16 %v2293, %v2292
        %v2331 = vpack.c.b16 %v2295, %v2294
        %v2332 = vpack.c.b16 %v2297, %v2296
        %v2333 = vpack.c.b16 %v2299, %v2298
        %v2334 = vpack.c.b16 %v2301, %v2300
        %v2335 = vpack.c.b16 %v2303, %v2302
        %2368 = vmatprep.subr.bf16.mxu0 0
        %2369 = vmatpush1.bf16.msra.mxu0 %v2311
        %2370 = vmatprep.subr.bf16.mxu0 0
        %2371 = vmatpush1.bf16.msra.mxu0 %v2310
        %2372 = vmatprep.subr.bf16.mxu0 0
        %2373 = vmatpush1.bf16.msra.mxu0 %v2309
        %2374 = vmatprep.subr.bf16.mxu0 0
        %2375 = vmatpush1.bf16.msra.mxu0 %v2308
        %2376 = vmatprep.subr.bf16.mxu0 0
        %2377 = vmatpush1.bf16.msra.mxu0 %v2307
        %2378 = vmatprep.subr.bf16.mxu0 0
        %2379 = vmatpush1.bf16.msra.mxu0 %v2306
        %2380 = vmatprep.subr.bf16.mxu0 0
        %2381 = vmatpush1.bf16.msra.mxu0 %v2305
        %2382 = vmatprep.subr.bf16.mxu0 0
        %2383 = vmatpush1.bf16.msra.mxu0 %v2304
        %2384 = vmatprep.subr.bf16.mxu0 0
        %2385 = vmatpush2.bf16.msra.mxu0 %v2319
        %2386 = vmatprep.subr.bf16.mxu0 0
        %2387 = vmatpush2.bf16.msra.mxu0 %v2318
        %2388 = vmatprep.subr.bf16.mxu0 0
        %2389 = vmatpush2.bf16.msra.mxu0 %v2317
        %2390 = vmatprep.subr.bf16.mxu0 0
        %2391 = vmatpush2.bf16.msra.mxu0 %v2316
        %2392 = vmatprep.subr.bf16.mxu0 0
        %2393 = vmatpush2.bf16.msra.mxu0 %v2315
        %2394 = vmatprep.subr.bf16.mxu0 0
        %2395 = vmatpush2.bf16.msra.mxu0 %v2314
        %2396 = vmatprep.subr.bf16.mxu0 0
        %2397 = vmatpush2.bf16.msra.mxu0 %v2313
        %2398 = vmatprep.subr.bf16.mxu0 0
        %2399 = vmatpush2.bf16.msra.mxu0 %v2312
        %2400 = vmatprep.mubr.bf16.mxu0 %v1665
        %2401 = vmatmul.mubr.bf16.gmra.mxu0 %v1664
        %v2402 = vpop.f32.mrf.mxu0
        %v2403 = vadd.f32 0.0, %v2402
        %v2404 = vpop.f32.mrf.mxu0
        %v2405 = vpop.f32.mrf.mxu0
        %v2406 = vadd.f32 0.0, %v2405
        %v2407 = vpop.f32.mrf.mxu0
        %2408 = vmatprep.mubr.bf16.mxu0 %v1669
        %2409 = vmatmul.mubr.bf16.gmra.mxu0 %v1668
        %v2410 = vpop.f32.mrf.mxu0
        %v2411 = vadd.f32 0.0, %v2410
        %v2412 = vpop.f32.mrf.mxu0
        %v2413 = vpop.f32.mrf.mxu0
        %v2414 = vadd.f32 0.0, %v2413
        %v2415 = vpop.f32.mrf.mxu0
        %2416 = vmatprep.mubr.bf16.mxu0 %v1673
        %2417 = vmatmul.mubr.bf16.gmra.mxu0 %v1672
        %v2418 = vpop.f32.mrf.mxu0
        %v2419 = vadd.f32 0.0, %v2418
        %v2420 = vpop.f32.mrf.mxu0
        %v2421 = vpop.f32.mrf.mxu0
        %v2422 = vadd.f32 0.0, %v2421
        %v2423 = vpop.f32.mrf.mxu0
        %2424 = vmatprep.mubr.bf16.mxu0 %v1677
        %2425 = vmatmul.mubr.bf16.gmra.mxu0 %v1676
        %v2426 = vpop.f32.mrf.mxu0
        %v2427 = vadd.f32 0.0, %v2426
        %v2428 = vpop.f32.mrf.mxu0
        %v2429 = vpop.f32.mrf.mxu0
        %v2430 = vadd.f32 0.0, %v2429
        %v2431 = vpop.f32.mrf.mxu0
        %2432 = vmatprep.mubr.bf16.mxu0 %v1681
        %2433 = vmatmul.mubr.bf16.gmra.mxu0 %v1680
        %v2434 = vpop.f32.mrf.mxu0
        %v2435 = vadd.f32 0.0, %v2434
        %v2436 = vpop.f32.mrf.mxu0
        %v2437 = vpop.f32.mrf.mxu0
        %v2438 = vadd.f32 0.0, %v2437
        %v2439 = vpop.f32.mrf.mxu0
        %2440 = vmatprep.mubr.bf16.mxu0 %v1685
        %2441 = vmatmul.mubr.bf16.gmra.mxu0 %v1684
        %v2442 = vpop.f32.mrf.mxu0
        %v2443 = vadd.f32 0.0, %v2442
        %v2444 = vpop.f32.mrf.mxu0
        %v2445 = vpop.f32.mrf.mxu0
        %v2446 = vadd.f32 0.0, %v2445
        %v2447 = vpop.f32.mrf.mxu0
        %2448 = vmatprep.mubr.bf16.mxu0 %v1689
        %2449 = vmatmul.mubr.bf16.gmra.mxu0 %v1688
        %v2450 = vpop.f32.mrf.mxu0
        %v2451 = vadd.f32 0.0, %v2450
        %v2452 = vpop.f32.mrf.mxu0
        %v2453 = vpop.f32.mrf.mxu0
        %v2454 = vadd.f32 0.0, %v2453
        %v2455 = vpop.f32.mrf.mxu0
        %2456 = vmatprep.mubr.bf16.mxu0 %v1693
        %2457 = vmatmul.mubr.bf16.gmra.mxu0 %v1692
        %v2458 = vpop.f32.mrf.mxu0
        %v2459 = vadd.f32 0.0, %v2458
        %v2460 = vpop.f32.mrf.mxu0
        %v2461 = vpop.f32.mrf.mxu0
        %v2462 = vadd.f32 0.0, %v2461
        %v2463 = vpop.f32.mrf.mxu0
        %2464 = vmatprep.mubr.bf16.mxu0 %v1697
        %2465 = vmatmul.mubr.bf16.gmra.mxu0 %v1696
        %v2466 = vpop.f32.mrf.mxu0
        %v2467 = vadd.f32 0.0, %v2466
        %v2468 = vpop.f32.mrf.mxu0
        %v2469 = vpop.f32.mrf.mxu0
        %v2470 = vadd.f32 0.0, %v2469
        %v2471 = vpop.f32.mrf.mxu0
        %2472 = vmatprep.mubr.bf16.mxu0 %v1701
        %2473 = vmatmul.mubr.bf16.gmra.mxu0 %v1700
        %v2474 = vpop.f32.mrf.mxu0
        %v2475 = vadd.f32 0.0, %v2474
        %v2476 = vpop.f32.mrf.mxu0
        %v2477 = vpop.f32.mrf.mxu0
        %v2478 = vadd.f32 0.0, %v2477
        %v2479 = vpop.f32.mrf.mxu0
        %2480 = vmatprep.mubr.bf16.mxu0 %v1705
        %2481 = vmatmul.mubr.bf16.gmra.mxu0 %v1704
        %v2482 = vpop.f32.mrf.mxu0
        %v2483 = vadd.f32 0.0, %v2482
        %v2484 = vpop.f32.mrf.mxu0
        %v2485 = vpop.f32.mrf.mxu0
        %v2486 = vadd.f32 0.0, %v2485
        %v2487 = vpop.f32.mrf.mxu0
        %2488 = vmatprep.mubr.bf16.mxu0 %v1709
        %2489 = vmatmul.mubr.bf16.gmra.mxu0 %v1708
        %v2490 = vpop.f32.mrf.mxu0
        %v2491 = vadd.f32 0.0, %v2490
        %v2492 = vpop.f32.mrf.mxu0
        %v2493 = vpop.f32.mrf.mxu0
        %v2494 = vadd.f32 0.0, %v2493
        %v2495 = vpop.f32.mrf.mxu0
        %2496 = vmatprep.mubr.bf16.mxu0 %v1713
        %2497 = vmatmul.mubr.bf16.gmra.mxu0 %v1712
        %v2498 = vpop.f32.mrf.mxu0
        %v2499 = vadd.f32 0.0, %v2498
        %v2500 = vpop.f32.mrf.mxu0
        %v2501 = vpop.f32.mrf.mxu0
        %v2502 = vadd.f32 0.0, %v2501
        %v2503 = vpop.f32.mrf.mxu0
        %2504 = vmatprep.mubr.bf16.mxu0 %v1717
        %2505 = vmatmul.mubr.bf16.gmra.mxu0 %v1716
        %v2506 = vpop.f32.mrf.mxu0
        %v2507 = vadd.f32 0.0, %v2506
        %v2508 = vpop.f32.mrf.mxu0
        %v2509 = vpop.f32.mrf.mxu0
        %v2510 = vadd.f32 0.0, %v2509
        %v2511 = vpop.f32.mrf.mxu0
        %2512 = vmatprep.mubr.bf16.mxu0 %v1721
        %2513 = vmatmul.mubr.bf16.gmra.mxu0 %v1720
        %v2514 = vpop.f32.mrf.mxu0
        %v2515 = vadd.f32 0.0, %v2514
        %v2516 = vpop.f32.mrf.mxu0
        %v2517 = vpop.f32.mrf.mxu0
        %v2518 = vadd.f32 0.0, %v2517
        %v2519 = vpop.f32.mrf.mxu0
        %2520 = vmatprep.mubr.bf16.mxu0 %v1725
        %2521 = vmatmul.mubr.bf16.gmra.mxu0 %v1724
        %v2522 = vpop.f32.mrf.mxu0
        %v2523 = vadd.f32 0.0, %v2522
        %v2524 = vpop.f32.mrf.mxu0
        %v2525 = vpop.f32.mrf.mxu0
        %v2526 = vadd.f32 0.0, %v2525
        %v2527 = vpop.f32.mrf.mxu0
        %2528 = vmatprep.mubr.bf16.mxu0 %v1729
        %2529 = vmatmul.mubr.bf16.gmra.mxu0 %v1728
        %v2530 = vpop.f32.mrf.mxu0
        %v2531 = vadd.f32 0.0, %v2530
        %v2532 = vpop.f32.mrf.mxu0
        %v2533 = vpop.f32.mrf.mxu0
        %v2534 = vadd.f32 0.0, %v2533
        %v2535 = vpop.f32.mrf.mxu0
        %2536 = vmatprep.mubr.bf16.mxu0 %v1733
        %2537 = vmatmul.mubr.bf16.gmra.mxu0 %v1732
        %v2538 = vpop.f32.mrf.mxu0
        %v2539 = vadd.f32 0.0, %v2538
        %v2540 = vpop.f32.mrf.mxu0
        %v2541 = vpop.f32.mrf.mxu0
        %v2542 = vadd.f32 0.0, %v2541
        %v2543 = vpop.f32.mrf.mxu0
        %2544 = vmatprep.mubr.bf16.mxu0 %v1737
        %2545 = vmatmul.mubr.bf16.gmra.mxu0 %v1736
        %v2546 = vpop.f32.mrf.mxu0
        %v2547 = vadd.f32 0.0, %v2546
        %v2548 = vpop.f32.mrf.mxu0
        %v2549 = vpop.f32.mrf.mxu0
        %v2550 = vadd.f32 0.0, %v2549
        %v2551 = vpop.f32.mrf.mxu0
        %2552 = vmatprep.mubr.bf16.mxu0 %v1741
        %2553 = vmatmul.mubr.bf16.gmra.mxu0 %v1740
        %v2554 = vpop.f32.mrf.mxu0
        %v2555 = vadd.f32 0.0, %v2554
        %v2556 = vpop.f32.mrf.mxu0
        %v2557 = vpop.f32.mrf.mxu0
        %v2558 = vadd.f32 0.0, %v2557
        %v2559 = vpop.f32.mrf.mxu0
        %2560 = vmatprep.mubr.bf16.mxu0 %v1745
        %2561 = vmatmul.mubr.bf16.gmra.mxu0 %v1744
        %v2562 = vpop.f32.mrf.mxu0
        %v2563 = vadd.f32 0.0, %v2562
        %v2564 = vpop.f32.mrf.mxu0
        %v2565 = vpop.f32.mrf.mxu0
        %v2566 = vadd.f32 0.0, %v2565
        %v2567 = vpop.f32.mrf.mxu0
        %2568 = vmatprep.mubr.bf16.mxu0 %v1749
        %2569 = vmatmul.mubr.bf16.gmra.mxu0 %v1748
        %v2570 = vpop.f32.mrf.mxu0
        %v2571 = vadd.f32 0.0, %v2570
        %v2572 = vpop.f32.mrf.mxu0
        %v2573 = vpop.f32.mrf.mxu0
        %v2574 = vadd.f32 0.0, %v2573
        %v2575 = vpop.f32.mrf.mxu0
        %2576 = vmatprep.mubr.bf16.mxu0 %v1753
        %2577 = vmatmul.mubr.bf16.gmra.mxu0 %v1752
        %v2578 = vpop.f32.mrf.mxu0
        %v2579 = vadd.f32 0.0, %v2578
        %v2580 = vpop.f32.mrf.mxu0
        %v2581 = vpop.f32.mrf.mxu0
        %v2582 = vadd.f32 0.0, %v2581
        %v2583 = vpop.f32.mrf.mxu0
        %2584 = vmatprep.mubr.bf16.mxu0 %v1757
        %2585 = vmatmul.mubr.bf16.gmra.mxu0 %v1756
        %v2586 = vpop.f32.mrf.mxu0
        %v2587 = vadd.f32 0.0, %v2586
        %v2588 = vpop.f32.mrf.mxu0
        %v2589 = vpop.f32.mrf.mxu0
        %v2590 = vadd.f32 0.0, %v2589
        %v2591 = vpop.f32.mrf.mxu0
        %2592 = vmatprep.mubr.bf16.mxu0 %v1761
        %2593 = vmatmul.mubr.bf16.gmra.mxu0 %v1760
        %v2594 = vpop.f32.mrf.mxu0
        %v2595 = vadd.f32 0.0, %v2594
        %v2596 = vpop.f32.mrf.mxu0
        %v2597 = vpop.f32.mrf.mxu0
        %v2598 = vadd.f32 0.0, %v2597
        %v2599 = vpop.f32.mrf.mxu0
        %2600 = vmatprep.mubr.bf16.mxu0 %v1765
        %2601 = vmatmul.mubr.bf16.gmra.mxu0 %v1764
        %v2602 = vpop.f32.mrf.mxu0
        %v2603 = vadd.f32 0.0, %v2602
        %v2604 = vpop.f32.mrf.mxu0
        %v2605 = vpop.f32.mrf.mxu0
        %v2606 = vadd.f32 0.0, %v2605
        %v2607 = vpop.f32.mrf.mxu0
        %2608 = vmatprep.mubr.bf16.mxu0 %v1769
        %2609 = vmatmul.mubr.bf16.gmra.mxu0 %v1768
        %v2610 = vpop.f32.mrf.mxu0
        %v2611 = vadd.f32 0.0, %v2610
        %v2612 = vpop.f32.mrf.mxu0
        %v2613 = vpop.f32.mrf.mxu0
        %v2614 = vadd.f32 0.0, %v2613
        %v2615 = vpop.f32.mrf.mxu0
        %2616 = vmatprep.mubr.bf16.mxu0 %v1773
        %2617 = vmatmul.mubr.bf16.gmra.mxu0 %v1772
        %v2618 = vpop.f32.mrf.mxu0
        %v2619 = vadd.f32 0.0, %v2618
        %v2620 = vpop.f32.mrf.mxu0
        %v2621 = vpop.f32.mrf.mxu0
        %v2622 = vadd.f32 0.0, %v2621
        %v2623 = vpop.f32.mrf.mxu0
        %2624 = vmatprep.mubr.bf16.mxu0 %v1777
        %2625 = vmatmul.mubr.bf16.gmra.mxu0 %v1776
        %v2626 = vpop.f32.mrf.mxu0
        %v2627 = vadd.f32 0.0, %v2626
        %v2628 = vpop.f32.mrf.mxu0
        %v2629 = vpop.f32.mrf.mxu0
        %v2630 = vadd.f32 0.0, %v2629
        %v2631 = vpop.f32.mrf.mxu0
        %2632 = vmatprep.mubr.bf16.mxu0 %v1781
        %2633 = vmatmul.mubr.bf16.gmra.mxu0 %v1780
        %v2634 = vpop.f32.mrf.mxu0
        %v2635 = vadd.f32 0.0, %v2634
        %v2636 = vpop.f32.mrf.mxu0
        %v2637 = vpop.f32.mrf.mxu0
        %v2638 = vadd.f32 0.0, %v2637
        %v2639 = vpop.f32.mrf.mxu0
        %2640 = vmatprep.mubr.bf16.mxu0 %v1785
        %2641 = vmatmul.mubr.bf16.gmra.mxu0 %v1784
        %v2642 = vpop.f32.mrf.mxu0
        %v2643 = vadd.f32 0.0, %v2642
        %v2644 = vpop.f32.mrf.mxu0
        %v2645 = vpop.f32.mrf.mxu0
        %v2646 = vadd.f32 0.0, %v2645
        %v2647 = vpop.f32.mrf.mxu0
        %2648 = vmatprep.mubr.bf16.mxu0 %v1789
        %2649 = vmatmul.mubr.bf16.gmra.mxu0 %v1788
        %v2650 = vpop.f32.mrf.mxu0
        %v2651 = vadd.f32 0.0, %v2650
        %v2652 = vpop.f32.mrf.mxu0
        %v2653 = vpop.f32.mrf.mxu0
        %v2654 = vadd.f32 0.0, %v2653
        %v2655 = vpop.f32.mrf.mxu0
        %2656 = vmatprep.mubr.bf16.mxu0 %v1793
        %2657 = vmatmul.mubr.bf16.gmra.mxu0 %v1792
        %v2658 = vpop.f32.mrf.mxu0
        %v2659 = vadd.f32 0.0, %v2658
        %v2660 = vpop.f32.mrf.mxu0
        %v2661 = vpop.f32.mrf.mxu0
        %v2662 = vadd.f32 0.0, %v2661
        %v2663 = vpop.f32.mrf.mxu0
        %2664 = vmatprep.mubr.bf16.mxu0 %v1797
        %2665 = vmatmul.mubr.bf16.gmra.mxu0 %v1796
        %v2666 = vpop.f32.mrf.mxu0
        %v2667 = vadd.f32 0.0, %v2666
        %v2668 = vpop.f32.mrf.mxu0
        %v2669 = vpop.f32.mrf.mxu0
        %v2670 = vadd.f32 0.0, %v2669
        %v2671 = vpop.f32.mrf.mxu0
        %2672 = vmatprep.mubr.bf16.mxu0 %v1801
        %2673 = vmatmul.mubr.bf16.gmra.mxu0 %v1800
        %v2674 = vpop.f32.mrf.mxu0
        %v2675 = vadd.f32 0.0, %v2674
        %v2676 = vpop.f32.mrf.mxu0
        %v2677 = vpop.f32.mrf.mxu0
        %v2678 = vadd.f32 0.0, %v2677
        %v2679 = vpop.f32.mrf.mxu0
        %2680 = vmatprep.mubr.bf16.mxu0 %v1805
        %2681 = vmatmul.mubr.bf16.gmra.mxu0 %v1804
        %v2682 = vpop.f32.mrf.mxu0
        %v2683 = vadd.f32 0.0, %v2682
        %v2684 = vpop.f32.mrf.mxu0
        %v2685 = vpop.f32.mrf.mxu0
        %v2686 = vadd.f32 0.0, %v2685
        %v2687 = vpop.f32.mrf.mxu0
        %2688 = vmatprep.mubr.bf16.mxu0 %v1809
        %2689 = vmatmul.mubr.bf16.gmra.mxu0 %v1808
        %v2690 = vpop.f32.mrf.mxu0
        %v2691 = vadd.f32 0.0, %v2690
        %v2692 = vpop.f32.mrf.mxu0
        %v2693 = vpop.f32.mrf.mxu0
        %v2694 = vadd.f32 0.0, %v2693
        %v2695 = vpop.f32.mrf.mxu0
        %2696 = vmatprep.mubr.bf16.mxu0 %v1813
        %2697 = vmatmul.mubr.bf16.gmra.mxu0 %v1812
        %v2698 = vpop.f32.mrf.mxu0
        %v2699 = vadd.f32 0.0, %v2698
        %v2700 = vpop.f32.mrf.mxu0
        %v2701 = vpop.f32.mrf.mxu0
        %v2702 = vadd.f32 0.0, %v2701
        %v2703 = vpop.f32.mrf.mxu0
        %2704 = vmatprep.mubr.bf16.mxu0 %v1817
        %2705 = vmatmul.mubr.bf16.gmra.mxu0 %v1816
        %v2706 = vpop.f32.mrf.mxu0
        %v2707 = vadd.f32 0.0, %v2706
        %v2708 = vpop.f32.mrf.mxu0
        %v2709 = vpop.f32.mrf.mxu0
        %v2710 = vadd.f32 0.0, %v2709
        %v2711 = vpop.f32.mrf.mxu0
        %2712 = vmatprep.mubr.bf16.mxu0 %v1821
        %2713 = vmatmul.mubr.bf16.gmra.mxu0 %v1820
        %v2714 = vpop.f32.mrf.mxu0
        %v2715 = vadd.f32 0.0, %v2714
        %v2716 = vpop.f32.mrf.mxu0
        %v2717 = vpop.f32.mrf.mxu0
        %v2718 = vadd.f32 0.0, %v2717
        %v2719 = vpop.f32.mrf.mxu0
        %2720 = vmatprep.mubr.bf16.mxu0 %v1825
        %2721 = vmatmul.mubr.bf16.gmra.mxu0 %v1824
        %v2722 = vpop.f32.mrf.mxu0
        %v2723 = vadd.f32 0.0, %v2722
        %v2724 = vpop.f32.mrf.mxu0
        %v2725 = vpop.f32.mrf.mxu0
        %v2726 = vadd.f32 0.0, %v2725
        %v2727 = vpop.f32.mrf.mxu0
        %2728 = vmatprep.mubr.bf16.mxu0 %v1829
        %2729 = vmatmul.mubr.bf16.gmra.mxu0 %v1828
        %v2730 = vpop.f32.mrf.mxu0
        %v2731 = vadd.f32 0.0, %v2730
        %v2732 = vpop.f32.mrf.mxu0
        %v2733 = vpop.f32.mrf.mxu0
        %v2734 = vadd.f32 0.0, %v2733
        %v2735 = vpop.f32.mrf.mxu0
        %2736 = vmatprep.mubr.bf16.mxu0 %v1833
        %2737 = vmatmul.mubr.bf16.gmra.mxu0 %v1832
        %v2738 = vpop.f32.mrf.mxu0
        %v2739 = vadd.f32 0.0, %v2738
        %v2740 = vpop.f32.mrf.mxu0
        %v2741 = vpop.f32.mrf.mxu0
        %v2742 = vadd.f32 0.0, %v2741
        %v2743 = vpop.f32.mrf.mxu0
        %2744 = vmatprep.mubr.bf16.mxu0 %v1837
        %2745 = vmatmul.mubr.bf16.gmra.mxu0 %v1836
        %v2746 = vpop.f32.mrf.mxu0
        %v2747 = vadd.f32 0.0, %v2746
        %v2748 = vpop.f32.mrf.mxu0
        %v2749 = vpop.f32.mrf.mxu0
        %v2750 = vadd.f32 0.0, %v2749
        %v2751 = vpop.f32.mrf.mxu0
        %2752 = vmatprep.mubr.bf16.mxu0 %v1841
        %2753 = vmatmul.mubr.bf16.gmra.mxu0 %v1840
        %v2754 = vpop.f32.mrf.mxu0
        %v2755 = vadd.f32 0.0, %v2754
        %v2756 = vpop.f32.mrf.mxu0
        %v2757 = vpop.f32.mrf.mxu0
        %v2758 = vadd.f32 0.0, %v2757
        %v2759 = vpop.f32.mrf.mxu0
        %2760 = vmatprep.mubr.bf16.mxu0 %v1845
        %2761 = vmatmul.mubr.bf16.gmra.mxu0 %v1844
        %v2762 = vpop.f32.mrf.mxu0
        %v2763 = vadd.f32 0.0, %v2762
        %v2764 = vpop.f32.mrf.mxu0
        %v2765 = vpop.f32.mrf.mxu0
        %v2766 = vadd.f32 0.0, %v2765
        %v2767 = vpop.f32.mrf.mxu0
        %2768 = vmatprep.mubr.bf16.mxu0 %v1849
        %2769 = vmatmul.mubr.bf16.gmra.mxu0 %v1848
        %v2770 = vpop.f32.mrf.mxu0
        %v2771 = vadd.f32 0.0, %v2770
        %v2772 = vpop.f32.mrf.mxu0
        %v2773 = vpop.f32.mrf.mxu0
        %v2774 = vadd.f32 0.0, %v2773
        %v2775 = vpop.f32.mrf.mxu0
        %2776 = vmatprep.mubr.bf16.mxu0 %v1853
        %2777 = vmatmul.mubr.bf16.gmra.mxu0 %v1852
        %v2778 = vpop.f32.mrf.mxu0
        %v2779 = vadd.f32 0.0, %v2778
        %v2780 = vpop.f32.mrf.mxu0
        %v2781 = vpop.f32.mrf.mxu0
        %v2782 = vadd.f32 0.0, %v2781
        %v2783 = vpop.f32.mrf.mxu0
        %2784 = vmatprep.mubr.bf16.mxu0 %v1857
        %2785 = vmatmul.mubr.bf16.gmra.mxu0 %v1856
        %v2786 = vpop.f32.mrf.mxu0
        %v2787 = vadd.f32 0.0, %v2786
        %v2788 = vpop.f32.mrf.mxu0
        %v2789 = vpop.f32.mrf.mxu0
        %v2790 = vadd.f32 0.0, %v2789
        %v2791 = vpop.f32.mrf.mxu0
        %2792 = vmatprep.mubr.bf16.mxu0 %v1861
        %2793 = vmatmul.mubr.bf16.gmra.mxu0 %v1860
        %v2794 = vpop.f32.mrf.mxu0
        %v2795 = vadd.f32 0.0, %v2794
        %v2796 = vpop.f32.mrf.mxu0
        %v2797 = vpop.f32.mrf.mxu0
        %v2798 = vadd.f32 0.0, %v2797
        %v2799 = vpop.f32.mrf.mxu0
        %2800 = vmatprep.mubr.bf16.mxu0 %v1865
        %2801 = vmatmul.mubr.bf16.gmra.mxu0 %v1864
        %v2802 = vpop.f32.mrf.mxu0
        %v2803 = vadd.f32 0.0, %v2802
        %v2804 = vpop.f32.mrf.mxu0
        %v2805 = vpop.f32.mrf.mxu0
        %v2806 = vadd.f32 0.0, %v2805
        %v2807 = vpop.f32.mrf.mxu0
        %2808 = vmatprep.mubr.bf16.mxu0 %v1869
        %2809 = vmatmul.mubr.bf16.gmra.mxu0 %v1868
        %v2810 = vpop.f32.mrf.mxu0
        %v2811 = vadd.f32 0.0, %v2810
        %v2812 = vpop.f32.mrf.mxu0
        %v2813 = vpop.f32.mrf.mxu0
        %v2814 = vadd.f32 0.0, %v2813
        %v2815 = vpop.f32.mrf.mxu0
        %2816 = vmatprep.mubr.bf16.mxu0 %v1873
        %2817 = vmatmul.mubr.bf16.gmra.mxu0 %v1872
        %v2818 = vpop.f32.mrf.mxu0
        %v2819 = vadd.f32 0.0, %v2818
        %v2820 = vpop.f32.mrf.mxu0
        %v2821 = vpop.f32.mrf.mxu0
        %v2822 = vadd.f32 0.0, %v2821
        %v2823 = vpop.f32.mrf.mxu0
        %2824 = vmatprep.mubr.bf16.mxu0 %v1877
        %2825 = vmatmul.mubr.bf16.gmra.mxu0 %v1876
        %v2826 = vpop.f32.mrf.mxu0
        %v2827 = vadd.f32 0.0, %v2826
        %v2828 = vpop.f32.mrf.mxu0
        %v2829 = vpop.f32.mrf.mxu0
        %v2830 = vadd.f32 0.0, %v2829
        %v2831 = vpop.f32.mrf.mxu0
        %2832 = vmatprep.mubr.bf16.mxu0 %v1881
        %2833 = vmatmul.mubr.bf16.gmra.mxu0 %v1880
        %v2834 = vpop.f32.mrf.mxu0
        %v2835 = vadd.f32 0.0, %v2834
        %v2836 = vpop.f32.mrf.mxu0
        %v2837 = vpop.f32.mrf.mxu0
        %v2838 = vadd.f32 0.0, %v2837
        %v2839 = vpop.f32.mrf.mxu0
        %2840 = vmatprep.mubr.bf16.mxu0 %v1885
        %2841 = vmatmul.mubr.bf16.gmra.mxu0 %v1884
        %v2842 = vpop.f32.mrf.mxu0
        %v2843 = vadd.f32 0.0, %v2842
        %v2844 = vpop.f32.mrf.mxu0
        %v2845 = vpop.f32.mrf.mxu0
        %v2846 = vadd.f32 0.0, %v2845
        %v2847 = vpop.f32.mrf.mxu0
        %2848 = vmatprep.mubr.bf16.mxu0 %v1889
        %2849 = vmatmul.mubr.bf16.gmra.mxu0 %v1888
        %v2850 = vpop.f32.mrf.mxu0
        %v2851 = vadd.f32 0.0, %v2850
        %v2852 = vpop.f32.mrf.mxu0
        %v2853 = vpop.f32.mrf.mxu0
        %v2854 = vadd.f32 0.0, %v2853
        %v2855 = vpop.f32.mrf.mxu0
        %2856 = vmatprep.mubr.bf16.mxu0 %v1893
        %2857 = vmatmul.mubr.bf16.gmra.mxu0 %v1892
        %v2858 = vpop.f32.mrf.mxu0
        %v2859 = vadd.f32 0.0, %v2858
        %v2860 = vpop.f32.mrf.mxu0
        %v2861 = vpop.f32.mrf.mxu0
        %v2862 = vadd.f32 0.0, %v2861
        %v2863 = vpop.f32.mrf.mxu0
        %2864 = vmatprep.mubr.bf16.mxu0 %v1897
        %2865 = vmatmul.mubr.bf16.gmra.mxu0 %v1896
        %v2866 = vpop.f32.mrf.mxu0
        %v2867 = vadd.f32 0.0, %v2866
        %v2868 = vpop.f32.mrf.mxu0
        %v2869 = vpop.f32.mrf.mxu0
        %v2870 = vadd.f32 0.0, %v2869
        %v2871 = vpop.f32.mrf.mxu0
        %2872 = vmatprep.mubr.bf16.mxu0 %v1901
        %2873 = vmatmul.mubr.bf16.gmra.mxu0 %v1900
        %v2874 = vpop.f32.mrf.mxu0
        %v2875 = vadd.f32 0.0, %v2874
        %v2876 = vpop.f32.mrf.mxu0
        %v2877 = vpop.f32.mrf.mxu0
        %v2878 = vadd.f32 0.0, %v2877
        %v2879 = vpop.f32.mrf.mxu0
        %2880 = vmatprep.mubr.bf16.mxu0 %v1905
        %2881 = vmatmul.mubr.bf16.gmra.mxu0 %v1904
        %v2882 = vpop.f32.mrf.mxu0
        %v2883 = vadd.f32 0.0, %v2882
        %v2884 = vpop.f32.mrf.mxu0
        %v2885 = vpop.f32.mrf.mxu0
        %v2886 = vadd.f32 0.0, %v2885
        %v2887 = vpop.f32.mrf.mxu0
        %2888 = vmatprep.mubr.bf16.mxu0 %v1909
        %2889 = vmatmul.mubr.bf16.gmra.mxu0 %v1908
        %v2890 = vpop.f32.mrf.mxu0
        %v2891 = vadd.f32 0.0, %v2890
        %v2892 = vpop.f32.mrf.mxu0
        %v2893 = vpop.f32.mrf.mxu0
        %v2894 = vadd.f32 0.0, %v2893
        %v2895 = vpop.f32.mrf.mxu0
        %2896 = vmatprep.mubr.bf16.mxu0 %v1913
        %2897 = vmatmul.mubr.bf16.gmra.mxu0 %v1912
        %v2898 = vpop.f32.mrf.mxu0
        %v2899 = vadd.f32 0.0, %v2898
        %v2900 = vpop.f32.mrf.mxu0
        %v2901 = vpop.f32.mrf.mxu0
        %v2902 = vadd.f32 0.0, %v2901
        %v2903 = vpop.f32.mrf.mxu0
        %2904 = vmatprep.mubr.bf16.mxu0 %v1917
        %2905 = vmatmul.mubr.bf16.gmra.mxu0 %v1916
        %v2906 = vpop.f32.mrf.mxu0
        %v2907 = vadd.f32 0.0, %v2906
        %v2908 = vpop.f32.mrf.mxu0
        %v2909 = vpop.f32.mrf.mxu0
        %v2910 = vadd.f32 0.0, %v2909
        %v2911 = vpop.f32.mrf.mxu0
        %2912 = vdwg.mxu0
        %2913 = vmatprep.subr.bf16.mxu0 0
        %2914 = vmatpush1.bf16.msra.mxu0 %v2327
        %2915 = vmatprep.subr.bf16.mxu0 0
        %2916 = vmatpush1.bf16.msra.mxu0 %v2326
        %2917 = vmatprep.subr.bf16.mxu0 0
        %2918 = vmatpush1.bf16.msra.mxu0 %v2325
        %2919 = vmatprep.subr.bf16.mxu0 0
        %2920 = vmatpush1.bf16.msra.mxu0 %v2324
        %2921 = vmatprep.subr.bf16.mxu0 0
        %2922 = vmatpush1.bf16.msra.mxu0 %v2323
        %2923 = vmatprep.subr.bf16.mxu0 0
        %2924 = vmatpush1.bf16.msra.mxu0 %v2322
        %2925 = vmatprep.subr.bf16.mxu0 0
        %2926 = vmatpush1.bf16.msra.mxu0 %v2321
        %2927 = vmatprep.subr.bf16.mxu0 0
        %2928 = vmatpush1.bf16.msra.mxu0 %v2320
        %2929 = vmatprep.subr.bf16.mxu0 0
        %2930 = vmatpush2.bf16.msra.mxu0 %v2335
        %2931 = vmatprep.subr.bf16.mxu0 0
        %2932 = vmatpush2.bf16.msra.mxu0 %v2334
        %2933 = vmatprep.subr.bf16.mxu0 0
        %2934 = vmatpush2.bf16.msra.mxu0 %v2333
        %2935 = vmatprep.subr.bf16.mxu0 0
        %2936 = vmatpush2.bf16.msra.mxu0 %v2332
        %2937 = vmatprep.subr.bf16.mxu0 0
        %2938 = vmatpush2.bf16.msra.mxu0 %v2331
        %2939 = vmatprep.subr.bf16.mxu0 0
        %2940 = vmatpush2.bf16.msra.mxu0 %v2330
        %2941 = vmatprep.subr.bf16.mxu0 0
        %2942 = vmatpush2.bf16.msra.mxu0 %v2329
        %2943 = vmatprep.subr.bf16.mxu0 0
        %2944 = vmatpush2.bf16.msra.mxu0 %v2328
        %2945 = vmatprep.mubr.bf16.mxu0 %v1667
        %2946 = vmatmul.mubr.bf16.gmra.mxu0 %v1666
        %v2947 = vpop.f32.mrf.mxu0
        %v2948 = vadd.f32 %v2403, %v2947
        %v2949 = vpop.f32.mrf.mxu0
        %v2950 = vpop.f32.mrf.mxu0
        %v2951 = vadd.f32 %v2406, %v2950
        %v2952 = vpop.f32.mrf.mxu0
        %2953 = vmatprep.mubr.bf16.mxu0 %v1671
        %2954 = vmatmul.mubr.bf16.gmra.mxu0 %v1670
        %v2955 = vpop.f32.mrf.mxu0
        %v2956 = vadd.f32 %v2411, %v2955
        %v2957 = vpop.f32.mrf.mxu0
        %v2958 = vpop.f32.mrf.mxu0
        %v2959 = vadd.f32 %v2414, %v2958
        %v2960 = vpop.f32.mrf.mxu0
        %2961 = vmatprep.mubr.bf16.mxu0 %v1675
        %2962 = vmatmul.mubr.bf16.gmra.mxu0 %v1674
        %v2963 = vpop.f32.mrf.mxu0
        %v2964 = vadd.f32 %v2419, %v2963
        %v2965 = vpop.f32.mrf.mxu0
        %v2966 = vpop.f32.mrf.mxu0
        %v2967 = vadd.f32 %v2422, %v2966
        %v2968 = vpop.f32.mrf.mxu0
        %2969 = vmatprep.mubr.bf16.mxu0 %v1679
        %2970 = vmatmul.mubr.bf16.gmra.mxu0 %v1678
        %v2971 = vpop.f32.mrf.mxu0
        %v2972 = vadd.f32 %v2427, %v2971
        %v2973 = vpop.f32.mrf.mxu0
        %v2974 = vpop.f32.mrf.mxu0
        %v2975 = vadd.f32 %v2430, %v2974
        %v2976 = vpop.f32.mrf.mxu0
        %2977 = vmatprep.mubr.bf16.mxu0 %v1683
        %2978 = vmatmul.mubr.bf16.gmra.mxu0 %v1682
        %v2979 = vpop.f32.mrf.mxu0
        %v2980 = vadd.f32 %v2435, %v2979
        %v2981 = vpop.f32.mrf.mxu0
        %v2982 = vpop.f32.mrf.mxu0
        %v2983 = vadd.f32 %v2438, %v2982
        %v2984 = vpop.f32.mrf.mxu0
        %2985 = vmatprep.mubr.bf16.mxu0 %v1687
        %2986 = vmatmul.mubr.bf16.gmra.mxu0 %v1686
        %v2987 = vpop.f32.mrf.mxu0
        %v2988 = vadd.f32 %v2443, %v2987
        %v2989 = vpop.f32.mrf.mxu0
        %v2990 = vpop.f32.mrf.mxu0
        %v2991 = vadd.f32 %v2446, %v2990
        %v2992 = vpop.f32.mrf.mxu0
        %2993 = vmatprep.mubr.bf16.mxu0 %v1691
        %2994 = vmatmul.mubr.bf16.gmra.mxu0 %v1690
        %v2995 = vpop.f32.mrf.mxu0
        %v2996 = vadd.f32 %v2451, %v2995
        %v2997 = vpop.f32.mrf.mxu0
        %v2998 = vpop.f32.mrf.mxu0
        %v2999 = vadd.f32 %v2454, %v2998
        %v3000 = vpop.f32.mrf.mxu0
        %3001 = vmatprep.mubr.bf16.mxu0 %v1695
        %3002 = vmatmul.mubr.bf16.gmra.mxu0 %v1694
        %v3003 = vpop.f32.mrf.mxu0
        %v3004 = vadd.f32 %v2459, %v3003
        %v3005 = vpop.f32.mrf.mxu0
        %v3006 = vpop.f32.mrf.mxu0
        %v3007 = vadd.f32 %v2462, %v3006
        %v3008 = vpop.f32.mrf.mxu0
        %3009 = vmatprep.mubr.bf16.mxu0 %v1699
        %3010 = vmatmul.mubr.bf16.gmra.mxu0 %v1698
        %v3011 = vpop.f32.mrf.mxu0
        %v3012 = vadd.f32 %v2467, %v3011
        %v3013 = vpop.f32.mrf.mxu0
        %v3014 = vpop.f32.mrf.mxu0
        %v3015 = vadd.f32 %v2470, %v3014
        %v3016 = vpop.f32.mrf.mxu0
        %3017 = vmatprep.mubr.bf16.mxu0 %v1703
        %3018 = vmatmul.mubr.bf16.gmra.mxu0 %v1702
        %v3019 = vpop.f32.mrf.mxu0
        %v3020 = vadd.f32 %v2475, %v3019
        %v3021 = vpop.f32.mrf.mxu0
        %v3022 = vpop.f32.mrf.mxu0
        %v3023 = vadd.f32 %v2478, %v3022
        %v3024 = vpop.f32.mrf.mxu0
        %3025 = vmatprep.mubr.bf16.mxu0 %v1707
        %3026 = vmatmul.mubr.bf16.gmra.mxu0 %v1706
        %v3027 = vpop.f32.mrf.mxu0
        %v3028 = vadd.f32 %v2483, %v3027
        %v3029 = vpop.f32.mrf.mxu0
        %v3030 = vpop.f32.mrf.mxu0
        %v3031 = vadd.f32 %v2486, %v3030
        %v3032 = vpop.f32.mrf.mxu0
        %3033 = vmatprep.mubr.bf16.mxu0 %v1711
        %3034 = vmatmul.mubr.bf16.gmra.mxu0 %v1710
        %v3035 = vpop.f32.mrf.mxu0
        %v3036 = vadd.f32 %v2491, %v3035
        %v3037 = vpop.f32.mrf.mxu0
        %v3038 = vpop.f32.mrf.mxu0
        %v3039 = vadd.f32 %v2494, %v3038
        %v3040 = vpop.f32.mrf.mxu0
        %3041 = vmatprep.mubr.bf16.mxu0 %v1715
        %3042 = vmatmul.mubr.bf16.gmra.mxu0 %v1714
        %v3043 = vpop.f32.mrf.mxu0
        %v3044 = vadd.f32 %v2499, %v3043
        %v3045 = vpop.f32.mrf.mxu0
        %v3046 = vpop.f32.mrf.mxu0
        %v3047 = vadd.f32 %v2502, %v3046
        %v3048 = vpop.f32.mrf.mxu0
        %3049 = vmatprep.mubr.bf16.mxu0 %v1719
        %3050 = vmatmul.mubr.bf16.gmra.mxu0 %v1718
        %v3051 = vpop.f32.mrf.mxu0
        %v3052 = vadd.f32 %v2507, %v3051
        %v3053 = vpop.f32.mrf.mxu0
        %v3054 = vpop.f32.mrf.mxu0
        %v3055 = vadd.f32 %v2510, %v3054
        %v3056 = vpop.f32.mrf.mxu0
        %3057 = vmatprep.mubr.bf16.mxu0 %v1723
        %3058 = vmatmul.mubr.bf16.gmra.mxu0 %v1722
        %v3059 = vpop.f32.mrf.mxu0
        %v3060 = vadd.f32 %v2515, %v3059
        %v3061 = vpop.f32.mrf.mxu0
        %v3062 = vpop.f32.mrf.mxu0
        %v3063 = vadd.f32 %v2518, %v3062
        %v3064 = vpop.f32.mrf.mxu0
        %3065 = vmatprep.mubr.bf16.mxu0 %v1727
        %3066 = vmatmul.mubr.bf16.gmra.mxu0 %v1726
        %v3067 = vpop.f32.mrf.mxu0
        %v3068 = vadd.f32 %v2523, %v3067
        %v3069 = vpop.f32.mrf.mxu0
        %v3070 = vpop.f32.mrf.mxu0
        %v3071 = vadd.f32 %v2526, %v3070
        %v3072 = vpop.f32.mrf.mxu0
        %3073 = vmatprep.mubr.bf16.mxu0 %v1731
        %3074 = vmatmul.mubr.bf16.gmra.mxu0 %v1730
        %v3075 = vpop.f32.mrf.mxu0
        %v3076 = vadd.f32 %v2531, %v3075
        %v3077 = vpop.f32.mrf.mxu0
        %v3078 = vpop.f32.mrf.mxu0
        %v3079 = vadd.f32 %v2534, %v3078
        %v3080 = vpop.f32.mrf.mxu0
        %3081 = vmatprep.mubr.bf16.mxu0 %v1735
        %3082 = vmatmul.mubr.bf16.gmra.mxu0 %v1734
        %v3083 = vpop.f32.mrf.mxu0
        %v3084 = vadd.f32 %v2539, %v3083
        %v3085 = vpop.f32.mrf.mxu0
        %v3086 = vpop.f32.mrf.mxu0
        %v3087 = vadd.f32 %v2542, %v3086
        %v3088 = vpop.f32.mrf.mxu0
        %3089 = vmatprep.mubr.bf16.mxu0 %v1739
        %3090 = vmatmul.mubr.bf16.gmra.mxu0 %v1738
        %v3091 = vpop.f32.mrf.mxu0
        %v3092 = vadd.f32 %v2547, %v3091
        %v3093 = vpop.f32.mrf.mxu0
        %v3094 = vpop.f32.mrf.mxu0
        %v3095 = vadd.f32 %v2550, %v3094
        %v3096 = vpop.f32.mrf.mxu0
        %3097 = vmatprep.mubr.bf16.mxu0 %v1743
        %3098 = vmatmul.mubr.bf16.gmra.mxu0 %v1742
        %v3099 = vpop.f32.mrf.mxu0
        %v3100 = vadd.f32 %v2555, %v3099
        %v3101 = vpop.f32.mrf.mxu0
        %v3102 = vpop.f32.mrf.mxu0
        %v3103 = vadd.f32 %v2558, %v3102
        %v3104 = vpop.f32.mrf.mxu0
        %3105 = vmatprep.mubr.bf16.mxu0 %v1747
        %3106 = vmatmul.mubr.bf16.gmra.mxu0 %v1746
        %v3107 = vpop.f32.mrf.mxu0
        %v3108 = vadd.f32 %v2563, %v3107
        %v3109 = vpop.f32.mrf.mxu0
        %v3110 = vpop.f32.mrf.mxu0
        %v3111 = vadd.f32 %v2566, %v3110
        %v3112 = vpop.f32.mrf.mxu0
        %3113 = vmatprep.mubr.bf16.mxu0 %v1751
        %3114 = vmatmul.mubr.bf16.gmra.mxu0 %v1750
        %v3115 = vpop.f32.mrf.mxu0
        %v3116 = vadd.f32 %v2571, %v3115
        %v3117 = vpop.f32.mrf.mxu0
        %v3118 = vpop.f32.mrf.mxu0
        %v3119 = vadd.f32 %v2574, %v3118
        %v3120 = vpop.f32.mrf.mxu0
        %3121 = vmatprep.mubr.bf16.mxu0 %v1755
        %3122 = vmatmul.mubr.bf16.gmra.mxu0 %v1754
        %v3123 = vpop.f32.mrf.mxu0
        %v3124 = vadd.f32 %v2579, %v3123
        %v3125 = vpop.f32.mrf.mxu0
        %v3126 = vpop.f32.mrf.mxu0
        %v3127 = vadd.f32 %v2582, %v3126
        %v3128 = vpop.f32.mrf.mxu0
        %3129 = vmatprep.mubr.bf16.mxu0 %v1759
        %3130 = vmatmul.mubr.bf16.gmra.mxu0 %v1758
        %v3131 = vpop.f32.mrf.mxu0
        %v3132 = vadd.f32 %v2587, %v3131
        %v3133 = vpop.f32.mrf.mxu0
        %v3134 = vpop.f32.mrf.mxu0
        %v3135 = vadd.f32 %v2590, %v3134
        %v3136 = vpop.f32.mrf.mxu0
        %3137 = vmatprep.mubr.bf16.mxu0 %v1763
        %3138 = vmatmul.mubr.bf16.gmra.mxu0 %v1762
        %v3139 = vpop.f32.mrf.mxu0
        %v3140 = vadd.f32 %v2595, %v3139
        %v3141 = vpop.f32.mrf.mxu0
        %v3142 = vpop.f32.mrf.mxu0
        %v3143 = vadd.f32 %v2598, %v3142
        %v3144 = vpop.f32.mrf.mxu0
        %3145 = vmatprep.mubr.bf16.mxu0 %v1767
        %3146 = vmatmul.mubr.bf16.gmra.mxu0 %v1766
        %v3147 = vpop.f32.mrf.mxu0
        %v3148 = vadd.f32 %v2603, %v3147
        %v3149 = vpop.f32.mrf.mxu0
        %v3150 = vpop.f32.mrf.mxu0
        %v3151 = vadd.f32 %v2606, %v3150
        %v3152 = vpop.f32.mrf.mxu0
        %3153 = vmatprep.mubr.bf16.mxu0 %v1771
        %3154 = vmatmul.mubr.bf16.gmra.mxu0 %v1770
        %v3155 = vpop.f32.mrf.mxu0
        %v3156 = vadd.f32 %v2611, %v3155
        %v3157 = vpop.f32.mrf.mxu0
        %v3158 = vpop.f32.mrf.mxu0
        %v3159 = vadd.f32 %v2614, %v3158
        %v3160 = vpop.f32.mrf.mxu0
        %3161 = vmatprep.mubr.bf16.mxu0 %v1775
        %3162 = vmatmul.mubr.bf16.gmra.mxu0 %v1774
        %v3163 = vpop.f32.mrf.mxu0
        %v3164 = vadd.f32 %v2619, %v3163
        %v3165 = vpop.f32.mrf.mxu0
        %v3166 = vpop.f32.mrf.mxu0
        %v3167 = vadd.f32 %v2622, %v3166
        %v3168 = vpop.f32.mrf.mxu0
        %3169 = vmatprep.mubr.bf16.mxu0 %v1779
        %3170 = vmatmul.mubr.bf16.gmra.mxu0 %v1778
        %v3171 = vpop.f32.mrf.mxu0
        %v3172 = vadd.f32 %v2627, %v3171
        %v3173 = vpop.f32.mrf.mxu0
        %v3174 = vpop.f32.mrf.mxu0
        %v3175 = vadd.f32 %v2630, %v3174
        %v3176 = vpop.f32.mrf.mxu0
        %3177 = vmatprep.mubr.bf16.mxu0 %v1783
        %3178 = vmatmul.mubr.bf16.gmra.mxu0 %v1782
        %v3179 = vpop.f32.mrf.mxu0
        %v3180 = vadd.f32 %v2635, %v3179
        %v3181 = vpop.f32.mrf.mxu0
        %v3182 = vpop.f32.mrf.mxu0
        %v3183 = vadd.f32 %v2638, %v3182
        %v3184 = vpop.f32.mrf.mxu0
        %3185 = vmatprep.mubr.bf16.mxu0 %v1787
        %3186 = vmatmul.mubr.bf16.gmra.mxu0 %v1786
        %v3187 = vpop.f32.mrf.mxu0
        %v3188 = vadd.f32 %v2643, %v3187
        %v3189 = vpop.f32.mrf.mxu0
        %v3190 = vpop.f32.mrf.mxu0
        %v3191 = vadd.f32 %v2646, %v3190
        %v3192 = vpop.f32.mrf.mxu0
        %3193 = vmatprep.mubr.bf16.mxu0 %v1791
        %3194 = vmatmul.mubr.bf16.gmra.mxu0 %v1790
        %v3195 = vpop.f32.mrf.mxu0
        %v3196 = vadd.f32 %v2651, %v3195
        %v3197 = vpop.f32.mrf.mxu0
        %v3198 = vpop.f32.mrf.mxu0
        %v3199 = vadd.f32 %v2654, %v3198
        %v3200 = vpop.f32.mrf.mxu0
        %3201 = vmatprep.mubr.bf16.mxu0 %v1795
        %3202 = vmatmul.mubr.bf16.gmra.mxu0 %v1794
        %v3203 = vpop.f32.mrf.mxu0
        %v3204 = vadd.f32 %v2659, %v3203
        %v3205 = vpop.f32.mrf.mxu0
        %v3206 = vpop.f32.mrf.mxu0
        %v3207 = vadd.f32 %v2662, %v3206
        %v3208 = vpop.f32.mrf.mxu0
        %3209 = vmatprep.mubr.bf16.mxu0 %v1799
        %3210 = vmatmul.mubr.bf16.gmra.mxu0 %v1798
        %v3211 = vpop.f32.mrf.mxu0
        %v3212 = vadd.f32 %v2667, %v3211
        %v3213 = vpop.f32.mrf.mxu0
        %v3214 = vpop.f32.mrf.mxu0
        %v3215 = vadd.f32 %v2670, %v3214
        %v3216 = vpop.f32.mrf.mxu0
        %3217 = vmatprep.mubr.bf16.mxu0 %v1803
        %3218 = vmatmul.mubr.bf16.gmra.mxu0 %v1802
        %v3219 = vpop.f32.mrf.mxu0
        %v3220 = vadd.f32 %v2675, %v3219
        %v3221 = vpop.f32.mrf.mxu0
        %v3222 = vpop.f32.mrf.mxu0
        %v3223 = vadd.f32 %v2678, %v3222
        %v3224 = vpop.f32.mrf.mxu0
        %3225 = vmatprep.mubr.bf16.mxu0 %v1807
        %3226 = vmatmul.mubr.bf16.gmra.mxu0 %v1806
        %v3227 = vpop.f32.mrf.mxu0
        %v3228 = vadd.f32 %v2683, %v3227
        %v3229 = vpop.f32.mrf.mxu0
        %v3230 = vpop.f32.mrf.mxu0
        %v3231 = vadd.f32 %v2686, %v3230
        %v3232 = vpop.f32.mrf.mxu0
        %3233 = vmatprep.mubr.bf16.mxu0 %v1811
        %3234 = vmatmul.mubr.bf16.gmra.mxu0 %v1810
        %v3235 = vpop.f32.mrf.mxu0
        %v3236 = vadd.f32 %v2691, %v3235
        %v3237 = vpop.f32.mrf.mxu0
        %v3238 = vpop.f32.mrf.mxu0
        %v3239 = vadd.f32 %v2694, %v3238
        %v3240 = vpop.f32.mrf.mxu0
        %3241 = vmatprep.mubr.bf16.mxu0 %v1815
        %3242 = vmatmul.mubr.bf16.gmra.mxu0 %v1814
        %v3243 = vpop.f32.mrf.mxu0
        %v3244 = vadd.f32 %v2699, %v3243
        %v3245 = vpop.f32.mrf.mxu0
        %v3246 = vpop.f32.mrf.mxu0
        %v3247 = vadd.f32 %v2702, %v3246
        %v3248 = vpop.f32.mrf.mxu0
        %3249 = vmatprep.mubr.bf16.mxu0 %v1819
        %3250 = vmatmul.mubr.bf16.gmra.mxu0 %v1818
        %v3251 = vpop.f32.mrf.mxu0
        %v3252 = vadd.f32 %v2707, %v3251
        %v3253 = vpop.f32.mrf.mxu0
        %v3254 = vpop.f32.mrf.mxu0
        %v3255 = vadd.f32 %v2710, %v3254
        %v3256 = vpop.f32.mrf.mxu0
        %3257 = vmatprep.mubr.bf16.mxu0 %v1823
        %3258 = vmatmul.mubr.bf16.gmra.mxu0 %v1822
        %v3259 = vpop.f32.mrf.mxu0
        %v3260 = vadd.f32 %v2715, %v3259
        %v3261 = vpop.f32.mrf.mxu0
        %v3262 = vpop.f32.mrf.mxu0
        %v3263 = vadd.f32 %v2718, %v3262
        %v3264 = vpop.f32.mrf.mxu0
        %3265 = vmatprep.mubr.bf16.mxu0 %v1827
        %3266 = vmatmul.mubr.bf16.gmra.mxu0 %v1826
        %v3267 = vpop.f32.mrf.mxu0
        %v3268 = vadd.f32 %v2723, %v3267
        %v3269 = vpop.f32.mrf.mxu0
        %v3270 = vpop.f32.mrf.mxu0
        %v3271 = vadd.f32 %v2726, %v3270
        %v3272 = vpop.f32.mrf.mxu0
        %3273 = vmatprep.mubr.bf16.mxu0 %v1831
        %3274 = vmatmul.mubr.bf16.gmra.mxu0 %v1830
        %v3275 = vpop.f32.mrf.mxu0
        %v3276 = vadd.f32 %v2731, %v3275
        %v3277 = vpop.f32.mrf.mxu0
        %v3278 = vpop.f32.mrf.mxu0
        %v3279 = vadd.f32 %v2734, %v3278
        %v3280 = vpop.f32.mrf.mxu0
        %3281 = vmatprep.mubr.bf16.mxu0 %v1835
        %3282 = vmatmul.mubr.bf16.gmra.mxu0 %v1834
        %v3283 = vpop.f32.mrf.mxu0
        %v3284 = vadd.f32 %v2739, %v3283
        %v3285 = vpop.f32.mrf.mxu0
        %v3286 = vpop.f32.mrf.mxu0
        %v3287 = vadd.f32 %v2742, %v3286
        %v3288 = vpop.f32.mrf.mxu0
        %3289 = vmatprep.mubr.bf16.mxu0 %v1839
        %3290 = vmatmul.mubr.bf16.gmra.mxu0 %v1838
        %v3291 = vpop.f32.mrf.mxu0
        %v3292 = vadd.f32 %v2747, %v3291
        %v3293 = vpop.f32.mrf.mxu0
        %v3294 = vpop.f32.mrf.mxu0
        %v3295 = vadd.f32 %v2750, %v3294
        %v3296 = vpop.f32.mrf.mxu0
        %3297 = vmatprep.mubr.bf16.mxu0 %v1843
        %3298 = vmatmul.mubr.bf16.gmra.mxu0 %v1842
        %v3299 = vpop.f32.mrf.mxu0
        %v3300 = vadd.f32 %v2755, %v3299
        %v3301 = vpop.f32.mrf.mxu0
        %v3302 = vpop.f32.mrf.mxu0
        %v3303 = vadd.f32 %v2758, %v3302
        %v3304 = vpop.f32.mrf.mxu0
        %3305 = vmatprep.mubr.bf16.mxu0 %v1847
        %3306 = vmatmul.mubr.bf16.gmra.mxu0 %v1846
        %v3307 = vpop.f32.mrf.mxu0
        %v3308 = vadd.f32 %v2763, %v3307
        %v3309 = vpop.f32.mrf.mxu0
        %v3310 = vpop.f32.mrf.mxu0
        %v3311 = vadd.f32 %v2766, %v3310
        %v3312 = vpop.f32.mrf.mxu0
        %3313 = vmatprep.mubr.bf16.mxu0 %v1851
        %3314 = vmatmul.mubr.bf16.gmra.mxu0 %v1850
        %v3315 = vpop.f32.mrf.mxu0
        %v3316 = vadd.f32 %v2771, %v3315
        %v3317 = vpop.f32.mrf.mxu0
        %v3318 = vpop.f32.mrf.mxu0
        %v3319 = vadd.f32 %v2774, %v3318
        %v3320 = vpop.f32.mrf.mxu0
        %3321 = vmatprep.mubr.bf16.mxu0 %v1855
        %3322 = vmatmul.mubr.bf16.gmra.mxu0 %v1854
        %v3323 = vpop.f32.mrf.mxu0
        %v3324 = vadd.f32 %v2779, %v3323
        %v3325 = vpop.f32.mrf.mxu0
        %v3326 = vpop.f32.mrf.mxu0
        %v3327 = vadd.f32 %v2782, %v3326
        %v3328 = vpop.f32.mrf.mxu0
        %3329 = vmatprep.mubr.bf16.mxu0 %v1859
        %3330 = vmatmul.mubr.bf16.gmra.mxu0 %v1858
        %v3331 = vpop.f32.mrf.mxu0
        %v3332 = vadd.f32 %v2787, %v3331
        %v3333 = vpop.f32.mrf.mxu0
        %v3334 = vpop.f32.mrf.mxu0
        %v3335 = vadd.f32 %v2790, %v3334
        %v3336 = vpop.f32.mrf.mxu0
        %3337 = vmatprep.mubr.bf16.mxu0 %v1863
        %3338 = vmatmul.mubr.bf16.gmra.mxu0 %v1862
        %v3339 = vpop.f32.mrf.mxu0
        %v3340 = vadd.f32 %v2795, %v3339
        %v3341 = vpop.f32.mrf.mxu0
        %v3342 = vpop.f32.mrf.mxu0
        %v3343 = vadd.f32 %v2798, %v3342
        %v3344 = vpop.f32.mrf.mxu0
        %3345 = vmatprep.mubr.bf16.mxu0 %v1867
        %3346 = vmatmul.mubr.bf16.gmra.mxu0 %v1866
        %v3347 = vpop.f32.mrf.mxu0
        %v3348 = vadd.f32 %v2803, %v3347
        %v3349 = vpop.f32.mrf.mxu0
        %v3350 = vpop.f32.mrf.mxu0
        %v3351 = vadd.f32 %v2806, %v3350
        %v3352 = vpop.f32.mrf.mxu0
        %3353 = vmatprep.mubr.bf16.mxu0 %v1871
        %3354 = vmatmul.mubr.bf16.gmra.mxu0 %v1870
        %v3355 = vpop.f32.mrf.mxu0
        %v3356 = vadd.f32 %v2811, %v3355
        %v3357 = vpop.f32.mrf.mxu0
        %v3358 = vpop.f32.mrf.mxu0
        %v3359 = vadd.f32 %v2814, %v3358
        %v3360 = vpop.f32.mrf.mxu0
        %3361 = vmatprep.mubr.bf16.mxu0 %v1875
        %3362 = vmatmul.mubr.bf16.gmra.mxu0 %v1874
        %v3363 = vpop.f32.mrf.mxu0
        %v3364 = vadd.f32 %v2819, %v3363
        %v3365 = vpop.f32.mrf.mxu0
        %v3366 = vpop.f32.mrf.mxu0
        %v3367 = vadd.f32 %v2822, %v3366
        %v3368 = vpop.f32.mrf.mxu0
        %3369 = vmatprep.mubr.bf16.mxu0 %v1879
        %3370 = vmatmul.mubr.bf16.gmra.mxu0 %v1878
        %v3371 = vpop.f32.mrf.mxu0
        %v3372 = vadd.f32 %v2827, %v3371
        %v3373 = vpop.f32.mrf.mxu0
        %v3374 = vpop.f32.mrf.mxu0
        %v3375 = vadd.f32 %v2830, %v3374
        %v3376 = vpop.f32.mrf.mxu0
        %3377 = vmatprep.mubr.bf16.mxu0 %v1883
        %3378 = vmatmul.mubr.bf16.gmra.mxu0 %v1882
        %v3379 = vpop.f32.mrf.mxu0
        %v3380 = vadd.f32 %v2835, %v3379
        %v3381 = vpop.f32.mrf.mxu0
        %v3382 = vpop.f32.mrf.mxu0
        %v3383 = vadd.f32 %v2838, %v3382
        %v3384 = vpop.f32.mrf.mxu0
        %3385 = vmatprep.mubr.bf16.mxu0 %v1887
        %3386 = vmatmul.mubr.bf16.gmra.mxu0 %v1886
        %v3387 = vpop.f32.mrf.mxu0
        %v3388 = vadd.f32 %v2843, %v3387
        %v3389 = vpop.f32.mrf.mxu0
        %v3390 = vpop.f32.mrf.mxu0
        %v3391 = vadd.f32 %v2846, %v3390
        %v3392 = vpop.f32.mrf.mxu0
        %3393 = vmatprep.mubr.bf16.mxu0 %v1891
        %3394 = vmatmul.mubr.bf16.gmra.mxu0 %v1890
        %v3395 = vpop.f32.mrf.mxu0
        %v3396 = vadd.f32 %v2851, %v3395
        %v3397 = vpop.f32.mrf.mxu0
        %v3398 = vpop.f32.mrf.mxu0
        %v3399 = vadd.f32 %v2854, %v3398
        %v3400 = vpop.f32.mrf.mxu0
        %3401 = vmatprep.mubr.bf16.mxu0 %v1895
        %3402 = vmatmul.mubr.bf16.gmra.mxu0 %v1894
        %v3403 = vpop.f32.mrf.mxu0
        %v3404 = vadd.f32 %v2859, %v3403
        %v3405 = vpop.f32.mrf.mxu0
        %v3406 = vpop.f32.mrf.mxu0
        %v3407 = vadd.f32 %v2862, %v3406
        %v3408 = vpop.f32.mrf.mxu0
        %3409 = vmatprep.mubr.bf16.mxu0 %v1899
        %3410 = vmatmul.mubr.bf16.gmra.mxu0 %v1898
        %v3411 = vpop.f32.mrf.mxu0
        %v3412 = vadd.f32 %v2867, %v3411
        %v3413 = vpop.f32.mrf.mxu0
        %v3414 = vpop.f32.mrf.mxu0
        %v3415 = vadd.f32 %v2870, %v3414
        %v3416 = vpop.f32.mrf.mxu0
        %3417 = vmatprep.mubr.bf16.mxu0 %v1903
        %3418 = vmatmul.mubr.bf16.gmra.mxu0 %v1902
        %v3419 = vpop.f32.mrf.mxu0
        %v3420 = vadd.f32 %v2875, %v3419
        %v3421 = vpop.f32.mrf.mxu0
        %v3422 = vpop.f32.mrf.mxu0
        %v3423 = vadd.f32 %v2878, %v3422
        %v3424 = vpop.f32.mrf.mxu0
        %3425 = vmatprep.mubr.bf16.mxu0 %v1907
        %3426 = vmatmul.mubr.bf16.gmra.mxu0 %v1906
        %v3427 = vpop.f32.mrf.mxu0
        %v3428 = vadd.f32 %v2883, %v3427
        %v3429 = vpop.f32.mrf.mxu0
        %v3430 = vpop.f32.mrf.mxu0
        %v3431 = vadd.f32 %v2886, %v3430
        %v3432 = vpop.f32.mrf.mxu0
        %3433 = vmatprep.mubr.bf16.mxu0 %v1911
        %3434 = vmatmul.mubr.bf16.gmra.mxu0 %v1910
        %v3435 = vpop.f32.mrf.mxu0
        %v3436 = vadd.f32 %v2891, %v3435
        %v3437 = vpop.f32.mrf.mxu0
        %v3438 = vpop.f32.mrf.mxu0
        %v3439 = vadd.f32 %v2894, %v3438
        %v3440 = vpop.f32.mrf.mxu0
        %3441 = vmatprep.mubr.bf16.mxu0 %v1915
        %3442 = vmatmul.mubr.bf16.gmra.mxu0 %v1914
        %v3443 = vpop.f32.mrf.mxu0
        %v3444 = vadd.f32 %v2899, %v3443
        %v3445 = vpop.f32.mrf.mxu0
        %v3446 = vpop.f32.mrf.mxu0
        %v3447 = vadd.f32 %v2902, %v3446
        %v3448 = vpop.f32.mrf.mxu0
        %3449 = vmatprep.mubr.bf16.mxu0 %v1919
        %3450 = vmatmul.mubr.bf16.gmra.mxu0 %v1918
        %v3451 = vpop.f32.mrf.mxu0
        %v3452 = vadd.f32 %v2907, %v3451
        %v3453 = vpop.f32.mrf.mxu0
        %v3454 = vpop.f32.mrf.mxu0
        %v3455 = vadd.f32 %v2910, %v3454
        %v3456 = vpop.f32.mrf.mxu0
        %3457 = vdwg.mxu0
        %v3458 = vld [vmem:[%s5] sm:$0xff]
        %v3459 = vld [vmem:[%s5 + $0x8] sm:$0xff]
        %v3460 = vld [vmem:[%s5 + $0x10] sm:$0xff]
        %v3461 = vld [vmem:[%s5 + $0x18] sm:$0xff]
        %v3462 = vld [vmem:[%s5 + $0x20] sm:$0xff]
        %v3463 = vld [vmem:[%s5 + $0x28] sm:$0xff]
        %v3464 = vld [vmem:[%s5 + $0x30] sm:$0xff]
        %v3465 = vld [vmem:[%s5 + $0x38] sm:$0xff]
        %v3466 = vld [vmem:[%s5 + $0x40] sm:$0xff]
        %v3467 = vld [vmem:[%s5 + $0x48] sm:$0xff]
        %v3468 = vld [vmem:[%s5 + $0x50] sm:$0xff]
        %v3469 = vld [vmem:[%s5 + $0x58] sm:$0xff]
        %v3470 = vld [vmem:[%s5 + $0x60] sm:$0xff]
        %v3471 = vld [vmem:[%s5 + $0x68] sm:$0xff]
        %v3472 = vld [vmem:[%s5 + $0x70] sm:$0xff]
        %v3473 = vld [vmem:[%s5 + $0x78] sm:$0xff]
        %v3474 = vld [vmem:[%s5 + $0x80] sm:$0xff]
        %v3475 = vld [vmem:[%s5 + $0x88] sm:$0xff]
        %v3476 = vld [vmem:[%s5 + $0x90] sm:$0xff]
        %v3477 = vld [vmem:[%s5 + $0x98] sm:$0xff]
        %v3478 = vld [vmem:[%s5 + $0xa0] sm:$0xff]
        %v3479 = vld [vmem:[%s5 + $0xa8] sm:$0xff]
        %v3480 = vld [vmem:[%s5 + $0xb0] sm:$0xff]
        %v3481 = vld [vmem:[%s5 + $0xb8] sm:$0xff]
        %v3482 = vld [vmem:[%s5 + $0xc0] sm:$0xff]
        %v3483 = vld [vmem:[%s5 + $0xc8] sm:$0xff]
        %v3484 = vld [vmem:[%s5 + $0xd0] sm:$0xff]
        %v3485 = vld [vmem:[%s5 + $0xd8] sm:$0xff]
        %v3486 = vld [vmem:[%s5 + $0xe0] sm:$0xff]
        %v3487 = vld [vmem:[%s5 + $0xe8] sm:$0xff]
        %v3488 = vld [vmem:[%s5 + $0xf0] sm:$0xff]
        %v3489 = vld [vmem:[%s5 + $0xf8] sm:$0xff]
        %v3490 = vld [vmem:[%s5 + $0x100] sm:$0xff]
        %v3491 = vld [vmem:[%s5 + $0x108] sm:$0xff]
        %v3492 = vld [vmem:[%s5 + $0x110] sm:$0xff]
        %v3493 = vld [vmem:[%s5 + $0x118] sm:$0xff]
        %v3494 = vld [vmem:[%s5 + $0x120] sm:$0xff]
        %v3495 = vld [vmem:[%s5 + $0x128] sm:$0xff]
        %v3496 = vld [vmem:[%s5 + $0x130] sm:$0xff]
        %v3497 = vld [vmem:[%s5 + $0x138] sm:$0xff]
        %v3498 = vld [vmem:[%s5 + $0x140] sm:$0xff]
        %v3499 = vld [vmem:[%s5 + $0x148] sm:$0xff]
        %v3500 = vld [vmem:[%s5 + $0x150] sm:$0xff]
        %v3501 = vld [vmem:[%s5 + $0x158] sm:$0xff]
        %v3502 = vld [vmem:[%s5 + $0x160] sm:$0xff]
        %v3503 = vld [vmem:[%s5 + $0x168] sm:$0xff]
        %v3504 = vld [vmem:[%s5 + $0x170] sm:$0xff]
        %v3505 = vld [vmem:[%s5 + $0x178] sm:$0xff]
        %v3506 = vld [vmem:[%s5 + $0x180] sm:$0xff]
        %v3507 = vld [vmem:[%s5 + $0x188] sm:$0xff]
        %v3508 = vld [vmem:[%s5 + $0x190] sm:$0xff]
        %v3509 = vld [vmem:[%s5 + $0x198] sm:$0xff]
        %v3510 = vld [vmem:[%s5 + $0x1a0] sm:$0xff]
        %v3511 = vld [vmem:[%s5 + $0x1a8] sm:$0xff]
        %v3512 = vld [vmem:[%s5 + $0x1b0] sm:$0xff]
        %v3513 = vld [vmem:[%s5 + $0x1b8] sm:$0xff]
        %v3514 = vld [vmem:[%s5 + $0x1c0] sm:$0xff]
        %v3515 = vld [vmem:[%s5 + $0x1c8] sm:$0xff]
        %v3516 = vld [vmem:[%s5 + $0x1d0] sm:$0xff]
        %v3517 = vld [vmem:[%s5 + $0x1d8] sm:$0xff]
        %v3518 = vld [vmem:[%s5 + $0x1e0] sm:$0xff]
        %v3519 = vld [vmem:[%s5 + $0x1e8] sm:$0xff]
        %v3520 = vld [vmem:[%s5 + $0x1f0] sm:$0xff]
        %v3521 = vld [vmem:[%s5 + $0x1f8] sm:$0xff]
        %v3522 = vld [vmem:[%s5] sm:$0x1]
        %3524 = vset.pattern.permute.xlu0 0
        %3525 = vperm.xlu0 %3524, %v3458
        %v3526 = vpop.permute.xlu0 %3525
        %3529 = vset.pattern.permute.xlu0 0
        %3530 = vperm.xlu0 %3529, %v3459
        %v3531 = vpop.permute.xlu0 %3530
        %3534 = vset.pattern.permute.xlu0 0
        %3535 = vperm.xlu0 %3534, %v3460
        %v3536 = vpop.permute.xlu0 %3535
        %3539 = vset.pattern.permute.xlu0 0
        %3540 = vperm.xlu0 %3539, %v3461
        %v3541 = vpop.permute.xlu0 %3540
        %3544 = vset.pattern.permute.xlu0 0
        %3545 = vperm.xlu0 %3544, %v3462
        %v3546 = vpop.permute.xlu0 %3545
        %3549 = vset.pattern.permute.xlu0 0
        %3550 = vperm.xlu0 %3549, %v3463
        %v3551 = vpop.permute.xlu0 %3550
        %3554 = vset.pattern.permute.xlu0 0
        %3555 = vperm.xlu0 %3554, %v3464
        %v3556 = vpop.permute.xlu0 %3555
        %3559 = vset.pattern.permute.xlu0 0
        %3560 = vperm.xlu0 %3559, %v3465
        %v3561 = vpop.permute.xlu0 %3560
        %3564 = vset.pattern.permute.xlu0 0
        %3565 = vperm.xlu0 %3564, %v3466
        %v3566 = vpop.permute.xlu0 %3565
        %3569 = vset.pattern.permute.xlu0 0
        %3570 = vperm.xlu0 %3569, %v3467
        %v3571 = vpop.permute.xlu0 %3570
        %3574 = vset.pattern.permute.xlu0 0
        %3575 = vperm.xlu0 %3574, %v3468
        %v3576 = vpop.permute.xlu0 %3575
        %3579 = vset.pattern.permute.xlu0 0
        %3580 = vperm.xlu0 %3579, %v3469
        %v3581 = vpop.permute.xlu0 %3580
        %3584 = vset.pattern.permute.xlu0 0
        %3585 = vperm.xlu0 %3584, %v3470
        %v3586 = vpop.permute.xlu0 %3585
        %3589 = vset.pattern.permute.xlu0 0
        %3590 = vperm.xlu0 %3589, %v3471
        %v3591 = vpop.permute.xlu0 %3590
        %3594 = vset.pattern.permute.xlu0 0
        %3595 = vperm.xlu0 %3594, %v3472
        %v3596 = vpop.permute.xlu0 %3595
        %3599 = vset.pattern.permute.xlu0 0
        %3600 = vperm.xlu0 %3599, %v3473
        %v3601 = vpop.permute.xlu0 %3600
        %3604 = vset.pattern.permute.xlu0 0
        %3605 = vperm.xlu0 %3604, %v3474
        %v3606 = vpop.permute.xlu0 %3605
        %3609 = vset.pattern.permute.xlu0 0
        %3610 = vperm.xlu0 %3609, %v3475
        %v3611 = vpop.permute.xlu0 %3610
        %3614 = vset.pattern.permute.xlu0 0
        %3615 = vperm.xlu0 %3614, %v3476
        %v3616 = vpop.permute.xlu0 %3615
        %3619 = vset.pattern.permute.xlu0 0
        %3620 = vperm.xlu0 %3619, %v3477
        %v3621 = vpop.permute.xlu0 %3620
        %3624 = vset.pattern.permute.xlu0 0
        %3625 = vperm.xlu0 %3624, %v3478
        %v3626 = vpop.permute.xlu0 %3625
        %3629 = vset.pattern.permute.xlu0 0
        %3630 = vperm.xlu0 %3629, %v3479
        %v3631 = vpop.permute.xlu0 %3630
        %3634 = vset.pattern.permute.xlu0 0
        %3635 = vperm.xlu0 %3634, %v3480
        %v3636 = vpop.permute.xlu0 %3635
        %3639 = vset.pattern.permute.xlu0 0
        %3640 = vperm.xlu0 %3639, %v3481
        %v3641 = vpop.permute.xlu0 %3640
        %3644 = vset.pattern.permute.xlu0 0
        %3645 = vperm.xlu0 %3644, %v3482
        %v3646 = vpop.permute.xlu0 %3645
        %3649 = vset.pattern.permute.xlu0 0
        %3650 = vperm.xlu0 %3649, %v3483
        %v3651 = vpop.permute.xlu0 %3650
        %3654 = vset.pattern.permute.xlu0 0
        %3655 = vperm.xlu0 %3654, %v3484
        %v3656 = vpop.permute.xlu0 %3655
        %3659 = vset.pattern.permute.xlu0 0
        %3660 = vperm.xlu0 %3659, %v3485
        %v3661 = vpop.permute.xlu0 %3660
        %3664 = vset.pattern.permute.xlu0 0
        %3665 = vperm.xlu0 %3664, %v3486
        %v3666 = vpop.permute.xlu0 %3665
        %3669 = vset.pattern.permute.xlu0 0
        %3670 = vperm.xlu0 %3669, %v3487
        %v3671 = vpop.permute.xlu0 %3670
        %3674 = vset.pattern.permute.xlu0 0
        %3675 = vperm.xlu0 %3674, %v3488
        %v3676 = vpop.permute.xlu0 %3675
        %3679 = vset.pattern.permute.xlu0 0
        %3680 = vperm.xlu0 %3679, %v3489
        %v3681 = vpop.permute.xlu0 %3680
        %3684 = vset.pattern.permute.xlu0 0
        %3685 = vperm.xlu0 %3684, %v3490
        %v3686 = vpop.permute.xlu0 %3685
        %3689 = vset.pattern.permute.xlu0 0
        %3690 = vperm.xlu0 %3689, %v3491
        %v3691 = vpop.permute.xlu0 %3690
        %3694 = vset.pattern.permute.xlu0 0
        %3695 = vperm.xlu0 %3694, %v3492
        %v3696 = vpop.permute.xlu0 %3695
        %3699 = vset.pattern.permute.xlu0 0
        %3700 = vperm.xlu0 %3699, %v3493
        %v3701 = vpop.permute.xlu0 %3700
        %3704 = vset.pattern.permute.xlu0 0
        %3705 = vperm.xlu0 %3704, %v3494
        %v3706 = vpop.permute.xlu0 %3705
        %3709 = vset.pattern.permute.xlu0 0
        %3710 = vperm.xlu0 %3709, %v3495
        %v3711 = vpop.permute.xlu0 %3710
        %3714 = vset.pattern.permute.xlu0 0
        %3715 = vperm.xlu0 %3714, %v3496
        %v3716 = vpop.permute.xlu0 %3715
        %3719 = vset.pattern.permute.xlu0 0
        %3720 = vperm.xlu0 %3719, %v3497
        %v3721 = vpop.permute.xlu0 %3720
        %3724 = vset.pattern.permute.xlu0 0
        %3725 = vperm.xlu0 %3724, %v3498
        %v3726 = vpop.permute.xlu0 %3725
        %3729 = vset.pattern.permute.xlu0 0
        %3730 = vperm.xlu0 %3729, %v3499
        %v3731 = vpop.permute.xlu0 %3730
        %3734 = vset.pattern.permute.xlu0 0
        %3735 = vperm.xlu0 %3734, %v3500
        %v3736 = vpop.permute.xlu0 %3735
        %3739 = vset.pattern.permute.xlu0 0
        %3740 = vperm.xlu0 %3739, %v3501
        %v3741 = vpop.permute.xlu0 %3740
        %3744 = vset.pattern.permute.xlu0 0
        %3745 = vperm.xlu0 %3744, %v3502
        %v3746 = vpop.permute.xlu0 %3745
        %3749 = vset.pattern.permute.xlu0 0
        %3750 = vperm.xlu0 %3749, %v3503
        %v3751 = vpop.permute.xlu0 %3750
        %3754 = vset.pattern.permute.xlu0 0
        %3755 = vperm.xlu0 %3754, %v3504
        %v3756 = vpop.permute.xlu0 %3755
        %3759 = vset.pattern.permute.xlu0 0
        %3760 = vperm.xlu0 %3759, %v3505
        %v3761 = vpop.permute.xlu0 %3760
        %3764 = vset.pattern.permute.xlu0 0
        %3765 = vperm.xlu0 %3764, %v3506
        %v3766 = vpop.permute.xlu0 %3765
        %3769 = vset.pattern.permute.xlu0 0
        %3770 = vperm.xlu0 %3769, %v3507
        %v3771 = vpop.permute.xlu0 %3770
        %3774 = vset.pattern.permute.xlu0 0
        %3775 = vperm.xlu0 %3774, %v3508
        %v3776 = vpop.permute.xlu0 %3775
        %3779 = vset.pattern.permute.xlu0 0
        %3780 = vperm.xlu0 %3779, %v3509
        %v3781 = vpop.permute.xlu0 %3780
        %3784 = vset.pattern.permute.xlu0 0
        %3785 = vperm.xlu0 %3784, %v3510
        %v3786 = vpop.permute.xlu0 %3785
        %3789 = vset.pattern.permute.xlu0 0
        %3790 = vperm.xlu0 %3789, %v3511
        %v3791 = vpop.permute.xlu0 %3790
        %3794 = vset.pattern.permute.xlu0 0
        %3795 = vperm.xlu0 %3794, %v3512
        %v3796 = vpop.permute.xlu0 %3795
        %3799 = vset.pattern.permute.xlu0 0
        %3800 = vperm.xlu0 %3799, %v3513
        %v3801 = vpop.permute.xlu0 %3800
        %3804 = vset.pattern.permute.xlu0 0
        %3805 = vperm.xlu0 %3804, %v3514
        %v3806 = vpop.permute.xlu0 %3805
        %3809 = vset.pattern.permute.xlu0 0
        %3810 = vperm.xlu0 %3809, %v3515
        %v3811 = vpop.permute.xlu0 %3810
        %3814 = vset.pattern.permute.xlu0 0
        %3815 = vperm.xlu0 %3814, %v3516
        %v3816 = vpop.permute.xlu0 %3815
        %3819 = vset.pattern.permute.xlu0 0
        %3820 = vperm.xlu0 %3819, %v3517
        %v3821 = vpop.permute.xlu0 %3820
        %3824 = vset.pattern.permute.xlu0 0
        %3825 = vperm.xlu0 %3824, %v3518
        %v3826 = vpop.permute.xlu0 %3825
        %3829 = vset.pattern.permute.xlu0 0
        %3830 = vperm.xlu0 %3829, %v3519
        %v3831 = vpop.permute.xlu0 %3830
        %3834 = vset.pattern.permute.xlu0 0
        %3835 = vperm.xlu0 %3834, %v3520
        %v3836 = vpop.permute.xlu0 %3835
        %3839 = vset.pattern.permute.xlu0 0
        %3840 = vperm.xlu0 %3839, %v3521
        %v3841 = vpop.permute.xlu0 %3840
        %v3843 = vadd.f32 %v2948, %v3526
        %v3844 = vadd.f32 %v2951, %v3531
        %v3845 = vadd.f32 %v2956, %v3536
        %v3846 = vadd.f32 %v2959, %v3541
        %v3847 = vadd.f32 %v2964, %v3546
        %v3848 = vadd.f32 %v2967, %v3551
        %v3849 = vadd.f32 %v2972, %v3556
        %v3850 = vadd.f32 %v2975, %v3561
        %v3851 = vadd.f32 %v2980, %v3566
        %v3852 = vadd.f32 %v2983, %v3571
        %v3853 = vadd.f32 %v2988, %v3576
        %v3854 = vadd.f32 %v2991, %v3581
        %v3855 = vadd.f32 %v2996, %v3586
        %v3856 = vadd.f32 %v2999, %v3591
        %v3857 = vadd.f32 %v3004, %v3596
        %v3858 = vadd.f32 %v3007, %v3601
        %v3859 = vadd.f32 %v3012, %v3606
        %v3860 = vadd.f32 %v3015, %v3611
        %v3861 = vadd.f32 %v3020, %v3616
        %v3862 = vadd.f32 %v3023, %v3621
        %v3863 = vadd.f32 %v3028, %v3626
        %v3864 = vadd.f32 %v3031, %v3631
        %v3865 = vadd.f32 %v3036, %v3636
        %v3866 = vadd.f32 %v3039, %v3641
        %v3867 = vadd.f32 %v3044, %v3646
        %v3868 = vadd.f32 %v3047, %v3651
        %v3869 = vadd.f32 %v3052, %v3656
        %v3870 = vadd.f32 %v3055, %v3661
        %v3871 = vadd.f32 %v3060, %v3666
        %v3872 = vadd.f32 %v3063, %v3671
        %v3873 = vadd.f32 %v3068, %v3676
        %v3874 = vadd.f32 %v3071, %v3681
        %v3875 = vadd.f32 %v3076, %v3686
        %v3876 = vadd.f32 %v3079, %v3691
        %v3877 = vadd.f32 %v3084, %v3696
        %v3878 = vadd.f32 %v3087, %v3701
        %v3879 = vadd.f32 %v3092, %v3706
        %v3880 = vadd.f32 %v3095, %v3711
        %v3881 = vadd.f32 %v3100, %v3716
        %v3882 = vadd.f32 %v3103, %v3721
        %v3883 = vadd.f32 %v3108, %v3726
        %v3884 = vadd.f32 %v3111, %v3731
        %v3885 = vadd.f32 %v3116, %v3736
        %v3886 = vadd.f32 %v3119, %v3741
        %v3887 = vadd.f32 %v3124, %v3746
        %v3888 = vadd.f32 %v3127, %v3751
        %v3889 = vadd.f32 %v3132, %v3756
        %v3890 = vadd.f32 %v3135, %v3761
        %v3891 = vadd.f32 %v3140, %v3766
        %v3892 = vadd.f32 %v3143, %v3771
        %v3893 = vadd.f32 %v3148, %v3776
        %v3894 = vadd.f32 %v3151, %v3781
        %v3895 = vadd.f32 %v3156, %v3786
        %v3896 = vadd.f32 %v3159, %v3791
        %v3897 = vadd.f32 %v3164, %v3796
        %v3898 = vadd.f32 %v3167, %v3801
        %v3899 = vadd.f32 %v3172, %v3806
        %v3900 = vadd.f32 %v3175, %v3811
        %v3901 = vadd.f32 %v3180, %v3816
        %v3902 = vadd.f32 %v3183, %v3821
        %v3903 = vadd.f32 %v3188, %v3826
        %v3904 = vadd.f32 %v3191, %v3831
        %v3905 = vadd.f32 %v3196, %v3836
        %v3906 = vadd.f32 %v3199, %v3841
        %v3907 = vmax.f32 %v3843, 0.0
        %v3908 = vmax.f32 %v3844, 0.0
        %v3909 = vmax.f32 %v3845, 0.0
        %v3910 = vmax.f32 %v3846, 0.0
        %v3911 = vmax.f32 %v3847, 0.0
        %v3912 = vmax.f32 %v3848, 0.0
        %v3913 = vmax.f32 %v3849, 0.0
        %v3914 = vmax.f32 %v3850, 0.0
        %v3915 = vmax.f32 %v3851, 0.0
        %v3916 = vmax.f32 %v3852, 0.0
        %v3917 = vmax.f32 %v3853, 0.0
        %v3918 = vmax.f32 %v3854, 0.0
        %v3919 = vmax.f32 %v3855, 0.0
        %v3920 = vmax.f32 %v3856, 0.0
        %v3921 = vmax.f32 %v3857, 0.0
        %v3922 = vmax.f32 %v3858, 0.0
        %v3923 = vmax.f32 %v3859, 0.0
        %v3924 = vmax.f32 %v3860, 0.0
        %v3925 = vmax.f32 %v3861, 0.0
        %v3926 = vmax.f32 %v3862, 0.0
        %v3927 = vmax.f32 %v3863, 0.0
        %v3928 = vmax.f32 %v3864, 0.0
        %v3929 = vmax.f32 %v3865, 0.0
        %v3930 = vmax.f32 %v3866, 0.0
        %v3931 = vmax.f32 %v3867, 0.0
        %v3932 = vmax.f32 %v3868, 0.0
        %v3933 = vmax.f32 %v3869, 0.0
        %v3934 = vmax.f32 %v3870, 0.0
        %v3935 = vmax.f32 %v3871, 0.0
        %v3936 = vmax.f32 %v3872, 0.0
        %v3937 = vmax.f32 %v3873, 0.0
        %v3938 = vmax.f32 %v3874, 0.0
        %v3939 = vmax.f32 %v3875, 0.0
        %v3940 = vmax.f32 %v3876, 0.0
        %v3941 = vmax.f32 %v3877, 0.0
        %v3942 = vmax.f32 %v3878, 0.0
        %v3943 = vmax.f32 %v3879, 0.0
        %v3944 = vmax.f32 %v3880, 0.0
        %v3945 = vmax.f32 %v3881, 0.0
        %v3946 = vmax.f32 %v3882, 0.0
        %v3947 = vmax.f32 %v3883, 0.0
        %v3948 = vmax.f32 %v3884, 0.0
        %v3949 = vmax.f32 %v3885, 0.0
        %v3950 = vmax.f32 %v3886, 0.0
        %v3951 = vmax.f32 %v3887, 0.0
        %v3952 = vmax.f32 %v3888, 0.0
        %v3953 = vmax.f32 %v3889, 0.0
        %v3954 = vmax.f32 %v3890, 0.0
        %v3955 = vmax.f32 %v3891, 0.0
        %v3956 = vmax.f32 %v3892, 0.0
        %v3957 = vmax.f32 %v3893, 0.0
        %v3958 = vmax.f32 %v3894, 0.0
        %v3959 = vmax.f32 %v3895, 0.0
        %v3960 = vmax.f32 %v3896, 0.0
        %v3961 = vmax.f32 %v3897, 0.0
        %v3962 = vmax.f32 %v3898, 0.0
        %v3963 = vmax.f32 %v3899, 0.0
        %v3964 = vmax.f32 %v3900, 0.0
        %v3965 = vmax.f32 %v3901, 0.0
        %v3966 = vmax.f32 %v3902, 0.0
        %v3967 = vmax.f32 %v3903, 0.0
        %v3968 = vmax.f32 %v3904, 0.0
        %v3969 = vmax.f32 %v3905, 0.0
        %v3970 = vmax.f32 %v3906, 0.0
        %v3971 = vpack.c.bf16 %v3908, %v3907
        %v3972 = vpack.c.bf16 %v3910, %v3909
        %v3973 = vpack.c.bf16 %v3912, %v3911
        %v3974 = vpack.c.bf16 %v3914, %v3913
        %v3975 = vpack.c.bf16 %v3916, %v3915
        %v3976 = vpack.c.bf16 %v3918, %v3917
        %v3977 = vpack.c.bf16 %v3920, %v3919
        %v3978 = vpack.c.bf16 %v3922, %v3921
        %v3979 = vpack.c.bf16 %v3924, %v3923
        %v3980 = vpack.c.bf16 %v3926, %v3925
        %v3981 = vpack.c.bf16 %v3928, %v3927
        %v3982 = vpack.c.bf16 %v3930, %v3929
        %v3983 = vpack.c.bf16 %v3932, %v3931
        %v3984 = vpack.c.bf16 %v3934, %v3933
        %v3985 = vpack.c.bf16 %v3936, %v3935
        %v3986 = vpack.c.bf16 %v3938, %v3937
        %v3987 = vpack.c.bf16 %v3940, %v3939
        %v3988 = vpack.c.bf16 %v3942, %v3941
        %v3989 = vpack.c.bf16 %v3944, %v3943
        %v3990 = vpack.c.bf16 %v3946, %v3945
        %v3991 = vpack.c.bf16 %v3948, %v3947
        %v3992 = vpack.c.bf16 %v3950, %v3949
        %v3993 = vpack.c.bf16 %v3952, %v3951
        %v3994 = vpack.c.bf16 %v3954, %v3953
        %v3995 = vpack.c.bf16 %v3956, %v3955
        %v3996 = vpack.c.bf16 %v3958, %v3957
        %v3997 = vpack.c.bf16 %v3960, %v3959
        %v3998 = vpack.c.bf16 %v3962, %v3961
        %v3999 = vpack.c.bf16 %v3964, %v3963
        %v4000 = vpack.c.bf16 %v3966, %v3965
        %v4001 = vpack.c.bf16 %v3968, %v3967
        %v4002 = vpack.c.bf16 %v3970, %v3969
        %v4003 = vld [vmem:[#allocation3] sm:$0xff]
        %v4004 = vld [vmem:[#allocation3 + $0x8] sm:$0xff]
        %v4005 = vld [vmem:[#allocation3 + $0x10] sm:$0xff]
        %v4006 = vld [vmem:[#allocation3 + $0x18] sm:$0xff]
        %v4007 = vld [vmem:[#allocation3 + $0x20] sm:$0xff]
        %v4008 = vld [vmem:[#allocation3 + $0x28] sm:$0xff]
        %v4009 = vld [vmem:[#allocation3 + $0x30] sm:$0xff]
        %v4010 = vld [vmem:[#allocation3 + $0x38] sm:$0xff]
        %v4011 = vld [vmem:[#allocation3 + $0x40] sm:$0xff]
        %v4012 = vld [vmem:[#allocation3 + $0x48] sm:$0xff]
        %v4013 = vld [vmem:[#allocation3 + $0x50] sm:$0xff]
        %v4014 = vld [vmem:[#allocation3 + $0x58] sm:$0xff]
        %v4015 = vld [vmem:[#allocation3 + $0x60] sm:$0xff]
        %v4016 = vld [vmem:[#allocation3 + $0x68] sm:$0xff]
        %v4017 = vld [vmem:[#allocation3 + $0x70] sm:$0xff]
        %v4018 = vld [vmem:[#allocation3 + $0x78] sm:$0xff]
        %v4019 = vld [vmem:[#allocation3 + $0x80] sm:$0xff]
        %v4020 = vld [vmem:[#allocation3 + $0x88] sm:$0xff]
        %v4021 = vld [vmem:[#allocation3 + $0x90] sm:$0xff]
        %v4022 = vld [vmem:[#allocation3 + $0x98] sm:$0xff]
        %v4023 = vld [vmem:[#allocation3 + $0xa0] sm:$0xff]
        %v4024 = vld [vmem:[#allocation3 + $0xa8] sm:$0xff]
        %v4025 = vld [vmem:[#allocation3 + $0xb0] sm:$0xff]
        %v4026 = vld [vmem:[#allocation3 + $0xb8] sm:$0xff]
        %v4027 = vld [vmem:[#allocation3 + $0xc0] sm:$0xff]
        %v4028 = vld [vmem:[#allocation3 + $0xc8] sm:$0xff]
        %v4029 = vld [vmem:[#allocation3 + $0xd0] sm:$0xff]
        %v4030 = vld [vmem:[#allocation3 + $0xd8] sm:$0xff]
        %v4031 = vld [vmem:[#allocation3 + $0xe0] sm:$0xff]
        %v4032 = vld [vmem:[#allocation3 + $0xe8] sm:$0xff]
        %v4033 = vld [vmem:[#allocation3 + $0xf0] sm:$0xff]
        %v4034 = vld [vmem:[#allocation3 + $0xf8] sm:$0xff]
        %v4035 = vld [vmem:[#allocation3 + $0x100] sm:$0xff]
        %v4036 = vld [vmem:[#allocation3 + $0x108] sm:$0xff]
        %v4037 = vld [vmem:[#allocation3 + $0x110] sm:$0xff]
        %v4038 = vld [vmem:[#allocation3 + $0x118] sm:$0xff]
        %v4039 = vld [vmem:[#allocation3 + $0x120] sm:$0xff]
        %v4040 = vld [vmem:[#allocation3 + $0x128] sm:$0xff]
        %v4041 = vld [vmem:[#allocation3 + $0x130] sm:$0xff]
        %v4042 = vld [vmem:[#allocation3 + $0x138] sm:$0xff]
        %v4043 = vld [vmem:[#allocation3 + $0x140] sm:$0xff]
        %v4044 = vld [vmem:[#allocation3 + $0x148] sm:$0xff]
        %v4045 = vld [vmem:[#allocation3 + $0x150] sm:$0xff]
        %v4046 = vld [vmem:[#allocation3 + $0x158] sm:$0xff]
        %v4047 = vld [vmem:[#allocation3 + $0x160] sm:$0xff]
        %v4048 = vld [vmem:[#allocation3 + $0x168] sm:$0xff]
        %v4049 = vld [vmem:[#allocation3 + $0x170] sm:$0xff]
        %v4050 = vld [vmem:[#allocation3 + $0x178] sm:$0xff]
        %v4051 = vld [vmem:[#allocation3 + $0x180] sm:$0xff]
        %v4052 = vld [vmem:[#allocation3 + $0x188] sm:$0xff]
        %v4053 = vld [vmem:[#allocation3 + $0x190] sm:$0xff]
        %v4054 = vld [vmem:[#allocation3 + $0x198] sm:$0xff]
        %v4055 = vld [vmem:[#allocation3 + $0x1a0] sm:$0xff]
        %v4056 = vld [vmem:[#allocation3 + $0x1a8] sm:$0xff]
        %v4057 = vld [vmem:[#allocation3 + $0x1b0] sm:$0xff]
        %v4058 = vld [vmem:[#allocation3 + $0x1b8] sm:$0xff]
        %v4059 = vld [vmem:[#allocation3 + $0x1c0] sm:$0xff]
        %v4060 = vld [vmem:[#allocation3 + $0x1c8] sm:$0xff]
        %v4061 = vld [vmem:[#allocation3 + $0x1d0] sm:$0xff]
        %v4062 = vld [vmem:[#allocation3 + $0x1d8] sm:$0xff]
        %v4063 = vld [vmem:[#allocation3 + $0x1e0] sm:$0xff]
        %v4064 = vld [vmem:[#allocation3 + $0x1e8] sm:$0xff]
        %v4065 = vld [vmem:[#allocation3 + $0x1f0] sm:$0xff]
        %v4066 = vld [vmem:[#allocation3 + $0x1f8] sm:$0xff]
        %v4067 = vld [vmem:[#allocation3 + $0x200] sm:$0xff]
        %v4068 = vld [vmem:[#allocation3 + $0x208] sm:$0xff]
        %v4069 = vld [vmem:[#allocation3 + $0x210] sm:$0xff]
        %v4070 = vld [vmem:[#allocation3 + $0x218] sm:$0xff]
        %v4071 = vld [vmem:[#allocation3 + $0x220] sm:$0xff]
        %v4072 = vld [vmem:[#allocation3 + $0x228] sm:$0xff]
        %v4073 = vld [vmem:[#allocation3 + $0x230] sm:$0xff]
        %v4074 = vld [vmem:[#allocation3 + $0x238] sm:$0xff]
        %v4075 = vld [vmem:[#allocation3 + $0x240] sm:$0xff]
        %v4076 = vld [vmem:[#allocation3 + $0x248] sm:$0xff]
        %v4077 = vld [vmem:[#allocation3 + $0x250] sm:$0xff]
        %v4078 = vld [vmem:[#allocation3 + $0x258] sm:$0xff]
        %v4079 = vld [vmem:[#allocation3 + $0x260] sm:$0xff]
        %v4080 = vld [vmem:[#allocation3 + $0x268] sm:$0xff]
        %v4081 = vld [vmem:[#allocation3 + $0x270] sm:$0xff]
        %v4082 = vld [vmem:[#allocation3 + $0x278] sm:$0xff]
        %v4083 = vld [vmem:[#allocation3 + $0x280] sm:$0xff]
        %v4084 = vld [vmem:[#allocation3 + $0x288] sm:$0xff]
        %v4085 = vld [vmem:[#allocation3 + $0x290] sm:$0xff]
        %v4086 = vld [vmem:[#allocation3 + $0x298] sm:$0xff]
        %v4087 = vld [vmem:[#allocation3 + $0x2a0] sm:$0xff]
        %v4088 = vld [vmem:[#allocation3 + $0x2a8] sm:$0xff]
        %v4089 = vld [vmem:[#allocation3 + $0x2b0] sm:$0xff]
        %v4090 = vld [vmem:[#allocation3 + $0x2b8] sm:$0xff]
        %v4091 = vld [vmem:[#allocation3 + $0x2c0] sm:$0xff]
        %v4092 = vld [vmem:[#allocation3 + $0x2c8] sm:$0xff]
        %v4093 = vld [vmem:[#allocation3 + $0x2d0] sm:$0xff]
        %v4094 = vld [vmem:[#allocation3 + $0x2d8] sm:$0xff]
        %v4095 = vld [vmem:[#allocation3 + $0x2e0] sm:$0xff]
        %v4096 = vld [vmem:[#allocation3 + $0x2e8] sm:$0xff]
        %v4097 = vld [vmem:[#allocation3 + $0x2f0] sm:$0xff]
        %v4098 = vld [vmem:[#allocation3 + $0x2f8] sm:$0xff]
        %v4099 = vld [vmem:[#allocation3 + $0x300] sm:$0xff]
        %v4100 = vld [vmem:[#allocation3 + $0x308] sm:$0xff]
        %v4101 = vld [vmem:[#allocation3 + $0x310] sm:$0xff]
        %v4102 = vld [vmem:[#allocation3 + $0x318] sm:$0xff]
        %v4103 = vld [vmem:[#allocation3 + $0x320] sm:$0xff]
        %v4104 = vld [vmem:[#allocation3 + $0x328] sm:$0xff]
        %v4105 = vld [vmem:[#allocation3 + $0x330] sm:$0xff]
        %v4106 = vld [vmem:[#allocation3 + $0x338] sm:$0xff]
        %v4107 = vld [vmem:[#allocation3 + $0x340] sm:$0xff]
        %v4108 = vld [vmem:[#allocation3 + $0x348] sm:$0xff]
        %v4109 = vld [vmem:[#allocation3 + $0x350] sm:$0xff]
        %v4110 = vld [vmem:[#allocation3 + $0x358] sm:$0xff]
        %v4111 = vld [vmem:[#allocation3 + $0x360] sm:$0xff]
        %v4112 = vld [vmem:[#allocation3 + $0x368] sm:$0xff]
        %v4113 = vld [vmem:[#allocation3 + $0x370] sm:$0xff]
        %v4114 = vld [vmem:[#allocation3 + $0x378] sm:$0xff]
        %v4115 = vld [vmem:[#allocation3 + $0x380] sm:$0xff]
        %v4116 = vld [vmem:[#allocation3 + $0x388] sm:$0xff]
        %v4117 = vld [vmem:[#allocation3 + $0x390] sm:$0xff]
        %v4118 = vld [vmem:[#allocation3 + $0x398] sm:$0xff]
        %v4119 = vld [vmem:[#allocation3 + $0x3a0] sm:$0xff]
        %v4120 = vld [vmem:[#allocation3 + $0x3a8] sm:$0xff]
        %v4121 = vld [vmem:[#allocation3 + $0x3b0] sm:$0xff]
        %v4122 = vld [vmem:[#allocation3 + $0x3b8] sm:$0xff]
        %v4123 = vld [vmem:[#allocation3 + $0x3c0] sm:$0xff]
        %v4124 = vld [vmem:[#allocation3 + $0x3c8] sm:$0xff]
        %v4125 = vld [vmem:[#allocation3 + $0x3d0] sm:$0xff]
        %v4126 = vld [vmem:[#allocation3 + $0x3d8] sm:$0xff]
        %v4127 = vld [vmem:[#allocation3 + $0x3e0] sm:$0xff]
        %v4128 = vld [vmem:[#allocation3 + $0x3e8] sm:$0xff]
        %v4129 = vld [vmem:[#allocation3 + $0x3f0] sm:$0xff]
        %v4130 = vld [vmem:[#allocation3 + $0x3f8] sm:$0xff]
        %4131 = vset.pattern.permute.xlu0 1
        %4132 = vperm.xlu0 %4131, %v3458
        %v4133 = vpop.permute.xlu0 %4132
        %4135 = vset.pattern.permute.xlu0 1
        %4136 = vperm.xlu0 %4135, %v3459
        %v4137 = vpop.permute.xlu0 %4136
        %4139 = vset.pattern.permute.xlu0 1
        %4140 = vperm.xlu0 %4139, %v3460
        %v4141 = vpop.permute.xlu0 %4140
        %4143 = vset.pattern.permute.xlu0 1
        %4144 = vperm.xlu0 %4143, %v3461
        %v4145 = vpop.permute.xlu0 %4144
        %4147 = vset.pattern.permute.xlu0 1
        %4148 = vperm.xlu0 %4147, %v3462
        %v4149 = vpop.permute.xlu0 %4148
        %4151 = vset.pattern.permute.xlu0 1
        %4152 = vperm.xlu0 %4151, %v3463
        %v4153 = vpop.permute.xlu0 %4152
        %4155 = vset.pattern.permute.xlu0 1
        %4156 = vperm.xlu0 %4155, %v3464
        %v4157 = vpop.permute.xlu0 %4156
        %4159 = vset.pattern.permute.xlu0 1
        %4160 = vperm.xlu0 %4159, %v3465
        %v4161 = vpop.permute.xlu0 %4160
        %4163 = vset.pattern.permute.xlu0 1
        %4164 = vperm.xlu0 %4163, %v3466
        %v4165 = vpop.permute.xlu0 %4164
        %4167 = vset.pattern.permute.xlu0 1
        %4168 = vperm.xlu0 %4167, %v3467
        %v4169 = vpop.permute.xlu0 %4168
        %4171 = vset.pattern.permute.xlu0 1
        %4172 = vperm.xlu0 %4171, %v3468
        %v4173 = vpop.permute.xlu0 %4172
        %4175 = vset.pattern.permute.xlu0 1
        %4176 = vperm.xlu0 %4175, %v3469
        %v4177 = vpop.permute.xlu0 %4176
        %4179 = vset.pattern.permute.xlu0 1
        %4180 = vperm.xlu0 %4179, %v3470
        %v4181 = vpop.permute.xlu0 %4180
        %4183 = vset.pattern.permute.xlu0 1
        %4184 = vperm.xlu0 %4183, %v3471
        %v4185 = vpop.permute.xlu0 %4184
        %4187 = vset.pattern.permute.xlu0 1
        %4188 = vperm.xlu0 %4187, %v3472
        %v4189 = vpop.permute.xlu0 %4188
        %4191 = vset.pattern.permute.xlu0 1
        %4192 = vperm.xlu0 %4191, %v3473
        %v4193 = vpop.permute.xlu0 %4192
        %4195 = vset.pattern.permute.xlu0 1
        %4196 = vperm.xlu0 %4195, %v3474
        %v4197 = vpop.permute.xlu0 %4196
        %4199 = vset.pattern.permute.xlu0 1
        %4200 = vperm.xlu0 %4199, %v3475
        %v4201 = vpop.permute.xlu0 %4200
        %4203 = vset.pattern.permute.xlu0 1
        %4204 = vperm.xlu0 %4203, %v3476
        %v4205 = vpop.permute.xlu0 %4204
        %4207 = vset.pattern.permute.xlu0 1
        %4208 = vperm.xlu0 %4207, %v3477
        %v4209 = vpop.permute.xlu0 %4208
        %4211 = vset.pattern.permute.xlu0 1
        %4212 = vperm.xlu0 %4211, %v3478
        %v4213 = vpop.permute.xlu0 %4212
        %4215 = vset.pattern.permute.xlu0 1
        %4216 = vperm.xlu0 %4215, %v3479
        %v4217 = vpop.permute.xlu0 %4216
        %4219 = vset.pattern.permute.xlu0 1
        %4220 = vperm.xlu0 %4219, %v3480
        %v4221 = vpop.permute.xlu0 %4220
        %4223 = vset.pattern.permute.xlu0 1
        %4224 = vperm.xlu0 %4223, %v3481
        %v4225 = vpop.permute.xlu0 %4224
        %4227 = vset.pattern.permute.xlu0 1
        %4228 = vperm.xlu0 %4227, %v3482
        %v4229 = vpop.permute.xlu0 %4228
        %4231 = vset.pattern.permute.xlu0 1
        %4232 = vperm.xlu0 %4231, %v3483
        %v4233 = vpop.permute.xlu0 %4232
        %4235 = vset.pattern.permute.xlu0 1
        %4236 = vperm.xlu0 %4235, %v3484
        %v4237 = vpop.permute.xlu0 %4236
        %4239 = vset.pattern.permute.xlu0 1
        %4240 = vperm.xlu0 %4239, %v3485
        %v4241 = vpop.permute.xlu0 %4240
        %4243 = vset.pattern.permute.xlu0 1
        %4244 = vperm.xlu0 %4243, %v3486
        %v4245 = vpop.permute.xlu0 %4244
        %4247 = vset.pattern.permute.xlu0 1
        %4248 = vperm.xlu0 %4247, %v3487
        %v4249 = vpop.permute.xlu0 %4248
        %4251 = vset.pattern.permute.xlu0 1
        %4252 = vperm.xlu0 %4251, %v3488
        %v4253 = vpop.permute.xlu0 %4252
        %4255 = vset.pattern.permute.xlu0 1
        %4256 = vperm.xlu0 %4255, %v3489
        %v4257 = vpop.permute.xlu0 %4256
        %4259 = vset.pattern.permute.xlu0 1
        %4260 = vperm.xlu0 %4259, %v3490
        %v4261 = vpop.permute.xlu0 %4260
        %4263 = vset.pattern.permute.xlu0 1
        %4264 = vperm.xlu0 %4263, %v3491
        %v4265 = vpop.permute.xlu0 %4264
        %4267 = vset.pattern.permute.xlu0 1
        %4268 = vperm.xlu0 %4267, %v3492
        %v4269 = vpop.permute.xlu0 %4268
        %4271 = vset.pattern.permute.xlu0 1
        %4272 = vperm.xlu0 %4271, %v3493
        %v4273 = vpop.permute.xlu0 %4272
        %4275 = vset.pattern.permute.xlu0 1
        %4276 = vperm.xlu0 %4275, %v3494
        %v4277 = vpop.permute.xlu0 %4276
        %4279 = vset.pattern.permute.xlu0 1
        %4280 = vperm.xlu0 %4279, %v3495
        %v4281 = vpop.permute.xlu0 %4280
        %4283 = vset.pattern.permute.xlu0 1
        %4284 = vperm.xlu0 %4283, %v3496
        %v4285 = vpop.permute.xlu0 %4284
        %4287 = vset.pattern.permute.xlu0 1
        %4288 = vperm.xlu0 %4287, %v3497
        %v4289 = vpop.permute.xlu0 %4288
        %4291 = vset.pattern.permute.xlu0 1
        %4292 = vperm.xlu0 %4291, %v3498
        %v4293 = vpop.permute.xlu0 %4292
        %4295 = vset.pattern.permute.xlu0 1
        %4296 = vperm.xlu0 %4295, %v3499
        %v4297 = vpop.permute.xlu0 %4296
        %4299 = vset.pattern.permute.xlu0 1
        %4300 = vperm.xlu0 %4299, %v3500
        %v4301 = vpop.permute.xlu0 %4300
        %4303 = vset.pattern.permute.xlu0 1
        %4304 = vperm.xlu0 %4303, %v3501
        %v4305 = vpop.permute.xlu0 %4304
        %4307 = vset.pattern.permute.xlu0 1
        %4308 = vperm.xlu0 %4307, %v3502
        %v4309 = vpop.permute.xlu0 %4308
        %4311 = vset.pattern.permute.xlu0 1
        %4312 = vperm.xlu0 %4311, %v3503
        %v4313 = vpop.permute.xlu0 %4312
        %4315 = vset.pattern.permute.xlu0 1
        %4316 = vperm.xlu0 %4315, %v3504
        %v4317 = vpop.permute.xlu0 %4316
        %4319 = vset.pattern.permute.xlu0 1
        %4320 = vperm.xlu0 %4319, %v3505
        %v4321 = vpop.permute.xlu0 %4320
        %4323 = vset.pattern.permute.xlu0 1
        %4324 = vperm.xlu0 %4323, %v3506
        %v4325 = vpop.permute.xlu0 %4324
        %4327 = vset.pattern.permute.xlu0 1
        %4328 = vperm.xlu0 %4327, %v3507
        %v4329 = vpop.permute.xlu0 %4328
        %4331 = vset.pattern.permute.xlu0 1
        %4332 = vperm.xlu0 %4331, %v3508
        %v4333 = vpop.permute.xlu0 %4332
        %4335 = vset.pattern.permute.xlu0 1
        %4336 = vperm.xlu0 %4335, %v3509
        %v4337 = vpop.permute.xlu0 %4336
        %4339 = vset.pattern.permute.xlu0 1
        %4340 = vperm.xlu0 %4339, %v3510
        %v4341 = vpop.permute.xlu0 %4340
        %4343 = vset.pattern.permute.xlu0 1
        %4344 = vperm.xlu0 %4343, %v3511
        %v4345 = vpop.permute.xlu0 %4344
        %4347 = vset.pattern.permute.xlu0 1
        %4348 = vperm.xlu0 %4347, %v3512
        %v4349 = vpop.permute.xlu0 %4348
        %4351 = vset.pattern.permute.xlu0 1
        %4352 = vperm.xlu0 %4351, %v3513
        %v4353 = vpop.permute.xlu0 %4352
        %4355 = vset.pattern.permute.xlu0 1
        %4356 = vperm.xlu0 %4355, %v3514
        %v4357 = vpop.permute.xlu0 %4356
        %4359 = vset.pattern.permute.xlu0 1
        %4360 = vperm.xlu0 %4359, %v3515
        %v4361 = vpop.permute.xlu0 %4360
        %4363 = vset.pattern.permute.xlu0 1
        %4364 = vperm.xlu0 %4363, %v3516
        %v4365 = vpop.permute.xlu0 %4364
        %4367 = vset.pattern.permute.xlu0 1
        %4368 = vperm.xlu0 %4367, %v3517
        %v4369 = vpop.permute.xlu0 %4368
        %4371 = vset.pattern.permute.xlu0 1
        %4372 = vperm.xlu0 %4371, %v3518
        %v4373 = vpop.permute.xlu0 %4372
        %4375 = vset.pattern.permute.xlu0 1
        %4376 = vperm.xlu0 %4375, %v3519
        %v4377 = vpop.permute.xlu0 %4376
        %4379 = vset.pattern.permute.xlu0 1
        %4380 = vperm.xlu0 %4379, %v3520
        %v4381 = vpop.permute.xlu0 %4380
        %4383 = vset.pattern.permute.xlu0 1
        %4384 = vperm.xlu0 %4383, %v3521
        %v4385 = vpop.permute.xlu0 %4384
        %v4515 = vunpack.c.l.b16 %v4003
        %v4516 = vunpack.c.h.b16 %v4003
        %v4517 = vunpack.c.l.b16 %v4004
        %v4518 = vunpack.c.h.b16 %v4004
        %v4519 = vunpack.c.l.b16 %v4005
        %v4520 = vunpack.c.h.b16 %v4005
        %v4521 = vunpack.c.l.b16 %v4006
        %v4522 = vunpack.c.h.b16 %v4006
        %v4523 = vunpack.c.l.b16 %v4007
        %v4524 = vunpack.c.h.b16 %v4007
        %v4525 = vunpack.c.l.b16 %v4008
        %v4526 = vunpack.c.h.b16 %v4008
        %v4527 = vunpack.c.l.b16 %v4009
        %v4528 = vunpack.c.h.b16 %v4009
        %v4529 = vunpack.c.l.b16 %v4010
        %v4530 = vunpack.c.h.b16 %v4010
        %v4531 = vunpack.c.l.b16 %v4011
        %v4532 = vunpack.c.h.b16 %v4011
        %v4533 = vunpack.c.l.b16 %v4012
        %v4534 = vunpack.c.h.b16 %v4012
        %v4535 = vunpack.c.l.b16 %v4013
        %v4536 = vunpack.c.h.b16 %v4013
        %v4537 = vunpack.c.l.b16 %v4014
        %v4538 = vunpack.c.h.b16 %v4014
        %v4539 = vunpack.c.l.b16 %v4015
        %v4540 = vunpack.c.h.b16 %v4015
        %v4541 = vunpack.c.l.b16 %v4016
        %v4542 = vunpack.c.h.b16 %v4016
        %v4543 = vunpack.c.l.b16 %v4017
        %v4544 = vunpack.c.h.b16 %v4017
        %v4545 = vunpack.c.l.b16 %v4018
        %v4546 = vunpack.c.h.b16 %v4018
        %v4547 = vunpack.c.l.b16 %v4019
        %v4548 = vunpack.c.h.b16 %v4019
        %v4549 = vunpack.c.l.b16 %v4020
        %v4550 = vunpack.c.h.b16 %v4020
        %v4551 = vunpack.c.l.b16 %v4021
        %v4552 = vunpack.c.h.b16 %v4021
        %v4553 = vunpack.c.l.b16 %v4022
        %v4554 = vunpack.c.h.b16 %v4022
        %v4555 = vunpack.c.l.b16 %v4023
        %v4556 = vunpack.c.h.b16 %v4023
        %v4557 = vunpack.c.l.b16 %v4024
        %v4558 = vunpack.c.h.b16 %v4024
        %v4559 = vunpack.c.l.b16 %v4025
        %v4560 = vunpack.c.h.b16 %v4025
        %v4561 = vunpack.c.l.b16 %v4026
        %v4562 = vunpack.c.h.b16 %v4026
        %v4563 = vunpack.c.l.b16 %v4027
        %v4564 = vunpack.c.h.b16 %v4027
        %v4565 = vunpack.c.l.b16 %v4028
        %v4566 = vunpack.c.h.b16 %v4028
        %v4567 = vunpack.c.l.b16 %v4029
        %v4568 = vunpack.c.h.b16 %v4029
        %v4569 = vunpack.c.l.b16 %v4030
        %v4570 = vunpack.c.h.b16 %v4030
        %v4571 = vunpack.c.l.b16 %v4031
        %v4572 = vunpack.c.h.b16 %v4031
        %v4573 = vunpack.c.l.b16 %v4032
        %v4574 = vunpack.c.h.b16 %v4032
        %v4575 = vunpack.c.l.b16 %v4033
        %v4576 = vunpack.c.h.b16 %v4033
        %v4577 = vunpack.c.l.b16 %v4034
        %v4578 = vunpack.c.h.b16 %v4034
        %v4579 = vunpack.c.l.b16 %v4035
        %v4580 = vunpack.c.h.b16 %v4035
        %v4581 = vunpack.c.l.b16 %v4036
        %v4582 = vunpack.c.h.b16 %v4036
        %v4583 = vunpack.c.l.b16 %v4037
        %v4584 = vunpack.c.h.b16 %v4037
        %v4585 = vunpack.c.l.b16 %v4038
        %v4586 = vunpack.c.h.b16 %v4038
        %v4587 = vunpack.c.l.b16 %v4039
        %v4588 = vunpack.c.h.b16 %v4039
        %v4589 = vunpack.c.l.b16 %v4040
        %v4590 = vunpack.c.h.b16 %v4040
        %v4591 = vunpack.c.l.b16 %v4041
        %v4592 = vunpack.c.h.b16 %v4041
        %v4593 = vunpack.c.l.b16 %v4042
        %v4594 = vunpack.c.h.b16 %v4042
        %v4595 = vunpack.c.l.b16 %v4043
        %v4596 = vunpack.c.h.b16 %v4043
        %v4597 = vunpack.c.l.b16 %v4044
        %v4598 = vunpack.c.h.b16 %v4044
        %v4599 = vunpack.c.l.b16 %v4045
        %v4600 = vunpack.c.h.b16 %v4045
        %v4601 = vunpack.c.l.b16 %v4046
        %v4602 = vunpack.c.h.b16 %v4046
        %v4603 = vunpack.c.l.b16 %v4047
        %v4604 = vunpack.c.h.b16 %v4047
        %v4605 = vunpack.c.l.b16 %v4048
        %v4606 = vunpack.c.h.b16 %v4048
        %v4607 = vunpack.c.l.b16 %v4049
        %v4608 = vunpack.c.h.b16 %v4049
        %v4609 = vunpack.c.l.b16 %v4050
        %v4610 = vunpack.c.h.b16 %v4050
        %v4611 = vunpack.c.l.b16 %v4051
        %v4612 = vunpack.c.h.b16 %v4051
        %v4613 = vunpack.c.l.b16 %v4052
        %v4614 = vunpack.c.h.b16 %v4052
        %v4615 = vunpack.c.l.b16 %v4053
        %v4616 = vunpack.c.h.b16 %v4053
        %v4617 = vunpack.c.l.b16 %v4054
        %v4618 = vunpack.c.h.b16 %v4054
        %v4619 = vunpack.c.l.b16 %v4055
        %v4620 = vunpack.c.h.b16 %v4055
        %v4621 = vunpack.c.l.b16 %v4056
        %v4622 = vunpack.c.h.b16 %v4056
        %v4623 = vunpack.c.l.b16 %v4057
        %v4624 = vunpack.c.h.b16 %v4057
        %v4625 = vunpack.c.l.b16 %v4058
        %v4626 = vunpack.c.h.b16 %v4058
        %v4627 = vunpack.c.l.b16 %v4059
        %v4628 = vunpack.c.h.b16 %v4059
        %v4629 = vunpack.c.l.b16 %v4060
        %v4630 = vunpack.c.h.b16 %v4060
        %v4631 = vunpack.c.l.b16 %v4061
        %v4632 = vunpack.c.h.b16 %v4061
        %v4633 = vunpack.c.l.b16 %v4062
        %v4634 = vunpack.c.h.b16 %v4062
        %v4635 = vunpack.c.l.b16 %v4063
        %v4636 = vunpack.c.h.b16 %v4063
        %v4637 = vunpack.c.l.b16 %v4064
        %v4638 = vunpack.c.h.b16 %v4064
        %v4639 = vunpack.c.l.b16 %v4065
        %v4640 = vunpack.c.h.b16 %v4065
        %v4641 = vunpack.c.l.b16 %v4066
        %v4642 = vunpack.c.h.b16 %v4066
        %v4643 = vunpack.c.l.b16 %v4067
        %v4644 = vunpack.c.h.b16 %v4067
        %v4645 = vunpack.c.l.b16 %v4068
        %v4646 = vunpack.c.h.b16 %v4068
        %v4647 = vunpack.c.l.b16 %v4069
        %v4648 = vunpack.c.h.b16 %v4069
        %v4649 = vunpack.c.l.b16 %v4070
        %v4650 = vunpack.c.h.b16 %v4070
        %v4651 = vunpack.c.l.b16 %v4071
        %v4652 = vunpack.c.h.b16 %v4071
        %v4653 = vunpack.c.l.b16 %v4072
        %v4654 = vunpack.c.h.b16 %v4072
        %v4655 = vunpack.c.l.b16 %v4073
        %v4656 = vunpack.c.h.b16 %v4073
        %v4657 = vunpack.c.l.b16 %v4074
        %v4658 = vunpack.c.h.b16 %v4074
        %v4659 = vunpack.c.l.b16 %v4075
        %v4660 = vunpack.c.h.b16 %v4075
        %v4661 = vunpack.c.l.b16 %v4076
        %v4662 = vunpack.c.h.b16 %v4076
        %v4663 = vunpack.c.l.b16 %v4077
        %v4664 = vunpack.c.h.b16 %v4077
        %v4665 = vunpack.c.l.b16 %v4078
        %v4666 = vunpack.c.h.b16 %v4078
        %v4667 = vunpack.c.l.b16 %v4079
        %v4668 = vunpack.c.h.b16 %v4079
        %v4669 = vunpack.c.l.b16 %v4080
        %v4670 = vunpack.c.h.b16 %v4080
        %v4671 = vunpack.c.l.b16 %v4081
        %v4672 = vunpack.c.h.b16 %v4081
        %v4673 = vunpack.c.l.b16 %v4082
        %v4674 = vunpack.c.h.b16 %v4082
        %v4675 = vunpack.c.l.b16 %v4083
        %v4676 = vunpack.c.h.b16 %v4083
        %v4677 = vunpack.c.l.b16 %v4084
        %v4678 = vunpack.c.h.b16 %v4084
        %v4679 = vunpack.c.l.b16 %v4085
        %v4680 = vunpack.c.h.b16 %v4085
        %v4681 = vunpack.c.l.b16 %v4086
        %v4682 = vunpack.c.h.b16 %v4086
        %v4683 = vunpack.c.l.b16 %v4087
        %v4684 = vunpack.c.h.b16 %v4087
        %v4685 = vunpack.c.l.b16 %v4088
        %v4686 = vunpack.c.h.b16 %v4088
        %v4687 = vunpack.c.l.b16 %v4089
        %v4688 = vunpack.c.h.b16 %v4089
        %v4689 = vunpack.c.l.b16 %v4090
        %v4690 = vunpack.c.h.b16 %v4090
        %v4691 = vunpack.c.l.b16 %v4091
        %v4692 = vunpack.c.h.b16 %v4091
        %v4693 = vunpack.c.l.b16 %v4092
        %v4694 = vunpack.c.h.b16 %v4092
        %v4695 = vunpack.c.l.b16 %v4093
        %v4696 = vunpack.c.h.b16 %v4093
        %v4697 = vunpack.c.l.b16 %v4094
        %v4698 = vunpack.c.h.b16 %v4094
        %v4699 = vunpack.c.l.b16 %v4095
        %v4700 = vunpack.c.h.b16 %v4095
        %v4701 = vunpack.c.l.b16 %v4096
        %v4702 = vunpack.c.h.b16 %v4096
        %v4703 = vunpack.c.l.b16 %v4097
        %v4704 = vunpack.c.h.b16 %v4097
        %v4705 = vunpack.c.l.b16 %v4098
        %v4706 = vunpack.c.h.b16 %v4098
        %v4707 = vunpack.c.l.b16 %v4099
        %v4708 = vunpack.c.h.b16 %v4099
        %v4709 = vunpack.c.l.b16 %v4100
        %v4710 = vunpack.c.h.b16 %v4100
        %v4711 = vunpack.c.l.b16 %v4101
        %v4712 = vunpack.c.h.b16 %v4101
        %v4713 = vunpack.c.l.b16 %v4102
        %v4714 = vunpack.c.h.b16 %v4102
        %v4715 = vunpack.c.l.b16 %v4103
        %v4716 = vunpack.c.h.b16 %v4103
        %v4717 = vunpack.c.l.b16 %v4104
        %v4718 = vunpack.c.h.b16 %v4104
        %v4719 = vunpack.c.l.b16 %v4105
        %v4720 = vunpack.c.h.b16 %v4105
        %v4721 = vunpack.c.l.b16 %v4106
        %v4722 = vunpack.c.h.b16 %v4106
        %v4723 = vunpack.c.l.b16 %v4107
        %v4724 = vunpack.c.h.b16 %v4107
        %v4725 = vunpack.c.l.b16 %v4108
        %v4726 = vunpack.c.h.b16 %v4108
        %v4727 = vunpack.c.l.b16 %v4109
        %v4728 = vunpack.c.h.b16 %v4109
        %v4729 = vunpack.c.l.b16 %v4110
        %v4730 = vunpack.c.h.b16 %v4110
        %v4731 = vunpack.c.l.b16 %v4111
        %v4732 = vunpack.c.h.b16 %v4111
        %v4733 = vunpack.c.l.b16 %v4112
        %v4734 = vunpack.c.h.b16 %v4112
        %v4735 = vunpack.c.l.b16 %v4113
        %v4736 = vunpack.c.h.b16 %v4113
        %v4737 = vunpack.c.l.b16 %v4114
        %v4738 = vunpack.c.h.b16 %v4114
        %v4739 = vunpack.c.l.b16 %v4115
        %v4740 = vunpack.c.h.b16 %v4115
        %v4741 = vunpack.c.l.b16 %v4116
        %v4742 = vunpack.c.h.b16 %v4116
        %v4743 = vunpack.c.l.b16 %v4117
        %v4744 = vunpack.c.h.b16 %v4117
        %v4745 = vunpack.c.l.b16 %v4118
        %v4746 = vunpack.c.h.b16 %v4118
        %v4747 = vunpack.c.l.b16 %v4119
        %v4748 = vunpack.c.h.b16 %v4119
        %v4749 = vunpack.c.l.b16 %v4120
        %v4750 = vunpack.c.h.b16 %v4120
        %v4751 = vunpack.c.l.b16 %v4121
        %v4752 = vunpack.c.h.b16 %v4121
        %v4753 = vunpack.c.l.b16 %v4122
        %v4754 = vunpack.c.h.b16 %v4122
        %v4755 = vunpack.c.l.b16 %v4123
        %v4756 = vunpack.c.h.b16 %v4123
        %v4757 = vunpack.c.l.b16 %v4124
        %v4758 = vunpack.c.h.b16 %v4124
        %v4759 = vunpack.c.l.b16 %v4125
        %v4760 = vunpack.c.h.b16 %v4125
        %v4761 = vunpack.c.l.b16 %v4126
        %v4762 = vunpack.c.h.b16 %v4126
        %v4763 = vunpack.c.l.b16 %v4127
        %v4764 = vunpack.c.h.b16 %v4127
        %v4765 = vunpack.c.l.b16 %v4128
        %v4766 = vunpack.c.h.b16 %v4128
        %v4767 = vunpack.c.l.b16 %v4129
        %v4768 = vunpack.c.h.b16 %v4129
        %v4769 = vunpack.c.l.b16 %v4130
        %v4770 = vunpack.c.h.b16 %v4130
        %v4771 = vpack.c.b16 %v4519, %v4515
        %v4772 = vpack.c.b16 %v4520, %v4516
        %v4773 = vpack.c.b16 %v4521, %v4517
        %v4774 = vpack.c.b16 %v4522, %v4518
        %v4775 = vpack.c.b16 %v4527, %v4523
        %v4776 = vpack.c.b16 %v4528, %v4524
        %v4777 = vpack.c.b16 %v4529, %v4525
        %v4778 = vpack.c.b16 %v4530, %v4526
        %v4779 = vpack.c.b16 %v4535, %v4531
        %v4780 = vpack.c.b16 %v4536, %v4532
        %v4781 = vpack.c.b16 %v4537, %v4533
        %v4782 = vpack.c.b16 %v4538, %v4534
        %v4783 = vpack.c.b16 %v4543, %v4539
        %v4784 = vpack.c.b16 %v4544, %v4540
        %v4785 = vpack.c.b16 %v4545, %v4541
        %v4786 = vpack.c.b16 %v4546, %v4542
        %v4787 = vpack.c.b16 %v4551, %v4547
        %v4788 = vpack.c.b16 %v4552, %v4548
        %v4789 = vpack.c.b16 %v4553, %v4549
        %v4790 = vpack.c.b16 %v4554, %v4550
        %v4791 = vpack.c.b16 %v4559, %v4555
        %v4792 = vpack.c.b16 %v4560, %v4556
        %v4793 = vpack.c.b16 %v4561, %v4557
        %v4794 = vpack.c.b16 %v4562, %v4558
        %v4795 = vpack.c.b16 %v4567, %v4563
        %v4796 = vpack.c.b16 %v4568, %v4564
        %v4797 = vpack.c.b16 %v4569, %v4565
        %v4798 = vpack.c.b16 %v4570, %v4566
        %v4799 = vpack.c.b16 %v4575, %v4571
        %v4800 = vpack.c.b16 %v4576, %v4572
        %v4801 = vpack.c.b16 %v4577, %v4573
        %v4802 = vpack.c.b16 %v4578, %v4574
        %v4803 = vpack.c.b16 %v4583, %v4579
        %v4804 = vpack.c.b16 %v4584, %v4580
        %v4805 = vpack.c.b16 %v4585, %v4581
        %v4806 = vpack.c.b16 %v4586, %v4582
        %v4807 = vpack.c.b16 %v4591, %v4587
        %v4808 = vpack.c.b16 %v4592, %v4588
        %v4809 = vpack.c.b16 %v4593, %v4589
        %v4810 = vpack.c.b16 %v4594, %v4590
        %v4811 = vpack.c.b16 %v4599, %v4595
        %v4812 = vpack.c.b16 %v4600, %v4596
        %v4813 = vpack.c.b16 %v4601, %v4597
        %v4814 = vpack.c.b16 %v4602, %v4598
        %v4815 = vpack.c.b16 %v4607, %v4603
        %v4816 = vpack.c.b16 %v4608, %v4604
        %v4817 = vpack.c.b16 %v4609, %v4605
        %v4818 = vpack.c.b16 %v4610, %v4606
        %v4819 = vpack.c.b16 %v4615, %v4611
        %v4820 = vpack.c.b16 %v4616, %v4612
        %v4821 = vpack.c.b16 %v4617, %v4613
        %v4822 = vpack.c.b16 %v4618, %v4614
        %v4823 = vpack.c.b16 %v4623, %v4619
        %v4824 = vpack.c.b16 %v4624, %v4620
        %v4825 = vpack.c.b16 %v4625, %v4621
        %v4826 = vpack.c.b16 %v4626, %v4622
        %v4827 = vpack.c.b16 %v4631, %v4627
        %v4828 = vpack.c.b16 %v4632, %v4628
        %v4829 = vpack.c.b16 %v4633, %v4629
        %v4830 = vpack.c.b16 %v4634, %v4630
        %v4831 = vpack.c.b16 %v4639, %v4635
        %v4832 = vpack.c.b16 %v4640, %v4636
        %v4833 = vpack.c.b16 %v4641, %v4637
        %v4834 = vpack.c.b16 %v4642, %v4638
        %v4835 = vpack.c.b16 %v4647, %v4643
        %v4836 = vpack.c.b16 %v4648, %v4644
        %v4837 = vpack.c.b16 %v4649, %v4645
        %v4838 = vpack.c.b16 %v4650, %v4646
        %v4839 = vpack.c.b16 %v4655, %v4651
        %v4840 = vpack.c.b16 %v4656, %v4652
        %v4841 = vpack.c.b16 %v4657, %v4653
        %v4842 = vpack.c.b16 %v4658, %v4654
        %v4843 = vpack.c.b16 %v4663, %v4659
        %v4844 = vpack.c.b16 %v4664, %v4660
        %v4845 = vpack.c.b16 %v4665, %v4661
        %v4846 = vpack.c.b16 %v4666, %v4662
        %v4847 = vpack.c.b16 %v4671, %v4667
        %v4848 = vpack.c.b16 %v4672, %v4668
        %v4849 = vpack.c.b16 %v4673, %v4669
        %v4850 = vpack.c.b16 %v4674, %v4670
        %v4851 = vpack.c.b16 %v4679, %v4675
        %v4852 = vpack.c.b16 %v4680, %v4676
        %v4853 = vpack.c.b16 %v4681, %v4677
        %v4854 = vpack.c.b16 %v4682, %v4678
        %v4855 = vpack.c.b16 %v4687, %v4683
        %v4856 = vpack.c.b16 %v4688, %v4684
        %v4857 = vpack.c.b16 %v4689, %v4685
        %v4858 = vpack.c.b16 %v4690, %v4686
        %v4859 = vpack.c.b16 %v4695, %v4691
        %v4860 = vpack.c.b16 %v4696, %v4692
        %v4861 = vpack.c.b16 %v4697, %v4693
        %v4862 = vpack.c.b16 %v4698, %v4694
        %v4863 = vpack.c.b16 %v4703, %v4699
        %v4864 = vpack.c.b16 %v4704, %v4700
        %v4865 = vpack.c.b16 %v4705, %v4701
        %v4866 = vpack.c.b16 %v4706, %v4702
        %v4867 = vpack.c.b16 %v4711, %v4707
        %v4868 = vpack.c.b16 %v4712, %v4708
        %v4869 = vpack.c.b16 %v4713, %v4709
        %v4870 = vpack.c.b16 %v4714, %v4710
        %v4871 = vpack.c.b16 %v4719, %v4715
        %v4872 = vpack.c.b16 %v4720, %v4716
        %v4873 = vpack.c.b16 %v4721, %v4717
        %v4874 = vpack.c.b16 %v4722, %v4718
        %v4875 = vpack.c.b16 %v4727, %v4723
        %v4876 = vpack.c.b16 %v4728, %v4724
        %v4877 = vpack.c.b16 %v4729, %v4725
        %v4878 = vpack.c.b16 %v4730, %v4726
        %v4879 = vpack.c.b16 %v4735, %v4731
        %v4880 = vpack.c.b16 %v4736, %v4732
        %v4881 = vpack.c.b16 %v4737, %v4733
        %v4882 = vpack.c.b16 %v4738, %v4734
        %v4883 = vpack.c.b16 %v4743, %v4739
        %v4884 = vpack.c.b16 %v4744, %v4740
        %v4885 = vpack.c.b16 %v4745, %v4741
        %v4886 = vpack.c.b16 %v4746, %v4742
        %v4887 = vpack.c.b16 %v4751, %v4747
        %v4888 = vpack.c.b16 %v4752, %v4748
        %v4889 = vpack.c.b16 %v4753, %v4749
        %v4890 = vpack.c.b16 %v4754, %v4750
        %v4891 = vpack.c.b16 %v4759, %v4755
        %v4892 = vpack.c.b16 %v4760, %v4756
        %v4893 = vpack.c.b16 %v4761, %v4757
        %v4894 = vpack.c.b16 %v4762, %v4758
        %v4895 = vpack.c.b16 %v4767, %v4763
        %v4896 = vpack.c.b16 %v4768, %v4764
        %v4897 = vpack.c.b16 %v4769, %v4765
        %v4898 = vpack.c.b16 %v4770, %v4766
        %5027 = vmatprep.subr.bf16.mxu0 0
        %5028 = vmatpush1.bf16.msra.mxu0 %v3978
        %5029 = vmatprep.subr.bf16.mxu0 0
        %5030 = vmatpush1.bf16.msra.mxu0 %v3977
        %5031 = vmatprep.subr.bf16.mxu0 0
        %5032 = vmatpush1.bf16.msra.mxu0 %v3976
        %5033 = vmatprep.subr.bf16.mxu0 0
        %5034 = vmatpush1.bf16.msra.mxu0 %v3975
        %5035 = vmatprep.subr.bf16.mxu0 0
        %5036 = vmatpush1.bf16.msra.mxu0 %v3974
        %5037 = vmatprep.subr.bf16.mxu0 0
        %5038 = vmatpush1.bf16.msra.mxu0 %v3973
        %5039 = vmatprep.subr.bf16.mxu0 0
        %5040 = vmatpush1.bf16.msra.mxu0 %v3972
        %5041 = vmatprep.subr.bf16.mxu0 0
        %5042 = vmatpush1.bf16.msra.mxu0 %v3971
        %5043 = vmatprep.subr.bf16.mxu0 0
        %5044 = vmatpush2.bf16.msra.mxu0 %v3986
        %5045 = vmatprep.subr.bf16.mxu0 0
        %5046 = vmatpush2.bf16.msra.mxu0 %v3985
        %5047 = vmatprep.subr.bf16.mxu0 0
        %5048 = vmatpush2.bf16.msra.mxu0 %v3984
        %5049 = vmatprep.subr.bf16.mxu0 0
        %5050 = vmatpush2.bf16.msra.mxu0 %v3983
        %5051 = vmatprep.subr.bf16.mxu0 0
        %5052 = vmatpush2.bf16.msra.mxu0 %v3982
        %5053 = vmatprep.subr.bf16.mxu0 0
        %5054 = vmatpush2.bf16.msra.mxu0 %v3981
        %5055 = vmatprep.subr.bf16.mxu0 0
        %5056 = vmatpush2.bf16.msra.mxu0 %v3980
        %5057 = vmatprep.subr.bf16.mxu0 0
        %5058 = vmatpush2.bf16.msra.mxu0 %v3979
        %5059 = vmatprep.mubr.bf16.mxu0 %v4772
        %5060 = vmatmul.mubr.bf16.gmra.mxu0 %v4771
        %v5061 = vpop.f32.mrf.mxu0
        %v5062 = vadd.f32 %v4133, %v5061
        %v5063 = vpop.f32.mrf.mxu0
        %v5064 = vpop.f32.mrf.mxu0
        %v5065 = vadd.f32 %v4137, %v5064
        %v5066 = vpop.f32.mrf.mxu0
        %5067 = vmatprep.mubr.bf16.mxu0 %v4776
        %5068 = vmatmul.mubr.bf16.gmra.mxu0 %v4775
        %v5069 = vpop.f32.mrf.mxu0
        %v5070 = vadd.f32 %v4141, %v5069
        %v5071 = vpop.f32.mrf.mxu0
        %v5072 = vpop.f32.mrf.mxu0
        %v5073 = vadd.f32 %v4145, %v5072
        %v5074 = vpop.f32.mrf.mxu0
        %5075 = vmatprep.mubr.bf16.mxu0 %v4780
        %5076 = vmatmul.mubr.bf16.gmra.mxu0 %v4779
        %v5077 = vpop.f32.mrf.mxu0
        %v5078 = vadd.f32 %v4149, %v5077
        %v5079 = vpop.f32.mrf.mxu0
        %v5080 = vpop.f32.mrf.mxu0
        %v5081 = vadd.f32 %v4153, %v5080
        %v5082 = vpop.f32.mrf.mxu0
        %5083 = vmatprep.mubr.bf16.mxu0 %v4784
        %5084 = vmatmul.mubr.bf16.gmra.mxu0 %v4783
        %v5085 = vpop.f32.mrf.mxu0
        %v5086 = vadd.f32 %v4157, %v5085
        %v5087 = vpop.f32.mrf.mxu0
        %v5088 = vpop.f32.mrf.mxu0
        %v5089 = vadd.f32 %v4161, %v5088
        %v5090 = vpop.f32.mrf.mxu0
        %5091 = vmatprep.mubr.bf16.mxu0 %v4788
        %5092 = vmatmul.mubr.bf16.gmra.mxu0 %v4787
        %v5093 = vpop.f32.mrf.mxu0
        %v5094 = vadd.f32 %v4165, %v5093
        %v5095 = vpop.f32.mrf.mxu0
        %v5096 = vpop.f32.mrf.mxu0
        %v5097 = vadd.f32 %v4169, %v5096
        %v5098 = vpop.f32.mrf.mxu0
        %5099 = vmatprep.mubr.bf16.mxu0 %v4792
        %5100 = vmatmul.mubr.bf16.gmra.mxu0 %v4791
        %v5101 = vpop.f32.mrf.mxu0
        %v5102 = vadd.f32 %v4173, %v5101
        %v5103 = vpop.f32.mrf.mxu0
        %v5104 = vpop.f32.mrf.mxu0
        %v5105 = vadd.f32 %v4177, %v5104
        %v5106 = vpop.f32.mrf.mxu0
        %5107 = vmatprep.mubr.bf16.mxu0 %v4796
        %5108 = vmatmul.mubr.bf16.gmra.mxu0 %v4795
        %v5109 = vpop.f32.mrf.mxu0
        %v5110 = vadd.f32 %v4181, %v5109
        %v5111 = vpop.f32.mrf.mxu0
        %v5112 = vpop.f32.mrf.mxu0
        %v5113 = vadd.f32 %v4185, %v5112
        %v5114 = vpop.f32.mrf.mxu0
        %5115 = vmatprep.mubr.bf16.mxu0 %v4800
        %5116 = vmatmul.mubr.bf16.gmra.mxu0 %v4799
        %v5117 = vpop.f32.mrf.mxu0
        %v5118 = vadd.f32 %v4189, %v5117
        %v5119 = vpop.f32.mrf.mxu0
        %v5120 = vpop.f32.mrf.mxu0
        %v5121 = vadd.f32 %v4193, %v5120
        %v5122 = vpop.f32.mrf.mxu0
        %5123 = vmatprep.mubr.bf16.mxu0 %v4804
        %5124 = vmatmul.mubr.bf16.gmra.mxu0 %v4803
        %v5125 = vpop.f32.mrf.mxu0
        %v5126 = vadd.f32 %v4197, %v5125
        %v5127 = vpop.f32.mrf.mxu0
        %v5128 = vpop.f32.mrf.mxu0
        %v5129 = vadd.f32 %v4201, %v5128
        %v5130 = vpop.f32.mrf.mxu0
        %5131 = vmatprep.mubr.bf16.mxu0 %v4808
        %5132 = vmatmul.mubr.bf16.gmra.mxu0 %v4807
        %v5133 = vpop.f32.mrf.mxu0
        %v5134 = vadd.f32 %v4205, %v5133
        %v5135 = vpop.f32.mrf.mxu0
        %v5136 = vpop.f32.mrf.mxu0
        %v5137 = vadd.f32 %v4209, %v5136
        %v5138 = vpop.f32.mrf.mxu0
        %5139 = vmatprep.mubr.bf16.mxu0 %v4812
        %5140 = vmatmul.mubr.bf16.gmra.mxu0 %v4811
        %v5141 = vpop.f32.mrf.mxu0
        %v5142 = vadd.f32 %v4213, %v5141
        %v5143 = vpop.f32.mrf.mxu0
        %v5144 = vpop.f32.mrf.mxu0
        %v5145 = vadd.f32 %v4217, %v5144
        %v5146 = vpop.f32.mrf.mxu0
        %5147 = vmatprep.mubr.bf16.mxu0 %v4816
        %5148 = vmatmul.mubr.bf16.gmra.mxu0 %v4815
        %v5149 = vpop.f32.mrf.mxu0
        %v5150 = vadd.f32 %v4221, %v5149
        %v5151 = vpop.f32.mrf.mxu0
        %v5152 = vpop.f32.mrf.mxu0
        %v5153 = vadd.f32 %v4225, %v5152
        %v5154 = vpop.f32.mrf.mxu0
        %5155 = vmatprep.mubr.bf16.mxu0 %v4820
        %5156 = vmatmul.mubr.bf16.gmra.mxu0 %v4819
        %v5157 = vpop.f32.mrf.mxu0
        %v5158 = vadd.f32 %v4229, %v5157
        %v5159 = vpop.f32.mrf.mxu0
        %v5160 = vpop.f32.mrf.mxu0
        %v5161 = vadd.f32 %v4233, %v5160
        %v5162 = vpop.f32.mrf.mxu0
        %5163 = vmatprep.mubr.bf16.mxu0 %v4824
        %5164 = vmatmul.mubr.bf16.gmra.mxu0 %v4823
        %v5165 = vpop.f32.mrf.mxu0
        %v5166 = vadd.f32 %v4237, %v5165
        %v5167 = vpop.f32.mrf.mxu0
        %v5168 = vpop.f32.mrf.mxu0
        %v5169 = vadd.f32 %v4241, %v5168
        %v5170 = vpop.f32.mrf.mxu0
        %5171 = vmatprep.mubr.bf16.mxu0 %v4828
        %5172 = vmatmul.mubr.bf16.gmra.mxu0 %v4827
        %v5173 = vpop.f32.mrf.mxu0
        %v5174 = vadd.f32 %v4245, %v5173
        %v5175 = vpop.f32.mrf.mxu0
        %v5176 = vpop.f32.mrf.mxu0
        %v5177 = vadd.f32 %v4249, %v5176
        %v5178 = vpop.f32.mrf.mxu0
        %5179 = vmatprep.mubr.bf16.mxu0 %v4832
        %5180 = vmatmul.mubr.bf16.gmra.mxu0 %v4831
        %v5181 = vpop.f32.mrf.mxu0
        %v5182 = vadd.f32 %v4253, %v5181
        %v5183 = vpop.f32.mrf.mxu0
        %v5184 = vpop.f32.mrf.mxu0
        %v5185 = vadd.f32 %v4257, %v5184
        %v5186 = vpop.f32.mrf.mxu0
        %5187 = vmatprep.mubr.bf16.mxu0 %v4836
        %5188 = vmatmul.mubr.bf16.gmra.mxu0 %v4835
        %v5189 = vpop.f32.mrf.mxu0
        %v5190 = vadd.f32 %v4261, %v5189
        %v5191 = vpop.f32.mrf.mxu0
        %v5192 = vpop.f32.mrf.mxu0
        %v5193 = vadd.f32 %v4265, %v5192
        %v5194 = vpop.f32.mrf.mxu0
        %5195 = vmatprep.mubr.bf16.mxu0 %v4840
        %5196 = vmatmul.mubr.bf16.gmra.mxu0 %v4839
        %v5197 = vpop.f32.mrf.mxu0
        %v5198 = vadd.f32 %v4269, %v5197
        %v5199 = vpop.f32.mrf.mxu0
        %v5200 = vpop.f32.mrf.mxu0
        %v5201 = vadd.f32 %v4273, %v5200
        %v5202 = vpop.f32.mrf.mxu0
        %5203 = vmatprep.mubr.bf16.mxu0 %v4844
        %5204 = vmatmul.mubr.bf16.gmra.mxu0 %v4843
        %v5205 = vpop.f32.mrf.mxu0
        %v5206 = vadd.f32 %v4277, %v5205
        %v5207 = vpop.f32.mrf.mxu0
        %v5208 = vpop.f32.mrf.mxu0
        %v5209 = vadd.f32 %v4281, %v5208
        %v5210 = vpop.f32.mrf.mxu0
        %5211 = vmatprep.mubr.bf16.mxu0 %v4848
        %5212 = vmatmul.mubr.bf16.gmra.mxu0 %v4847
        %v5213 = vpop.f32.mrf.mxu0
        %v5214 = vadd.f32 %v4285, %v5213
        %v5215 = vpop.f32.mrf.mxu0
        %v5216 = vpop.f32.mrf.mxu0
        %v5217 = vadd.f32 %v4289, %v5216
        %v5218 = vpop.f32.mrf.mxu0
        %5219 = vmatprep.mubr.bf16.mxu0 %v4852
        %5220 = vmatmul.mubr.bf16.gmra.mxu0 %v4851
        %v5221 = vpop.f32.mrf.mxu0
        %v5222 = vadd.f32 %v4293, %v5221
        %v5223 = vpop.f32.mrf.mxu0
        %v5224 = vpop.f32.mrf.mxu0
        %v5225 = vadd.f32 %v4297, %v5224
        %v5226 = vpop.f32.mrf.mxu0
        %5227 = vmatprep.mubr.bf16.mxu0 %v4856
        %5228 = vmatmul.mubr.bf16.gmra.mxu0 %v4855
        %v5229 = vpop.f32.mrf.mxu0
        %v5230 = vadd.f32 %v4301, %v5229
        %v5231 = vpop.f32.mrf.mxu0
        %v5232 = vpop.f32.mrf.mxu0
        %v5233 = vadd.f32 %v4305, %v5232
        %v5234 = vpop.f32.mrf.mxu0
        %5235 = vmatprep.mubr.bf16.mxu0 %v4860
        %5236 = vmatmul.mubr.bf16.gmra.mxu0 %v4859
        %v5237 = vpop.f32.mrf.mxu0
        %v5238 = vadd.f32 %v4309, %v5237
        %v5239 = vpop.f32.mrf.mxu0
        %v5240 = vpop.f32.mrf.mxu0
        %v5241 = vadd.f32 %v4313, %v5240
        %v5242 = vpop.f32.mrf.mxu0
        %5243 = vmatprep.mubr.bf16.mxu0 %v4864
        %5244 = vmatmul.mubr.bf16.gmra.mxu0 %v4863
        %v5245 = vpop.f32.mrf.mxu0
        %v5246 = vadd.f32 %v4317, %v5245
        %v5247 = vpop.f32.mrf.mxu0
        %v5248 = vpop.f32.mrf.mxu0
        %v5249 = vadd.f32 %v4321, %v5248
        %v5250 = vpop.f32.mrf.mxu0
        %5251 = vmatprep.mubr.bf16.mxu0 %v4868
        %5252 = vmatmul.mubr.bf16.gmra.mxu0 %v4867
        %v5253 = vpop.f32.mrf.mxu0
        %v5254 = vadd.f32 %v4325, %v5253
        %v5255 = vpop.f32.mrf.mxu0
        %v5256 = vpop.f32.mrf.mxu0
        %v5257 = vadd.f32 %v4329, %v5256
        %v5258 = vpop.f32.mrf.mxu0
        %5259 = vmatprep.mubr.bf16.mxu0 %v4872
        %5260 = vmatmul.mubr.bf16.gmra.mxu0 %v4871
        %v5261 = vpop.f32.mrf.mxu0
        %v5262 = vadd.f32 %v4333, %v5261
        %v5263 = vpop.f32.mrf.mxu0
        %v5264 = vpop.f32.mrf.mxu0
        %v5265 = vadd.f32 %v4337, %v5264
        %v5266 = vpop.f32.mrf.mxu0
        %5267 = vmatprep.mubr.bf16.mxu0 %v4876
        %5268 = vmatmul.mubr.bf16.gmra.mxu0 %v4875
        %v5269 = vpop.f32.mrf.mxu0
        %v5270 = vadd.f32 %v4341, %v5269
        %v5271 = vpop.f32.mrf.mxu0
        %v5272 = vpop.f32.mrf.mxu0
        %v5273 = vadd.f32 %v4345, %v5272
        %v5274 = vpop.f32.mrf.mxu0
        %5275 = vmatprep.mubr.bf16.mxu0 %v4880
        %5276 = vmatmul.mubr.bf16.gmra.mxu0 %v4879
        %v5277 = vpop.f32.mrf.mxu0
        %v5278 = vadd.f32 %v4349, %v5277
        %v5279 = vpop.f32.mrf.mxu0
        %v5280 = vpop.f32.mrf.mxu0
        %v5281 = vadd.f32 %v4353, %v5280
        %v5282 = vpop.f32.mrf.mxu0
        %5283 = vmatprep.mubr.bf16.mxu0 %v4884
        %5284 = vmatmul.mubr.bf16.gmra.mxu0 %v4883
        %v5285 = vpop.f32.mrf.mxu0
        %v5286 = vadd.f32 %v4357, %v5285
        %v5287 = vpop.f32.mrf.mxu0
        %v5288 = vpop.f32.mrf.mxu0
        %v5289 = vadd.f32 %v4361, %v5288
        %v5290 = vpop.f32.mrf.mxu0
        %5291 = vmatprep.mubr.bf16.mxu0 %v4888
        %5292 = vmatmul.mubr.bf16.gmra.mxu0 %v4887
        %v5293 = vpop.f32.mrf.mxu0
        %v5294 = vadd.f32 %v4365, %v5293
        %v5295 = vpop.f32.mrf.mxu0
        %v5296 = vpop.f32.mrf.mxu0
        %v5297 = vadd.f32 %v4369, %v5296
        %v5298 = vpop.f32.mrf.mxu0
        %5299 = vmatprep.mubr.bf16.mxu0 %v4892
        %5300 = vmatmul.mubr.bf16.gmra.mxu0 %v4891
        %v5301 = vpop.f32.mrf.mxu0
        %v5302 = vadd.f32 %v4373, %v5301
        %v5303 = vpop.f32.mrf.mxu0
        %v5304 = vpop.f32.mrf.mxu0
        %v5305 = vadd.f32 %v4377, %v5304
        %v5306 = vpop.f32.mrf.mxu0
        %5307 = vmatprep.mubr.bf16.mxu0 %v4896
        %5308 = vmatmul.mubr.bf16.gmra.mxu0 %v4895
        %v5309 = vpop.f32.mrf.mxu0
        %v5310 = vadd.f32 %v4381, %v5309
        %v5311 = vpop.f32.mrf.mxu0
        %v5312 = vpop.f32.mrf.mxu0
        %v5313 = vadd.f32 %v4385, %v5312
        %v5314 = vpop.f32.mrf.mxu0
        %5315 = vdwg.mxu0
        %5316 = vmatprep.subr.bf16.mxu0 0
        %5317 = vmatpush1.bf16.msra.mxu0 %v3994
        %5318 = vmatprep.subr.bf16.mxu0 0
        %5319 = vmatpush1.bf16.msra.mxu0 %v3993
        %5320 = vmatprep.subr.bf16.mxu0 0
        %5321 = vmatpush1.bf16.msra.mxu0 %v3992
        %5322 = vmatprep.subr.bf16.mxu0 0
        %5323 = vmatpush1.bf16.msra.mxu0 %v3991
        %5324 = vmatprep.subr.bf16.mxu0 0
        %5325 = vmatpush1.bf16.msra.mxu0 %v3990
        %5326 = vmatprep.subr.bf16.mxu0 0
        %5327 = vmatpush1.bf16.msra.mxu0 %v3989
        %5328 = vmatprep.subr.bf16.mxu0 0
        %5329 = vmatpush1.bf16.msra.mxu0 %v3988
        %5330 = vmatprep.subr.bf16.mxu0 0
        %5331 = vmatpush1.bf16.msra.mxu0 %v3987
        %5332 = vmatprep.subr.bf16.mxu0 0
        %5333 = vmatpush2.bf16.msra.mxu0 %v4002
        %5334 = vmatprep.subr.bf16.mxu0 0
        %5335 = vmatpush2.bf16.msra.mxu0 %v4001
        %5336 = vmatprep.subr.bf16.mxu0 0
        %5337 = vmatpush2.bf16.msra.mxu0 %v4000
        %5338 = vmatprep.subr.bf16.mxu0 0
        %5339 = vmatpush2.bf16.msra.mxu0 %v3999
        %5340 = vmatprep.subr.bf16.mxu0 0
        %5341 = vmatpush2.bf16.msra.mxu0 %v3998
        %5342 = vmatprep.subr.bf16.mxu0 0
        %5343 = vmatpush2.bf16.msra.mxu0 %v3997
        %5344 = vmatprep.subr.bf16.mxu0 0
        %5345 = vmatpush2.bf16.msra.mxu0 %v3996
        %5346 = vmatprep.subr.bf16.mxu0 0
        %5347 = vmatpush2.bf16.msra.mxu0 %v3995
        %5348 = vmatprep.mubr.bf16.mxu0 %v4774
        %5349 = vmatmul.mubr.bf16.gmra.mxu0 %v4773
        %v5350 = vpop.f32.mrf.mxu0
        %v5351 = vadd.f32 %v5062, %v5350
        %v5352 = vpop.f32.mrf.mxu0
        %v5353 = vpop.f32.mrf.mxu0
        %v5354 = vadd.f32 %v5065, %v5353
        %v5355 = vpop.f32.mrf.mxu0
        %5356 = vmatprep.mubr.bf16.mxu0 %v4778
        %5357 = vmatmul.mubr.bf16.gmra.mxu0 %v4777
        %v5358 = vpop.f32.mrf.mxu0
        %v5359 = vadd.f32 %v5070, %v5358
        %v5360 = vpop.f32.mrf.mxu0
        %v5361 = vpop.f32.mrf.mxu0
        %v5362 = vadd.f32 %v5073, %v5361
        %v5363 = vpop.f32.mrf.mxu0
        %5364 = vmatprep.mubr.bf16.mxu0 %v4782
        %5365 = vmatmul.mubr.bf16.gmra.mxu0 %v4781
        %v5366 = vpop.f32.mrf.mxu0
        %v5367 = vadd.f32 %v5078, %v5366
        %v5368 = vpop.f32.mrf.mxu0
        %v5369 = vpop.f32.mrf.mxu0
        %v5370 = vadd.f32 %v5081, %v5369
        %v5371 = vpop.f32.mrf.mxu0
        %5372 = vmatprep.mubr.bf16.mxu0 %v4786
        %5373 = vmatmul.mubr.bf16.gmra.mxu0 %v4785
        %v5374 = vpop.f32.mrf.mxu0
        %v5375 = vadd.f32 %v5086, %v5374
        %v5376 = vpop.f32.mrf.mxu0
        %v5377 = vpop.f32.mrf.mxu0
        %v5378 = vadd.f32 %v5089, %v5377
        %v5379 = vpop.f32.mrf.mxu0
        %5380 = vmatprep.mubr.bf16.mxu0 %v4790
        %5381 = vmatmul.mubr.bf16.gmra.mxu0 %v4789
        %v5382 = vpop.f32.mrf.mxu0
        %v5383 = vadd.f32 %v5094, %v5382
        %v5384 = vpop.f32.mrf.mxu0
        %v5385 = vpop.f32.mrf.mxu0
        %v5386 = vadd.f32 %v5097, %v5385
        %v5387 = vpop.f32.mrf.mxu0
        %5388 = vmatprep.mubr.bf16.mxu0 %v4794
        %5389 = vmatmul.mubr.bf16.gmra.mxu0 %v4793
        %v5390 = vpop.f32.mrf.mxu0
        %v5391 = vadd.f32 %v5102, %v5390
        %v5392 = vpop.f32.mrf.mxu0
        %v5393 = vpop.f32.mrf.mxu0
        %v5394 = vadd.f32 %v5105, %v5393
        %v5395 = vpop.f32.mrf.mxu0
        %5396 = vmatprep.mubr.bf16.mxu0 %v4798
        %5397 = vmatmul.mubr.bf16.gmra.mxu0 %v4797
        %v5398 = vpop.f32.mrf.mxu0
        %v5399 = vadd.f32 %v5110, %v5398
        %v5400 = vpop.f32.mrf.mxu0
        %v5401 = vpop.f32.mrf.mxu0
        %v5402 = vadd.f32 %v5113, %v5401
        %v5403 = vpop.f32.mrf.mxu0
        %5404 = vmatprep.mubr.bf16.mxu0 %v4802
        %5405 = vmatmul.mubr.bf16.gmra.mxu0 %v4801
        %v5406 = vpop.f32.mrf.mxu0
        %v5407 = vadd.f32 %v5118, %v5406
        %v5408 = vpop.f32.mrf.mxu0
        %v5409 = vpop.f32.mrf.mxu0
        %v5410 = vadd.f32 %v5121, %v5409
        %v5411 = vpop.f32.mrf.mxu0
        %5412 = vmatprep.mubr.bf16.mxu0 %v4806
        %5413 = vmatmul.mubr.bf16.gmra.mxu0 %v4805
        %v5414 = vpop.f32.mrf.mxu0
        %v5415 = vadd.f32 %v5126, %v5414
        %v5416 = vpop.f32.mrf.mxu0
        %v5417 = vpop.f32.mrf.mxu0
        %v5418 = vadd.f32 %v5129, %v5417
        %v5419 = vpop.f32.mrf.mxu0
        %5420 = vmatprep.mubr.bf16.mxu0 %v4810
        %5421 = vmatmul.mubr.bf16.gmra.mxu0 %v4809
        %v5422 = vpop.f32.mrf.mxu0
        %v5423 = vadd.f32 %v5134, %v5422
        %v5424 = vpop.f32.mrf.mxu0
        %v5425 = vpop.f32.mrf.mxu0
        %v5426 = vadd.f32 %v5137, %v5425
        %v5427 = vpop.f32.mrf.mxu0
        %5428 = vmatprep.mubr.bf16.mxu0 %v4814
        %5429 = vmatmul.mubr.bf16.gmra.mxu0 %v4813
        %v5430 = vpop.f32.mrf.mxu0
        %v5431 = vadd.f32 %v5142, %v5430
        %v5432 = vpop.f32.mrf.mxu0
        %v5433 = vpop.f32.mrf.mxu0
        %v5434 = vadd.f32 %v5145, %v5433
        %v5435 = vpop.f32.mrf.mxu0
        %5436 = vmatprep.mubr.bf16.mxu0 %v4818
        %5437 = vmatmul.mubr.bf16.gmra.mxu0 %v4817
        %v5438 = vpop.f32.mrf.mxu0
        %v5439 = vadd.f32 %v5150, %v5438
        %v5440 = vpop.f32.mrf.mxu0
        %v5441 = vpop.f32.mrf.mxu0
        %v5442 = vadd.f32 %v5153, %v5441
        %v5443 = vpop.f32.mrf.mxu0
        %5444 = vmatprep.mubr.bf16.mxu0 %v4822
        %5445 = vmatmul.mubr.bf16.gmra.mxu0 %v4821
        %v5446 = vpop.f32.mrf.mxu0
        %v5447 = vadd.f32 %v5158, %v5446
        %v5448 = vpop.f32.mrf.mxu0
        %v5449 = vpop.f32.mrf.mxu0
        %v5450 = vadd.f32 %v5161, %v5449
        %v5451 = vpop.f32.mrf.mxu0
        %5452 = vmatprep.mubr.bf16.mxu0 %v4826
        %5453 = vmatmul.mubr.bf16.gmra.mxu0 %v4825
        %v5454 = vpop.f32.mrf.mxu0
        %v5455 = vadd.f32 %v5166, %v5454
        %v5456 = vpop.f32.mrf.mxu0
        %v5457 = vpop.f32.mrf.mxu0
        %v5458 = vadd.f32 %v5169, %v5457
        %v5459 = vpop.f32.mrf.mxu0
        %5460 = vmatprep.mubr.bf16.mxu0 %v4830
        %5461 = vmatmul.mubr.bf16.gmra.mxu0 %v4829
        %v5462 = vpop.f32.mrf.mxu0
        %v5463 = vadd.f32 %v5174, %v5462
        %v5464 = vpop.f32.mrf.mxu0
        %v5465 = vpop.f32.mrf.mxu0
        %v5466 = vadd.f32 %v5177, %v5465
        %v5467 = vpop.f32.mrf.mxu0
        %5468 = vmatprep.mubr.bf16.mxu0 %v4834
        %5469 = vmatmul.mubr.bf16.gmra.mxu0 %v4833
        %v5470 = vpop.f32.mrf.mxu0
        %v5471 = vadd.f32 %v5182, %v5470
        %v5472 = vpop.f32.mrf.mxu0
        %v5473 = vpop.f32.mrf.mxu0
        %v5474 = vadd.f32 %v5185, %v5473
        %v5475 = vpop.f32.mrf.mxu0
        %5476 = vmatprep.mubr.bf16.mxu0 %v4838
        %5477 = vmatmul.mubr.bf16.gmra.mxu0 %v4837
        %v5478 = vpop.f32.mrf.mxu0
        %v5479 = vadd.f32 %v5190, %v5478
        %v5480 = vpop.f32.mrf.mxu0
        %v5481 = vpop.f32.mrf.mxu0
        %v5482 = vadd.f32 %v5193, %v5481
        %v5483 = vpop.f32.mrf.mxu0
        %5484 = vmatprep.mubr.bf16.mxu0 %v4842
        %5485 = vmatmul.mubr.bf16.gmra.mxu0 %v4841
        %v5486 = vpop.f32.mrf.mxu0
        %v5487 = vadd.f32 %v5198, %v5486
        %v5488 = vpop.f32.mrf.mxu0
        %v5489 = vpop.f32.mrf.mxu0
        %v5490 = vadd.f32 %v5201, %v5489
        %v5491 = vpop.f32.mrf.mxu0
        %5492 = vmatprep.mubr.bf16.mxu0 %v4846
        %5493 = vmatmul.mubr.bf16.gmra.mxu0 %v4845
        %v5494 = vpop.f32.mrf.mxu0
        %v5495 = vadd.f32 %v5206, %v5494
        %v5496 = vpop.f32.mrf.mxu0
        %v5497 = vpop.f32.mrf.mxu0
        %v5498 = vadd.f32 %v5209, %v5497
        %v5499 = vpop.f32.mrf.mxu0
        %5500 = vmatprep.mubr.bf16.mxu0 %v4850
        %5501 = vmatmul.mubr.bf16.gmra.mxu0 %v4849
        %v5502 = vpop.f32.mrf.mxu0
        %v5503 = vadd.f32 %v5214, %v5502
        %v5504 = vpop.f32.mrf.mxu0
        %v5505 = vpop.f32.mrf.mxu0
        %v5506 = vadd.f32 %v5217, %v5505
        %v5507 = vpop.f32.mrf.mxu0
        %5508 = vmatprep.mubr.bf16.mxu0 %v4854
        %5509 = vmatmul.mubr.bf16.gmra.mxu0 %v4853
        %v5510 = vpop.f32.mrf.mxu0
        %v5511 = vadd.f32 %v5222, %v5510
        %v5512 = vpop.f32.mrf.mxu0
        %v5513 = vpop.f32.mrf.mxu0
        %v5514 = vadd.f32 %v5225, %v5513
        %v5515 = vpop.f32.mrf.mxu0
        %5516 = vmatprep.mubr.bf16.mxu0 %v4858
        %5517 = vmatmul.mubr.bf16.gmra.mxu0 %v4857
        %v5518 = vpop.f32.mrf.mxu0
        %v5519 = vadd.f32 %v5230, %v5518
        %v5520 = vpop.f32.mrf.mxu0
        %v5521 = vpop.f32.mrf.mxu0
        %v5522 = vadd.f32 %v5233, %v5521
        %v5523 = vpop.f32.mrf.mxu0
        %5524 = vmatprep.mubr.bf16.mxu0 %v4862
        %5525 = vmatmul.mubr.bf16.gmra.mxu0 %v4861
        %v5526 = vpop.f32.mrf.mxu0
        %v5527 = vadd.f32 %v5238, %v5526
        %v5528 = vpop.f32.mrf.mxu0
        %v5529 = vpop.f32.mrf.mxu0
        %v5530 = vadd.f32 %v5241, %v5529
        %v5531 = vpop.f32.mrf.mxu0
        %5532 = vmatprep.mubr.bf16.mxu0 %v4866
        %5533 = vmatmul.mubr.bf16.gmra.mxu0 %v4865
        %v5534 = vpop.f32.mrf.mxu0
        %v5535 = vadd.f32 %v5246, %v5534
        %v5536 = vpop.f32.mrf.mxu0
        %v5537 = vpop.f32.mrf.mxu0
        %v5538 = vadd.f32 %v5249, %v5537
        %v5539 = vpop.f32.mrf.mxu0
        %5540 = vmatprep.mubr.bf16.mxu0 %v4870
        %5541 = vmatmul.mubr.bf16.gmra.mxu0 %v4869
        %v5542 = vpop.f32.mrf.mxu0
        %v5543 = vadd.f32 %v5254, %v5542
        %v5544 = vpop.f32.mrf.mxu0
        %v5545 = vpop.f32.mrf.mxu0
        %v5546 = vadd.f32 %v5257, %v5545
        %v5547 = vpop.f32.mrf.mxu0
        %5548 = vmatprep.mubr.bf16.mxu0 %v4874
        %5549 = vmatmul.mubr.bf16.gmra.mxu0 %v4873
        %v5550 = vpop.f32.mrf.mxu0
        %v5551 = vadd.f32 %v5262, %v5550
        %v5552 = vpop.f32.mrf.mxu0
        %v5553 = vpop.f32.mrf.mxu0
        %v5554 = vadd.f32 %v5265, %v5553
        %v5555 = vpop.f32.mrf.mxu0
        %5556 = vmatprep.mubr.bf16.mxu0 %v4878
        %5557 = vmatmul.mubr.bf16.gmra.mxu0 %v4877
        %v5558 = vpop.f32.mrf.mxu0
        %v5559 = vadd.f32 %v5270, %v5558
        %v5560 = vpop.f32.mrf.mxu0
        %v5561 = vpop.f32.mrf.mxu0
        %v5562 = vadd.f32 %v5273, %v5561
        %v5563 = vpop.f32.mrf.mxu0
        %5564 = vmatprep.mubr.bf16.mxu0 %v4882
        %5565 = vmatmul.mubr.bf16.gmra.mxu0 %v4881
        %v5566 = vpop.f32.mrf.mxu0
        %v5567 = vadd.f32 %v5278, %v5566
        %v5568 = vpop.f32.mrf.mxu0
        %v5569 = vpop.f32.mrf.mxu0
        %v5570 = vadd.f32 %v5281, %v5569
        %v5571 = vpop.f32.mrf.mxu0
        %5572 = vmatprep.mubr.bf16.mxu0 %v4886
        %5573 = vmatmul.mubr.bf16.gmra.mxu0 %v4885
        %v5574 = vpop.f32.mrf.mxu0
        %v5575 = vadd.f32 %v5286, %v5574
        %v5576 = vpop.f32.mrf.mxu0
        %v5577 = vpop.f32.mrf.mxu0
        %v5578 = vadd.f32 %v5289, %v5577
        %v5579 = vpop.f32.mrf.mxu0
        %5580 = vmatprep.mubr.bf16.mxu0 %v4890
        %5581 = vmatmul.mubr.bf16.gmra.mxu0 %v4889
        %v5582 = vpop.f32.mrf.mxu0
        %v5583 = vadd.f32 %v5294, %v5582
        %v5584 = vpop.f32.mrf.mxu0
        %v5585 = vpop.f32.mrf.mxu0
        %v5586 = vadd.f32 %v5297, %v5585
        %v5587 = vpop.f32.mrf.mxu0
        %5588 = vmatprep.mubr.bf16.mxu0 %v4894
        %5589 = vmatmul.mubr.bf16.gmra.mxu0 %v4893
        %v5590 = vpop.f32.mrf.mxu0
        %v5591 = vadd.f32 %v5302, %v5590
        %v5592 = vpop.f32.mrf.mxu0
        %v5593 = vpop.f32.mrf.mxu0
        %v5594 = vadd.f32 %v5305, %v5593
        %v5595 = vpop.f32.mrf.mxu0
        %5596 = vmatprep.mubr.bf16.mxu0 %v4898
        %5597 = vmatmul.mubr.bf16.gmra.mxu0 %v4897
        %v5598 = vpop.f32.mrf.mxu0
        %v5599 = vadd.f32 %v5310, %v5598
        %v5600 = vpop.f32.mrf.mxu0
        %v5601 = vpop.f32.mrf.mxu0
        %v5602 = vadd.f32 %v5313, %v5601
        %v5603 = vpop.f32.mrf.mxu0
        %5604 = vdwg.mxu0
        %v5605 = vmax.f32 %v5351, 0.0
        %v5606 = vmax.f32 %v5354, 0.0
        %v5607 = vmax.f32 %v5359, 0.0
        %v5608 = vmax.f32 %v5362, 0.0
        %v5609 = vmax.f32 %v5367, 0.0
        %v5610 = vmax.f32 %v5370, 0.0
        %v5611 = vmax.f32 %v5375, 0.0
        %v5612 = vmax.f32 %v5378, 0.0
        %v5613 = vmax.f32 %v5383, 0.0
        %v5614 = vmax.f32 %v5386, 0.0
        %v5615 = vmax.f32 %v5391, 0.0
        %v5616 = vmax.f32 %v5394, 0.0
        %v5617 = vmax.f32 %v5399, 0.0
        %v5618 = vmax.f32 %v5402, 0.0
        %v5619 = vmax.f32 %v5407, 0.0
        %v5620 = vmax.f32 %v5410, 0.0
        %v5621 = vmax.f32 %v5415, 0.0
        %v5622 = vmax.f32 %v5418, 0.0
        %v5623 = vmax.f32 %v5423, 0.0
        %v5624 = vmax.f32 %v5426, 0.0
        %v5625 = vmax.f32 %v5431, 0.0
        %v5626 = vmax.f32 %v5434, 0.0
        %v5627 = vmax.f32 %v5439, 0.0
        %v5628 = vmax.f32 %v5442, 0.0
        %v5629 = vmax.f32 %v5447, 0.0
        %v5630 = vmax.f32 %v5450, 0.0
        %v5631 = vmax.f32 %v5455, 0.0
        %v5632 = vmax.f32 %v5458, 0.0
        %v5633 = vmax.f32 %v5463, 0.0
        %v5634 = vmax.f32 %v5466, 0.0
        %v5635 = vmax.f32 %v5471, 0.0
        %v5636 = vmax.f32 %v5474, 0.0
        %v5637 = vmax.f32 %v5479, 0.0
        %v5638 = vmax.f32 %v5482, 0.0
        %v5639 = vmax.f32 %v5487, 0.0
        %v5640 = vmax.f32 %v5490, 0.0
        %v5641 = vmax.f32 %v5495, 0.0
        %v5642 = vmax.f32 %v5498, 0.0
        %v5643 = vmax.f32 %v5503, 0.0
        %v5644 = vmax.f32 %v5506, 0.0
        %v5645 = vmax.f32 %v5511, 0.0
        %v5646 = vmax.f32 %v5514, 0.0
        %v5647 = vmax.f32 %v5519, 0.0
        %v5648 = vmax.f32 %v5522, 0.0
        %v5649 = vmax.f32 %v5527, 0.0
        %v5650 = vmax.f32 %v5530, 0.0
        %v5651 = vmax.f32 %v5535, 0.0
        %v5652 = vmax.f32 %v5538, 0.0
        %v5653 = vmax.f32 %v5543, 0.0
        %v5654 = vmax.f32 %v5546, 0.0
        %v5655 = vmax.f32 %v5551, 0.0
        %v5656 = vmax.f32 %v5554, 0.0
        %v5657 = vmax.f32 %v5559, 0.0
        %v5658 = vmax.f32 %v5562, 0.0
        %v5659 = vmax.f32 %v5567, 0.0
        %v5660 = vmax.f32 %v5570, 0.0
        %v5661 = vmax.f32 %v5575, 0.0
        %v5662 = vmax.f32 %v5578, 0.0
        %v5663 = vmax.f32 %v5583, 0.0
        %v5664 = vmax.f32 %v5586, 0.0
        %v5665 = vmax.f32 %v5591, 0.0
        %v5666 = vmax.f32 %v5594, 0.0
        %v5667 = vmax.f32 %v5599, 0.0
        %v5668 = vmax.f32 %v5602, 0.0
        %v5669 = vpack.c.bf16 %v5606, %v5605
        %v5670 = vpack.c.bf16 %v5608, %v5607
        %v5671 = vpack.c.bf16 %v5610, %v5609
        %v5672 = vpack.c.bf16 %v5612, %v5611
        %v5673 = vpack.c.bf16 %v5614, %v5613
        %v5674 = vpack.c.bf16 %v5616, %v5615
        %v5675 = vpack.c.bf16 %v5618, %v5617
        %v5676 = vpack.c.bf16 %v5620, %v5619
        %v5677 = vpack.c.bf16 %v5622, %v5621
        %v5678 = vpack.c.bf16 %v5624, %v5623
        %v5679 = vpack.c.bf16 %v5626, %v5625
        %v5680 = vpack.c.bf16 %v5628, %v5627
        %v5681 = vpack.c.bf16 %v5630, %v5629
        %v5682 = vpack.c.bf16 %v5632, %v5631
        %v5683 = vpack.c.bf16 %v5634, %v5633
        %v5684 = vpack.c.bf16 %v5636, %v5635
        %v5685 = vpack.c.bf16 %v5638, %v5637
        %v5686 = vpack.c.bf16 %v5640, %v5639
        %v5687 = vpack.c.bf16 %v5642, %v5641
        %v5688 = vpack.c.bf16 %v5644, %v5643
        %v5689 = vpack.c.bf16 %v5646, %v5645
        %v5690 = vpack.c.bf16 %v5648, %v5647
        %v5691 = vpack.c.bf16 %v5650, %v5649
        %v5692 = vpack.c.bf16 %v5652, %v5651
        %v5693 = vpack.c.bf16 %v5654, %v5653
        %v5694 = vpack.c.bf16 %v5656, %v5655
        %v5695 = vpack.c.bf16 %v5658, %v5657
        %v5696 = vpack.c.bf16 %v5660, %v5659
        %v5697 = vpack.c.bf16 %v5662, %v5661
        %v5698 = vpack.c.bf16 %v5664, %v5663
        %v5699 = vpack.c.bf16 %v5666, %v5665
        %v5700 = vpack.c.bf16 %v5668, %v5667
        %v5701 = vld [vmem:[#allocation5] sm:$0xff]
        %v5702 = vld [vmem:[#allocation5 + $0x8] sm:$0xff]
        %v5703 = vld [vmem:[#allocation5 + $0x10] sm:$0xff]
        %v5704 = vld [vmem:[#allocation5 + $0x18] sm:$0xff]
        %v5705 = vld [vmem:[#allocation5 + $0x20] sm:$0xff]
        %v5706 = vld [vmem:[#allocation5 + $0x28] sm:$0xff]
        %v5707 = vld [vmem:[#allocation5 + $0x30] sm:$0xff]
        %v5708 = vld [vmem:[#allocation5 + $0x38] sm:$0xff]
        %v5709 = vld [vmem:[#allocation5 + $0x40] sm:$0xff]
        %v5710 = vld [vmem:[#allocation5 + $0x48] sm:$0xff]
        %v5711 = vld [vmem:[#allocation5 + $0x50] sm:$0xff]
        %v5712 = vld [vmem:[#allocation5 + $0x58] sm:$0xff]
        %v5713 = vld [vmem:[#allocation5 + $0x60] sm:$0xff]
        %v5714 = vld [vmem:[#allocation5 + $0x68] sm:$0xff]
        %v5715 = vld [vmem:[#allocation5 + $0x70] sm:$0xff]
        %v5716 = vld [vmem:[#allocation5 + $0x78] sm:$0xff]
        %v5717 = vld [vmem:[#allocation5 + $0x80] sm:$0xff]
        %v5718 = vld [vmem:[#allocation5 + $0x88] sm:$0xff]
        %v5719 = vld [vmem:[#allocation5 + $0x90] sm:$0xff]
        %v5720 = vld [vmem:[#allocation5 + $0x98] sm:$0xff]
        %v5721 = vld [vmem:[#allocation5 + $0xa0] sm:$0xff]
        %v5722 = vld [vmem:[#allocation5 + $0xa8] sm:$0xff]
        %v5723 = vld [vmem:[#allocation5 + $0xb0] sm:$0xff]
        %v5724 = vld [vmem:[#allocation5 + $0xb8] sm:$0xff]
        %v5725 = vld [vmem:[#allocation5 + $0xc0] sm:$0xff]
        %v5726 = vld [vmem:[#allocation5 + $0xc8] sm:$0xff]
        %v5727 = vld [vmem:[#allocation5 + $0xd0] sm:$0xff]
        %v5728 = vld [vmem:[#allocation5 + $0xd8] sm:$0xff]
        %v5729 = vld [vmem:[#allocation5 + $0xe0] sm:$0xff]
        %v5730 = vld [vmem:[#allocation5 + $0xe8] sm:$0xff]
        %v5731 = vld [vmem:[#allocation5 + $0xf0] sm:$0xff]
        %v5732 = vld [vmem:[#allocation5 + $0xf8] sm:$0xff]
        %v5733 = vld [vmem:[#allocation5 + $0x100] sm:$0xff]
        %v5734 = vld [vmem:[#allocation5 + $0x108] sm:$0xff]
        %v5735 = vld [vmem:[#allocation5 + $0x110] sm:$0xff]
        %v5736 = vld [vmem:[#allocation5 + $0x118] sm:$0xff]
        %v5737 = vld [vmem:[#allocation5 + $0x120] sm:$0xff]
        %v5738 = vld [vmem:[#allocation5 + $0x128] sm:$0xff]
        %v5739 = vld [vmem:[#allocation5 + $0x130] sm:$0xff]
        %v5740 = vld [vmem:[#allocation5 + $0x138] sm:$0xff]
        %v5741 = vld [vmem:[#allocation5 + $0x140] sm:$0xff]
        %v5742 = vld [vmem:[#allocation5 + $0x148] sm:$0xff]
        %v5743 = vld [vmem:[#allocation5 + $0x150] sm:$0xff]
        %v5744 = vld [vmem:[#allocation5 + $0x158] sm:$0xff]
        %v5745 = vld [vmem:[#allocation5 + $0x160] sm:$0xff]
        %v5746 = vld [vmem:[#allocation5 + $0x168] sm:$0xff]
        %v5747 = vld [vmem:[#allocation5 + $0x170] sm:$0xff]
        %v5748 = vld [vmem:[#allocation5 + $0x178] sm:$0xff]
        %v5749 = vld [vmem:[#allocation5 + $0x180] sm:$0xff]
        %v5750 = vld [vmem:[#allocation5 + $0x188] sm:$0xff]
        %v5751 = vld [vmem:[#allocation5 + $0x190] sm:$0xff]
        %v5752 = vld [vmem:[#allocation5 + $0x198] sm:$0xff]
        %v5753 = vld [vmem:[#allocation5 + $0x1a0] sm:$0xff]
        %v5754 = vld [vmem:[#allocation5 + $0x1a8] sm:$0xff]
        %v5755 = vld [vmem:[#allocation5 + $0x1b0] sm:$0xff]
        %v5756 = vld [vmem:[#allocation5 + $0x1b8] sm:$0xff]
        %v5757 = vld [vmem:[#allocation5 + $0x1c0] sm:$0xff]
        %v5758 = vld [vmem:[#allocation5 + $0x1c8] sm:$0xff]
        %v5759 = vld [vmem:[#allocation5 + $0x1d0] sm:$0xff]
        %v5760 = vld [vmem:[#allocation5 + $0x1d8] sm:$0xff]
        %v5761 = vld [vmem:[#allocation5 + $0x1e0] sm:$0xff]
        %v5762 = vld [vmem:[#allocation5 + $0x1e8] sm:$0xff]
        %v5763 = vld [vmem:[#allocation5 + $0x1f0] sm:$0xff]
        %v5764 = vld [vmem:[#allocation5 + $0x1f8] sm:$0xff]
        %v5765 = vld [vmem:[#allocation5 + $0x200] sm:$0xff]
        %v5766 = vld [vmem:[#allocation5 + $0x208] sm:$0xff]
        %v5767 = vld [vmem:[#allocation5 + $0x210] sm:$0xff]
        %v5768 = vld [vmem:[#allocation5 + $0x218] sm:$0xff]
        %v5769 = vld [vmem:[#allocation5 + $0x220] sm:$0xff]
        %v5770 = vld [vmem:[#allocation5 + $0x228] sm:$0xff]
        %v5771 = vld [vmem:[#allocation5 + $0x230] sm:$0xff]
        %v5772 = vld [vmem:[#allocation5 + $0x238] sm:$0xff]
        %v5773 = vld [vmem:[#allocation5 + $0x240] sm:$0xff]
        %v5774 = vld [vmem:[#allocation5 + $0x248] sm:$0xff]
        %v5775 = vld [vmem:[#allocation5 + $0x250] sm:$0xff]
        %v5776 = vld [vmem:[#allocation5 + $0x258] sm:$0xff]
        %v5777 = vld [vmem:[#allocation5 + $0x260] sm:$0xff]
        %v5778 = vld [vmem:[#allocation5 + $0x268] sm:$0xff]
        %v5779 = vld [vmem:[#allocation5 + $0x270] sm:$0xff]
        %v5780 = vld [vmem:[#allocation5 + $0x278] sm:$0xff]
        %v5781 = vld [vmem:[#allocation5 + $0x280] sm:$0xff]
        %v5782 = vld [vmem:[#allocation5 + $0x288] sm:$0xff]
        %v5783 = vld [vmem:[#allocation5 + $0x290] sm:$0xff]
        %v5784 = vld [vmem:[#allocation5 + $0x298] sm:$0xff]
        %v5785 = vld [vmem:[#allocation5 + $0x2a0] sm:$0xff]
        %v5786 = vld [vmem:[#allocation5 + $0x2a8] sm:$0xff]
        %v5787 = vld [vmem:[#allocation5 + $0x2b0] sm:$0xff]
        %v5788 = vld [vmem:[#allocation5 + $0x2b8] sm:$0xff]
        %v5789 = vld [vmem:[#allocation5 + $0x2c0] sm:$0xff]
        %v5790 = vld [vmem:[#allocation5 + $0x2c8] sm:$0xff]
        %v5791 = vld [vmem:[#allocation5 + $0x2d0] sm:$0xff]
        %v5792 = vld [vmem:[#allocation5 + $0x2d8] sm:$0xff]
        %v5793 = vld [vmem:[#allocation5 + $0x2e0] sm:$0xff]
        %v5794 = vld [vmem:[#allocation5 + $0x2e8] sm:$0xff]
        %v5795 = vld [vmem:[#allocation5 + $0x2f0] sm:$0xff]
        %v5796 = vld [vmem:[#allocation5 + $0x2f8] sm:$0xff]
        %v5797 = vld [vmem:[#allocation5 + $0x300] sm:$0xff]
        %v5798 = vld [vmem:[#allocation5 + $0x308] sm:$0xff]
        %v5799 = vld [vmem:[#allocation5 + $0x310] sm:$0xff]
        %v5800 = vld [vmem:[#allocation5 + $0x318] sm:$0xff]
        %v5801 = vld [vmem:[#allocation5 + $0x320] sm:$0xff]
        %v5802 = vld [vmem:[#allocation5 + $0x328] sm:$0xff]
        %v5803 = vld [vmem:[#allocation5 + $0x330] sm:$0xff]
        %v5804 = vld [vmem:[#allocation5 + $0x338] sm:$0xff]
        %v5805 = vld [vmem:[#allocation5 + $0x340] sm:$0xff]
        %v5806 = vld [vmem:[#allocation5 + $0x348] sm:$0xff]
        %v5807 = vld [vmem:[#allocation5 + $0x350] sm:$0xff]
        %v5808 = vld [vmem:[#allocation5 + $0x358] sm:$0xff]
        %v5809 = vld [vmem:[#allocation5 + $0x360] sm:$0xff]
        %v5810 = vld [vmem:[#allocation5 + $0x368] sm:$0xff]
        %v5811 = vld [vmem:[#allocation5 + $0x370] sm:$0xff]
        %v5812 = vld [vmem:[#allocation5 + $0x378] sm:$0xff]
        %v5813 = vld [vmem:[#allocation5 + $0x380] sm:$0xff]
        %v5814 = vld [vmem:[#allocation5 + $0x388] sm:$0xff]
        %v5815 = vld [vmem:[#allocation5 + $0x390] sm:$0xff]
        %v5816 = vld [vmem:[#allocation5 + $0x398] sm:$0xff]
        %v5817 = vld [vmem:[#allocation5 + $0x3a0] sm:$0xff]
        %v5818 = vld [vmem:[#allocation5 + $0x3a8] sm:$0xff]
        %v5819 = vld [vmem:[#allocation5 + $0x3b0] sm:$0xff]
        %v5820 = vld [vmem:[#allocation5 + $0x3b8] sm:$0xff]
        %v5821 = vld [vmem:[#allocation5 + $0x3c0] sm:$0xff]
        %v5822 = vld [vmem:[#allocation5 + $0x3c8] sm:$0xff]
        %v5823 = vld [vmem:[#allocation5 + $0x3d0] sm:$0xff]
        %v5824 = vld [vmem:[#allocation5 + $0x3d8] sm:$0xff]
        %v5825 = vld [vmem:[#allocation5 + $0x3e0] sm:$0xff]
        %v5826 = vld [vmem:[#allocation5 + $0x3e8] sm:$0xff]
        %v5827 = vld [vmem:[#allocation5 + $0x3f0] sm:$0xff]
        %v5828 = vld [vmem:[#allocation5 + $0x3f8] sm:$0xff]
        %5829 = vset.pattern.permute.xlu0 2
        %5830 = vperm.xlu0 %5829, %v3458
        %v5831 = vpop.permute.xlu0 %5830
        %5833 = vset.pattern.permute.xlu0 2
        %5834 = vperm.xlu0 %5833, %v3459
        %v5835 = vpop.permute.xlu0 %5834
        %5837 = vset.pattern.permute.xlu0 2
        %5838 = vperm.xlu0 %5837, %v3460
        %v5839 = vpop.permute.xlu0 %5838
        %5841 = vset.pattern.permute.xlu0 2
        %5842 = vperm.xlu0 %5841, %v3461
        %v5843 = vpop.permute.xlu0 %5842
        %5845 = vset.pattern.permute.xlu0 2
        %5846 = vperm.xlu0 %5845, %v3462
        %v5847 = vpop.permute.xlu0 %5846
        %5849 = vset.pattern.permute.xlu0 2
        %5850 = vperm.xlu0 %5849, %v3463
        %v5851 = vpop.permute.xlu0 %5850
        %5853 = vset.pattern.permute.xlu0 2
        %5854 = vperm.xlu0 %5853, %v3464
        %v5855 = vpop.permute.xlu0 %5854
        %5857 = vset.pattern.permute.xlu0 2
        %5858 = vperm.xlu0 %5857, %v3465
        %v5859 = vpop.permute.xlu0 %5858
        %5861 = vset.pattern.permute.xlu0 2
        %5862 = vperm.xlu0 %5861, %v3466
        %v5863 = vpop.permute.xlu0 %5862
        %5865 = vset.pattern.permute.xlu0 2
        %5866 = vperm.xlu0 %5865, %v3467
        %v5867 = vpop.permute.xlu0 %5866
        %5869 = vset.pattern.permute.xlu0 2
        %5870 = vperm.xlu0 %5869, %v3468
        %v5871 = vpop.permute.xlu0 %5870
        %5873 = vset.pattern.permute.xlu0 2
        %5874 = vperm.xlu0 %5873, %v3469
        %v5875 = vpop.permute.xlu0 %5874
        %5877 = vset.pattern.permute.xlu0 2
        %5878 = vperm.xlu0 %5877, %v3470
        %v5879 = vpop.permute.xlu0 %5878
        %5881 = vset.pattern.permute.xlu0 2
        %5882 = vperm.xlu0 %5881, %v3471
        %v5883 = vpop.permute.xlu0 %5882
        %5885 = vset.pattern.permute.xlu0 2
        %5886 = vperm.xlu0 %5885, %v3472
        %v5887 = vpop.permute.xlu0 %5886
        %5889 = vset.pattern.permute.xlu0 2
        %5890 = vperm.xlu0 %5889, %v3473
        %v5891 = vpop.permute.xlu0 %5890
        %5893 = vset.pattern.permute.xlu0 2
        %5894 = vperm.xlu0 %5893, %v3474
        %v5895 = vpop.permute.xlu0 %5894
        %5897 = vset.pattern.permute.xlu0 2
        %5898 = vperm.xlu0 %5897, %v3475
        %v5899 = vpop.permute.xlu0 %5898
        %5901 = vset.pattern.permute.xlu0 2
        %5902 = vperm.xlu0 %5901, %v3476
        %v5903 = vpop.permute.xlu0 %5902
        %5905 = vset.pattern.permute.xlu0 2
        %5906 = vperm.xlu0 %5905, %v3477
        %v5907 = vpop.permute.xlu0 %5906
        %5909 = vset.pattern.permute.xlu0 2
        %5910 = vperm.xlu0 %5909, %v3478
        %v5911 = vpop.permute.xlu0 %5910
        %5913 = vset.pattern.permute.xlu0 2
        %5914 = vperm.xlu0 %5913, %v3479
        %v5915 = vpop.permute.xlu0 %5914
        %5917 = vset.pattern.permute.xlu0 2
        %5918 = vperm.xlu0 %5917, %v3480
        %v5919 = vpop.permute.xlu0 %5918
        %5921 = vset.pattern.permute.xlu0 2
        %5922 = vperm.xlu0 %5921, %v3481
        %v5923 = vpop.permute.xlu0 %5922
        %5925 = vset.pattern.permute.xlu0 2
        %5926 = vperm.xlu0 %5925, %v3482
        %v5927 = vpop.permute.xlu0 %5926
        %5929 = vset.pattern.permute.xlu0 2
        %5930 = vperm.xlu0 %5929, %v3483
        %v5931 = vpop.permute.xlu0 %5930
        %5933 = vset.pattern.permute.xlu0 2
        %5934 = vperm.xlu0 %5933, %v3484
        %v5935 = vpop.permute.xlu0 %5934
        %5937 = vset.pattern.permute.xlu0 2
        %5938 = vperm.xlu0 %5937, %v3485
        %v5939 = vpop.permute.xlu0 %5938
        %5941 = vset.pattern.permute.xlu0 2
        %5942 = vperm.xlu0 %5941, %v3486
        %v5943 = vpop.permute.xlu0 %5942
        %5945 = vset.pattern.permute.xlu0 2
        %5946 = vperm.xlu0 %5945, %v3487
        %v5947 = vpop.permute.xlu0 %5946
        %5949 = vset.pattern.permute.xlu0 2
        %5950 = vperm.xlu0 %5949, %v3488
        %v5951 = vpop.permute.xlu0 %5950
        %5953 = vset.pattern.permute.xlu0 2
        %5954 = vperm.xlu0 %5953, %v3489
        %v5955 = vpop.permute.xlu0 %5954
        %5957 = vset.pattern.permute.xlu0 2
        %5958 = vperm.xlu0 %5957, %v3490
        %v5959 = vpop.permute.xlu0 %5958
        %5961 = vset.pattern.permute.xlu0 2
        %5962 = vperm.xlu0 %5961, %v3491
        %v5963 = vpop.permute.xlu0 %5962
        %5965 = vset.pattern.permute.xlu0 2
        %5966 = vperm.xlu0 %5965, %v3492
        %v5967 = vpop.permute.xlu0 %5966
        %5969 = vset.pattern.permute.xlu0 2
        %5970 = vperm.xlu0 %5969, %v3493
        %v5971 = vpop.permute.xlu0 %5970
        %5973 = vset.pattern.permute.xlu0 2
        %5974 = vperm.xlu0 %5973, %v3494
        %v5975 = vpop.permute.xlu0 %5974
        %5977 = vset.pattern.permute.xlu0 2
        %5978 = vperm.xlu0 %5977, %v3495
        %v5979 = vpop.permute.xlu0 %5978
        %5981 = vset.pattern.permute.xlu0 2
        %5982 = vperm.xlu0 %5981, %v3496
        %v5983 = vpop.permute.xlu0 %5982
        %5985 = vset.pattern.permute.xlu0 2
        %5986 = vperm.xlu0 %5985, %v3497
        %v5987 = vpop.permute.xlu0 %5986
        %5989 = vset.pattern.permute.xlu0 2
        %5990 = vperm.xlu0 %5989, %v3498
        %v5991 = vpop.permute.xlu0 %5990
        %5993 = vset.pattern.permute.xlu0 2
        %5994 = vperm.xlu0 %5993, %v3499
        %v5995 = vpop.permute.xlu0 %5994
        %5997 = vset.pattern.permute.xlu0 2
        %5998 = vperm.xlu0 %5997, %v3500
        %v5999 = vpop.permute.xlu0 %5998
        %6001 = vset.pattern.permute.xlu0 2
        %6002 = vperm.xlu0 %6001, %v3501
        %v6003 = vpop.permute.xlu0 %6002
        %6005 = vset.pattern.permute.xlu0 2
        %6006 = vperm.xlu0 %6005, %v3502
        %v6007 = vpop.permute.xlu0 %6006
        %6009 = vset.pattern.permute.xlu0 2
        %6010 = vperm.xlu0 %6009, %v3503
        %v6011 = vpop.permute.xlu0 %6010
        %6013 = vset.pattern.permute.xlu0 2
        %6014 = vperm.xlu0 %6013, %v3504
        %v6015 = vpop.permute.xlu0 %6014
        %6017 = vset.pattern.permute.xlu0 2
        %6018 = vperm.xlu0 %6017, %v3505
        %v6019 = vpop.permute.xlu0 %6018
        %6021 = vset.pattern.permute.xlu0 2
        %6022 = vperm.xlu0 %6021, %v3506
        %v6023 = vpop.permute.xlu0 %6022
        %6025 = vset.pattern.permute.xlu0 2
        %6026 = vperm.xlu0 %6025, %v3507
        %v6027 = vpop.permute.xlu0 %6026
        %6029 = vset.pattern.permute.xlu0 2
        %6030 = vperm.xlu0 %6029, %v3508
        %v6031 = vpop.permute.xlu0 %6030
        %6033 = vset.pattern.permute.xlu0 2
        %6034 = vperm.xlu0 %6033, %v3509
        %v6035 = vpop.permute.xlu0 %6034
        %6037 = vset.pattern.permute.xlu0 2
        %6038 = vperm.xlu0 %6037, %v3510
        %v6039 = vpop.permute.xlu0 %6038
        %6041 = vset.pattern.permute.xlu0 2
        %6042 = vperm.xlu0 %6041, %v3511
        %v6043 = vpop.permute.xlu0 %6042
        %6045 = vset.pattern.permute.xlu0 2
        %6046 = vperm.xlu0 %6045, %v3512
        %v6047 = vpop.permute.xlu0 %6046
        %6049 = vset.pattern.permute.xlu0 2
        %6050 = vperm.xlu0 %6049, %v3513
        %v6051 = vpop.permute.xlu0 %6050
        %6053 = vset.pattern.permute.xlu0 2
        %6054 = vperm.xlu0 %6053, %v3514
        %v6055 = vpop.permute.xlu0 %6054
        %6057 = vset.pattern.permute.xlu0 2
        %6058 = vperm.xlu0 %6057, %v3515
        %v6059 = vpop.permute.xlu0 %6058
        %6061 = vset.pattern.permute.xlu0 2
        %6062 = vperm.xlu0 %6061, %v3516
        %v6063 = vpop.permute.xlu0 %6062
        %6065 = vset.pattern.permute.xlu0 2
        %6066 = vperm.xlu0 %6065, %v3517
        %v6067 = vpop.permute.xlu0 %6066
        %6069 = vset.pattern.permute.xlu0 2
        %6070 = vperm.xlu0 %6069, %v3518
        %v6071 = vpop.permute.xlu0 %6070
        %6073 = vset.pattern.permute.xlu0 2
        %6074 = vperm.xlu0 %6073, %v3519
        %v6075 = vpop.permute.xlu0 %6074
        %6077 = vset.pattern.permute.xlu0 2
        %6078 = vperm.xlu0 %6077, %v3520
        %v6079 = vpop.permute.xlu0 %6078
        %6081 = vset.pattern.permute.xlu0 2
        %6082 = vperm.xlu0 %6081, %v3521
        %v6083 = vpop.permute.xlu0 %6082
        %v6213 = vunpack.c.l.b16 %v5701
        %v6214 = vunpack.c.h.b16 %v5701
        %v6215 = vunpack.c.l.b16 %v5702
        %v6216 = vunpack.c.h.b16 %v5702
        %v6217 = vunpack.c.l.b16 %v5703
        %v6218 = vunpack.c.h.b16 %v5703
        %v6219 = vunpack.c.l.b16 %v5704
        %v6220 = vunpack.c.h.b16 %v5704
        %v6221 = vunpack.c.l.b16 %v5705
        %v6222 = vunpack.c.h.b16 %v5705
        %v6223 = vunpack.c.l.b16 %v5706
        %v6224 = vunpack.c.h.b16 %v5706
        %v6225 = vunpack.c.l.b16 %v5707
        %v6226 = vunpack.c.h.b16 %v5707
        %v6227 = vunpack.c.l.b16 %v5708
        %v6228 = vunpack.c.h.b16 %v5708
        %v6229 = vunpack.c.l.b16 %v5709
        %v6230 = vunpack.c.h.b16 %v5709
        %v6231 = vunpack.c.l.b16 %v5710
        %v6232 = vunpack.c.h.b16 %v5710
        %v6233 = vunpack.c.l.b16 %v5711
        %v6234 = vunpack.c.h.b16 %v5711
        %v6235 = vunpack.c.l.b16 %v5712
        %v6236 = vunpack.c.h.b16 %v5712
        %v6237 = vunpack.c.l.b16 %v5713
        %v6238 = vunpack.c.h.b16 %v5713
        %v6239 = vunpack.c.l.b16 %v5714
        %v6240 = vunpack.c.h.b16 %v5714
        %v6241 = vunpack.c.l.b16 %v5715
        %v6242 = vunpack.c.h.b16 %v5715
        %v6243 = vunpack.c.l.b16 %v5716
        %v6244 = vunpack.c.h.b16 %v5716
        %v6245 = vunpack.c.l.b16 %v5717
        %v6246 = vunpack.c.h.b16 %v5717
        %v6247 = vunpack.c.l.b16 %v5718
        %v6248 = vunpack.c.h.b16 %v5718
        %v6249 = vunpack.c.l.b16 %v5719
        %v6250 = vunpack.c.h.b16 %v5719
        %v6251 = vunpack.c.l.b16 %v5720
        %v6252 = vunpack.c.h.b16 %v5720
        %v6253 = vunpack.c.l.b16 %v5721
        %v6254 = vunpack.c.h.b16 %v5721
        %v6255 = vunpack.c.l.b16 %v5722
        %v6256 = vunpack.c.h.b16 %v5722
        %v6257 = vunpack.c.l.b16 %v5723
        %v6258 = vunpack.c.h.b16 %v5723
        %v6259 = vunpack.c.l.b16 %v5724
        %v6260 = vunpack.c.h.b16 %v5724
        %v6261 = vunpack.c.l.b16 %v5725
        %v6262 = vunpack.c.h.b16 %v5725
        %v6263 = vunpack.c.l.b16 %v5726
        %v6264 = vunpack.c.h.b16 %v5726
        %v6265 = vunpack.c.l.b16 %v5727
        %v6266 = vunpack.c.h.b16 %v5727
        %v6267 = vunpack.c.l.b16 %v5728
        %v6268 = vunpack.c.h.b16 %v5728
        %v6269 = vunpack.c.l.b16 %v5729
        %v6270 = vunpack.c.h.b16 %v5729
        %v6271 = vunpack.c.l.b16 %v5730
        %v6272 = vunpack.c.h.b16 %v5730
        %v6273 = vunpack.c.l.b16 %v5731
        %v6274 = vunpack.c.h.b16 %v5731
        %v6275 = vunpack.c.l.b16 %v5732
        %v6276 = vunpack.c.h.b16 %v5732
        %v6277 = vunpack.c.l.b16 %v5733
        %v6278 = vunpack.c.h.b16 %v5733
        %v6279 = vunpack.c.l.b16 %v5734
        %v6280 = vunpack.c.h.b16 %v5734
        %v6281 = vunpack.c.l.b16 %v5735
        %v6282 = vunpack.c.h.b16 %v5735
        %v6283 = vunpack.c.l.b16 %v5736
        %v6284 = vunpack.c.h.b16 %v5736
        %v6285 = vunpack.c.l.b16 %v5737
        %v6286 = vunpack.c.h.b16 %v5737
        %v6287 = vunpack.c.l.b16 %v5738
        %v6288 = vunpack.c.h.b16 %v5738
        %v6289 = vunpack.c.l.b16 %v5739
        %v6290 = vunpack.c.h.b16 %v5739
        %v6291 = vunpack.c.l.b16 %v5740
        %v6292 = vunpack.c.h.b16 %v5740
        %v6293 = vunpack.c.l.b16 %v5741
        %v6294 = vunpack.c.h.b16 %v5741
        %v6295 = vunpack.c.l.b16 %v5742
        %v6296 = vunpack.c.h.b16 %v5742
        %v6297 = vunpack.c.l.b16 %v5743
        %v6298 = vunpack.c.h.b16 %v5743
        %v6299 = vunpack.c.l.b16 %v5744
        %v6300 = vunpack.c.h.b16 %v5744
        %v6301 = vunpack.c.l.b16 %v5745
        %v6302 = vunpack.c.h.b16 %v5745
        %v6303 = vunpack.c.l.b16 %v5746
        %v6304 = vunpack.c.h.b16 %v5746
        %v6305 = vunpack.c.l.b16 %v5747
        %v6306 = vunpack.c.h.b16 %v5747
        %v6307 = vunpack.c.l.b16 %v5748
        %v6308 = vunpack.c.h.b16 %v5748
        %v6309 = vunpack.c.l.b16 %v5749
        %v6310 = vunpack.c.h.b16 %v5749
        %v6311 = vunpack.c.l.b16 %v5750
        %v6312 = vunpack.c.h.b16 %v5750
        %v6313 = vunpack.c.l.b16 %v5751
        %v6314 = vunpack.c.h.b16 %v5751
        %v6315 = vunpack.c.l.b16 %v5752
        %v6316 = vunpack.c.h.b16 %v5752
        %v6317 = vunpack.c.l.b16 %v5753
        %v6318 = vunpack.c.h.b16 %v5753
        %v6319 = vunpack.c.l.b16 %v5754
        %v6320 = vunpack.c.h.b16 %v5754
        %v6321 = vunpack.c.l.b16 %v5755
        %v6322 = vunpack.c.h.b16 %v5755
        %v6323 = vunpack.c.l.b16 %v5756
        %v6324 = vunpack.c.h.b16 %v5756
        %v6325 = vunpack.c.l.b16 %v5757
        %v6326 = vunpack.c.h.b16 %v5757
        %v6327 = vunpack.c.l.b16 %v5758
        %v6328 = vunpack.c.h.b16 %v5758
        %v6329 = vunpack.c.l.b16 %v5759
        %v6330 = vunpack.c.h.b16 %v5759
        %v6331 = vunpack.c.l.b16 %v5760
        %v6332 = vunpack.c.h.b16 %v5760
        %v6333 = vunpack.c.l.b16 %v5761
        %v6334 = vunpack.c.h.b16 %v5761
        %v6335 = vunpack.c.l.b16 %v5762
        %v6336 = vunpack.c.h.b16 %v5762
        %v6337 = vunpack.c.l.b16 %v5763
        %v6338 = vunpack.c.h.b16 %v5763
        %v6339 = vunpack.c.l.b16 %v5764
        %v6340 = vunpack.c.h.b16 %v5764
        %v6341 = vunpack.c.l.b16 %v5765
        %v6342 = vunpack.c.h.b16 %v5765
        %v6343 = vunpack.c.l.b16 %v5766
        %v6344 = vunpack.c.h.b16 %v5766
        %v6345 = vunpack.c.l.b16 %v5767
        %v6346 = vunpack.c.h.b16 %v5767
        %v6347 = vunpack.c.l.b16 %v5768
        %v6348 = vunpack.c.h.b16 %v5768
        %v6349 = vunpack.c.l.b16 %v5769
        %v6350 = vunpack.c.h.b16 %v5769
        %v6351 = vunpack.c.l.b16 %v5770
        %v6352 = vunpack.c.h.b16 %v5770
        %v6353 = vunpack.c.l.b16 %v5771
        %v6354 = vunpack.c.h.b16 %v5771
        %v6355 = vunpack.c.l.b16 %v5772
        %v6356 = vunpack.c.h.b16 %v5772
        %v6357 = vunpack.c.l.b16 %v5773
        %v6358 = vunpack.c.h.b16 %v5773
        %v6359 = vunpack.c.l.b16 %v5774
        %v6360 = vunpack.c.h.b16 %v5774
        %v6361 = vunpack.c.l.b16 %v5775
        %v6362 = vunpack.c.h.b16 %v5775
        %v6363 = vunpack.c.l.b16 %v5776
        %v6364 = vunpack.c.h.b16 %v5776
        %v6365 = vunpack.c.l.b16 %v5777
        %v6366 = vunpack.c.h.b16 %v5777
        %v6367 = vunpack.c.l.b16 %v5778
        %v6368 = vunpack.c.h.b16 %v5778
        %v6369 = vunpack.c.l.b16 %v5779
        %v6370 = vunpack.c.h.b16 %v5779
        %v6371 = vunpack.c.l.b16 %v5780
        %v6372 = vunpack.c.h.b16 %v5780
        %v6373 = vunpack.c.l.b16 %v5781
        %v6374 = vunpack.c.h.b16 %v5781
        %v6375 = vunpack.c.l.b16 %v5782
        %v6376 = vunpack.c.h.b16 %v5782
        %v6377 = vunpack.c.l.b16 %v5783
        %v6378 = vunpack.c.h.b16 %v5783
        %v6379 = vunpack.c.l.b16 %v5784
        %v6380 = vunpack.c.h.b16 %v5784
        %v6381 = vunpack.c.l.b16 %v5785
        %v6382 = vunpack.c.h.b16 %v5785
        %v6383 = vunpack.c.l.b16 %v5786
        %v6384 = vunpack.c.h.b16 %v5786
        %v6385 = vunpack.c.l.b16 %v5787
        %v6386 = vunpack.c.h.b16 %v5787
        %v6387 = vunpack.c.l.b16 %v5788
        %v6388 = vunpack.c.h.b16 %v5788
        %v6389 = vunpack.c.l.b16 %v5789
        %v6390 = vunpack.c.h.b16 %v5789
        %v6391 = vunpack.c.l.b16 %v5790
        %v6392 = vunpack.c.h.b16 %v5790
        %v6393 = vunpack.c.l.b16 %v5791
        %v6394 = vunpack.c.h.b16 %v5791
        %v6395 = vunpack.c.l.b16 %v5792
        %v6396 = vunpack.c.h.b16 %v5792
        %v6397 = vunpack.c.l.b16 %v5793
        %v6398 = vunpack.c.h.b16 %v5793
        %v6399 = vunpack.c.l.b16 %v5794
        %v6400 = vunpack.c.h.b16 %v5794
        %v6401 = vunpack.c.l.b16 %v5795
        %v6402 = vunpack.c.h.b16 %v5795
        %v6403 = vunpack.c.l.b16 %v5796
        %v6404 = vunpack.c.h.b16 %v5796
        %v6405 = vunpack.c.l.b16 %v5797
        %v6406 = vunpack.c.h.b16 %v5797
        %v6407 = vunpack.c.l.b16 %v5798
        %v6408 = vunpack.c.h.b16 %v5798
        %v6409 = vunpack.c.l.b16 %v5799
        %v6410 = vunpack.c.h.b16 %v5799
        %v6411 = vunpack.c.l.b16 %v5800
        %v6412 = vunpack.c.h.b16 %v5800
        %v6413 = vunpack.c.l.b16 %v5801
        %v6414 = vunpack.c.h.b16 %v5801
        %v6415 = vunpack.c.l.b16 %v5802
        %v6416 = vunpack.c.h.b16 %v5802
        %v6417 = vunpack.c.l.b16 %v5803
        %v6418 = vunpack.c.h.b16 %v5803
        %v6419 = vunpack.c.l.b16 %v5804
        %v6420 = vunpack.c.h.b16 %v5804
        %v6421 = vunpack.c.l.b16 %v5805
        %v6422 = vunpack.c.h.b16 %v5805
        %v6423 = vunpack.c.l.b16 %v5806
        %v6424 = vunpack.c.h.b16 %v5806
        %v6425 = vunpack.c.l.b16 %v5807
        %v6426 = vunpack.c.h.b16 %v5807
        %v6427 = vunpack.c.l.b16 %v5808
        %v6428 = vunpack.c.h.b16 %v5808
        %v6429 = vunpack.c.l.b16 %v5809
        %v6430 = vunpack.c.h.b16 %v5809
        %v6431 = vunpack.c.l.b16 %v5810
        %v6432 = vunpack.c.h.b16 %v5810
        %v6433 = vunpack.c.l.b16 %v5811
        %v6434 = vunpack.c.h.b16 %v5811
        %v6435 = vunpack.c.l.b16 %v5812
        %v6436 = vunpack.c.h.b16 %v5812
        %v6437 = vunpack.c.l.b16 %v5813
        %v6438 = vunpack.c.h.b16 %v5813
        %v6439 = vunpack.c.l.b16 %v5814
        %v6440 = vunpack.c.h.b16 %v5814
        %v6441 = vunpack.c.l.b16 %v5815
        %v6442 = vunpack.c.h.b16 %v5815
        %v6443 = vunpack.c.l.b16 %v5816
        %v6444 = vunpack.c.h.b16 %v5816
        %v6445 = vunpack.c.l.b16 %v5817
        %v6446 = vunpack.c.h.b16 %v5817
        %v6447 = vunpack.c.l.b16 %v5818
        %v6448 = vunpack.c.h.b16 %v5818
        %v6449 = vunpack.c.l.b16 %v5819
        %v6450 = vunpack.c.h.b16 %v5819
        %v6451 = vunpack.c.l.b16 %v5820
        %v6452 = vunpack.c.h.b16 %v5820
        %v6453 = vunpack.c.l.b16 %v5821
        %v6454 = vunpack.c.h.b16 %v5821
        %v6455 = vunpack.c.l.b16 %v5822
        %v6456 = vunpack.c.h.b16 %v5822
        %v6457 = vunpack.c.l.b16 %v5823
        %v6458 = vunpack.c.h.b16 %v5823
        %v6459 = vunpack.c.l.b16 %v5824
        %v6460 = vunpack.c.h.b16 %v5824
        %v6461 = vunpack.c.l.b16 %v5825
        %v6462 = vunpack.c.h.b16 %v5825
        %v6463 = vunpack.c.l.b16 %v5826
        %v6464 = vunpack.c.h.b16 %v5826
        %v6465 = vunpack.c.l.b16 %v5827
        %v6466 = vunpack.c.h.b16 %v5827
        %v6467 = vunpack.c.l.b16 %v5828
        %v6468 = vunpack.c.h.b16 %v5828
        %v6469 = vpack.c.b16 %v6217, %v6213
        %v6470 = vpack.c.b16 %v6218, %v6214
        %v6471 = vpack.c.b16 %v6219, %v6215
        %v6472 = vpack.c.b16 %v6220, %v6216
        %v6473 = vpack.c.b16 %v6225, %v6221
        %v6474 = vpack.c.b16 %v6226, %v6222
        %v6475 = vpack.c.b16 %v6227, %v6223
        %v6476 = vpack.c.b16 %v6228, %v6224
        %v6477 = vpack.c.b16 %v6233, %v6229
        %v6478 = vpack.c.b16 %v6234, %v6230
        %v6479 = vpack.c.b16 %v6235, %v6231
        %v6480 = vpack.c.b16 %v6236, %v6232
        %v6481 = vpack.c.b16 %v6241, %v6237
        %v6482 = vpack.c.b16 %v6242, %v6238
        %v6483 = vpack.c.b16 %v6243, %v6239
        %v6484 = vpack.c.b16 %v6244, %v6240
        %v6485 = vpack.c.b16 %v6249, %v6245
        %v6486 = vpack.c.b16 %v6250, %v6246
        %v6487 = vpack.c.b16 %v6251, %v6247
        %v6488 = vpack.c.b16 %v6252, %v6248
        %v6489 = vpack.c.b16 %v6257, %v6253
        %v6490 = vpack.c.b16 %v6258, %v6254
        %v6491 = vpack.c.b16 %v6259, %v6255
        %v6492 = vpack.c.b16 %v6260, %v6256
        %v6493 = vpack.c.b16 %v6265, %v6261
        %v6494 = vpack.c.b16 %v6266, %v6262
        %v6495 = vpack.c.b16 %v6267, %v6263
        %v6496 = vpack.c.b16 %v6268, %v6264
        %v6497 = vpack.c.b16 %v6273, %v6269
        %v6498 = vpack.c.b16 %v6274, %v6270
        %v6499 = vpack.c.b16 %v6275, %v6271
        %v6500 = vpack.c.b16 %v6276, %v6272
        %v6501 = vpack.c.b16 %v6281, %v6277
        %v6502 = vpack.c.b16 %v6282, %v6278
        %v6503 = vpack.c.b16 %v6283, %v6279
        %v6504 = vpack.c.b16 %v6284, %v6280
        %v6505 = vpack.c.b16 %v6289, %v6285
        %v6506 = vpack.c.b16 %v6290, %v6286
        %v6507 = vpack.c.b16 %v6291, %v6287
        %v6508 = vpack.c.b16 %v6292, %v6288
        %v6509 = vpack.c.b16 %v6297, %v6293
        %v6510 = vpack.c.b16 %v6298, %v6294
        %v6511 = vpack.c.b16 %v6299, %v6295
        %v6512 = vpack.c.b16 %v6300, %v6296
        %v6513 = vpack.c.b16 %v6305, %v6301
        %v6514 = vpack.c.b16 %v6306, %v6302
        %v6515 = vpack.c.b16 %v6307, %v6303
        %v6516 = vpack.c.b16 %v6308, %v6304
        %v6517 = vpack.c.b16 %v6313, %v6309
        %v6518 = vpack.c.b16 %v6314, %v6310
        %v6519 = vpack.c.b16 %v6315, %v6311
        %v6520 = vpack.c.b16 %v6316, %v6312
        %v6521 = vpack.c.b16 %v6321, %v6317
        %v6522 = vpack.c.b16 %v6322, %v6318
        %v6523 = vpack.c.b16 %v6323, %v6319
        %v6524 = vpack.c.b16 %v6324, %v6320
        %v6525 = vpack.c.b16 %v6329, %v6325
        %v6526 = vpack.c.b16 %v6330, %v6326
        %v6527 = vpack.c.b16 %v6331, %v6327
        %v6528 = vpack.c.b16 %v6332, %v6328
        %v6529 = vpack.c.b16 %v6337, %v6333
        %v6530 = vpack.c.b16 %v6338, %v6334
        %v6531 = vpack.c.b16 %v6339, %v6335
        %v6532 = vpack.c.b16 %v6340, %v6336
        %v6533 = vpack.c.b16 %v6345, %v6341
        %v6534 = vpack.c.b16 %v6346, %v6342
        %v6535 = vpack.c.b16 %v6347, %v6343
        %v6536 = vpack.c.b16 %v6348, %v6344
        %v6537 = vpack.c.b16 %v6353, %v6349
        %v6538 = vpack.c.b16 %v6354, %v6350
        %v6539 = vpack.c.b16 %v6355, %v6351
        %v6540 = vpack.c.b16 %v6356, %v6352
        %v6541 = vpack.c.b16 %v6361, %v6357
        %v6542 = vpack.c.b16 %v6362, %v6358
        %v6543 = vpack.c.b16 %v6363, %v6359
        %v6544 = vpack.c.b16 %v6364, %v6360
        %v6545 = vpack.c.b16 %v6369, %v6365
        %v6546 = vpack.c.b16 %v6370, %v6366
        %v6547 = vpack.c.b16 %v6371, %v6367
        %v6548 = vpack.c.b16 %v6372, %v6368
        %v6549 = vpack.c.b16 %v6377, %v6373
        %v6550 = vpack.c.b16 %v6378, %v6374
        %v6551 = vpack.c.b16 %v6379, %v6375
        %v6552 = vpack.c.b16 %v6380, %v6376
        %v6553 = vpack.c.b16 %v6385, %v6381
        %v6554 = vpack.c.b16 %v6386, %v6382
        %v6555 = vpack.c.b16 %v6387, %v6383
        %v6556 = vpack.c.b16 %v6388, %v6384
        %v6557 = vpack.c.b16 %v6393, %v6389
        %v6558 = vpack.c.b16 %v6394, %v6390
        %v6559 = vpack.c.b16 %v6395, %v6391
        %v6560 = vpack.c.b16 %v6396, %v6392
        %v6561 = vpack.c.b16 %v6401, %v6397
        %v6562 = vpack.c.b16 %v6402, %v6398
        %v6563 = vpack.c.b16 %v6403, %v6399
        %v6564 = vpack.c.b16 %v6404, %v6400
        %v6565 = vpack.c.b16 %v6409, %v6405
        %v6566 = vpack.c.b16 %v6410, %v6406
        %v6567 = vpack.c.b16 %v6411, %v6407
        %v6568 = vpack.c.b16 %v6412, %v6408
        %v6569 = vpack.c.b16 %v6417, %v6413
        %v6570 = vpack.c.b16 %v6418, %v6414
        %v6571 = vpack.c.b16 %v6419, %v6415
        %v6572 = vpack.c.b16 %v6420, %v6416
        %v6573 = vpack.c.b16 %v6425, %v6421
        %v6574 = vpack.c.b16 %v6426, %v6422
        %v6575 = vpack.c.b16 %v6427, %v6423
        %v6576 = vpack.c.b16 %v6428, %v6424
        %v6577 = vpack.c.b16 %v6433, %v6429
        %v6578 = vpack.c.b16 %v6434, %v6430
        %v6579 = vpack.c.b16 %v6435, %v6431
        %v6580 = vpack.c.b16 %v6436, %v6432
        %v6581 = vpack.c.b16 %v6441, %v6437
        %v6582 = vpack.c.b16 %v6442, %v6438
        %v6583 = vpack.c.b16 %v6443, %v6439
        %v6584 = vpack.c.b16 %v6444, %v6440
        %v6585 = vpack.c.b16 %v6449, %v6445
        %v6586 = vpack.c.b16 %v6450, %v6446
        %v6587 = vpack.c.b16 %v6451, %v6447
        %v6588 = vpack.c.b16 %v6452, %v6448
        %v6589 = vpack.c.b16 %v6457, %v6453
        %v6590 = vpack.c.b16 %v6458, %v6454
        %v6591 = vpack.c.b16 %v6459, %v6455
        %v6592 = vpack.c.b16 %v6460, %v6456
        %v6593 = vpack.c.b16 %v6465, %v6461
        %v6594 = vpack.c.b16 %v6466, %v6462
        %v6595 = vpack.c.b16 %v6467, %v6463
        %v6596 = vpack.c.b16 %v6468, %v6464
        %6725 = vmatprep.subr.bf16.mxu0 0
        %6726 = vmatpush1.bf16.msra.mxu0 %v5676
        %6727 = vmatprep.subr.bf16.mxu0 0
        %6728 = vmatpush1.bf16.msra.mxu0 %v5675
        %6729 = vmatprep.subr.bf16.mxu0 0
        %6730 = vmatpush1.bf16.msra.mxu0 %v5674
        %6731 = vmatprep.subr.bf16.mxu0 0
        %6732 = vmatpush1.bf16.msra.mxu0 %v5673
        %6733 = vmatprep.subr.bf16.mxu0 0
        %6734 = vmatpush1.bf16.msra.mxu0 %v5672
        %6735 = vmatprep.subr.bf16.mxu0 0
        %6736 = vmatpush1.bf16.msra.mxu0 %v5671
        %6737 = vmatprep.subr.bf16.mxu0 0
        %6738 = vmatpush1.bf16.msra.mxu0 %v5670
        %6739 = vmatprep.subr.bf16.mxu0 0
        %6740 = vmatpush1.bf16.msra.mxu0 %v5669
        %6741 = vmatprep.subr.bf16.mxu0 0
        %6742 = vmatpush2.bf16.msra.mxu0 %v5684
        %6743 = vmatprep.subr.bf16.mxu0 0
        %6744 = vmatpush2.bf16.msra.mxu0 %v5683
        %6745 = vmatprep.subr.bf16.mxu0 0
        %6746 = vmatpush2.bf16.msra.mxu0 %v5682
        %6747 = vmatprep.subr.bf16.mxu0 0
        %6748 = vmatpush2.bf16.msra.mxu0 %v5681
        %6749 = vmatprep.subr.bf16.mxu0 0
        %6750 = vmatpush2.bf16.msra.mxu0 %v5680
        %6751 = vmatprep.subr.bf16.mxu0 0
        %6752 = vmatpush2.bf16.msra.mxu0 %v5679
        %6753 = vmatprep.subr.bf16.mxu0 0
        %6754 = vmatpush2.bf16.msra.mxu0 %v5678
        %6755 = vmatprep.subr.bf16.mxu0 0
        %6756 = vmatpush2.bf16.msra.mxu0 %v5677
        %6757 = vmatprep.mubr.bf16.mxu0 %v6470
        %6758 = vmatmul.mubr.bf16.gmra.mxu0 %v6469
        %v6759 = vpop.f32.mrf.mxu0
        %v6760 = vadd.f32 %v5831, %v6759
        %v6761 = vpop.f32.mrf.mxu0
        %v6762 = vpop.f32.mrf.mxu0
        %v6763 = vadd.f32 %v5835, %v6762
        %v6764 = vpop.f32.mrf.mxu0
        %6765 = vmatprep.mubr.bf16.mxu0 %v6474
        %6766 = vmatmul.mubr.bf16.gmra.mxu0 %v6473
        %v6767 = vpop.f32.mrf.mxu0
        %v6768 = vadd.f32 %v5839, %v6767
        %v6769 = vpop.f32.mrf.mxu0
        %v6770 = vpop.f32.mrf.mxu0
        %v6771 = vadd.f32 %v5843, %v6770
        %v6772 = vpop.f32.mrf.mxu0
        %6773 = vmatprep.mubr.bf16.mxu0 %v6478
        %6774 = vmatmul.mubr.bf16.gmra.mxu0 %v6477
        %v6775 = vpop.f32.mrf.mxu0
        %v6776 = vadd.f32 %v5847, %v6775
        %v6777 = vpop.f32.mrf.mxu0
        %v6778 = vpop.f32.mrf.mxu0
        %v6779 = vadd.f32 %v5851, %v6778
        %v6780 = vpop.f32.mrf.mxu0
        %6781 = vmatprep.mubr.bf16.mxu0 %v6482
        %6782 = vmatmul.mubr.bf16.gmra.mxu0 %v6481
        %v6783 = vpop.f32.mrf.mxu0
        %v6784 = vadd.f32 %v5855, %v6783
        %v6785 = vpop.f32.mrf.mxu0
        %v6786 = vpop.f32.mrf.mxu0
        %v6787 = vadd.f32 %v5859, %v6786
        %v6788 = vpop.f32.mrf.mxu0
        %6789 = vmatprep.mubr.bf16.mxu0 %v6486
        %6790 = vmatmul.mubr.bf16.gmra.mxu0 %v6485
        %v6791 = vpop.f32.mrf.mxu0
        %v6792 = vadd.f32 %v5863, %v6791
        %v6793 = vpop.f32.mrf.mxu0
        %v6794 = vpop.f32.mrf.mxu0
        %v6795 = vadd.f32 %v5867, %v6794
        %v6796 = vpop.f32.mrf.mxu0
        %6797 = vmatprep.mubr.bf16.mxu0 %v6490
        %6798 = vmatmul.mubr.bf16.gmra.mxu0 %v6489
        %v6799 = vpop.f32.mrf.mxu0
        %v6800 = vadd.f32 %v5871, %v6799
        %v6801 = vpop.f32.mrf.mxu0
        %v6802 = vpop.f32.mrf.mxu0
        %v6803 = vadd.f32 %v5875, %v6802
        %v6804 = vpop.f32.mrf.mxu0
        %6805 = vmatprep.mubr.bf16.mxu0 %v6494
        %6806 = vmatmul.mubr.bf16.gmra.mxu0 %v6493
        %v6807 = vpop.f32.mrf.mxu0
        %v6808 = vadd.f32 %v5879, %v6807
        %v6809 = vpop.f32.mrf.mxu0
        %v6810 = vpop.f32.mrf.mxu0
        %v6811 = vadd.f32 %v5883, %v6810
        %v6812 = vpop.f32.mrf.mxu0
        %6813 = vmatprep.mubr.bf16.mxu0 %v6498
        %6814 = vmatmul.mubr.bf16.gmra.mxu0 %v6497
        %v6815 = vpop.f32.mrf.mxu0
        %v6816 = vadd.f32 %v5887, %v6815
        %v6817 = vpop.f32.mrf.mxu0
        %v6818 = vpop.f32.mrf.mxu0
        %v6819 = vadd.f32 %v5891, %v6818
        %v6820 = vpop.f32.mrf.mxu0
        %6821 = vmatprep.mubr.bf16.mxu0 %v6502
        %6822 = vmatmul.mubr.bf16.gmra.mxu0 %v6501
        %v6823 = vpop.f32.mrf.mxu0
        %v6824 = vadd.f32 %v5895, %v6823
        %v6825 = vpop.f32.mrf.mxu0
        %v6826 = vpop.f32.mrf.mxu0
        %v6827 = vadd.f32 %v5899, %v6826
        %v6828 = vpop.f32.mrf.mxu0
        %6829 = vmatprep.mubr.bf16.mxu0 %v6506
        %6830 = vmatmul.mubr.bf16.gmra.mxu0 %v6505
        %v6831 = vpop.f32.mrf.mxu0
        %v6832 = vadd.f32 %v5903, %v6831
        %v6833 = vpop.f32.mrf.mxu0
        %v6834 = vpop.f32.mrf.mxu0
        %v6835 = vadd.f32 %v5907, %v6834
        %v6836 = vpop.f32.mrf.mxu0
        %6837 = vmatprep.mubr.bf16.mxu0 %v6510
        %6838 = vmatmul.mubr.bf16.gmra.mxu0 %v6509
        %v6839 = vpop.f32.mrf.mxu0
        %v6840 = vadd.f32 %v5911, %v6839
        %v6841 = vpop.f32.mrf.mxu0
        %v6842 = vpop.f32.mrf.mxu0
        %v6843 = vadd.f32 %v5915, %v6842
        %v6844 = vpop.f32.mrf.mxu0
        %6845 = vmatprep.mubr.bf16.mxu0 %v6514
        %6846 = vmatmul.mubr.bf16.gmra.mxu0 %v6513
        %v6847 = vpop.f32.mrf.mxu0
        %v6848 = vadd.f32 %v5919, %v6847
        %v6849 = vpop.f32.mrf.mxu0
        %v6850 = vpop.f32.mrf.mxu0
        %v6851 = vadd.f32 %v5923, %v6850
        %v6852 = vpop.f32.mrf.mxu0
        %6853 = vmatprep.mubr.bf16.mxu0 %v6518
        %6854 = vmatmul.mubr.bf16.gmra.mxu0 %v6517
        %v6855 = vpop.f32.mrf.mxu0
        %v6856 = vadd.f32 %v5927, %v6855
        %v6857 = vpop.f32.mrf.mxu0
        %v6858 = vpop.f32.mrf.mxu0
        %v6859 = vadd.f32 %v5931, %v6858
        %v6860 = vpop.f32.mrf.mxu0
        %6861 = vmatprep.mubr.bf16.mxu0 %v6522
        %6862 = vmatmul.mubr.bf16.gmra.mxu0 %v6521
        %v6863 = vpop.f32.mrf.mxu0
        %v6864 = vadd.f32 %v5935, %v6863
        %v6865 = vpop.f32.mrf.mxu0
        %v6866 = vpop.f32.mrf.mxu0
        %v6867 = vadd.f32 %v5939, %v6866
        %v6868 = vpop.f32.mrf.mxu0
        %6869 = vmatprep.mubr.bf16.mxu0 %v6526
        %6870 = vmatmul.mubr.bf16.gmra.mxu0 %v6525
        %v6871 = vpop.f32.mrf.mxu0
        %v6872 = vadd.f32 %v5943, %v6871
        %v6873 = vpop.f32.mrf.mxu0
        %v6874 = vpop.f32.mrf.mxu0
        %v6875 = vadd.f32 %v5947, %v6874
        %v6876 = vpop.f32.mrf.mxu0
        %6877 = vmatprep.mubr.bf16.mxu0 %v6530
        %6878 = vmatmul.mubr.bf16.gmra.mxu0 %v6529
        %v6879 = vpop.f32.mrf.mxu0
        %v6880 = vadd.f32 %v5951, %v6879
        %v6881 = vpop.f32.mrf.mxu0
        %v6882 = vpop.f32.mrf.mxu0
        %v6883 = vadd.f32 %v5955, %v6882
        %v6884 = vpop.f32.mrf.mxu0
        %6885 = vmatprep.mubr.bf16.mxu0 %v6534
        %6886 = vmatmul.mubr.bf16.gmra.mxu0 %v6533
        %v6887 = vpop.f32.mrf.mxu0
        %v6888 = vadd.f32 %v5959, %v6887
        %v6889 = vpop.f32.mrf.mxu0
        %v6890 = vpop.f32.mrf.mxu0
        %v6891 = vadd.f32 %v5963, %v6890
        %v6892 = vpop.f32.mrf.mxu0
        %6893 = vmatprep.mubr.bf16.mxu0 %v6538
        %6894 = vmatmul.mubr.bf16.gmra.mxu0 %v6537
        %v6895 = vpop.f32.mrf.mxu0
        %v6896 = vadd.f32 %v5967, %v6895
        %v6897 = vpop.f32.mrf.mxu0
        %v6898 = vpop.f32.mrf.mxu0
        %v6899 = vadd.f32 %v5971, %v6898
        %v6900 = vpop.f32.mrf.mxu0
        %6901 = vmatprep.mubr.bf16.mxu0 %v6542
        %6902 = vmatmul.mubr.bf16.gmra.mxu0 %v6541
        %v6903 = vpop.f32.mrf.mxu0
        %v6904 = vadd.f32 %v5975, %v6903
        %v6905 = vpop.f32.mrf.mxu0
        %v6906 = vpop.f32.mrf.mxu0
        %v6907 = vadd.f32 %v5979, %v6906
        %v6908 = vpop.f32.mrf.mxu0
        %6909 = vmatprep.mubr.bf16.mxu0 %v6546
        %6910 = vmatmul.mubr.bf16.gmra.mxu0 %v6545
        %v6911 = vpop.f32.mrf.mxu0
        %v6912 = vadd.f32 %v5983, %v6911
        %v6913 = vpop.f32.mrf.mxu0
        %v6914 = vpop.f32.mrf.mxu0
        %v6915 = vadd.f32 %v5987, %v6914
        %v6916 = vpop.f32.mrf.mxu0
        %6917 = vmatprep.mubr.bf16.mxu0 %v6550
        %6918 = vmatmul.mubr.bf16.gmra.mxu0 %v6549
        %v6919 = vpop.f32.mrf.mxu0
        %v6920 = vadd.f32 %v5991, %v6919
        %v6921 = vpop.f32.mrf.mxu0
        %v6922 = vpop.f32.mrf.mxu0
        %v6923 = vadd.f32 %v5995, %v6922
        %v6924 = vpop.f32.mrf.mxu0
        %6925 = vmatprep.mubr.bf16.mxu0 %v6554
        %6926 = vmatmul.mubr.bf16.gmra.mxu0 %v6553
        %v6927 = vpop.f32.mrf.mxu0
        %v6928 = vadd.f32 %v5999, %v6927
        %v6929 = vpop.f32.mrf.mxu0
        %v6930 = vpop.f32.mrf.mxu0
        %v6931 = vadd.f32 %v6003, %v6930
        %v6932 = vpop.f32.mrf.mxu0
        %6933 = vmatprep.mubr.bf16.mxu0 %v6558
        %6934 = vmatmul.mubr.bf16.gmra.mxu0 %v6557
        %v6935 = vpop.f32.mrf.mxu0
        %v6936 = vadd.f32 %v6007, %v6935
        %v6937 = vpop.f32.mrf.mxu0
        %v6938 = vpop.f32.mrf.mxu0
        %v6939 = vadd.f32 %v6011, %v6938
        %v6940 = vpop.f32.mrf.mxu0
        %6941 = vmatprep.mubr.bf16.mxu0 %v6562
        %6942 = vmatmul.mubr.bf16.gmra.mxu0 %v6561
        %v6943 = vpop.f32.mrf.mxu0
        %v6944 = vadd.f32 %v6015, %v6943
        %v6945 = vpop.f32.mrf.mxu0
        %v6946 = vpop.f32.mrf.mxu0
        %v6947 = vadd.f32 %v6019, %v6946
        %v6948 = vpop.f32.mrf.mxu0
        %6949 = vmatprep.mubr.bf16.mxu0 %v6566
        %6950 = vmatmul.mubr.bf16.gmra.mxu0 %v6565
        %v6951 = vpop.f32.mrf.mxu0
        %v6952 = vadd.f32 %v6023, %v6951
        %v6953 = vpop.f32.mrf.mxu0
        %v6954 = vpop.f32.mrf.mxu0
        %v6955 = vadd.f32 %v6027, %v6954
        %v6956 = vpop.f32.mrf.mxu0
        %6957 = vmatprep.mubr.bf16.mxu0 %v6570
        %6958 = vmatmul.mubr.bf16.gmra.mxu0 %v6569
        %v6959 = vpop.f32.mrf.mxu0
        %v6960 = vadd.f32 %v6031, %v6959
        %v6961 = vpop.f32.mrf.mxu0
        %v6962 = vpop.f32.mrf.mxu0
        %v6963 = vadd.f32 %v6035, %v6962
        %v6964 = vpop.f32.mrf.mxu0
        %6965 = vmatprep.mubr.bf16.mxu0 %v6574
        %6966 = vmatmul.mubr.bf16.gmra.mxu0 %v6573
        %v6967 = vpop.f32.mrf.mxu0
        %v6968 = vadd.f32 %v6039, %v6967
        %v6969 = vpop.f32.mrf.mxu0
        %v6970 = vpop.f32.mrf.mxu0
        %v6971 = vadd.f32 %v6043, %v6970
        %v6972 = vpop.f32.mrf.mxu0
        %6973 = vmatprep.mubr.bf16.mxu0 %v6578
        %6974 = vmatmul.mubr.bf16.gmra.mxu0 %v6577
        %v6975 = vpop.f32.mrf.mxu0
        %v6976 = vadd.f32 %v6047, %v6975
        %v6977 = vpop.f32.mrf.mxu0
        %v6978 = vpop.f32.mrf.mxu0
        %v6979 = vadd.f32 %v6051, %v6978
        %v6980 = vpop.f32.mrf.mxu0
        %6981 = vmatprep.mubr.bf16.mxu0 %v6582
        %6982 = vmatmul.mubr.bf16.gmra.mxu0 %v6581
        %v6983 = vpop.f32.mrf.mxu0
        %v6984 = vadd.f32 %v6055, %v6983
        %v6985 = vpop.f32.mrf.mxu0
        %v6986 = vpop.f32.mrf.mxu0
        %v6987 = vadd.f32 %v6059, %v6986
        %v6988 = vpop.f32.mrf.mxu0
        %6989 = vmatprep.mubr.bf16.mxu0 %v6586
        %6990 = vmatmul.mubr.bf16.gmra.mxu0 %v6585
        %v6991 = vpop.f32.mrf.mxu0
        %v6992 = vadd.f32 %v6063, %v6991
        %v6993 = vpop.f32.mrf.mxu0
        %v6994 = vpop.f32.mrf.mxu0
        %v6995 = vadd.f32 %v6067, %v6994
        %v6996 = vpop.f32.mrf.mxu0
        %6997 = vmatprep.mubr.bf16.mxu0 %v6590
        %6998 = vmatmul.mubr.bf16.gmra.mxu0 %v6589
        %v6999 = vpop.f32.mrf.mxu0
        %v7000 = vadd.f32 %v6071, %v6999
        %v7001 = vpop.f32.mrf.mxu0
        %v7002 = vpop.f32.mrf.mxu0
        %v7003 = vadd.f32 %v6075, %v7002
        %v7004 = vpop.f32.mrf.mxu0
        %7005 = vmatprep.mubr.bf16.mxu0 %v6594
        %7006 = vmatmul.mubr.bf16.gmra.mxu0 %v6593
        %v7007 = vpop.f32.mrf.mxu0
        %v7008 = vadd.f32 %v6079, %v7007
        %v7009 = vpop.f32.mrf.mxu0
        %v7010 = vpop.f32.mrf.mxu0
        %v7011 = vadd.f32 %v6083, %v7010
        %v7012 = vpop.f32.mrf.mxu0
        %7013 = vdwg.mxu0
        %7014 = vmatprep.subr.bf16.mxu0 0
        %7015 = vmatpush1.bf16.msra.mxu0 %v5692
        %7016 = vmatprep.subr.bf16.mxu0 0
        %7017 = vmatpush1.bf16.msra.mxu0 %v5691
        %7018 = vmatprep.subr.bf16.mxu0 0
        %7019 = vmatpush1.bf16.msra.mxu0 %v5690
        %7020 = vmatprep.subr.bf16.mxu0 0
        %7021 = vmatpush1.bf16.msra.mxu0 %v5689
        %7022 = vmatprep.subr.bf16.mxu0 0
        %7023 = vmatpush1.bf16.msra.mxu0 %v5688
        %7024 = vmatprep.subr.bf16.mxu0 0
        %7025 = vmatpush1.bf16.msra.mxu0 %v5687
        %7026 = vmatprep.subr.bf16.mxu0 0
        %7027 = vmatpush1.bf16.msra.mxu0 %v5686
        %7028 = vmatprep.subr.bf16.mxu0 0
        %7029 = vmatpush1.bf16.msra.mxu0 %v5685
        %7030 = vmatprep.subr.bf16.mxu0 0
        %7031 = vmatpush2.bf16.msra.mxu0 %v5700
        %7032 = vmatprep.subr.bf16.mxu0 0
        %7033 = vmatpush2.bf16.msra.mxu0 %v5699
        %7034 = vmatprep.subr.bf16.mxu0 0
        %7035 = vmatpush2.bf16.msra.mxu0 %v5698
        %7036 = vmatprep.subr.bf16.mxu0 0
        %7037 = vmatpush2.bf16.msra.mxu0 %v5697
        %7038 = vmatprep.subr.bf16.mxu0 0
        %7039 = vmatpush2.bf16.msra.mxu0 %v5696
        %7040 = vmatprep.subr.bf16.mxu0 0
        %7041 = vmatpush2.bf16.msra.mxu0 %v5695
        %7042 = vmatprep.subr.bf16.mxu0 0
        %7043 = vmatpush2.bf16.msra.mxu0 %v5694
        %7044 = vmatprep.subr.bf16.mxu0 0
        %7045 = vmatpush2.bf16.msra.mxu0 %v5693
        %7046 = vmatprep.mubr.bf16.mxu0 %v6472
        %7047 = vmatmul.mubr.bf16.gmra.mxu0 %v6471
        %v7048 = vpop.f32.mrf.mxu0
        %v7049 = vadd.f32 %v6760, %v7048
        %v7050 = vpop.f32.mrf.mxu0
        %v7051 = vpop.f32.mrf.mxu0
        %v7052 = vadd.f32 %v6763, %v7051
        %v7053 = vpop.f32.mrf.mxu0
        %7054 = vmatprep.mubr.bf16.mxu0 %v6476
        %7055 = vmatmul.mubr.bf16.gmra.mxu0 %v6475
        %v7056 = vpop.f32.mrf.mxu0
        %v7057 = vadd.f32 %v6768, %v7056
        %v7058 = vpop.f32.mrf.mxu0
        %v7059 = vpop.f32.mrf.mxu0
        %v7060 = vadd.f32 %v6771, %v7059
        %v7061 = vpop.f32.mrf.mxu0
        %7062 = vmatprep.mubr.bf16.mxu0 %v6480
        %7063 = vmatmul.mubr.bf16.gmra.mxu0 %v6479
        %v7064 = vpop.f32.mrf.mxu0
        %v7065 = vadd.f32 %v6776, %v7064
        %v7066 = vpop.f32.mrf.mxu0
        %v7067 = vpop.f32.mrf.mxu0
        %v7068 = vadd.f32 %v6779, %v7067
        %v7069 = vpop.f32.mrf.mxu0
        %7070 = vmatprep.mubr.bf16.mxu0 %v6484
        %7071 = vmatmul.mubr.bf16.gmra.mxu0 %v6483
        %v7072 = vpop.f32.mrf.mxu0
        %v7073 = vadd.f32 %v6784, %v7072
        %v7074 = vpop.f32.mrf.mxu0
        %v7075 = vpop.f32.mrf.mxu0
        %v7076 = vadd.f32 %v6787, %v7075
        %v7077 = vpop.f32.mrf.mxu0
        %7078 = vmatprep.mubr.bf16.mxu0 %v6488
        %7079 = vmatmul.mubr.bf16.gmra.mxu0 %v6487
        %v7080 = vpop.f32.mrf.mxu0
        %v7081 = vadd.f32 %v6792, %v7080
        %v7082 = vpop.f32.mrf.mxu0
        %v7083 = vpop.f32.mrf.mxu0
        %v7084 = vadd.f32 %v6795, %v7083
        %v7085 = vpop.f32.mrf.mxu0
        %7086 = vmatprep.mubr.bf16.mxu0 %v6492
        %7087 = vmatmul.mubr.bf16.gmra.mxu0 %v6491
        %v7088 = vpop.f32.mrf.mxu0
        %v7089 = vadd.f32 %v6800, %v7088
        %v7090 = vpop.f32.mrf.mxu0
        %v7091 = vpop.f32.mrf.mxu0
        %v7092 = vadd.f32 %v6803, %v7091
        %v7093 = vpop.f32.mrf.mxu0
        %7094 = vmatprep.mubr.bf16.mxu0 %v6496
        %7095 = vmatmul.mubr.bf16.gmra.mxu0 %v6495
        %v7096 = vpop.f32.mrf.mxu0
        %v7097 = vadd.f32 %v6808, %v7096
        %v7098 = vpop.f32.mrf.mxu0
        %v7099 = vpop.f32.mrf.mxu0
        %v7100 = vadd.f32 %v6811, %v7099
        %v7101 = vpop.f32.mrf.mxu0
        %7102 = vmatprep.mubr.bf16.mxu0 %v6500
        %7103 = vmatmul.mubr.bf16.gmra.mxu0 %v6499
        %v7104 = vpop.f32.mrf.mxu0
        %v7105 = vadd.f32 %v6816, %v7104
        %v7106 = vpop.f32.mrf.mxu0
        %v7107 = vpop.f32.mrf.mxu0
        %v7108 = vadd.f32 %v6819, %v7107
        %v7109 = vpop.f32.mrf.mxu0
        %7110 = vmatprep.mubr.bf16.mxu0 %v6504
        %7111 = vmatmul.mubr.bf16.gmra.mxu0 %v6503
        %v7112 = vpop.f32.mrf.mxu0
        %v7113 = vadd.f32 %v6824, %v7112
        %v7114 = vpop.f32.mrf.mxu0
        %v7115 = vpop.f32.mrf.mxu0
        %v7116 = vadd.f32 %v6827, %v7115
        %v7117 = vpop.f32.mrf.mxu0
        %7118 = vmatprep.mubr.bf16.mxu0 %v6508
        %7119 = vmatmul.mubr.bf16.gmra.mxu0 %v6507
        %v7120 = vpop.f32.mrf.mxu0
        %v7121 = vadd.f32 %v6832, %v7120
        %v7122 = vpop.f32.mrf.mxu0
        %v7123 = vpop.f32.mrf.mxu0
        %v7124 = vadd.f32 %v6835, %v7123
        %v7125 = vpop.f32.mrf.mxu0
        %7126 = vmatprep.mubr.bf16.mxu0 %v6512
        %7127 = vmatmul.mubr.bf16.gmra.mxu0 %v6511
        %v7128 = vpop.f32.mrf.mxu0
        %v7129 = vadd.f32 %v6840, %v7128
        %v7130 = vpop.f32.mrf.mxu0
        %v7131 = vpop.f32.mrf.mxu0
        %v7132 = vadd.f32 %v6843, %v7131
        %v7133 = vpop.f32.mrf.mxu0
        %7134 = vmatprep.mubr.bf16.mxu0 %v6516
        %7135 = vmatmul.mubr.bf16.gmra.mxu0 %v6515
        %v7136 = vpop.f32.mrf.mxu0
        %v7137 = vadd.f32 %v6848, %v7136
        %v7138 = vpop.f32.mrf.mxu0
        %v7139 = vpop.f32.mrf.mxu0
        %v7140 = vadd.f32 %v6851, %v7139
        %v7141 = vpop.f32.mrf.mxu0
        %7142 = vmatprep.mubr.bf16.mxu0 %v6520
        %7143 = vmatmul.mubr.bf16.gmra.mxu0 %v6519
        %v7144 = vpop.f32.mrf.mxu0
        %v7145 = vadd.f32 %v6856, %v7144
        %v7146 = vpop.f32.mrf.mxu0
        %v7147 = vpop.f32.mrf.mxu0
        %v7148 = vadd.f32 %v6859, %v7147
        %v7149 = vpop.f32.mrf.mxu0
        %7150 = vmatprep.mubr.bf16.mxu0 %v6524
        %7151 = vmatmul.mubr.bf16.gmra.mxu0 %v6523
        %v7152 = vpop.f32.mrf.mxu0
        %v7153 = vadd.f32 %v6864, %v7152
        %v7154 = vpop.f32.mrf.mxu0
        %v7155 = vpop.f32.mrf.mxu0
        %v7156 = vadd.f32 %v6867, %v7155
        %v7157 = vpop.f32.mrf.mxu0
        %7158 = vmatprep.mubr.bf16.mxu0 %v6528
        %7159 = vmatmul.mubr.bf16.gmra.mxu0 %v6527
        %v7160 = vpop.f32.mrf.mxu0
        %v7161 = vadd.f32 %v6872, %v7160
        %v7162 = vpop.f32.mrf.mxu0
        %v7163 = vpop.f32.mrf.mxu0
        %v7164 = vadd.f32 %v6875, %v7163
        %v7165 = vpop.f32.mrf.mxu0
        %7166 = vmatprep.mubr.bf16.mxu0 %v6532
        %7167 = vmatmul.mubr.bf16.gmra.mxu0 %v6531
        %v7168 = vpop.f32.mrf.mxu0
        %v7169 = vadd.f32 %v6880, %v7168
        %v7170 = vpop.f32.mrf.mxu0
        %v7171 = vpop.f32.mrf.mxu0
        %v7172 = vadd.f32 %v6883, %v7171
        %v7173 = vpop.f32.mrf.mxu0
        %7174 = vmatprep.mubr.bf16.mxu0 %v6536
        %7175 = vmatmul.mubr.bf16.gmra.mxu0 %v6535
        %v7176 = vpop.f32.mrf.mxu0
        %v7177 = vadd.f32 %v6888, %v7176
        %v7178 = vpop.f32.mrf.mxu0
        %v7179 = vpop.f32.mrf.mxu0
        %v7180 = vadd.f32 %v6891, %v7179
        %v7181 = vpop.f32.mrf.mxu0
        %7182 = vmatprep.mubr.bf16.mxu0 %v6540
        %7183 = vmatmul.mubr.bf16.gmra.mxu0 %v6539
        %v7184 = vpop.f32.mrf.mxu0
        %v7185 = vadd.f32 %v6896, %v7184
        %v7186 = vpop.f32.mrf.mxu0
        %v7187 = vpop.f32.mrf.mxu0
        %v7188 = vadd.f32 %v6899, %v7187
        %v7189 = vpop.f32.mrf.mxu0
        %7190 = vmatprep.mubr.bf16.mxu0 %v6544
        %7191 = vmatmul.mubr.bf16.gmra.mxu0 %v6543
        %v7192 = vpop.f32.mrf.mxu0
        %v7193 = vadd.f32 %v6904, %v7192
        %v7194 = vpop.f32.mrf.mxu0
        %v7195 = vpop.f32.mrf.mxu0
        %v7196 = vadd.f32 %v6907, %v7195
        %v7197 = vpop.f32.mrf.mxu0
        %7198 = vmatprep.mubr.bf16.mxu0 %v6548
        %7199 = vmatmul.mubr.bf16.gmra.mxu0 %v6547
        %v7200 = vpop.f32.mrf.mxu0
        %v7201 = vadd.f32 %v6912, %v7200
        %v7202 = vpop.f32.mrf.mxu0
        %v7203 = vpop.f32.mrf.mxu0
        %v7204 = vadd.f32 %v6915, %v7203
        %v7205 = vpop.f32.mrf.mxu0
        %7206 = vmatprep.mubr.bf16.mxu0 %v6552
        %7207 = vmatmul.mubr.bf16.gmra.mxu0 %v6551
        %v7208 = vpop.f32.mrf.mxu0
        %v7209 = vadd.f32 %v6920, %v7208
        %v7210 = vpop.f32.mrf.mxu0
        %v7211 = vpop.f32.mrf.mxu0
        %v7212 = vadd.f32 %v6923, %v7211
        %v7213 = vpop.f32.mrf.mxu0
        %7214 = vmatprep.mubr.bf16.mxu0 %v6556
        %7215 = vmatmul.mubr.bf16.gmra.mxu0 %v6555
        %v7216 = vpop.f32.mrf.mxu0
        %v7217 = vadd.f32 %v6928, %v7216
        %v7218 = vpop.f32.mrf.mxu0
        %v7219 = vpop.f32.mrf.mxu0
        %v7220 = vadd.f32 %v6931, %v7219
        %v7221 = vpop.f32.mrf.mxu0
        %7222 = vmatprep.mubr.bf16.mxu0 %v6560
        %7223 = vmatmul.mubr.bf16.gmra.mxu0 %v6559
        %v7224 = vpop.f32.mrf.mxu0
        %v7225 = vadd.f32 %v6936, %v7224
        %v7226 = vpop.f32.mrf.mxu0
        %v7227 = vpop.f32.mrf.mxu0
        %v7228 = vadd.f32 %v6939, %v7227
        %v7229 = vpop.f32.mrf.mxu0
        %7230 = vmatprep.mubr.bf16.mxu0 %v6564
        %7231 = vmatmul.mubr.bf16.gmra.mxu0 %v6563
        %v7232 = vpop.f32.mrf.mxu0
        %v7233 = vadd.f32 %v6944, %v7232
        %v7234 = vpop.f32.mrf.mxu0
        %v7235 = vpop.f32.mrf.mxu0
        %v7236 = vadd.f32 %v6947, %v7235
        %v7237 = vpop.f32.mrf.mxu0
        %7238 = vmatprep.mubr.bf16.mxu0 %v6568
        %7239 = vmatmul.mubr.bf16.gmra.mxu0 %v6567
        %v7240 = vpop.f32.mrf.mxu0
        %v7241 = vadd.f32 %v6952, %v7240
        %v7242 = vpop.f32.mrf.mxu0
        %v7243 = vpop.f32.mrf.mxu0
        %v7244 = vadd.f32 %v6955, %v7243
        %v7245 = vpop.f32.mrf.mxu0
        %7246 = vmatprep.mubr.bf16.mxu0 %v6572
        %7247 = vmatmul.mubr.bf16.gmra.mxu0 %v6571
        %v7248 = vpop.f32.mrf.mxu0
        %v7249 = vadd.f32 %v6960, %v7248
        %v7250 = vpop.f32.mrf.mxu0
        %v7251 = vpop.f32.mrf.mxu0
        %v7252 = vadd.f32 %v6963, %v7251
        %v7253 = vpop.f32.mrf.mxu0
        %7254 = vmatprep.mubr.bf16.mxu0 %v6576
        %7255 = vmatmul.mubr.bf16.gmra.mxu0 %v6575
        %v7256 = vpop.f32.mrf.mxu0
        %v7257 = vadd.f32 %v6968, %v7256
        %v7258 = vpop.f32.mrf.mxu0
        %v7259 = vpop.f32.mrf.mxu0
        %v7260 = vadd.f32 %v6971, %v7259
        %v7261 = vpop.f32.mrf.mxu0
        %7262 = vmatprep.mubr.bf16.mxu0 %v6580
        %7263 = vmatmul.mubr.bf16.gmra.mxu0 %v6579
        %v7264 = vpop.f32.mrf.mxu0
        %v7265 = vadd.f32 %v6976, %v7264
        %v7266 = vpop.f32.mrf.mxu0
        %v7267 = vpop.f32.mrf.mxu0
        %v7268 = vadd.f32 %v6979, %v7267
        %v7269 = vpop.f32.mrf.mxu0
        %7270 = vmatprep.mubr.bf16.mxu0 %v6584
        %7271 = vmatmul.mubr.bf16.gmra.mxu0 %v6583
        %v7272 = vpop.f32.mrf.mxu0
        %v7273 = vadd.f32 %v6984, %v7272
        %v7274 = vpop.f32.mrf.mxu0
        %v7275 = vpop.f32.mrf.mxu0
        %v7276 = vadd.f32 %v6987, %v7275
        %v7277 = vpop.f32.mrf.mxu0
        %7278 = vmatprep.mubr.bf16.mxu0 %v6588
        %7279 = vmatmul.mubr.bf16.gmra.mxu0 %v6587
        %v7280 = vpop.f32.mrf.mxu0
        %v7281 = vadd.f32 %v6992, %v7280
        %v7282 = vpop.f32.mrf.mxu0
        %v7283 = vpop.f32.mrf.mxu0
        %v7284 = vadd.f32 %v6995, %v7283
        %v7285 = vpop.f32.mrf.mxu0
        %7286 = vmatprep.mubr.bf16.mxu0 %v6592
        %7287 = vmatmul.mubr.bf16.gmra.mxu0 %v6591
        %v7288 = vpop.f32.mrf.mxu0
        %v7289 = vadd.f32 %v7000, %v7288
        %v7290 = vpop.f32.mrf.mxu0
        %v7291 = vpop.f32.mrf.mxu0
        %v7292 = vadd.f32 %v7003, %v7291
        %v7293 = vpop.f32.mrf.mxu0
        %7294 = vmatprep.mubr.bf16.mxu0 %v6596
        %7295 = vmatmul.mubr.bf16.gmra.mxu0 %v6595
        %v7296 = vpop.f32.mrf.mxu0
        %v7297 = vadd.f32 %v7008, %v7296
        %v7298 = vpop.f32.mrf.mxu0
        %v7299 = vpop.f32.mrf.mxu0
        %v7300 = vadd.f32 %v7011, %v7299
        %v7301 = vpop.f32.mrf.mxu0
        %7302 = vdwg.mxu0
        %v7303 = vmax.f32 %v7049, 0.0
        %v7304 = vmax.f32 %v7052, 0.0
        %v7305 = vmax.f32 %v7057, 0.0
        %v7306 = vmax.f32 %v7060, 0.0
        %v7307 = vmax.f32 %v7065, 0.0
        %v7308 = vmax.f32 %v7068, 0.0
        %v7309 = vmax.f32 %v7073, 0.0
        %v7310 = vmax.f32 %v7076, 0.0
        %v7311 = vmax.f32 %v7081, 0.0
        %v7312 = vmax.f32 %v7084, 0.0
        %v7313 = vmax.f32 %v7089, 0.0
        %v7314 = vmax.f32 %v7092, 0.0
        %v7315 = vmax.f32 %v7097, 0.0
        %v7316 = vmax.f32 %v7100, 0.0
        %v7317 = vmax.f32 %v7105, 0.0
        %v7318 = vmax.f32 %v7108, 0.0
        %v7319 = vmax.f32 %v7113, 0.0
        %v7320 = vmax.f32 %v7116, 0.0
        %v7321 = vmax.f32 %v7121, 0.0
        %v7322 = vmax.f32 %v7124, 0.0
        %v7323 = vmax.f32 %v7129, 0.0
        %v7324 = vmax.f32 %v7132, 0.0
        %v7325 = vmax.f32 %v7137, 0.0
        %v7326 = vmax.f32 %v7140, 0.0
        %v7327 = vmax.f32 %v7145, 0.0
        %v7328 = vmax.f32 %v7148, 0.0
        %v7329 = vmax.f32 %v7153, 0.0
        %v7330 = vmax.f32 %v7156, 0.0
        %v7331 = vmax.f32 %v7161, 0.0
        %v7332 = vmax.f32 %v7164, 0.0
        %v7333 = vmax.f32 %v7169, 0.0
        %v7334 = vmax.f32 %v7172, 0.0
        %v7335 = vmax.f32 %v7177, 0.0
        %v7336 = vmax.f32 %v7180, 0.0
        %v7337 = vmax.f32 %v7185, 0.0
        %v7338 = vmax.f32 %v7188, 0.0
        %v7339 = vmax.f32 %v7193, 0.0
        %v7340 = vmax.f32 %v7196, 0.0
        %v7341 = vmax.f32 %v7201, 0.0
        %v7342 = vmax.f32 %v7204, 0.0
        %v7343 = vmax.f32 %v7209, 0.0
        %v7344 = vmax.f32 %v7212, 0.0
        %v7345 = vmax.f32 %v7217, 0.0
        %v7346 = vmax.f32 %v7220, 0.0
        %v7347 = vmax.f32 %v7225, 0.0
        %v7348 = vmax.f32 %v7228, 0.0
        %v7349 = vmax.f32 %v7233, 0.0
        %v7350 = vmax.f32 %v7236, 0.0
        %v7351 = vmax.f32 %v7241, 0.0
        %v7352 = vmax.f32 %v7244, 0.0
        %v7353 = vmax.f32 %v7249, 0.0
        %v7354 = vmax.f32 %v7252, 0.0
        %v7355 = vmax.f32 %v7257, 0.0
        %v7356 = vmax.f32 %v7260, 0.0
        %v7357 = vmax.f32 %v7265, 0.0
        %v7358 = vmax.f32 %v7268, 0.0
        %v7359 = vmax.f32 %v7273, 0.0
        %v7360 = vmax.f32 %v7276, 0.0
        %v7361 = vmax.f32 %v7281, 0.0
        %v7362 = vmax.f32 %v7284, 0.0
        %v7363 = vmax.f32 %v7289, 0.0
        %v7364 = vmax.f32 %v7292, 0.0
        %v7365 = vmax.f32 %v7297, 0.0
        %v7366 = vmax.f32 %v7300, 0.0
        %v7367 = vpack.c.bf16 %v7304, %v7303
        %v7368 = vpack.c.bf16 %v7306, %v7305
        %v7369 = vpack.c.bf16 %v7308, %v7307
        %v7370 = vpack.c.bf16 %v7310, %v7309
        %v7371 = vpack.c.bf16 %v7312, %v7311
        %v7372 = vpack.c.bf16 %v7314, %v7313
        %v7373 = vpack.c.bf16 %v7316, %v7315
        %v7374 = vpack.c.bf16 %v7318, %v7317
        %v7375 = vpack.c.bf16 %v7320, %v7319
        %v7376 = vpack.c.bf16 %v7322, %v7321
        %v7377 = vpack.c.bf16 %v7324, %v7323
        %v7378 = vpack.c.bf16 %v7326, %v7325
        %v7379 = vpack.c.bf16 %v7328, %v7327
        %v7380 = vpack.c.bf16 %v7330, %v7329
        %v7381 = vpack.c.bf16 %v7332, %v7331
        %v7382 = vpack.c.bf16 %v7334, %v7333
        %v7383 = vpack.c.bf16 %v7336, %v7335
        %v7384 = vpack.c.bf16 %v7338, %v7337
        %v7385 = vpack.c.bf16 %v7340, %v7339
        %v7386 = vpack.c.bf16 %v7342, %v7341
        %v7387 = vpack.c.bf16 %v7344, %v7343
        %v7388 = vpack.c.bf16 %v7346, %v7345
        %v7389 = vpack.c.bf16 %v7348, %v7347
        %v7390 = vpack.c.bf16 %v7350, %v7349
        %v7391 = vpack.c.bf16 %v7352, %v7351
        %v7392 = vpack.c.bf16 %v7354, %v7353
        %v7393 = vpack.c.bf16 %v7356, %v7355
        %v7394 = vpack.c.bf16 %v7358, %v7357
        %v7395 = vpack.c.bf16 %v7360, %v7359
        %v7396 = vpack.c.bf16 %v7362, %v7361
        %v7397 = vpack.c.bf16 %v7364, %v7363
        %v7398 = vpack.c.bf16 %v7366, %v7365
        %v7399 = vld [vmem:[%s4] sm:$0xff]
        %v7400 = vld [vmem:[%s4 + $0x8] sm:$0xff]
        %v7403 = vunpack.c.l.b16 %v7399
        %v7404 = vunpack.c.h.b16 %v7399
        %v7405 = vunpack.c.l.b16 %v7400
        %v7406 = vunpack.c.h.b16 %v7400
        %v7407 = vpack.c.b16 %v7403, %v7403
        %v7408 = vpack.c.b16 %v7404, %v7404
        %v7409 = vpack.c.b16 %v7405, %v7405
        %v7410 = vpack.c.b16 %v7406, %v7406
        %7415 = vmatprep.subr.bf16.mxu0 0
        %7416 = vmatpush1.bf16.msra.mxu0 %v7374
        %7417 = vmatprep.subr.bf16.mxu0 0
        %7418 = vmatpush1.bf16.msra.mxu0 %v7373
        %7419 = vmatprep.subr.bf16.mxu0 0
        %7420 = vmatpush1.bf16.msra.mxu0 %v7372
        %7421 = vmatprep.subr.bf16.mxu0 0
        %7422 = vmatpush1.bf16.msra.mxu0 %v7371
        %7423 = vmatprep.subr.bf16.mxu0 0
        %7424 = vmatpush1.bf16.msra.mxu0 %v7370
        %7425 = vmatprep.subr.bf16.mxu0 0
        %7426 = vmatpush1.bf16.msra.mxu0 %v7369
        %7427 = vmatprep.subr.bf16.mxu0 0
        %7428 = vmatpush1.bf16.msra.mxu0 %v7368
        %7429 = vmatprep.subr.bf16.mxu0 0
        %7430 = vmatpush1.bf16.msra.mxu0 %v7367
        %7431 = vmatprep.subr.bf16.mxu0 0
        %7432 = vmatpush2.bf16.msra.mxu0 %v7382
        %7433 = vmatprep.subr.bf16.mxu0 0
        %7434 = vmatpush2.bf16.msra.mxu0 %v7381
        %7435 = vmatprep.subr.bf16.mxu0 0
        %7436 = vmatpush2.bf16.msra.mxu0 %v7380
        %7437 = vmatprep.subr.bf16.mxu0 0
        %7438 = vmatpush2.bf16.msra.mxu0 %v7379
        %7439 = vmatprep.subr.bf16.mxu0 0
        %7440 = vmatpush2.bf16.msra.mxu0 %v7378
        %7441 = vmatprep.subr.bf16.mxu0 0
        %7442 = vmatpush2.bf16.msra.mxu0 %v7377
        %7443 = vmatprep.subr.bf16.mxu0 0
        %7444 = vmatpush2.bf16.msra.mxu0 %v7376
        %7445 = vmatprep.subr.bf16.mxu0 0
        %7446 = vmatpush2.bf16.msra.mxu0 %v7375
        %7447 = vmatprep.mubr.bf16.mxu0 %v7408
        %7448 = vmatmul.mubr.bf16.gmra.mxu0 %v7407
        %v7449 = vpop.f32.mrf.mxu0
        %v7450 = vadd.f32 0.0, %v7449
        %v7451 = vpop.f32.mrf.mxu0
        %v7452 = vpop.f32.mrf.mxu0
        %v7453 = vpop.f32.mrf.mxu0
        %7454 = vdwg.mxu0
        %7455 = vmatprep.subr.bf16.mxu0 0
        %7456 = vmatpush1.bf16.msra.mxu0 %v7390
        %7457 = vmatprep.subr.bf16.mxu0 0
        %7458 = vmatpush1.bf16.msra.mxu0 %v7389
        %7459 = vmatprep.subr.bf16.mxu0 0
        %7460 = vmatpush1.bf16.msra.mxu0 %v7388
        %7461 = vmatprep.subr.bf16.mxu0 0
        %7462 = vmatpush1.bf16.msra.mxu0 %v7387
        %7463 = vmatprep.subr.bf16.mxu0 0
        %7464 = vmatpush1.bf16.msra.mxu0 %v7386
        %7465 = vmatprep.subr.bf16.mxu0 0
        %7466 = vmatpush1.bf16.msra.mxu0 %v7385
        %7467 = vmatprep.subr.bf16.mxu0 0
        %7468 = vmatpush1.bf16.msra.mxu0 %v7384
        %7469 = vmatprep.subr.bf16.mxu0 0
        %7470 = vmatpush1.bf16.msra.mxu0 %v7383
        %7471 = vmatprep.subr.bf16.mxu0 0
        %7472 = vmatpush2.bf16.msra.mxu0 %v7398
        %7473 = vmatprep.subr.bf16.mxu0 0
        %7474 = vmatpush2.bf16.msra.mxu0 %v7397
        %7475 = vmatprep.subr.bf16.mxu0 0
        %7476 = vmatpush2.bf16.msra.mxu0 %v7396
        %7477 = vmatprep.subr.bf16.mxu0 0
        %7478 = vmatpush2.bf16.msra.mxu0 %v7395
        %7479 = vmatprep.subr.bf16.mxu0 0
        %7480 = vmatpush2.bf16.msra.mxu0 %v7394
        %7481 = vmatprep.subr.bf16.mxu0 0
        %7482 = vmatpush2.bf16.msra.mxu0 %v7393
        %7483 = vmatprep.subr.bf16.mxu0 0
        %7484 = vmatpush2.bf16.msra.mxu0 %v7392
        %7485 = vmatprep.subr.bf16.mxu0 0
        %7486 = vmatpush2.bf16.msra.mxu0 %v7391
        %7487 = vmatprep.mubr.bf16.mxu0 %v7410
        %7488 = vmatmul.mubr.bf16.gmra.mxu0 %v7409
        %v7489 = vpop.f32.mrf.mxu0
        %v7490 = vadd.f32 %v7450, %v7489
        %v7491 = vpop.f32.mrf.mxu0
        %v7492 = vpop.f32.mrf.mxu0
        %v7493 = vpop.f32.mrf.mxu0
        %7494 = vdwg.mxu0
        %7496 = vset.pattern.permute.xlu0 3
        %7497 = vperm.xlu0 %7496, %v3522
        %v7498 = vpop.permute.xlu0 %7497
        %v7500 = vadd.f32 %v7490, %v7498
        %7501 = vst [vmem:[%s574] sm:$0x1] %v7500
        %s7502 = scalar_lea.vmem %s5, 512
        %v7503 = vld [vmem:[%s7502] sm:$0xff]
        %v7504 = vld [vmem:[%s7502 + $0x8] sm:$0xff]
        %v7505 = vld [vmem:[%s7502 + $0x10] sm:$0xff]
        %v7506 = vld [vmem:[%s7502 + $0x18] sm:$0xff]
        %v7507 = vld [vmem:[%s7502 + $0x20] sm:$0xff]
        %v7508 = vld [vmem:[%s7502 + $0x28] sm:$0xff]
        %v7509 = vld [vmem:[%s7502 + $0x30] sm:$0xff]
        %v7510 = vld [vmem:[%s7502 + $0x38] sm:$0xff]
        %v7511 = vld [vmem:[%s7502 + $0x40] sm:$0xff]
        %v7512 = vld [vmem:[%s7502 + $0x48] sm:$0xff]
        %v7513 = vld [vmem:[%s7502 + $0x50] sm:$0xff]
        %v7514 = vld [vmem:[%s7502 + $0x58] sm:$0xff]
        %v7515 = vld [vmem:[%s7502 + $0x60] sm:$0xff]
        %v7516 = vld [vmem:[%s7502 + $0x68] sm:$0xff]
        %v7517 = vld [vmem:[%s7502 + $0x70] sm:$0xff]
        %v7518 = vld [vmem:[%s7502 + $0x78] sm:$0xff]
        %v7519 = vld [vmem:[%s7502 + $0x80] sm:$0xff]
        %v7520 = vld [vmem:[%s7502 + $0x88] sm:$0xff]
        %v7521 = vld [vmem:[%s7502 + $0x90] sm:$0xff]
        %v7522 = vld [vmem:[%s7502 + $0x98] sm:$0xff]
        %v7523 = vld [vmem:[%s7502 + $0xa0] sm:$0xff]
        %v7524 = vld [vmem:[%s7502 + $0xa8] sm:$0xff]
        %v7525 = vld [vmem:[%s7502 + $0xb0] sm:$0xff]
        %v7526 = vld [vmem:[%s7502 + $0xb8] sm:$0xff]
        %v7527 = vld [vmem:[%s7502 + $0xc0] sm:$0xff]
        %v7528 = vld [vmem:[%s7502 + $0xc8] sm:$0xff]
        %v7529 = vld [vmem:[%s7502 + $0xd0] sm:$0xff]
        %v7530 = vld [vmem:[%s7502 + $0xd8] sm:$0xff]
        %v7531 = vld [vmem:[%s7502 + $0xe0] sm:$0xff]
        %v7532 = vld [vmem:[%s7502 + $0xe8] sm:$0xff]
        %v7533 = vld [vmem:[%s7502 + $0xf0] sm:$0xff]
        %v7534 = vld [vmem:[%s7502 + $0xf8] sm:$0xff]
        %v7535 = vld [vmem:[%s7502 + $0x100] sm:$0xff]
        %v7536 = vld [vmem:[%s7502 + $0x108] sm:$0xff]
        %v7537 = vld [vmem:[%s7502 + $0x110] sm:$0xff]
        %v7538 = vld [vmem:[%s7502 + $0x118] sm:$0xff]
        %v7539 = vld [vmem:[%s7502 + $0x120] sm:$0xff]
        %v7540 = vld [vmem:[%s7502 + $0x128] sm:$0xff]
        %v7541 = vld [vmem:[%s7502 + $0x130] sm:$0xff]
        %v7542 = vld [vmem:[%s7502 + $0x138] sm:$0xff]
        %v7543 = vld [vmem:[%s7502 + $0x140] sm:$0xff]
        %v7544 = vld [vmem:[%s7502 + $0x148] sm:$0xff]
        %v7545 = vld [vmem:[%s7502 + $0x150] sm:$0xff]
        %v7546 = vld [vmem:[%s7502 + $0x158] sm:$0xff]
        %v7547 = vld [vmem:[%s7502 + $0x160] sm:$0xff]
        %v7548 = vld [vmem:[%s7502 + $0x168] sm:$0xff]
        %v7549 = vld [vmem:[%s7502 + $0x170] sm:$0xff]
        %v7550 = vld [vmem:[%s7502 + $0x178] sm:$0xff]
        %v7551 = vld [vmem:[%s7502 + $0x180] sm:$0xff]
        %v7552 = vld [vmem:[%s7502 + $0x188] sm:$0xff]
        %v7553 = vld [vmem:[%s7502 + $0x190] sm:$0xff]
        %v7554 = vld [vmem:[%s7502 + $0x198] sm:$0xff]
        %v7555 = vld [vmem:[%s7502 + $0x1a0] sm:$0xff]
        %v7556 = vld [vmem:[%s7502 + $0x1a8] sm:$0xff]
        %v7557 = vld [vmem:[%s7502 + $0x1b0] sm:$0xff]
        %v7558 = vld [vmem:[%s7502 + $0x1b8] sm:$0xff]
        %v7559 = vld [vmem:[%s7502 + $0x1c0] sm:$0xff]
        %v7560 = vld [vmem:[%s7502 + $0x1c8] sm:$0xff]
        %v7561 = vld [vmem:[%s7502 + $0x1d0] sm:$0xff]
        %v7562 = vld [vmem:[%s7502 + $0x1d8] sm:$0xff]
        %v7563 = vld [vmem:[%s7502 + $0x1e0] sm:$0xff]
        %v7564 = vld [vmem:[%s7502 + $0x1e8] sm:$0xff]
        %v7565 = vld [vmem:[%s7502 + $0x1f0] sm:$0xff]
        %v7566 = vld [vmem:[%s7502 + $0x1f8] sm:$0xff]
        %v7567 = vld [vmem:[%s7502] sm:$0x1]
        %7569 = vset.pattern.permute.xlu0 0
        %7570 = vperm.xlu0 %7569, %v7503
        %v7571 = vpop.permute.xlu0 %7570
        %7574 = vset.pattern.permute.xlu0 0
        %7575 = vperm.xlu0 %7574, %v7504
        %v7576 = vpop.permute.xlu0 %7575
        %7579 = vset.pattern.permute.xlu0 0
        %7580 = vperm.xlu0 %7579, %v7505
        %v7581 = vpop.permute.xlu0 %7580
        %7584 = vset.pattern.permute.xlu0 0
        %7585 = vperm.xlu0 %7584, %v7506
        %v7586 = vpop.permute.xlu0 %7585
        %7589 = vset.pattern.permute.xlu0 0
        %7590 = vperm.xlu0 %7589, %v7507
        %v7591 = vpop.permute.xlu0 %7590
        %7594 = vset.pattern.permute.xlu0 0
        %7595 = vperm.xlu0 %7594, %v7508
        %v7596 = vpop.permute.xlu0 %7595
        %7599 = vset.pattern.permute.xlu0 0
        %7600 = vperm.xlu0 %7599, %v7509
        %v7601 = vpop.permute.xlu0 %7600
        %7604 = vset.pattern.permute.xlu0 0
        %7605 = vperm.xlu0 %7604, %v7510
        %v7606 = vpop.permute.xlu0 %7605
        %7609 = vset.pattern.permute.xlu0 0
        %7610 = vperm.xlu0 %7609, %v7511
        %v7611 = vpop.permute.xlu0 %7610
        %7614 = vset.pattern.permute.xlu0 0
        %7615 = vperm.xlu0 %7614, %v7512
        %v7616 = vpop.permute.xlu0 %7615
        %7619 = vset.pattern.permute.xlu0 0
        %7620 = vperm.xlu0 %7619, %v7513
        %v7621 = vpop.permute.xlu0 %7620
        %7624 = vset.pattern.permute.xlu0 0
        %7625 = vperm.xlu0 %7624, %v7514
        %v7626 = vpop.permute.xlu0 %7625
        %7629 = vset.pattern.permute.xlu0 0
        %7630 = vperm.xlu0 %7629, %v7515
        %v7631 = vpop.permute.xlu0 %7630
        %7634 = vset.pattern.permute.xlu0 0
        %7635 = vperm.xlu0 %7634, %v7516
        %v7636 = vpop.permute.xlu0 %7635
        %7639 = vset.pattern.permute.xlu0 0
        %7640 = vperm.xlu0 %7639, %v7517
        %v7641 = vpop.permute.xlu0 %7640
        %7644 = vset.pattern.permute.xlu0 0
        %7645 = vperm.xlu0 %7644, %v7518
        %v7646 = vpop.permute.xlu0 %7645
        %7649 = vset.pattern.permute.xlu0 0
        %7650 = vperm.xlu0 %7649, %v7519
        %v7651 = vpop.permute.xlu0 %7650
        %7654 = vset.pattern.permute.xlu0 0
        %7655 = vperm.xlu0 %7654, %v7520
        %v7656 = vpop.permute.xlu0 %7655
        %7659 = vset.pattern.permute.xlu0 0
        %7660 = vperm.xlu0 %7659, %v7521
        %v7661 = vpop.permute.xlu0 %7660
        %7664 = vset.pattern.permute.xlu0 0
        %7665 = vperm.xlu0 %7664, %v7522
        %v7666 = vpop.permute.xlu0 %7665
        %7669 = vset.pattern.permute.xlu0 0
        %7670 = vperm.xlu0 %7669, %v7523
        %v7671 = vpop.permute.xlu0 %7670
        %7674 = vset.pattern.permute.xlu0 0
        %7675 = vperm.xlu0 %7674, %v7524
        %v7676 = vpop.permute.xlu0 %7675
        %7679 = vset.pattern.permute.xlu0 0
        %7680 = vperm.xlu0 %7679, %v7525
        %v7681 = vpop.permute.xlu0 %7680
        %7684 = vset.pattern.permute.xlu0 0
        %7685 = vperm.xlu0 %7684, %v7526
        %v7686 = vpop.permute.xlu0 %7685
        %7689 = vset.pattern.permute.xlu0 0
        %7690 = vperm.xlu0 %7689, %v7527
        %v7691 = vpop.permute.xlu0 %7690
        %7694 = vset.pattern.permute.xlu0 0
        %7695 = vperm.xlu0 %7694, %v7528
        %v7696 = vpop.permute.xlu0 %7695
        %7699 = vset.pattern.permute.xlu0 0
        %7700 = vperm.xlu0 %7699, %v7529
        %v7701 = vpop.permute.xlu0 %7700
        %7704 = vset.pattern.permute.xlu0 0
        %7705 = vperm.xlu0 %7704, %v7530
        %v7706 = vpop.permute.xlu0 %7705
        %7709 = vset.pattern.permute.xlu0 0
        %7710 = vperm.xlu0 %7709, %v7531
        %v7711 = vpop.permute.xlu0 %7710
        %7714 = vset.pattern.permute.xlu0 0
        %7715 = vperm.xlu0 %7714, %v7532
        %v7716 = vpop.permute.xlu0 %7715
        %7719 = vset.pattern.permute.xlu0 0
        %7720 = vperm.xlu0 %7719, %v7533
        %v7721 = vpop.permute.xlu0 %7720
        %7724 = vset.pattern.permute.xlu0 0
        %7725 = vperm.xlu0 %7724, %v7534
        %v7726 = vpop.permute.xlu0 %7725
        %7729 = vset.pattern.permute.xlu0 0
        %7730 = vperm.xlu0 %7729, %v7535
        %v7731 = vpop.permute.xlu0 %7730
        %7734 = vset.pattern.permute.xlu0 0
        %7735 = vperm.xlu0 %7734, %v7536
        %v7736 = vpop.permute.xlu0 %7735
        %7739 = vset.pattern.permute.xlu0 0
        %7740 = vperm.xlu0 %7739, %v7537
        %v7741 = vpop.permute.xlu0 %7740
        %7744 = vset.pattern.permute.xlu0 0
        %7745 = vperm.xlu0 %7744, %v7538
        %v7746 = vpop.permute.xlu0 %7745
        %7749 = vset.pattern.permute.xlu0 0
        %7750 = vperm.xlu0 %7749, %v7539
        %v7751 = vpop.permute.xlu0 %7750
        %7754 = vset.pattern.permute.xlu0 0
        %7755 = vperm.xlu0 %7754, %v7540
        %v7756 = vpop.permute.xlu0 %7755
        %7759 = vset.pattern.permute.xlu0 0
        %7760 = vperm.xlu0 %7759, %v7541
        %v7761 = vpop.permute.xlu0 %7760
        %7764 = vset.pattern.permute.xlu0 0
        %7765 = vperm.xlu0 %7764, %v7542
        %v7766 = vpop.permute.xlu0 %7765
        %7769 = vset.pattern.permute.xlu0 0
        %7770 = vperm.xlu0 %7769, %v7543
        %v7771 = vpop.permute.xlu0 %7770
        %7774 = vset.pattern.permute.xlu0 0
        %7775 = vperm.xlu0 %7774, %v7544
        %v7776 = vpop.permute.xlu0 %7775
        %7779 = vset.pattern.permute.xlu0 0
        %7780 = vperm.xlu0 %7779, %v7545
        %v7781 = vpop.permute.xlu0 %7780
        %7784 = vset.pattern.permute.xlu0 0
        %7785 = vperm.xlu0 %7784, %v7546
        %v7786 = vpop.permute.xlu0 %7785
        %7789 = vset.pattern.permute.xlu0 0
        %7790 = vperm.xlu0 %7789, %v7547
        %v7791 = vpop.permute.xlu0 %7790
        %7794 = vset.pattern.permute.xlu0 0
        %7795 = vperm.xlu0 %7794, %v7548
        %v7796 = vpop.permute.xlu0 %7795
        %7799 = vset.pattern.permute.xlu0 0
        %7800 = vperm.xlu0 %7799, %v7549
        %v7801 = vpop.permute.xlu0 %7800
        %7804 = vset.pattern.permute.xlu0 0
        %7805 = vperm.xlu0 %7804, %v7550
        %v7806 = vpop.permute.xlu0 %7805
        %7809 = vset.pattern.permute.xlu0 0
        %7810 = vperm.xlu0 %7809, %v7551
        %v7811 = vpop.permute.xlu0 %7810
        %7814 = vset.pattern.permute.xlu0 0
        %7815 = vperm.xlu0 %7814, %v7552
        %v7816 = vpop.permute.xlu0 %7815
        %7819 = vset.pattern.permute.xlu0 0
        %7820 = vperm.xlu0 %7819, %v7553
        %v7821 = vpop.permute.xlu0 %7820
        %7824 = vset.pattern.permute.xlu0 0
        %7825 = vperm.xlu0 %7824, %v7554
        %v7826 = vpop.permute.xlu0 %7825
        %7829 = vset.pattern.permute.xlu0 0
        %7830 = vperm.xlu0 %7829, %v7555
        %v7831 = vpop.permute.xlu0 %7830
        %7834 = vset.pattern.permute.xlu0 0
        %7835 = vperm.xlu0 %7834, %v7556
        %v7836 = vpop.permute.xlu0 %7835
        %7839 = vset.pattern.permute.xlu0 0
        %7840 = vperm.xlu0 %7839, %v7557
        %v7841 = vpop.permute.xlu0 %7840
        %7844 = vset.pattern.permute.xlu0 0
        %7845 = vperm.xlu0 %7844, %v7558
        %v7846 = vpop.permute.xlu0 %7845
        %7849 = vset.pattern.permute.xlu0 0
        %7850 = vperm.xlu0 %7849, %v7559
        %v7851 = vpop.permute.xlu0 %7850
        %7854 = vset.pattern.permute.xlu0 0
        %7855 = vperm.xlu0 %7854, %v7560
        %v7856 = vpop.permute.xlu0 %7855
        %7859 = vset.pattern.permute.xlu0 0
        %7860 = vperm.xlu0 %7859, %v7561
        %v7861 = vpop.permute.xlu0 %7860
        %7864 = vset.pattern.permute.xlu0 0
        %7865 = vperm.xlu0 %7864, %v7562
        %v7866 = vpop.permute.xlu0 %7865
        %7869 = vset.pattern.permute.xlu0 0
        %7870 = vperm.xlu0 %7869, %v7563
        %v7871 = vpop.permute.xlu0 %7870
        %7874 = vset.pattern.permute.xlu0 0
        %7875 = vperm.xlu0 %7874, %v7564
        %v7876 = vpop.permute.xlu0 %7875
        %7879 = vset.pattern.permute.xlu0 0
        %7880 = vperm.xlu0 %7879, %v7565
        %v7881 = vpop.permute.xlu0 %7880
        %7884 = vset.pattern.permute.xlu0 0
        %7885 = vperm.xlu0 %7884, %v7566
        %v7886 = vpop.permute.xlu0 %7885
        %v7888 = vadd.f32 %v3204, %v7571
        %v7889 = vadd.f32 %v3207, %v7576
        %v7890 = vadd.f32 %v3212, %v7581
        %v7891 = vadd.f32 %v3215, %v7586
        %v7892 = vadd.f32 %v3220, %v7591
        %v7893 = vadd.f32 %v3223, %v7596
        %v7894 = vadd.f32 %v3228, %v7601
        %v7895 = vadd.f32 %v3231, %v7606
        %v7896 = vadd.f32 %v3236, %v7611
        %v7897 = vadd.f32 %v3239, %v7616
        %v7898 = vadd.f32 %v3244, %v7621
        %v7899 = vadd.f32 %v3247, %v7626
        %v7900 = vadd.f32 %v3252, %v7631
        %v7901 = vadd.f32 %v3255, %v7636
        %v7902 = vadd.f32 %v3260, %v7641
        %v7903 = vadd.f32 %v3263, %v7646
        %v7904 = vadd.f32 %v3268, %v7651
        %v7905 = vadd.f32 %v3271, %v7656
        %v7906 = vadd.f32 %v3276, %v7661
        %v7907 = vadd.f32 %v3279, %v7666
        %v7908 = vadd.f32 %v3284, %v7671
        %v7909 = vadd.f32 %v3287, %v7676
        %v7910 = vadd.f32 %v3292, %v7681
        %v7911 = vadd.f32 %v3295, %v7686
        %v7912 = vadd.f32 %v3300, %v7691
        %v7913 = vadd.f32 %v3303, %v7696
        %v7914 = vadd.f32 %v3308, %v7701
        %v7915 = vadd.f32 %v3311, %v7706
        %v7916 = vadd.f32 %v3316, %v7711
        %v7917 = vadd.f32 %v3319, %v7716
        %v7918 = vadd.f32 %v3324, %v7721
        %v7919 = vadd.f32 %v3327, %v7726
        %v7920 = vadd.f32 %v3332, %v7731
        %v7921 = vadd.f32 %v3335, %v7736
        %v7922 = vadd.f32 %v3340, %v7741
        %v7923 = vadd.f32 %v3343, %v7746
        %v7924 = vadd.f32 %v3348, %v7751
        %v7925 = vadd.f32 %v3351, %v7756
        %v7926 = vadd.f32 %v3356, %v7761
        %v7927 = vadd.f32 %v3359, %v7766
        %v7928 = vadd.f32 %v3364, %v7771
        %v7929 = vadd.f32 %v3367, %v7776
        %v7930 = vadd.f32 %v3372, %v7781
        %v7931 = vadd.f32 %v3375, %v7786
        %v7932 = vadd.f32 %v3380, %v7791
        %v7933 = vadd.f32 %v3383, %v7796
        %v7934 = vadd.f32 %v3388, %v7801
        %v7935 = vadd.f32 %v3391, %v7806
        %v7936 = vadd.f32 %v3396, %v7811
        %v7937 = vadd.f32 %v3399, %v7816
        %v7938 = vadd.f32 %v3404, %v7821
        %v7939 = vadd.f32 %v3407, %v7826
        %v7940 = vadd.f32 %v3412, %v7831
        %v7941 = vadd.f32 %v3415, %v7836
        %v7942 = vadd.f32 %v3420, %v7841
        %v7943 = vadd.f32 %v3423, %v7846
        %v7944 = vadd.f32 %v3428, %v7851
        %v7945 = vadd.f32 %v3431, %v7856
        %v7946 = vadd.f32 %v3436, %v7861
        %v7947 = vadd.f32 %v3439, %v7866
        %v7948 = vadd.f32 %v3444, %v7871
        %v7949 = vadd.f32 %v3447, %v7876
        %v7950 = vadd.f32 %v3452, %v7881
        %v7951 = vadd.f32 %v3455, %v7886
        %v7952 = vmax.f32 %v7888, 0.0
        %v7953 = vmax.f32 %v7889, 0.0
        %v7954 = vmax.f32 %v7890, 0.0
        %v7955 = vmax.f32 %v7891, 0.0
        %v7956 = vmax.f32 %v7892, 0.0
        %v7957 = vmax.f32 %v7893, 0.0
        %v7958 = vmax.f32 %v7894, 0.0
        %v7959 = vmax.f32 %v7895, 0.0
        %v7960 = vmax.f32 %v7896, 0.0
        %v7961 = vmax.f32 %v7897, 0.0
        %v7962 = vmax.f32 %v7898, 0.0
        %v7963 = vmax.f32 %v7899, 0.0
        %v7964 = vmax.f32 %v7900, 0.0
        %v7965 = vmax.f32 %v7901, 0.0
        %v7966 = vmax.f32 %v7902, 0.0
        %v7967 = vmax.f32 %v7903, 0.0
        %v7968 = vmax.f32 %v7904, 0.0
        %v7969 = vmax.f32 %v7905, 0.0
        %v7970 = vmax.f32 %v7906, 0.0
        %v7971 = vmax.f32 %v7907, 0.0
        %v7972 = vmax.f32 %v7908, 0.0
        %v7973 = vmax.f32 %v7909, 0.0
        %v7974 = vmax.f32 %v7910, 0.0
        %v7975 = vmax.f32 %v7911, 0.0
        %v7976 = vmax.f32 %v7912, 0.0
        %v7977 = vmax.f32 %v7913, 0.0
        %v7978 = vmax.f32 %v7914, 0.0
        %v7979 = vmax.f32 %v7915, 0.0
        %v7980 = vmax.f32 %v7916, 0.0
        %v7981 = vmax.f32 %v7917, 0.0
        %v7982 = vmax.f32 %v7918, 0.0
        %v7983 = vmax.f32 %v7919, 0.0
        %v7984 = vmax.f32 %v7920, 0.0
        %v7985 = vmax.f32 %v7921, 0.0
        %v7986 = vmax.f32 %v7922, 0.0
        %v7987 = vmax.f32 %v7923, 0.0
        %v7988 = vmax.f32 %v7924, 0.0
        %v7989 = vmax.f32 %v7925, 0.0
        %v7990 = vmax.f32 %v7926, 0.0
        %v7991 = vmax.f32 %v7927, 0.0
        %v7992 = vmax.f32 %v7928, 0.0
        %v7993 = vmax.f32 %v7929, 0.0
        %v7994 = vmax.f32 %v7930, 0.0
        %v7995 = vmax.f32 %v7931, 0.0
        %v7996 = vmax.f32 %v7932, 0.0
        %v7997 = vmax.f32 %v7933, 0.0
        %v7998 = vmax.f32 %v7934, 0.0
        %v7999 = vmax.f32 %v7935, 0.0
        %v8000 = vmax.f32 %v7936, 0.0
        %v8001 = vmax.f32 %v7937, 0.0
        %v8002 = vmax.f32 %v7938, 0.0
        %v8003 = vmax.f32 %v7939, 0.0
        %v8004 = vmax.f32 %v7940, 0.0
        %v8005 = vmax.f32 %v7941, 0.0
        %v8006 = vmax.f32 %v7942, 0.0
        %v8007 = vmax.f32 %v7943, 0.0
        %v8008 = vmax.f32 %v7944, 0.0
        %v8009 = vmax.f32 %v7945, 0.0
        %v8010 = vmax.f32 %v7946, 0.0
        %v8011 = vmax.f32 %v7947, 0.0
        %v8012 = vmax.f32 %v7948, 0.0
        %v8013 = vmax.f32 %v7949, 0.0
        %v8014 = vmax.f32 %v7950, 0.0
        %v8015 = vmax.f32 %v7951, 0.0
        %v8016 = vpack.c.bf16 %v7953, %v7952
        %v8017 = vpack.c.bf16 %v7955, %v7954
        %v8018 = vpack.c.bf16 %v7957, %v7956
        %v8019 = vpack.c.bf16 %v7959, %v7958
        %v8020 = vpack.c.bf16 %v7961, %v7960
        %v8021 = vpack.c.bf16 %v7963, %v7962
        %v8022 = vpack.c.bf16 %v7965, %v7964
        %v8023 = vpack.c.bf16 %v7967, %v7966
        %v8024 = vpack.c.bf16 %v7969, %v7968
        %v8025 = vpack.c.bf16 %v7971, %v7970
        %v8026 = vpack.c.bf16 %v7973, %v7972
        %v8027 = vpack.c.bf16 %v7975, %v7974
        %v8028 = vpack.c.bf16 %v7977, %v7976
        %v8029 = vpack.c.bf16 %v7979, %v7978
        %v8030 = vpack.c.bf16 %v7981, %v7980
        %v8031 = vpack.c.bf16 %v7983, %v7982
        %v8032 = vpack.c.bf16 %v7985, %v7984
        %v8033 = vpack.c.bf16 %v7987, %v7986
        %v8034 = vpack.c.bf16 %v7989, %v7988
        %v8035 = vpack.c.bf16 %v7991, %v7990
        %v8036 = vpack.c.bf16 %v7993, %v7992
        %v8037 = vpack.c.bf16 %v7995, %v7994
        %v8038 = vpack.c.bf16 %v7997, %v7996
        %v8039 = vpack.c.bf16 %v7999, %v7998
        %v8040 = vpack.c.bf16 %v8001, %v8000
        %v8041 = vpack.c.bf16 %v8003, %v8002
        %v8042 = vpack.c.bf16 %v8005, %v8004
        %v8043 = vpack.c.bf16 %v8007, %v8006
        %v8044 = vpack.c.bf16 %v8009, %v8008
        %v8045 = vpack.c.bf16 %v8011, %v8010
        %v8046 = vpack.c.bf16 %v8013, %v8012
        %v8047 = vpack.c.bf16 %v8015, %v8014
        %s8048 = scalar_lea.vmem [#allocation3], 1024
        %v8049 = vld [vmem:[%s8048] sm:$0xff]
        %v8050 = vld [vmem:[%s8048 + $0x8] sm:$0xff]
        %v8051 = vld [vmem:[%s8048 + $0x10] sm:$0xff]
        %v8052 = vld [vmem:[%s8048 + $0x18] sm:$0xff]
        %v8053 = vld [vmem:[%s8048 + $0x20] sm:$0xff]
        %v8054 = vld [vmem:[%s8048 + $0x28] sm:$0xff]
        %v8055 = vld [vmem:[%s8048 + $0x30] sm:$0xff]
        %v8056 = vld [vmem:[%s8048 + $0x38] sm:$0xff]
        %v8057 = vld [vmem:[%s8048 + $0x40] sm:$0xff]
        %v8058 = vld [vmem:[%s8048 + $0x48] sm:$0xff]
        %v8059 = vld [vmem:[%s8048 + $0x50] sm:$0xff]
        %v8060 = vld [vmem:[%s8048 + $0x58] sm:$0xff]
        %v8061 = vld [vmem:[%s8048 + $0x60] sm:$0xff]
        %v8062 = vld [vmem:[%s8048 + $0x68] sm:$0xff]
        %v8063 = vld [vmem:[%s8048 + $0x70] sm:$0xff]
        %v8064 = vld [vmem:[%s8048 + $0x78] sm:$0xff]
        %v8065 = vld [vmem:[%s8048 + $0x80] sm:$0xff]
        %v8066 = vld [vmem:[%s8048 + $0x88] sm:$0xff]
        %v8067 = vld [vmem:[%s8048 + $0x90] sm:$0xff]
        %v8068 = vld [vmem:[%s8048 + $0x98] sm:$0xff]
        %v8069 = vld [vmem:[%s8048 + $0xa0] sm:$0xff]
        %v8070 = vld [vmem:[%s8048 + $0xa8] sm:$0xff]
        %v8071 = vld [vmem:[%s8048 + $0xb0] sm:$0xff]
        %v8072 = vld [vmem:[%s8048 + $0xb8] sm:$0xff]
        %v8073 = vld [vmem:[%s8048 + $0xc0] sm:$0xff]
        %v8074 = vld [vmem:[%s8048 + $0xc8] sm:$0xff]
        %v8075 = vld [vmem:[%s8048 + $0xd0] sm:$0xff]
        %v8076 = vld [vmem:[%s8048 + $0xd8] sm:$0xff]
        %v8077 = vld [vmem:[%s8048 + $0xe0] sm:$0xff]
        %v8078 = vld [vmem:[%s8048 + $0xe8] sm:$0xff]
        %v8079 = vld [vmem:[%s8048 + $0xf0] sm:$0xff]
        %v8080 = vld [vmem:[%s8048 + $0xf8] sm:$0xff]
        %v8081 = vld [vmem:[%s8048 + $0x100] sm:$0xff]
        %v8082 = vld [vmem:[%s8048 + $0x108] sm:$0xff]
        %v8083 = vld [vmem:[%s8048 + $0x110] sm:$0xff]
        %v8084 = vld [vmem:[%s8048 + $0x118] sm:$0xff]
        %v8085 = vld [vmem:[%s8048 + $0x120] sm:$0xff]
        %v8086 = vld [vmem:[%s8048 + $0x128] sm:$0xff]
        %v8087 = vld [vmem:[%s8048 + $0x130] sm:$0xff]
        %v8088 = vld [vmem:[%s8048 + $0x138] sm:$0xff]
        %v8089 = vld [vmem:[%s8048 + $0x140] sm:$0xff]
        %v8090 = vld [vmem:[%s8048 + $0x148] sm:$0xff]
        %v8091 = vld [vmem:[%s8048 + $0x150] sm:$0xff]
        %v8092 = vld [vmem:[%s8048 + $0x158] sm:$0xff]
        %v8093 = vld [vmem:[%s8048 + $0x160] sm:$0xff]
        %v8094 = vld [vmem:[%s8048 + $0x168] sm:$0xff]
        %v8095 = vld [vmem:[%s8048 + $0x170] sm:$0xff]
        %v8096 = vld [vmem:[%s8048 + $0x178] sm:$0xff]
        %v8097 = vld [vmem:[%s8048 + $0x180] sm:$0xff]
        %v8098 = vld [vmem:[%s8048 + $0x188] sm:$0xff]
        %v8099 = vld [vmem:[%s8048 + $0x190] sm:$0xff]
        %v8100 = vld [vmem:[%s8048 + $0x198] sm:$0xff]
        %v8101 = vld [vmem:[%s8048 + $0x1a0] sm:$0xff]
        %v8102 = vld [vmem:[%s8048 + $0x1a8] sm:$0xff]
        %v8103 = vld [vmem:[%s8048 + $0x1b0] sm:$0xff]
        %v8104 = vld [vmem:[%s8048 + $0x1b8] sm:$0xff]
        %v8105 = vld [vmem:[%s8048 + $0x1c0] sm:$0xff]
        %v8106 = vld [vmem:[%s8048 + $0x1c8] sm:$0xff]
        %v8107 = vld [vmem:[%s8048 + $0x1d0] sm:$0xff]
        %v8108 = vld [vmem:[%s8048 + $0x1d8] sm:$0xff]
        %v8109 = vld [vmem:[%s8048 + $0x1e0] sm:$0xff]
        %v8110 = vld [vmem:[%s8048 + $0x1e8] sm:$0xff]
        %v8111 = vld [vmem:[%s8048 + $0x1f0] sm:$0xff]
        %v8112 = vld [vmem:[%s8048 + $0x1f8] sm:$0xff]
        %v8113 = vld [vmem:[%s8048 + $0x200] sm:$0xff]
        %v8114 = vld [vmem:[%s8048 + $0x208] sm:$0xff]
        %v8115 = vld [vmem:[%s8048 + $0x210] sm:$0xff]
        %v8116 = vld [vmem:[%s8048 + $0x218] sm:$0xff]
        %v8117 = vld [vmem:[%s8048 + $0x220] sm:$0xff]
        %v8118 = vld [vmem:[%s8048 + $0x228] sm:$0xff]
        %v8119 = vld [vmem:[%s8048 + $0x230] sm:$0xff]
        %v8120 = vld [vmem:[%s8048 + $0x238] sm:$0xff]
        %v8121 = vld [vmem:[%s8048 + $0x240] sm:$0xff]
        %v8122 = vld [vmem:[%s8048 + $0x248] sm:$0xff]
        %v8123 = vld [vmem:[%s8048 + $0x250] sm:$0xff]
        %v8124 = vld [vmem:[%s8048 + $0x258] sm:$0xff]
        %v8125 = vld [vmem:[%s8048 + $0x260] sm:$0xff]
        %v8126 = vld [vmem:[%s8048 + $0x268] sm:$0xff]
        %v8127 = vld [vmem:[%s8048 + $0x270] sm:$0xff]
        %v8128 = vld [vmem:[%s8048 + $0x278] sm:$0xff]
        %v8129 = vld [vmem:[%s8048 + $0x280] sm:$0xff]
        %v8130 = vld [vmem:[%s8048 + $0x288] sm:$0xff]
        %v8131 = vld [vmem:[%s8048 + $0x290] sm:$0xff]
        %v8132 = vld [vmem:[%s8048 + $0x298] sm:$0xff]
        %v8133 = vld [vmem:[%s8048 + $0x2a0] sm:$0xff]
        %v8134 = vld [vmem:[%s8048 + $0x2a8] sm:$0xff]
        %v8135 = vld [vmem:[%s8048 + $0x2b0] sm:$0xff]
        %v8136 = vld [vmem:[%s8048 + $0x2b8] sm:$0xff]
        %v8137 = vld [vmem:[%s8048 + $0x2c0] sm:$0xff]
        %v8138 = vld [vmem:[%s8048 + $0x2c8] sm:$0xff]
        %v8139 = vld [vmem:[%s8048 + $0x2d0] sm:$0xff]
        %v8140 = vld [vmem:[%s8048 + $0x2d8] sm:$0xff]
        %v8141 = vld [vmem:[%s8048 + $0x2e0] sm:$0xff]
        %v8142 = vld [vmem:[%s8048 + $0x2e8] sm:$0xff]
        %v8143 = vld [vmem:[%s8048 + $0x2f0] sm:$0xff]
        %v8144 = vld [vmem:[%s8048 + $0x2f8] sm:$0xff]
        %v8145 = vld [vmem:[%s8048 + $0x300] sm:$0xff]
        %v8146 = vld [vmem:[%s8048 + $0x308] sm:$0xff]
        %v8147 = vld [vmem:[%s8048 + $0x310] sm:$0xff]
        %v8148 = vld [vmem:[%s8048 + $0x318] sm:$0xff]
        %v8149 = vld [vmem:[%s8048 + $0x320] sm:$0xff]
        %v8150 = vld [vmem:[%s8048 + $0x328] sm:$0xff]
        %v8151 = vld [vmem:[%s8048 + $0x330] sm:$0xff]
        %v8152 = vld [vmem:[%s8048 + $0x338] sm:$0xff]
        %v8153 = vld [vmem:[%s8048 + $0x340] sm:$0xff]
        %v8154 = vld [vmem:[%s8048 + $0x348] sm:$0xff]
        %v8155 = vld [vmem:[%s8048 + $0x350] sm:$0xff]
        %v8156 = vld [vmem:[%s8048 + $0x358] sm:$0xff]
        %v8157 = vld [vmem:[%s8048 + $0x360] sm:$0xff]
        %v8158 = vld [vmem:[%s8048 + $0x368] sm:$0xff]
        %v8159 = vld [vmem:[%s8048 + $0x370] sm:$0xff]
        %v8160 = vld [vmem:[%s8048 + $0x378] sm:$0xff]
        %v8161 = vld [vmem:[%s8048 + $0x380] sm:$0xff]
        %v8162 = vld [vmem:[%s8048 + $0x388] sm:$0xff]
        %v8163 = vld [vmem:[%s8048 + $0x390] sm:$0xff]
        %v8164 = vld [vmem:[%s8048 + $0x398] sm:$0xff]
        %v8165 = vld [vmem:[%s8048 + $0x3a0] sm:$0xff]
        %v8166 = vld [vmem:[%s8048 + $0x3a8] sm:$0xff]
        %v8167 = vld [vmem:[%s8048 + $0x3b0] sm:$0xff]
        %v8168 = vld [vmem:[%s8048 + $0x3b8] sm:$0xff]
        %v8169 = vld [vmem:[%s8048 + $0x3c0] sm:$0xff]
        %v8170 = vld [vmem:[%s8048 + $0x3c8] sm:$0xff]
        %v8171 = vld [vmem:[%s8048 + $0x3d0] sm:$0xff]
        %v8172 = vld [vmem:[%s8048 + $0x3d8] sm:$0xff]
        %v8173 = vld [vmem:[%s8048 + $0x3e0] sm:$0xff]
        %v8174 = vld [vmem:[%s8048 + $0x3e8] sm:$0xff]
        %v8175 = vld [vmem:[%s8048 + $0x3f0] sm:$0xff]
        %v8176 = vld [vmem:[%s8048 + $0x3f8] sm:$0xff]
        %8177 = vset.pattern.permute.xlu0 1
        %8178 = vperm.xlu0 %8177, %v7503
        %v8179 = vpop.permute.xlu0 %8178
        %8181 = vset.pattern.permute.xlu0 1
        %8182 = vperm.xlu0 %8181, %v7504
        %v8183 = vpop.permute.xlu0 %8182
        %8185 = vset.pattern.permute.xlu0 1
        %8186 = vperm.xlu0 %8185, %v7505
        %v8187 = vpop.permute.xlu0 %8186
        %8189 = vset.pattern.permute.xlu0 1
        %8190 = vperm.xlu0 %8189, %v7506
        %v8191 = vpop.permute.xlu0 %8190
        %8193 = vset.pattern.permute.xlu0 1
        %8194 = vperm.xlu0 %8193, %v7507
        %v8195 = vpop.permute.xlu0 %8194
        %8197 = vset.pattern.permute.xlu0 1
        %8198 = vperm.xlu0 %8197, %v7508
        %v8199 = vpop.permute.xlu0 %8198
        %8201 = vset.pattern.permute.xlu0 1
        %8202 = vperm.xlu0 %8201, %v7509
        %v8203 = vpop.permute.xlu0 %8202
        %8205 = vset.pattern.permute.xlu0 1
        %8206 = vperm.xlu0 %8205, %v7510
        %v8207 = vpop.permute.xlu0 %8206
        %8209 = vset.pattern.permute.xlu0 1
        %8210 = vperm.xlu0 %8209, %v7511
        %v8211 = vpop.permute.xlu0 %8210
        %8213 = vset.pattern.permute.xlu0 1
        %8214 = vperm.xlu0 %8213, %v7512
        %v8215 = vpop.permute.xlu0 %8214
        %8217 = vset.pattern.permute.xlu0 1
        %8218 = vperm.xlu0 %8217, %v7513
        %v8219 = vpop.permute.xlu0 %8218
        %8221 = vset.pattern.permute.xlu0 1
        %8222 = vperm.xlu0 %8221, %v7514
        %v8223 = vpop.permute.xlu0 %8222
        %8225 = vset.pattern.permute.xlu0 1
        %8226 = vperm.xlu0 %8225, %v7515
        %v8227 = vpop.permute.xlu0 %8226
        %8229 = vset.pattern.permute.xlu0 1
        %8230 = vperm.xlu0 %8229, %v7516
        %v8231 = vpop.permute.xlu0 %8230
        %8233 = vset.pattern.permute.xlu0 1
        %8234 = vperm.xlu0 %8233, %v7517
        %v8235 = vpop.permute.xlu0 %8234
        %8237 = vset.pattern.permute.xlu0 1
        %8238 = vperm.xlu0 %8237, %v7518
        %v8239 = vpop.permute.xlu0 %8238
        %8241 = vset.pattern.permute.xlu0 1
        %8242 = vperm.xlu0 %8241, %v7519
        %v8243 = vpop.permute.xlu0 %8242
        %8245 = vset.pattern.permute.xlu0 1
        %8246 = vperm.xlu0 %8245, %v7520
        %v8247 = vpop.permute.xlu0 %8246
        %8249 = vset.pattern.permute.xlu0 1
        %8250 = vperm.xlu0 %8249, %v7521
        %v8251 = vpop.permute.xlu0 %8250
        %8253 = vset.pattern.permute.xlu0 1
        %8254 = vperm.xlu0 %8253, %v7522
        %v8255 = vpop.permute.xlu0 %8254
        %8257 = vset.pattern.permute.xlu0 1
        %8258 = vperm.xlu0 %8257, %v7523
        %v8259 = vpop.permute.xlu0 %8258
        %8261 = vset.pattern.permute.xlu0 1
        %8262 = vperm.xlu0 %8261, %v7524
        %v8263 = vpop.permute.xlu0 %8262
        %8265 = vset.pattern.permute.xlu0 1
        %8266 = vperm.xlu0 %8265, %v7525
        %v8267 = vpop.permute.xlu0 %8266
        %8269 = vset.pattern.permute.xlu0 1
        %8270 = vperm.xlu0 %8269, %v7526
        %v8271 = vpop.permute.xlu0 %8270
        %8273 = vset.pattern.permute.xlu0 1
        %8274 = vperm.xlu0 %8273, %v7527
        %v8275 = vpop.permute.xlu0 %8274
        %8277 = vset.pattern.permute.xlu0 1
        %8278 = vperm.xlu0 %8277, %v7528
        %v8279 = vpop.permute.xlu0 %8278
        %8281 = vset.pattern.permute.xlu0 1
        %8282 = vperm.xlu0 %8281, %v7529
        %v8283 = vpop.permute.xlu0 %8282
        %8285 = vset.pattern.permute.xlu0 1
        %8286 = vperm.xlu0 %8285, %v7530
        %v8287 = vpop.permute.xlu0 %8286
        %8289 = vset.pattern.permute.xlu0 1
        %8290 = vperm.xlu0 %8289, %v7531
        %v8291 = vpop.permute.xlu0 %8290
        %8293 = vset.pattern.permute.xlu0 1
        %8294 = vperm.xlu0 %8293, %v7532
        %v8295 = vpop.permute.xlu0 %8294
        %8297 = vset.pattern.permute.xlu0 1
        %8298 = vperm.xlu0 %8297, %v7533
        %v8299 = vpop.permute.xlu0 %8298
        %8301 = vset.pattern.permute.xlu0 1
        %8302 = vperm.xlu0 %8301, %v7534
        %v8303 = vpop.permute.xlu0 %8302
        %8305 = vset.pattern.permute.xlu0 1
        %8306 = vperm.xlu0 %8305, %v7535
        %v8307 = vpop.permute.xlu0 %8306
        %8309 = vset.pattern.permute.xlu0 1
        %8310 = vperm.xlu0 %8309, %v7536
        %v8311 = vpop.permute.xlu0 %8310
        %8313 = vset.pattern.permute.xlu0 1
        %8314 = vperm.xlu0 %8313, %v7537
        %v8315 = vpop.permute.xlu0 %8314
        %8317 = vset.pattern.permute.xlu0 1
        %8318 = vperm.xlu0 %8317, %v7538
        %v8319 = vpop.permute.xlu0 %8318
        %8321 = vset.pattern.permute.xlu0 1
        %8322 = vperm.xlu0 %8321, %v7539
        %v8323 = vpop.permute.xlu0 %8322
        %8325 = vset.pattern.permute.xlu0 1
        %8326 = vperm.xlu0 %8325, %v7540
        %v8327 = vpop.permute.xlu0 %8326
        %8329 = vset.pattern.permute.xlu0 1
        %8330 = vperm.xlu0 %8329, %v7541
        %v8331 = vpop.permute.xlu0 %8330
        %8333 = vset.pattern.permute.xlu0 1
        %8334 = vperm.xlu0 %8333, %v7542
        %v8335 = vpop.permute.xlu0 %8334
        %8337 = vset.pattern.permute.xlu0 1
        %8338 = vperm.xlu0 %8337, %v7543
        %v8339 = vpop.permute.xlu0 %8338
        %8341 = vset.pattern.permute.xlu0 1
        %8342 = vperm.xlu0 %8341, %v7544
        %v8343 = vpop.permute.xlu0 %8342
        %8345 = vset.pattern.permute.xlu0 1
        %8346 = vperm.xlu0 %8345, %v7545
        %v8347 = vpop.permute.xlu0 %8346
        %8349 = vset.pattern.permute.xlu0 1
        %8350 = vperm.xlu0 %8349, %v7546
        %v8351 = vpop.permute.xlu0 %8350
        %8353 = vset.pattern.permute.xlu0 1
        %8354 = vperm.xlu0 %8353, %v7547
        %v8355 = vpop.permute.xlu0 %8354
        %8357 = vset.pattern.permute.xlu0 1
        %8358 = vperm.xlu0 %8357, %v7548
        %v8359 = vpop.permute.xlu0 %8358
        %8361 = vset.pattern.permute.xlu0 1
        %8362 = vperm.xlu0 %8361, %v7549
        %v8363 = vpop.permute.xlu0 %8362
        %8365 = vset.pattern.permute.xlu0 1
        %8366 = vperm.xlu0 %8365, %v7550
        %v8367 = vpop.permute.xlu0 %8366
        %8369 = vset.pattern.permute.xlu0 1
        %8370 = vperm.xlu0 %8369, %v7551
        %v8371 = vpop.permute.xlu0 %8370
        %8373 = vset.pattern.permute.xlu0 1
        %8374 = vperm.xlu0 %8373, %v7552
        %v8375 = vpop.permute.xlu0 %8374
        %8377 = vset.pattern.permute.xlu0 1
        %8378 = vperm.xlu0 %8377, %v7553
        %v8379 = vpop.permute.xlu0 %8378
        %8381 = vset.pattern.permute.xlu0 1
        %8382 = vperm.xlu0 %8381, %v7554
        %v8383 = vpop.permute.xlu0 %8382
        %8385 = vset.pattern.permute.xlu0 1
        %8386 = vperm.xlu0 %8385, %v7555
        %v8387 = vpop.permute.xlu0 %8386
        %8389 = vset.pattern.permute.xlu0 1
        %8390 = vperm.xlu0 %8389, %v7556
        %v8391 = vpop.permute.xlu0 %8390
        %8393 = vset.pattern.permute.xlu0 1
        %8394 = vperm.xlu0 %8393, %v7557
        %v8395 = vpop.permute.xlu0 %8394
        %8397 = vset.pattern.permute.xlu0 1
        %8398 = vperm.xlu0 %8397, %v7558
        %v8399 = vpop.permute.xlu0 %8398
        %8401 = vset.pattern.permute.xlu0 1
        %8402 = vperm.xlu0 %8401, %v7559
        %v8403 = vpop.permute.xlu0 %8402
        %8405 = vset.pattern.permute.xlu0 1
        %8406 = vperm.xlu0 %8405, %v7560
        %v8407 = vpop.permute.xlu0 %8406
        %8409 = vset.pattern.permute.xlu0 1
        %8410 = vperm.xlu0 %8409, %v7561
        %v8411 = vpop.permute.xlu0 %8410
        %8413 = vset.pattern.permute.xlu0 1
        %8414 = vperm.xlu0 %8413, %v7562
        %v8415 = vpop.permute.xlu0 %8414
        %8417 = vset.pattern.permute.xlu0 1
        %8418 = vperm.xlu0 %8417, %v7563
        %v8419 = vpop.permute.xlu0 %8418
        %8421 = vset.pattern.permute.xlu0 1
        %8422 = vperm.xlu0 %8421, %v7564
        %v8423 = vpop.permute.xlu0 %8422
        %8425 = vset.pattern.permute.xlu0 1
        %8426 = vperm.xlu0 %8425, %v7565
        %v8427 = vpop.permute.xlu0 %8426
        %8429 = vset.pattern.permute.xlu0 1
        %8430 = vperm.xlu0 %8429, %v7566
        %v8431 = vpop.permute.xlu0 %8430
        %v8561 = vunpack.c.l.b16 %v8049
        %v8562 = vunpack.c.h.b16 %v8049
        %v8563 = vunpack.c.l.b16 %v8050
        %v8564 = vunpack.c.h.b16 %v8050
        %v8565 = vunpack.c.l.b16 %v8051
        %v8566 = vunpack.c.h.b16 %v8051
        %v8567 = vunpack.c.l.b16 %v8052
        %v8568 = vunpack.c.h.b16 %v8052
        %v8569 = vunpack.c.l.b16 %v8053
        %v8570 = vunpack.c.h.b16 %v8053
        %v8571 = vunpack.c.l.b16 %v8054
        %v8572 = vunpack.c.h.b16 %v8054
        %v8573 = vunpack.c.l.b16 %v8055
        %v8574 = vunpack.c.h.b16 %v8055
        %v8575 = vunpack.c.l.b16 %v8056
        %v8576 = vunpack.c.h.b16 %v8056
        %v8577 = vunpack.c.l.b16 %v8057
        %v8578 = vunpack.c.h.b16 %v8057
        %v8579 = vunpack.c.l.b16 %v8058
        %v8580 = vunpack.c.h.b16 %v8058
        %v8581 = vunpack.c.l.b16 %v8059
        %v8582 = vunpack.c.h.b16 %v8059
        %v8583 = vunpack.c.l.b16 %v8060
        %v8584 = vunpack.c.h.b16 %v8060
        %v8585 = vunpack.c.l.b16 %v8061
        %v8586 = vunpack.c.h.b16 %v8061
        %v8587 = vunpack.c.l.b16 %v8062
        %v8588 = vunpack.c.h.b16 %v8062
        %v8589 = vunpack.c.l.b16 %v8063
        %v8590 = vunpack.c.h.b16 %v8063
        %v8591 = vunpack.c.l.b16 %v8064
        %v8592 = vunpack.c.h.b16 %v8064
        %v8593 = vunpack.c.l.b16 %v8065
        %v8594 = vunpack.c.h.b16 %v8065
        %v8595 = vunpack.c.l.b16 %v8066
        %v8596 = vunpack.c.h.b16 %v8066
        %v8597 = vunpack.c.l.b16 %v8067
        %v8598 = vunpack.c.h.b16 %v8067
        %v8599 = vunpack.c.l.b16 %v8068
        %v8600 = vunpack.c.h.b16 %v8068
        %v8601 = vunpack.c.l.b16 %v8069
        %v8602 = vunpack.c.h.b16 %v8069
        %v8603 = vunpack.c.l.b16 %v8070
        %v8604 = vunpack.c.h.b16 %v8070
        %v8605 = vunpack.c.l.b16 %v8071
        %v8606 = vunpack.c.h.b16 %v8071
        %v8607 = vunpack.c.l.b16 %v8072
        %v8608 = vunpack.c.h.b16 %v8072
        %v8609 = vunpack.c.l.b16 %v8073
        %v8610 = vunpack.c.h.b16 %v8073
        %v8611 = vunpack.c.l.b16 %v8074
        %v8612 = vunpack.c.h.b16 %v8074
        %v8613 = vunpack.c.l.b16 %v8075
        %v8614 = vunpack.c.h.b16 %v8075
        %v8615 = vunpack.c.l.b16 %v8076
        %v8616 = vunpack.c.h.b16 %v8076
        %v8617 = vunpack.c.l.b16 %v8077
        %v8618 = vunpack.c.h.b16 %v8077
        %v8619 = vunpack.c.l.b16 %v8078
        %v8620 = vunpack.c.h.b16 %v8078
        %v8621 = vunpack.c.l.b16 %v8079
        %v8622 = vunpack.c.h.b16 %v8079
        %v8623 = vunpack.c.l.b16 %v8080
        %v8624 = vunpack.c.h.b16 %v8080
        %v8625 = vunpack.c.l.b16 %v8081
        %v8626 = vunpack.c.h.b16 %v8081
        %v8627 = vunpack.c.l.b16 %v8082
        %v8628 = vunpack.c.h.b16 %v8082
        %v8629 = vunpack.c.l.b16 %v8083
        %v8630 = vunpack.c.h.b16 %v8083
        %v8631 = vunpack.c.l.b16 %v8084
        %v8632 = vunpack.c.h.b16 %v8084
        %v8633 = vunpack.c.l.b16 %v8085
        %v8634 = vunpack.c.h.b16 %v8085
        %v8635 = vunpack.c.l.b16 %v8086
        %v8636 = vunpack.c.h.b16 %v8086
        %v8637 = vunpack.c.l.b16 %v8087
        %v8638 = vunpack.c.h.b16 %v8087
        %v8639 = vunpack.c.l.b16 %v8088
        %v8640 = vunpack.c.h.b16 %v8088
        %v8641 = vunpack.c.l.b16 %v8089
        %v8642 = vunpack.c.h.b16 %v8089
        %v8643 = vunpack.c.l.b16 %v8090
        %v8644 = vunpack.c.h.b16 %v8090
        %v8645 = vunpack.c.l.b16 %v8091
        %v8646 = vunpack.c.h.b16 %v8091
        %v8647 = vunpack.c.l.b16 %v8092
        %v8648 = vunpack.c.h.b16 %v8092
        %v8649 = vunpack.c.l.b16 %v8093
        %v8650 = vunpack.c.h.b16 %v8093
        %v8651 = vunpack.c.l.b16 %v8094
        %v8652 = vunpack.c.h.b16 %v8094
        %v8653 = vunpack.c.l.b16 %v8095
        %v8654 = vunpack.c.h.b16 %v8095
        %v8655 = vunpack.c.l.b16 %v8096
        %v8656 = vunpack.c.h.b16 %v8096
        %v8657 = vunpack.c.l.b16 %v8097
        %v8658 = vunpack.c.h.b16 %v8097
        %v8659 = vunpack.c.l.b16 %v8098
        %v8660 = vunpack.c.h.b16 %v8098
        %v8661 = vunpack.c.l.b16 %v8099
        %v8662 = vunpack.c.h.b16 %v8099
        %v8663 = vunpack.c.l.b16 %v8100
        %v8664 = vunpack.c.h.b16 %v8100
        %v8665 = vunpack.c.l.b16 %v8101
        %v8666 = vunpack.c.h.b16 %v8101
        %v8667 = vunpack.c.l.b16 %v8102
        %v8668 = vunpack.c.h.b16 %v8102
        %v8669 = vunpack.c.l.b16 %v8103
        %v8670 = vunpack.c.h.b16 %v8103
        %v8671 = vunpack.c.l.b16 %v8104
        %v8672 = vunpack.c.h.b16 %v8104
        %v8673 = vunpack.c.l.b16 %v8105
        %v8674 = vunpack.c.h.b16 %v8105
        %v8675 = vunpack.c.l.b16 %v8106
        %v8676 = vunpack.c.h.b16 %v8106
        %v8677 = vunpack.c.l.b16 %v8107
        %v8678 = vunpack.c.h.b16 %v8107
        %v8679 = vunpack.c.l.b16 %v8108
        %v8680 = vunpack.c.h.b16 %v8108
        %v8681 = vunpack.c.l.b16 %v8109
        %v8682 = vunpack.c.h.b16 %v8109
        %v8683 = vunpack.c.l.b16 %v8110
        %v8684 = vunpack.c.h.b16 %v8110
        %v8685 = vunpack.c.l.b16 %v8111
        %v8686 = vunpack.c.h.b16 %v8111
        %v8687 = vunpack.c.l.b16 %v8112
        %v8688 = vunpack.c.h.b16 %v8112
        %v8689 = vunpack.c.l.b16 %v8113
        %v8690 = vunpack.c.h.b16 %v8113
        %v8691 = vunpack.c.l.b16 %v8114
        %v8692 = vunpack.c.h.b16 %v8114
        %v8693 = vunpack.c.l.b16 %v8115
        %v8694 = vunpack.c.h.b16 %v8115
        %v8695 = vunpack.c.l.b16 %v8116
        %v8696 = vunpack.c.h.b16 %v8116
        %v8697 = vunpack.c.l.b16 %v8117
        %v8698 = vunpack.c.h.b16 %v8117
        %v8699 = vunpack.c.l.b16 %v8118
        %v8700 = vunpack.c.h.b16 %v8118
        %v8701 = vunpack.c.l.b16 %v8119
        %v8702 = vunpack.c.h.b16 %v8119
        %v8703 = vunpack.c.l.b16 %v8120
        %v8704 = vunpack.c.h.b16 %v8120
        %v8705 = vunpack.c.l.b16 %v8121
        %v8706 = vunpack.c.h.b16 %v8121
        %v8707 = vunpack.c.l.b16 %v8122
        %v8708 = vunpack.c.h.b16 %v8122
        %v8709 = vunpack.c.l.b16 %v8123
        %v8710 = vunpack.c.h.b16 %v8123
        %v8711 = vunpack.c.l.b16 %v8124
        %v8712 = vunpack.c.h.b16 %v8124
        %v8713 = vunpack.c.l.b16 %v8125
        %v8714 = vunpack.c.h.b16 %v8125
        %v8715 = vunpack.c.l.b16 %v8126
        %v8716 = vunpack.c.h.b16 %v8126
        %v8717 = vunpack.c.l.b16 %v8127
        %v8718 = vunpack.c.h.b16 %v8127
        %v8719 = vunpack.c.l.b16 %v8128
        %v8720 = vunpack.c.h.b16 %v8128
        %v8721 = vunpack.c.l.b16 %v8129
        %v8722 = vunpack.c.h.b16 %v8129
        %v8723 = vunpack.c.l.b16 %v8130
        %v8724 = vunpack.c.h.b16 %v8130
        %v8725 = vunpack.c.l.b16 %v8131
        %v8726 = vunpack.c.h.b16 %v8131
        %v8727 = vunpack.c.l.b16 %v8132
        %v8728 = vunpack.c.h.b16 %v8132
        %v8729 = vunpack.c.l.b16 %v8133
        %v8730 = vunpack.c.h.b16 %v8133
        %v8731 = vunpack.c.l.b16 %v8134
        %v8732 = vunpack.c.h.b16 %v8134
        %v8733 = vunpack.c.l.b16 %v8135
        %v8734 = vunpack.c.h.b16 %v8135
        %v8735 = vunpack.c.l.b16 %v8136
        %v8736 = vunpack.c.h.b16 %v8136
        %v8737 = vunpack.c.l.b16 %v8137
        %v8738 = vunpack.c.h.b16 %v8137
        %v8739 = vunpack.c.l.b16 %v8138
        %v8740 = vunpack.c.h.b16 %v8138
        %v8741 = vunpack.c.l.b16 %v8139
        %v8742 = vunpack.c.h.b16 %v8139
        %v8743 = vunpack.c.l.b16 %v8140
        %v8744 = vunpack.c.h.b16 %v8140
        %v8745 = vunpack.c.l.b16 %v8141
        %v8746 = vunpack.c.h.b16 %v8141
        %v8747 = vunpack.c.l.b16 %v8142
        %v8748 = vunpack.c.h.b16 %v8142
        %v8749 = vunpack.c.l.b16 %v8143
        %v8750 = vunpack.c.h.b16 %v8143
        %v8751 = vunpack.c.l.b16 %v8144
        %v8752 = vunpack.c.h.b16 %v8144
        %v8753 = vunpack.c.l.b16 %v8145
        %v8754 = vunpack.c.h.b16 %v8145
        %v8755 = vunpack.c.l.b16 %v8146
        %v8756 = vunpack.c.h.b16 %v8146
        %v8757 = vunpack.c.l.b16 %v8147
        %v8758 = vunpack.c.h.b16 %v8147
        %v8759 = vunpack.c.l.b16 %v8148
        %v8760 = vunpack.c.h.b16 %v8148
        %v8761 = vunpack.c.l.b16 %v8149
        %v8762 = vunpack.c.h.b16 %v8149
        %v8763 = vunpack.c.l.b16 %v8150
        %v8764 = vunpack.c.h.b16 %v8150
        %v8765 = vunpack.c.l.b16 %v8151
        %v8766 = vunpack.c.h.b16 %v8151
        %v8767 = vunpack.c.l.b16 %v8152
        %v8768 = vunpack.c.h.b16 %v8152
        %v8769 = vunpack.c.l.b16 %v8153
        %v8770 = vunpack.c.h.b16 %v8153
        %v8771 = vunpack.c.l.b16 %v8154
        %v8772 = vunpack.c.h.b16 %v8154
        %v8773 = vunpack.c.l.b16 %v8155
        %v8774 = vunpack.c.h.b16 %v8155
        %v8775 = vunpack.c.l.b16 %v8156
        %v8776 = vunpack.c.h.b16 %v8156
        %v8777 = vunpack.c.l.b16 %v8157
        %v8778 = vunpack.c.h.b16 %v8157
        %v8779 = vunpack.c.l.b16 %v8158
        %v8780 = vunpack.c.h.b16 %v8158
        %v8781 = vunpack.c.l.b16 %v8159
        %v8782 = vunpack.c.h.b16 %v8159
        %v8783 = vunpack.c.l.b16 %v8160
        %v8784 = vunpack.c.h.b16 %v8160
        %v8785 = vunpack.c.l.b16 %v8161
        %v8786 = vunpack.c.h.b16 %v8161
        %v8787 = vunpack.c.l.b16 %v8162
        %v8788 = vunpack.c.h.b16 %v8162
        %v8789 = vunpack.c.l.b16 %v8163
        %v8790 = vunpack.c.h.b16 %v8163
        %v8791 = vunpack.c.l.b16 %v8164
        %v8792 = vunpack.c.h.b16 %v8164
        %v8793 = vunpack.c.l.b16 %v8165
        %v8794 = vunpack.c.h.b16 %v8165
        %v8795 = vunpack.c.l.b16 %v8166
        %v8796 = vunpack.c.h.b16 %v8166
        %v8797 = vunpack.c.l.b16 %v8167
        %v8798 = vunpack.c.h.b16 %v8167
        %v8799 = vunpack.c.l.b16 %v8168
        %v8800 = vunpack.c.h.b16 %v8168
        %v8801 = vunpack.c.l.b16 %v8169
        %v8802 = vunpack.c.h.b16 %v8169
        %v8803 = vunpack.c.l.b16 %v8170
        %v8804 = vunpack.c.h.b16 %v8170
        %v8805 = vunpack.c.l.b16 %v8171
        %v8806 = vunpack.c.h.b16 %v8171
        %v8807 = vunpack.c.l.b16 %v8172
        %v8808 = vunpack.c.h.b16 %v8172
        %v8809 = vunpack.c.l.b16 %v8173
        %v8810 = vunpack.c.h.b16 %v8173
        %v8811 = vunpack.c.l.b16 %v8174
        %v8812 = vunpack.c.h.b16 %v8174
        %v8813 = vunpack.c.l.b16 %v8175
        %v8814 = vunpack.c.h.b16 %v8175
        %v8815 = vunpack.c.l.b16 %v8176
        %v8816 = vunpack.c.h.b16 %v8176
        %v8817 = vpack.c.b16 %v8565, %v8561
        %v8818 = vpack.c.b16 %v8566, %v8562
        %v8819 = vpack.c.b16 %v8567, %v8563
        %v8820 = vpack.c.b16 %v8568, %v8564
        %v8821 = vpack.c.b16 %v8573, %v8569
        %v8822 = vpack.c.b16 %v8574, %v8570
        %v8823 = vpack.c.b16 %v8575, %v8571
        %v8824 = vpack.c.b16 %v8576, %v8572
        %v8825 = vpack.c.b16 %v8581, %v8577
        %v8826 = vpack.c.b16 %v8582, %v8578
        %v8827 = vpack.c.b16 %v8583, %v8579
        %v8828 = vpack.c.b16 %v8584, %v8580
        %v8829 = vpack.c.b16 %v8589, %v8585
        %v8830 = vpack.c.b16 %v8590, %v8586
        %v8831 = vpack.c.b16 %v8591, %v8587
        %v8832 = vpack.c.b16 %v8592, %v8588
        %v8833 = vpack.c.b16 %v8597, %v8593
        %v8834 = vpack.c.b16 %v8598, %v8594
        %v8835 = vpack.c.b16 %v8599, %v8595
        %v8836 = vpack.c.b16 %v8600, %v8596
        %v8837 = vpack.c.b16 %v8605, %v8601
        %v8838 = vpack.c.b16 %v8606, %v8602
        %v8839 = vpack.c.b16 %v8607, %v8603
        %v8840 = vpack.c.b16 %v8608, %v8604
        %v8841 = vpack.c.b16 %v8613, %v8609
        %v8842 = vpack.c.b16 %v8614, %v8610
        %v8843 = vpack.c.b16 %v8615, %v8611
        %v8844 = vpack.c.b16 %v8616, %v8612
        %v8845 = vpack.c.b16 %v8621, %v8617
        %v8846 = vpack.c.b16 %v8622, %v8618
        %v8847 = vpack.c.b16 %v8623, %v8619
        %v8848 = vpack.c.b16 %v8624, %v8620
        %v8849 = vpack.c.b16 %v8629, %v8625
        %v8850 = vpack.c.b16 %v8630, %v8626
        %v8851 = vpack.c.b16 %v8631, %v8627
        %v8852 = vpack.c.b16 %v8632, %v8628
        %v8853 = vpack.c.b16 %v8637, %v8633
        %v8854 = vpack.c.b16 %v8638, %v8634
        %v8855 = vpack.c.b16 %v8639, %v8635
        %v8856 = vpack.c.b16 %v8640, %v8636
        %v8857 = vpack.c.b16 %v8645, %v8641
        %v8858 = vpack.c.b16 %v8646, %v8642
        %v8859 = vpack.c.b16 %v8647, %v8643
        %v8860 = vpack.c.b16 %v8648, %v8644
        %v8861 = vpack.c.b16 %v8653, %v8649
        %v8862 = vpack.c.b16 %v8654, %v8650
        %v8863 = vpack.c.b16 %v8655, %v8651
        %v8864 = vpack.c.b16 %v8656, %v8652
        %v8865 = vpack.c.b16 %v8661, %v8657
        %v8866 = vpack.c.b16 %v8662, %v8658
        %v8867 = vpack.c.b16 %v8663, %v8659
        %v8868 = vpack.c.b16 %v8664, %v8660
        %v8869 = vpack.c.b16 %v8669, %v8665
        %v8870 = vpack.c.b16 %v8670, %v8666
        %v8871 = vpack.c.b16 %v8671, %v8667
        %v8872 = vpack.c.b16 %v8672, %v8668
        %v8873 = vpack.c.b16 %v8677, %v8673
        %v8874 = vpack.c.b16 %v8678, %v8674
        %v8875 = vpack.c.b16 %v8679, %v8675
        %v8876 = vpack.c.b16 %v8680, %v8676
        %v8877 = vpack.c.b16 %v8685, %v8681
        %v8878 = vpack.c.b16 %v8686, %v8682
        %v8879 = vpack.c.b16 %v8687, %v8683
        %v8880 = vpack.c.b16 %v8688, %v8684
        %v8881 = vpack.c.b16 %v8693, %v8689
        %v8882 = vpack.c.b16 %v8694, %v8690
        %v8883 = vpack.c.b16 %v8695, %v8691
        %v8884 = vpack.c.b16 %v8696, %v8692
        %v8885 = vpack.c.b16 %v8701, %v8697
        %v8886 = vpack.c.b16 %v8702, %v8698
        %v8887 = vpack.c.b16 %v8703, %v8699
        %v8888 = vpack.c.b16 %v8704, %v8700
        %v8889 = vpack.c.b16 %v8709, %v8705
        %v8890 = vpack.c.b16 %v8710, %v8706
        %v8891 = vpack.c.b16 %v8711, %v8707
        %v8892 = vpack.c.b16 %v8712, %v8708
        %v8893 = vpack.c.b16 %v8717, %v8713
        %v8894 = vpack.c.b16 %v8718, %v8714
        %v8895 = vpack.c.b16 %v8719, %v8715
        %v8896 = vpack.c.b16 %v8720, %v8716
        %v8897 = vpack.c.b16 %v8725, %v8721
        %v8898 = vpack.c.b16 %v8726, %v8722
        %v8899 = vpack.c.b16 %v8727, %v8723
        %v8900 = vpack.c.b16 %v8728, %v8724
        %v8901 = vpack.c.b16 %v8733, %v8729
        %v8902 = vpack.c.b16 %v8734, %v8730
        %v8903 = vpack.c.b16 %v8735, %v8731
        %v8904 = vpack.c.b16 %v8736, %v8732
        %v8905 = vpack.c.b16 %v8741, %v8737
        %v8906 = vpack.c.b16 %v8742, %v8738
        %v8907 = vpack.c.b16 %v8743, %v8739
        %v8908 = vpack.c.b16 %v8744, %v8740
        %v8909 = vpack.c.b16 %v8749, %v8745
        %v8910 = vpack.c.b16 %v8750, %v8746
        %v8911 = vpack.c.b16 %v8751, %v8747
        %v8912 = vpack.c.b16 %v8752, %v8748
        %v8913 = vpack.c.b16 %v8757, %v8753
        %v8914 = vpack.c.b16 %v8758, %v8754
        %v8915 = vpack.c.b16 %v8759, %v8755
        %v8916 = vpack.c.b16 %v8760, %v8756
        %v8917 = vpack.c.b16 %v8765, %v8761
        %v8918 = vpack.c.b16 %v8766, %v8762
        %v8919 = vpack.c.b16 %v8767, %v8763
        %v8920 = vpack.c.b16 %v8768, %v8764
        %v8921 = vpack.c.b16 %v8773, %v8769
        %v8922 = vpack.c.b16 %v8774, %v8770
        %v8923 = vpack.c.b16 %v8775, %v8771
        %v8924 = vpack.c.b16 %v8776, %v8772
        %v8925 = vpack.c.b16 %v8781, %v8777
        %v8926 = vpack.c.b16 %v8782, %v8778
        %v8927 = vpack.c.b16 %v8783, %v8779
        %v8928 = vpack.c.b16 %v8784, %v8780
        %v8929 = vpack.c.b16 %v8789, %v8785
        %v8930 = vpack.c.b16 %v8790, %v8786
        %v8931 = vpack.c.b16 %v8791, %v8787
        %v8932 = vpack.c.b16 %v8792, %v8788
        %v8933 = vpack.c.b16 %v8797, %v8793
        %v8934 = vpack.c.b16 %v8798, %v8794
        %v8935 = vpack.c.b16 %v8799, %v8795
        %v8936 = vpack.c.b16 %v8800, %v8796
        %v8937 = vpack.c.b16 %v8805, %v8801
        %v8938 = vpack.c.b16 %v8806, %v8802
        %v8939 = vpack.c.b16 %v8807, %v8803
        %v8940 = vpack.c.b16 %v8808, %v8804
        %v8941 = vpack.c.b16 %v8813, %v8809
        %v8942 = vpack.c.b16 %v8814, %v8810
        %v8943 = vpack.c.b16 %v8815, %v8811
        %v8944 = vpack.c.b16 %v8816, %v8812
        %9073 = vmatprep.subr.bf16.mxu0 0
        %9074 = vmatpush1.bf16.msra.mxu0 %v8023
        %9075 = vmatprep.subr.bf16.mxu0 0
        %9076 = vmatpush1.bf16.msra.mxu0 %v8022
        %9077 = vmatprep.subr.bf16.mxu0 0
        %9078 = vmatpush1.bf16.msra.mxu0 %v8021
        %9079 = vmatprep.subr.bf16.mxu0 0
        %9080 = vmatpush1.bf16.msra.mxu0 %v8020
        %9081 = vmatprep.subr.bf16.mxu0 0
        %9082 = vmatpush1.bf16.msra.mxu0 %v8019
        %9083 = vmatprep.subr.bf16.mxu0 0
        %9084 = vmatpush1.bf16.msra.mxu0 %v8018
        %9085 = vmatprep.subr.bf16.mxu0 0
        %9086 = vmatpush1.bf16.msra.mxu0 %v8017
        %9087 = vmatprep.subr.bf16.mxu0 0
        %9088 = vmatpush1.bf16.msra.mxu0 %v8016
        %9089 = vmatprep.subr.bf16.mxu0 0
        %9090 = vmatpush2.bf16.msra.mxu0 %v8031
        %9091 = vmatprep.subr.bf16.mxu0 0
        %9092 = vmatpush2.bf16.msra.mxu0 %v8030
        %9093 = vmatprep.subr.bf16.mxu0 0
        %9094 = vmatpush2.bf16.msra.mxu0 %v8029
        %9095 = vmatprep.subr.bf16.mxu0 0
        %9096 = vmatpush2.bf16.msra.mxu0 %v8028
        %9097 = vmatprep.subr.bf16.mxu0 0
        %9098 = vmatpush2.bf16.msra.mxu0 %v8027
        %9099 = vmatprep.subr.bf16.mxu0 0
        %9100 = vmatpush2.bf16.msra.mxu0 %v8026
        %9101 = vmatprep.subr.bf16.mxu0 0
        %9102 = vmatpush2.bf16.msra.mxu0 %v8025
        %9103 = vmatprep.subr.bf16.mxu0 0
        %9104 = vmatpush2.bf16.msra.mxu0 %v8024
        %9105 = vmatprep.mubr.bf16.mxu0 %v8818
        %9106 = vmatmul.mubr.bf16.gmra.mxu0 %v8817
        %v9107 = vpop.f32.mrf.mxu0
        %v9108 = vadd.f32 %v8179, %v9107
        %v9109 = vpop.f32.mrf.mxu0
        %v9110 = vpop.f32.mrf.mxu0
        %v9111 = vadd.f32 %v8183, %v9110
        %v9112 = vpop.f32.mrf.mxu0
        %9113 = vmatprep.mubr.bf16.mxu0 %v8822
        %9114 = vmatmul.mubr.bf16.gmra.mxu0 %v8821
        %v9115 = vpop.f32.mrf.mxu0
        %v9116 = vadd.f32 %v8187, %v9115
        %v9117 = vpop.f32.mrf.mxu0
        %v9118 = vpop.f32.mrf.mxu0
        %v9119 = vadd.f32 %v8191, %v9118
        %v9120 = vpop.f32.mrf.mxu0
        %9121 = vmatprep.mubr.bf16.mxu0 %v8826
        %9122 = vmatmul.mubr.bf16.gmra.mxu0 %v8825
        %v9123 = vpop.f32.mrf.mxu0
        %v9124 = vadd.f32 %v8195, %v9123
        %v9125 = vpop.f32.mrf.mxu0
        %v9126 = vpop.f32.mrf.mxu0
        %v9127 = vadd.f32 %v8199, %v9126
        %v9128 = vpop.f32.mrf.mxu0
        %9129 = vmatprep.mubr.bf16.mxu0 %v8830
        %9130 = vmatmul.mubr.bf16.gmra.mxu0 %v8829
        %v9131 = vpop.f32.mrf.mxu0
        %v9132 = vadd.f32 %v8203, %v9131
        %v9133 = vpop.f32.mrf.mxu0
        %v9134 = vpop.f32.mrf.mxu0
        %v9135 = vadd.f32 %v8207, %v9134
        %v9136 = vpop.f32.mrf.mxu0
        %9137 = vmatprep.mubr.bf16.mxu0 %v8834
        %9138 = vmatmul.mubr.bf16.gmra.mxu0 %v8833
        %v9139 = vpop.f32.mrf.mxu0
        %v9140 = vadd.f32 %v8211, %v9139
        %v9141 = vpop.f32.mrf.mxu0
        %v9142 = vpop.f32.mrf.mxu0
        %v9143 = vadd.f32 %v8215, %v9142
        %v9144 = vpop.f32.mrf.mxu0
        %9145 = vmatprep.mubr.bf16.mxu0 %v8838
        %9146 = vmatmul.mubr.bf16.gmra.mxu0 %v8837
        %v9147 = vpop.f32.mrf.mxu0
        %v9148 = vadd.f32 %v8219, %v9147
        %v9149 = vpop.f32.mrf.mxu0
        %v9150 = vpop.f32.mrf.mxu0
        %v9151 = vadd.f32 %v8223, %v9150
        %v9152 = vpop.f32.mrf.mxu0
        %9153 = vmatprep.mubr.bf16.mxu0 %v8842
        %9154 = vmatmul.mubr.bf16.gmra.mxu0 %v8841
        %v9155 = vpop.f32.mrf.mxu0
        %v9156 = vadd.f32 %v8227, %v9155
        %v9157 = vpop.f32.mrf.mxu0
        %v9158 = vpop.f32.mrf.mxu0
        %v9159 = vadd.f32 %v8231, %v9158
        %v9160 = vpop.f32.mrf.mxu0
        %9161 = vmatprep.mubr.bf16.mxu0 %v8846
        %9162 = vmatmul.mubr.bf16.gmra.mxu0 %v8845
        %v9163 = vpop.f32.mrf.mxu0
        %v9164 = vadd.f32 %v8235, %v9163
        %v9165 = vpop.f32.mrf.mxu0
        %v9166 = vpop.f32.mrf.mxu0
        %v9167 = vadd.f32 %v8239, %v9166
        %v9168 = vpop.f32.mrf.mxu0
        %9169 = vmatprep.mubr.bf16.mxu0 %v8850
        %9170 = vmatmul.mubr.bf16.gmra.mxu0 %v8849
        %v9171 = vpop.f32.mrf.mxu0
        %v9172 = vadd.f32 %v8243, %v9171
        %v9173 = vpop.f32.mrf.mxu0
        %v9174 = vpop.f32.mrf.mxu0
        %v9175 = vadd.f32 %v8247, %v9174
        %v9176 = vpop.f32.mrf.mxu0
        %9177 = vmatprep.mubr.bf16.mxu0 %v8854
        %9178 = vmatmul.mubr.bf16.gmra.mxu0 %v8853
        %v9179 = vpop.f32.mrf.mxu0
        %v9180 = vadd.f32 %v8251, %v9179
        %v9181 = vpop.f32.mrf.mxu0
        %v9182 = vpop.f32.mrf.mxu0
        %v9183 = vadd.f32 %v8255, %v9182
        %v9184 = vpop.f32.mrf.mxu0
        %9185 = vmatprep.mubr.bf16.mxu0 %v8858
        %9186 = vmatmul.mubr.bf16.gmra.mxu0 %v8857
        %v9187 = vpop.f32.mrf.mxu0
        %v9188 = vadd.f32 %v8259, %v9187
        %v9189 = vpop.f32.mrf.mxu0
        %v9190 = vpop.f32.mrf.mxu0
        %v9191 = vadd.f32 %v8263, %v9190
        %v9192 = vpop.f32.mrf.mxu0
        %9193 = vmatprep.mubr.bf16.mxu0 %v8862
        %9194 = vmatmul.mubr.bf16.gmra.mxu0 %v8861
        %v9195 = vpop.f32.mrf.mxu0
        %v9196 = vadd.f32 %v8267, %v9195
        %v9197 = vpop.f32.mrf.mxu0
        %v9198 = vpop.f32.mrf.mxu0
        %v9199 = vadd.f32 %v8271, %v9198
        %v9200 = vpop.f32.mrf.mxu0
        %9201 = vmatprep.mubr.bf16.mxu0 %v8866
        %9202 = vmatmul.mubr.bf16.gmra.mxu0 %v8865
        %v9203 = vpop.f32.mrf.mxu0
        %v9204 = vadd.f32 %v8275, %v9203
        %v9205 = vpop.f32.mrf.mxu0
        %v9206 = vpop.f32.mrf.mxu0
        %v9207 = vadd.f32 %v8279, %v9206
        %v9208 = vpop.f32.mrf.mxu0
        %9209 = vmatprep.mubr.bf16.mxu0 %v8870
        %9210 = vmatmul.mubr.bf16.gmra.mxu0 %v8869
        %v9211 = vpop.f32.mrf.mxu0
        %v9212 = vadd.f32 %v8283, %v9211
        %v9213 = vpop.f32.mrf.mxu0
        %v9214 = vpop.f32.mrf.mxu0
        %v9215 = vadd.f32 %v8287, %v9214
        %v9216 = vpop.f32.mrf.mxu0
        %9217 = vmatprep.mubr.bf16.mxu0 %v8874
        %9218 = vmatmul.mubr.bf16.gmra.mxu0 %v8873
        %v9219 = vpop.f32.mrf.mxu0
        %v9220 = vadd.f32 %v8291, %v9219
        %v9221 = vpop.f32.mrf.mxu0
        %v9222 = vpop.f32.mrf.mxu0
        %v9223 = vadd.f32 %v8295, %v9222
        %v9224 = vpop.f32.mrf.mxu0
        %9225 = vmatprep.mubr.bf16.mxu0 %v8878
        %9226 = vmatmul.mubr.bf16.gmra.mxu0 %v8877
        %v9227 = vpop.f32.mrf.mxu0
        %v9228 = vadd.f32 %v8299, %v9227
        %v9229 = vpop.f32.mrf.mxu0
        %v9230 = vpop.f32.mrf.mxu0
        %v9231 = vadd.f32 %v8303, %v9230
        %v9232 = vpop.f32.mrf.mxu0
        %9233 = vmatprep.mubr.bf16.mxu0 %v8882
        %9234 = vmatmul.mubr.bf16.gmra.mxu0 %v8881
        %v9235 = vpop.f32.mrf.mxu0
        %v9236 = vadd.f32 %v8307, %v9235
        %v9237 = vpop.f32.mrf.mxu0
        %v9238 = vpop.f32.mrf.mxu0
        %v9239 = vadd.f32 %v8311, %v9238
        %v9240 = vpop.f32.mrf.mxu0
        %9241 = vmatprep.mubr.bf16.mxu0 %v8886
        %9242 = vmatmul.mubr.bf16.gmra.mxu0 %v8885
        %v9243 = vpop.f32.mrf.mxu0
        %v9244 = vadd.f32 %v8315, %v9243
        %v9245 = vpop.f32.mrf.mxu0
        %v9246 = vpop.f32.mrf.mxu0
        %v9247 = vadd.f32 %v8319, %v9246
        %v9248 = vpop.f32.mrf.mxu0
        %9249 = vmatprep.mubr.bf16.mxu0 %v8890
        %9250 = vmatmul.mubr.bf16.gmra.mxu0 %v8889
        %v9251 = vpop.f32.mrf.mxu0
        %v9252 = vadd.f32 %v8323, %v9251
        %v9253 = vpop.f32.mrf.mxu0
        %v9254 = vpop.f32.mrf.mxu0
        %v9255 = vadd.f32 %v8327, %v9254
        %v9256 = vpop.f32.mrf.mxu0
        %9257 = vmatprep.mubr.bf16.mxu0 %v8894
        %9258 = vmatmul.mubr.bf16.gmra.mxu0 %v8893
        %v9259 = vpop.f32.mrf.mxu0
        %v9260 = vadd.f32 %v8331, %v9259
        %v9261 = vpop.f32.mrf.mxu0
        %v9262 = vpop.f32.mrf.mxu0
        %v9263 = vadd.f32 %v8335, %v9262
        %v9264 = vpop.f32.mrf.mxu0
        %9265 = vmatprep.mubr.bf16.mxu0 %v8898
        %9266 = vmatmul.mubr.bf16.gmra.mxu0 %v8897
        %v9267 = vpop.f32.mrf.mxu0
        %v9268 = vadd.f32 %v8339, %v9267
        %v9269 = vpop.f32.mrf.mxu0
        %v9270 = vpop.f32.mrf.mxu0
        %v9271 = vadd.f32 %v8343, %v9270
        %v9272 = vpop.f32.mrf.mxu0
        %9273 = vmatprep.mubr.bf16.mxu0 %v8902
        %9274 = vmatmul.mubr.bf16.gmra.mxu0 %v8901
        %v9275 = vpop.f32.mrf.mxu0
        %v9276 = vadd.f32 %v8347, %v9275
        %v9277 = vpop.f32.mrf.mxu0
        %v9278 = vpop.f32.mrf.mxu0
        %v9279 = vadd.f32 %v8351, %v9278
        %v9280 = vpop.f32.mrf.mxu0
        %9281 = vmatprep.mubr.bf16.mxu0 %v8906
        %9282 = vmatmul.mubr.bf16.gmra.mxu0 %v8905
        %v9283 = vpop.f32.mrf.mxu0
        %v9284 = vadd.f32 %v8355, %v9283
        %v9285 = vpop.f32.mrf.mxu0
        %v9286 = vpop.f32.mrf.mxu0
        %v9287 = vadd.f32 %v8359, %v9286
        %v9288 = vpop.f32.mrf.mxu0
        %9289 = vmatprep.mubr.bf16.mxu0 %v8910
        %9290 = vmatmul.mubr.bf16.gmra.mxu0 %v8909
        %v9291 = vpop.f32.mrf.mxu0
        %v9292 = vadd.f32 %v8363, %v9291
        %v9293 = vpop.f32.mrf.mxu0
        %v9294 = vpop.f32.mrf.mxu0
        %v9295 = vadd.f32 %v8367, %v9294
        %v9296 = vpop.f32.mrf.mxu0
        %9297 = vmatprep.mubr.bf16.mxu0 %v8914
        %9298 = vmatmul.mubr.bf16.gmra.mxu0 %v8913
        %v9299 = vpop.f32.mrf.mxu0
        %v9300 = vadd.f32 %v8371, %v9299
        %v9301 = vpop.f32.mrf.mxu0
        %v9302 = vpop.f32.mrf.mxu0
        %v9303 = vadd.f32 %v8375, %v9302
        %v9304 = vpop.f32.mrf.mxu0
        %9305 = vmatprep.mubr.bf16.mxu0 %v8918
        %9306 = vmatmul.mubr.bf16.gmra.mxu0 %v8917
        %v9307 = vpop.f32.mrf.mxu0
        %v9308 = vadd.f32 %v8379, %v9307
        %v9309 = vpop.f32.mrf.mxu0
        %v9310 = vpop.f32.mrf.mxu0
        %v9311 = vadd.f32 %v8383, %v9310
        %v9312 = vpop.f32.mrf.mxu0
        %9313 = vmatprep.mubr.bf16.mxu0 %v8922
        %9314 = vmatmul.mubr.bf16.gmra.mxu0 %v8921
        %v9315 = vpop.f32.mrf.mxu0
        %v9316 = vadd.f32 %v8387, %v9315
        %v9317 = vpop.f32.mrf.mxu0
        %v9318 = vpop.f32.mrf.mxu0
        %v9319 = vadd.f32 %v8391, %v9318
        %v9320 = vpop.f32.mrf.mxu0
        %9321 = vmatprep.mubr.bf16.mxu0 %v8926
        %9322 = vmatmul.mubr.bf16.gmra.mxu0 %v8925
        %v9323 = vpop.f32.mrf.mxu0
        %v9324 = vadd.f32 %v8395, %v9323
        %v9325 = vpop.f32.mrf.mxu0
        %v9326 = vpop.f32.mrf.mxu0
        %v9327 = vadd.f32 %v8399, %v9326
        %v9328 = vpop.f32.mrf.mxu0
        %9329 = vmatprep.mubr.bf16.mxu0 %v8930
        %9330 = vmatmul.mubr.bf16.gmra.mxu0 %v8929
        %v9331 = vpop.f32.mrf.mxu0
        %v9332 = vadd.f32 %v8403, %v9331
        %v9333 = vpop.f32.mrf.mxu0
        %v9334 = vpop.f32.mrf.mxu0
        %v9335 = vadd.f32 %v8407, %v9334
        %v9336 = vpop.f32.mrf.mxu0
        %9337 = vmatprep.mubr.bf16.mxu0 %v8934
        %9338 = vmatmul.mubr.bf16.gmra.mxu0 %v8933
        %v9339 = vpop.f32.mrf.mxu0
        %v9340 = vadd.f32 %v8411, %v9339
        %v9341 = vpop.f32.mrf.mxu0
        %v9342 = vpop.f32.mrf.mxu0
        %v9343 = vadd.f32 %v8415, %v9342
        %v9344 = vpop.f32.mrf.mxu0
        %9345 = vmatprep.mubr.bf16.mxu0 %v8938
        %9346 = vmatmul.mubr.bf16.gmra.mxu0 %v8937
        %v9347 = vpop.f32.mrf.mxu0
        %v9348 = vadd.f32 %v8419, %v9347
        %v9349 = vpop.f32.mrf.mxu0
        %v9350 = vpop.f32.mrf.mxu0
        %v9351 = vadd.f32 %v8423, %v9350
        %v9352 = vpop.f32.mrf.mxu0
        %9353 = vmatprep.mubr.bf16.mxu0 %v8942
        %9354 = vmatmul.mubr.bf16.gmra.mxu0 %v8941
        %v9355 = vpop.f32.mrf.mxu0
        %v9356 = vadd.f32 %v8427, %v9355
        %v9357 = vpop.f32.mrf.mxu0
        %v9358 = vpop.f32.mrf.mxu0
        %v9359 = vadd.f32 %v8431, %v9358
        %v9360 = vpop.f32.mrf.mxu0
        %9361 = vdwg.mxu0
        %9362 = vmatprep.subr.bf16.mxu0 0
        %9363 = vmatpush1.bf16.msra.mxu0 %v8039
        %9364 = vmatprep.subr.bf16.mxu0 0
        %9365 = vmatpush1.bf16.msra.mxu0 %v8038
        %9366 = vmatprep.subr.bf16.mxu0 0
        %9367 = vmatpush1.bf16.msra.mxu0 %v8037
        %9368 = vmatprep.subr.bf16.mxu0 0
        %9369 = vmatpush1.bf16.msra.mxu0 %v8036
        %9370 = vmatprep.subr.bf16.mxu0 0
        %9371 = vmatpush1.bf16.msra.mxu0 %v8035
        %9372 = vmatprep.subr.bf16.mxu0 0
        %9373 = vmatpush1.bf16.msra.mxu0 %v8034
        %9374 = vmatprep.subr.bf16.mxu0 0
        %9375 = vmatpush1.bf16.msra.mxu0 %v8033
        %9376 = vmatprep.subr.bf16.mxu0 0
        %9377 = vmatpush1.bf16.msra.mxu0 %v8032
        %9378 = vmatprep.subr.bf16.mxu0 0
        %9379 = vmatpush2.bf16.msra.mxu0 %v8047
        %9380 = vmatprep.subr.bf16.mxu0 0
        %9381 = vmatpush2.bf16.msra.mxu0 %v8046
        %9382 = vmatprep.subr.bf16.mxu0 0
        %9383 = vmatpush2.bf16.msra.mxu0 %v8045
        %9384 = vmatprep.subr.bf16.mxu0 0
        %9385 = vmatpush2.bf16.msra.mxu0 %v8044
        %9386 = vmatprep.subr.bf16.mxu0 0
        %9387 = vmatpush2.bf16.msra.mxu0 %v8043
        %9388 = vmatprep.subr.bf16.mxu0 0
        %9389 = vmatpush2.bf16.msra.mxu0 %v8042
        %9390 = vmatprep.subr.bf16.mxu0 0
        %9391 = vmatpush2.bf16.msra.mxu0 %v8041
        %9392 = vmatprep.subr.bf16.mxu0 0
        %9393 = vmatpush2.bf16.msra.mxu0 %v8040
        %9394 = vmatprep.mubr.bf16.mxu0 %v8820
        %9395 = vmatmul.mubr.bf16.gmra.mxu0 %v8819
        %v9396 = vpop.f32.mrf.mxu0
        %v9397 = vadd.f32 %v9108, %v9396
        %v9398 = vpop.f32.mrf.mxu0
        %v9399 = vpop.f32.mrf.mxu0
        %v9400 = vadd.f32 %v9111, %v9399
        %v9401 = vpop.f32.mrf.mxu0
        %9402 = vmatprep.mubr.bf16.mxu0 %v8824
        %9403 = vmatmul.mubr.bf16.gmra.mxu0 %v8823
        %v9404 = vpop.f32.mrf.mxu0
        %v9405 = vadd.f32 %v9116, %v9404
        %v9406 = vpop.f32.mrf.mxu0
        %v9407 = vpop.f32.mrf.mxu0
        %v9408 = vadd.f32 %v9119, %v9407
        %v9409 = vpop.f32.mrf.mxu0
        %9410 = vmatprep.mubr.bf16.mxu0 %v8828
        %9411 = vmatmul.mubr.bf16.gmra.mxu0 %v8827
        %v9412 = vpop.f32.mrf.mxu0
        %v9413 = vadd.f32 %v9124, %v9412
        %v9414 = vpop.f32.mrf.mxu0
        %v9415 = vpop.f32.mrf.mxu0
        %v9416 = vadd.f32 %v9127, %v9415
        %v9417 = vpop.f32.mrf.mxu0
        %9418 = vmatprep.mubr.bf16.mxu0 %v8832
        %9419 = vmatmul.mubr.bf16.gmra.mxu0 %v8831
        %v9420 = vpop.f32.mrf.mxu0
        %v9421 = vadd.f32 %v9132, %v9420
        %v9422 = vpop.f32.mrf.mxu0
        %v9423 = vpop.f32.mrf.mxu0
        %v9424 = vadd.f32 %v9135, %v9423
        %v9425 = vpop.f32.mrf.mxu0
        %9426 = vmatprep.mubr.bf16.mxu0 %v8836
        %9427 = vmatmul.mubr.bf16.gmra.mxu0 %v8835
        %v9428 = vpop.f32.mrf.mxu0
        %v9429 = vadd.f32 %v9140, %v9428
        %v9430 = vpop.f32.mrf.mxu0
        %v9431 = vpop.f32.mrf.mxu0
        %v9432 = vadd.f32 %v9143, %v9431
        %v9433 = vpop.f32.mrf.mxu0
        %9434 = vmatprep.mubr.bf16.mxu0 %v8840
        %9435 = vmatmul.mubr.bf16.gmra.mxu0 %v8839
        %v9436 = vpop.f32.mrf.mxu0
        %v9437 = vadd.f32 %v9148, %v9436
        %v9438 = vpop.f32.mrf.mxu0
        %v9439 = vpop.f32.mrf.mxu0
        %v9440 = vadd.f32 %v9151, %v9439
        %v9441 = vpop.f32.mrf.mxu0
        %9442 = vmatprep.mubr.bf16.mxu0 %v8844
        %9443 = vmatmul.mubr.bf16.gmra.mxu0 %v8843
        %v9444 = vpop.f32.mrf.mxu0
        %v9445 = vadd.f32 %v9156, %v9444
        %v9446 = vpop.f32.mrf.mxu0
        %v9447 = vpop.f32.mrf.mxu0
        %v9448 = vadd.f32 %v9159, %v9447
        %v9449 = vpop.f32.mrf.mxu0
        %9450 = vmatprep.mubr.bf16.mxu0 %v8848
        %9451 = vmatmul.mubr.bf16.gmra.mxu0 %v8847
        %v9452 = vpop.f32.mrf.mxu0
        %v9453 = vadd.f32 %v9164, %v9452
        %v9454 = vpop.f32.mrf.mxu0
        %v9455 = vpop.f32.mrf.mxu0
        %v9456 = vadd.f32 %v9167, %v9455
        %v9457 = vpop.f32.mrf.mxu0
        %9458 = vmatprep.mubr.bf16.mxu0 %v8852
        %9459 = vmatmul.mubr.bf16.gmra.mxu0 %v8851
        %v9460 = vpop.f32.mrf.mxu0
        %v9461 = vadd.f32 %v9172, %v9460
        %v9462 = vpop.f32.mrf.mxu0
        %v9463 = vpop.f32.mrf.mxu0
        %v9464 = vadd.f32 %v9175, %v9463
        %v9465 = vpop.f32.mrf.mxu0
        %9466 = vmatprep.mubr.bf16.mxu0 %v8856
        %9467 = vmatmul.mubr.bf16.gmra.mxu0 %v8855
        %v9468 = vpop.f32.mrf.mxu0
        %v9469 = vadd.f32 %v9180, %v9468
        %v9470 = vpop.f32.mrf.mxu0
        %v9471 = vpop.f32.mrf.mxu0
        %v9472 = vadd.f32 %v9183, %v9471
        %v9473 = vpop.f32.mrf.mxu0
        %9474 = vmatprep.mubr.bf16.mxu0 %v8860
        %9475 = vmatmul.mubr.bf16.gmra.mxu0 %v8859
        %v9476 = vpop.f32.mrf.mxu0
        %v9477 = vadd.f32 %v9188, %v9476
        %v9478 = vpop.f32.mrf.mxu0
        %v9479 = vpop.f32.mrf.mxu0
        %v9480 = vadd.f32 %v9191, %v9479
        %v9481 = vpop.f32.mrf.mxu0
        %9482 = vmatprep.mubr.bf16.mxu0 %v8864
        %9483 = vmatmul.mubr.bf16.gmra.mxu0 %v8863
        %v9484 = vpop.f32.mrf.mxu0
        %v9485 = vadd.f32 %v9196, %v9484
        %v9486 = vpop.f32.mrf.mxu0
        %v9487 = vpop.f32.mrf.mxu0
        %v9488 = vadd.f32 %v9199, %v9487
        %v9489 = vpop.f32.mrf.mxu0
        %9490 = vmatprep.mubr.bf16.mxu0 %v8868
        %9491 = vmatmul.mubr.bf16.gmra.mxu0 %v8867
        %v9492 = vpop.f32.mrf.mxu0
        %v9493 = vadd.f32 %v9204, %v9492
        %v9494 = vpop.f32.mrf.mxu0
        %v9495 = vpop.f32.mrf.mxu0
        %v9496 = vadd.f32 %v9207, %v9495
        %v9497 = vpop.f32.mrf.mxu0
        %9498 = vmatprep.mubr.bf16.mxu0 %v8872
        %9499 = vmatmul.mubr.bf16.gmra.mxu0 %v8871
        %v9500 = vpop.f32.mrf.mxu0
        %v9501 = vadd.f32 %v9212, %v9500
        %v9502 = vpop.f32.mrf.mxu0
        %v9503 = vpop.f32.mrf.mxu0
        %v9504 = vadd.f32 %v9215, %v9503
        %v9505 = vpop.f32.mrf.mxu0
        %9506 = vmatprep.mubr.bf16.mxu0 %v8876
        %9507 = vmatmul.mubr.bf16.gmra.mxu0 %v8875
        %v9508 = vpop.f32.mrf.mxu0
        %v9509 = vadd.f32 %v9220, %v9508
        %v9510 = vpop.f32.mrf.mxu0
        %v9511 = vpop.f32.mrf.mxu0
        %v9512 = vadd.f32 %v9223, %v9511
        %v9513 = vpop.f32.mrf.mxu0
        %9514 = vmatprep.mubr.bf16.mxu0 %v8880
        %9515 = vmatmul.mubr.bf16.gmra.mxu0 %v8879
        %v9516 = vpop.f32.mrf.mxu0
        %v9517 = vadd.f32 %v9228, %v9516
        %v9518 = vpop.f32.mrf.mxu0
        %v9519 = vpop.f32.mrf.mxu0
        %v9520 = vadd.f32 %v9231, %v9519
        %v9521 = vpop.f32.mrf.mxu0
        %9522 = vmatprep.mubr.bf16.mxu0 %v8884
        %9523 = vmatmul.mubr.bf16.gmra.mxu0 %v8883
        %v9524 = vpop.f32.mrf.mxu0
        %v9525 = vadd.f32 %v9236, %v9524
        %v9526 = vpop.f32.mrf.mxu0
        %v9527 = vpop.f32.mrf.mxu0
        %v9528 = vadd.f32 %v9239, %v9527
        %v9529 = vpop.f32.mrf.mxu0
        %9530 = vmatprep.mubr.bf16.mxu0 %v8888
        %9531 = vmatmul.mubr.bf16.gmra.mxu0 %v8887
        %v9532 = vpop.f32.mrf.mxu0
        %v9533 = vadd.f32 %v9244, %v9532
        %v9534 = vpop.f32.mrf.mxu0
        %v9535 = vpop.f32.mrf.mxu0
        %v9536 = vadd.f32 %v9247, %v9535
        %v9537 = vpop.f32.mrf.mxu0
        %9538 = vmatprep.mubr.bf16.mxu0 %v8892
        %9539 = vmatmul.mubr.bf16.gmra.mxu0 %v8891
        %v9540 = vpop.f32.mrf.mxu0
        %v9541 = vadd.f32 %v9252, %v9540
        %v9542 = vpop.f32.mrf.mxu0
        %v9543 = vpop.f32.mrf.mxu0
        %v9544 = vadd.f32 %v9255, %v9543
        %v9545 = vpop.f32.mrf.mxu0
        %9546 = vmatprep.mubr.bf16.mxu0 %v8896
        %9547 = vmatmul.mubr.bf16.gmra.mxu0 %v8895
        %v9548 = vpop.f32.mrf.mxu0
        %v9549 = vadd.f32 %v9260, %v9548
        %v9550 = vpop.f32.mrf.mxu0
        %v9551 = vpop.f32.mrf.mxu0
        %v9552 = vadd.f32 %v9263, %v9551
        %v9553 = vpop.f32.mrf.mxu0
        %9554 = vmatprep.mubr.bf16.mxu0 %v8900
        %9555 = vmatmul.mubr.bf16.gmra.mxu0 %v8899
        %v9556 = vpop.f32.mrf.mxu0
        %v9557 = vadd.f32 %v9268, %v9556
        %v9558 = vpop.f32.mrf.mxu0
        %v9559 = vpop.f32.mrf.mxu0
        %v9560 = vadd.f32 %v9271, %v9559
        %v9561 = vpop.f32.mrf.mxu0
        %9562 = vmatprep.mubr.bf16.mxu0 %v8904
        %9563 = vmatmul.mubr.bf16.gmra.mxu0 %v8903
        %v9564 = vpop.f32.mrf.mxu0
        %v9565 = vadd.f32 %v9276, %v9564
        %v9566 = vpop.f32.mrf.mxu0
        %v9567 = vpop.f32.mrf.mxu0
        %v9568 = vadd.f32 %v9279, %v9567
        %v9569 = vpop.f32.mrf.mxu0
        %9570 = vmatprep.mubr.bf16.mxu0 %v8908
        %9571 = vmatmul.mubr.bf16.gmra.mxu0 %v8907
        %v9572 = vpop.f32.mrf.mxu0
        %v9573 = vadd.f32 %v9284, %v9572
        %v9574 = vpop.f32.mrf.mxu0
        %v9575 = vpop.f32.mrf.mxu0
        %v9576 = vadd.f32 %v9287, %v9575
        %v9577 = vpop.f32.mrf.mxu0
        %9578 = vmatprep.mubr.bf16.mxu0 %v8912
        %9579 = vmatmul.mubr.bf16.gmra.mxu0 %v8911
        %v9580 = vpop.f32.mrf.mxu0
        %v9581 = vadd.f32 %v9292, %v9580
        %v9582 = vpop.f32.mrf.mxu0
        %v9583 = vpop.f32.mrf.mxu0
        %v9584 = vadd.f32 %v9295, %v9583
        %v9585 = vpop.f32.mrf.mxu0
        %9586 = vmatprep.mubr.bf16.mxu0 %v8916
        %9587 = vmatmul.mubr.bf16.gmra.mxu0 %v8915
        %v9588 = vpop.f32.mrf.mxu0
        %v9589 = vadd.f32 %v9300, %v9588
        %v9590 = vpop.f32.mrf.mxu0
        %v9591 = vpop.f32.mrf.mxu0
        %v9592 = vadd.f32 %v9303, %v9591
        %v9593 = vpop.f32.mrf.mxu0
        %9594 = vmatprep.mubr.bf16.mxu0 %v8920
        %9595 = vmatmul.mubr.bf16.gmra.mxu0 %v8919
        %v9596 = vpop.f32.mrf.mxu0
        %v9597 = vadd.f32 %v9308, %v9596
        %v9598 = vpop.f32.mrf.mxu0
        %v9599 = vpop.f32.mrf.mxu0
        %v9600 = vadd.f32 %v9311, %v9599
        %v9601 = vpop.f32.mrf.mxu0
        %9602 = vmatprep.mubr.bf16.mxu0 %v8924
        %9603 = vmatmul.mubr.bf16.gmra.mxu0 %v8923
        %v9604 = vpop.f32.mrf.mxu0
        %v9605 = vadd.f32 %v9316, %v9604
        %v9606 = vpop.f32.mrf.mxu0
        %v9607 = vpop.f32.mrf.mxu0
        %v9608 = vadd.f32 %v9319, %v9607
        %v9609 = vpop.f32.mrf.mxu0
        %9610 = vmatprep.mubr.bf16.mxu0 %v8928
        %9611 = vmatmul.mubr.bf16.gmra.mxu0 %v8927
        %v9612 = vpop.f32.mrf.mxu0
        %v9613 = vadd.f32 %v9324, %v9612
        %v9614 = vpop.f32.mrf.mxu0
        %v9615 = vpop.f32.mrf.mxu0
        %v9616 = vadd.f32 %v9327, %v9615
        %v9617 = vpop.f32.mrf.mxu0
        %9618 = vmatprep.mubr.bf16.mxu0 %v8932
        %9619 = vmatmul.mubr.bf16.gmra.mxu0 %v8931
        %v9620 = vpop.f32.mrf.mxu0
        %v9621 = vadd.f32 %v9332, %v9620
        %v9622 = vpop.f32.mrf.mxu0
        %v9623 = vpop.f32.mrf.mxu0
        %v9624 = vadd.f32 %v9335, %v9623
        %v9625 = vpop.f32.mrf.mxu0
        %9626 = vmatprep.mubr.bf16.mxu0 %v8936
        %9627 = vmatmul.mubr.bf16.gmra.mxu0 %v8935
        %v9628 = vpop.f32.mrf.mxu0
        %v9629 = vadd.f32 %v9340, %v9628
        %v9630 = vpop.f32.mrf.mxu0
        %v9631 = vpop.f32.mrf.mxu0
        %v9632 = vadd.f32 %v9343, %v9631
        %v9633 = vpop.f32.mrf.mxu0
        %9634 = vmatprep.mubr.bf16.mxu0 %v8940
        %9635 = vmatmul.mubr.bf16.gmra.mxu0 %v8939
        %v9636 = vpop.f32.mrf.mxu0
        %v9637 = vadd.f32 %v9348, %v9636
        %v9638 = vpop.f32.mrf.mxu0
        %v9639 = vpop.f32.mrf.mxu0
        %v9640 = vadd.f32 %v9351, %v9639
        %v9641 = vpop.f32.mrf.mxu0
        %9642 = vmatprep.mubr.bf16.mxu0 %v8944
        %9643 = vmatmul.mubr.bf16.gmra.mxu0 %v8943
        %v9644 = vpop.f32.mrf.mxu0
        %v9645 = vadd.f32 %v9356, %v9644
        %v9646 = vpop.f32.mrf.mxu0
        %v9647 = vpop.f32.mrf.mxu0
        %v9648 = vadd.f32 %v9359, %v9647
        %v9649 = vpop.f32.mrf.mxu0
        %9650 = vdwg.mxu0
        %v9651 = vmax.f32 %v9397, 0.0
        %v9652 = vmax.f32 %v9400, 0.0
        %v9653 = vmax.f32 %v9405, 0.0
        %v9654 = vmax.f32 %v9408, 0.0
        %v9655 = vmax.f32 %v9413, 0.0
        %v9656 = vmax.f32 %v9416, 0.0
        %v9657 = vmax.f32 %v9421, 0.0
        %v9658 = vmax.f32 %v9424, 0.0
        %v9659 = vmax.f32 %v9429, 0.0
        %v9660 = vmax.f32 %v9432, 0.0
        %v9661 = vmax.f32 %v9437, 0.0
        %v9662 = vmax.f32 %v9440, 0.0
        %v9663 = vmax.f32 %v9445, 0.0
        %v9664 = vmax.f32 %v9448, 0.0
        %v9665 = vmax.f32 %v9453, 0.0
        %v9666 = vmax.f32 %v9456, 0.0
        %v9667 = vmax.f32 %v9461, 0.0
        %v9668 = vmax.f32 %v9464, 0.0
        %v9669 = vmax.f32 %v9469, 0.0
        %v9670 = vmax.f32 %v9472, 0.0
        %v9671 = vmax.f32 %v9477, 0.0
        %v9672 = vmax.f32 %v9480, 0.0
        %v9673 = vmax.f32 %v9485, 0.0
        %v9674 = vmax.f32 %v9488, 0.0
        %v9675 = vmax.f32 %v9493, 0.0
        %v9676 = vmax.f32 %v9496, 0.0
        %v9677 = vmax.f32 %v9501, 0.0
        %v9678 = vmax.f32 %v9504, 0.0
        %v9679 = vmax.f32 %v9509, 0.0
        %v9680 = vmax.f32 %v9512, 0.0
        %v9681 = vmax.f32 %v9517, 0.0
        %v9682 = vmax.f32 %v9520, 0.0
        %v9683 = vmax.f32 %v9525, 0.0
        %v9684 = vmax.f32 %v9528, 0.0
        %v9685 = vmax.f32 %v9533, 0.0
        %v9686 = vmax.f32 %v9536, 0.0
        %v9687 = vmax.f32 %v9541, 0.0
        %v9688 = vmax.f32 %v9544, 0.0
        %v9689 = vmax.f32 %v9549, 0.0
        %v9690 = vmax.f32 %v9552, 0.0
        %v9691 = vmax.f32 %v9557, 0.0
        %v9692 = vmax.f32 %v9560, 0.0
        %v9693 = vmax.f32 %v9565, 0.0
        %v9694 = vmax.f32 %v9568, 0.0
        %v9695 = vmax.f32 %v9573, 0.0
        %v9696 = vmax.f32 %v9576, 0.0
        %v9697 = vmax.f32 %v9581, 0.0
        %v9698 = vmax.f32 %v9584, 0.0
        %v9699 = vmax.f32 %v9589, 0.0
        %v9700 = vmax.f32 %v9592, 0.0
        %v9701 = vmax.f32 %v9597, 0.0
        %v9702 = vmax.f32 %v9600, 0.0
        %v9703 = vmax.f32 %v9605, 0.0
        %v9704 = vmax.f32 %v9608, 0.0
        %v9705 = vmax.f32 %v9613, 0.0
        %v9706 = vmax.f32 %v9616, 0.0
        %v9707 = vmax.f32 %v9621, 0.0
        %v9708 = vmax.f32 %v9624, 0.0
        %v9709 = vmax.f32 %v9629, 0.0
        %v9710 = vmax.f32 %v9632, 0.0
        %v9711 = vmax.f32 %v9637, 0.0
        %v9712 = vmax.f32 %v9640, 0.0
        %v9713 = vmax.f32 %v9645, 0.0
        %v9714 = vmax.f32 %v9648, 0.0
        %v9715 = vpack.c.bf16 %v9652, %v9651
        %v9716 = vpack.c.bf16 %v9654, %v9653
        %v9717 = vpack.c.bf16 %v9656, %v9655
        %v9718 = vpack.c.bf16 %v9658, %v9657
        %v9719 = vpack.c.bf16 %v9660, %v9659
        %v9720 = vpack.c.bf16 %v9662, %v9661
        %v9721 = vpack.c.bf16 %v9664, %v9663
        %v9722 = vpack.c.bf16 %v9666, %v9665
        %v9723 = vpack.c.bf16 %v9668, %v9667
        %v9724 = vpack.c.bf16 %v9670, %v9669
        %v9725 = vpack.c.bf16 %v9672, %v9671
        %v9726 = vpack.c.bf16 %v9674, %v9673
        %v9727 = vpack.c.bf16 %v9676, %v9675
        %v9728 = vpack.c.bf16 %v9678, %v9677
        %v9729 = vpack.c.bf16 %v9680, %v9679
        %v9730 = vpack.c.bf16 %v9682, %v9681
        %v9731 = vpack.c.bf16 %v9684, %v9683
        %v9732 = vpack.c.bf16 %v9686, %v9685
        %v9733 = vpack.c.bf16 %v9688, %v9687
        %v9734 = vpack.c.bf16 %v9690, %v9689
        %v9735 = vpack.c.bf16 %v9692, %v9691
        %v9736 = vpack.c.bf16 %v9694, %v9693
        %v9737 = vpack.c.bf16 %v9696, %v9695
        %v9738 = vpack.c.bf16 %v9698, %v9697
        %v9739 = vpack.c.bf16 %v9700, %v9699
        %v9740 = vpack.c.bf16 %v9702, %v9701
        %v9741 = vpack.c.bf16 %v9704, %v9703
        %v9742 = vpack.c.bf16 %v9706, %v9705
        %v9743 = vpack.c.bf16 %v9708, %v9707
        %v9744 = vpack.c.bf16 %v9710, %v9709
        %v9745 = vpack.c.bf16 %v9712, %v9711
        %v9746 = vpack.c.bf16 %v9714, %v9713
        %s9747 = scalar_lea.vmem [#allocation5], 1024
        %v9748 = vld [vmem:[%s9747] sm:$0xff]
        %v9749 = vld [vmem:[%s9747 + $0x8] sm:$0xff]
        %v9750 = vld [vmem:[%s9747 + $0x10] sm:$0xff]
        %v9751 = vld [vmem:[%s9747 + $0x18] sm:$0xff]
        %v9752 = vld [vmem:[%s9747 + $0x20] sm:$0xff]
        %v9753 = vld [vmem:[%s9747 + $0x28] sm:$0xff]
        %v9754 = vld [vmem:[%s9747 + $0x30] sm:$0xff]
        %v9755 = vld [vmem:[%s9747 + $0x38] sm:$0xff]
        %v9756 = vld [vmem:[%s9747 + $0x40] sm:$0xff]
        %v9757 = vld [vmem:[%s9747 + $0x48] sm:$0xff]
        %v9758 = vld [vmem:[%s9747 + $0x50] sm:$0xff]
        %v9759 = vld [vmem:[%s9747 + $0x58] sm:$0xff]
        %v9760 = vld [vmem:[%s9747 + $0x60] sm:$0xff]
        %v9761 = vld [vmem:[%s9747 + $0x68] sm:$0xff]
        %v9762 = vld [vmem:[%s9747 + $0x70] sm:$0xff]
        %v9763 = vld [vmem:[%s9747 + $0x78] sm:$0xff]
        %v9764 = vld [vmem:[%s9747 + $0x80] sm:$0xff]
        %v9765 = vld [vmem:[%s9747 + $0x88] sm:$0xff]
        %v9766 = vld [vmem:[%s9747 + $0x90] sm:$0xff]
        %v9767 = vld [vmem:[%s9747 + $0x98] sm:$0xff]
        %v9768 = vld [vmem:[%s9747 + $0xa0] sm:$0xff]
        %v9769 = vld [vmem:[%s9747 + $0xa8] sm:$0xff]
        %v9770 = vld [vmem:[%s9747 + $0xb0] sm:$0xff]
        %v9771 = vld [vmem:[%s9747 + $0xb8] sm:$0xff]
        %v9772 = vld [vmem:[%s9747 + $0xc0] sm:$0xff]
        %v9773 = vld [vmem:[%s9747 + $0xc8] sm:$0xff]
        %v9774 = vld [vmem:[%s9747 + $0xd0] sm:$0xff]
        %v9775 = vld [vmem:[%s9747 + $0xd8] sm:$0xff]
        %v9776 = vld [vmem:[%s9747 + $0xe0] sm:$0xff]
        %v9777 = vld [vmem:[%s9747 + $0xe8] sm:$0xff]
        %v9778 = vld [vmem:[%s9747 + $0xf0] sm:$0xff]
        %v9779 = vld [vmem:[%s9747 + $0xf8] sm:$0xff]
        %v9780 = vld [vmem:[%s9747 + $0x100] sm:$0xff]
        %v9781 = vld [vmem:[%s9747 + $0x108] sm:$0xff]
        %v9782 = vld [vmem:[%s9747 + $0x110] sm:$0xff]
        %v9783 = vld [vmem:[%s9747 + $0x118] sm:$0xff]
        %v9784 = vld [vmem:[%s9747 + $0x120] sm:$0xff]
        %v9785 = vld [vmem:[%s9747 + $0x128] sm:$0xff]
        %v9786 = vld [vmem:[%s9747 + $0x130] sm:$0xff]
        %v9787 = vld [vmem:[%s9747 + $0x138] sm:$0xff]
        %v9788 = vld [vmem:[%s9747 + $0x140] sm:$0xff]
        %v9789 = vld [vmem:[%s9747 + $0x148] sm:$0xff]
        %v9790 = vld [vmem:[%s9747 + $0x150] sm:$0xff]
        %v9791 = vld [vmem:[%s9747 + $0x158] sm:$0xff]
        %v9792 = vld [vmem:[%s9747 + $0x160] sm:$0xff]
        %v9793 = vld [vmem:[%s9747 + $0x168] sm:$0xff]
        %v9794 = vld [vmem:[%s9747 + $0x170] sm:$0xff]
        %v9795 = vld [vmem:[%s9747 + $0x178] sm:$0xff]
        %v9796 = vld [vmem:[%s9747 + $0x180] sm:$0xff]
        %v9797 = vld [vmem:[%s9747 + $0x188] sm:$0xff]
        %v9798 = vld [vmem:[%s9747 + $0x190] sm:$0xff]
        %v9799 = vld [vmem:[%s9747 + $0x198] sm:$0xff]
        %v9800 = vld [vmem:[%s9747 + $0x1a0] sm:$0xff]
        %v9801 = vld [vmem:[%s9747 + $0x1a8] sm:$0xff]
        %v9802 = vld [vmem:[%s9747 + $0x1b0] sm:$0xff]
        %v9803 = vld [vmem:[%s9747 + $0x1b8] sm:$0xff]
        %v9804 = vld [vmem:[%s9747 + $0x1c0] sm:$0xff]
        %v9805 = vld [vmem:[%s9747 + $0x1c8] sm:$0xff]
        %v9806 = vld [vmem:[%s9747 + $0x1d0] sm:$0xff]
        %v9807 = vld [vmem:[%s9747 + $0x1d8] sm:$0xff]
        %v9808 = vld [vmem:[%s9747 + $0x1e0] sm:$0xff]
        %v9809 = vld [vmem:[%s9747 + $0x1e8] sm:$0xff]
        %v9810 = vld [vmem:[%s9747 + $0x1f0] sm:$0xff]
        %v9811 = vld [vmem:[%s9747 + $0x1f8] sm:$0xff]
        %v9812 = vld [vmem:[%s9747 + $0x200] sm:$0xff]
        %v9813 = vld [vmem:[%s9747 + $0x208] sm:$0xff]
        %v9814 = vld [vmem:[%s9747 + $0x210] sm:$0xff]
        %v9815 = vld [vmem:[%s9747 + $0x218] sm:$0xff]
        %v9816 = vld [vmem:[%s9747 + $0x220] sm:$0xff]
        %v9817 = vld [vmem:[%s9747 + $0x228] sm:$0xff]
        %v9818 = vld [vmem:[%s9747 + $0x230] sm:$0xff]
        %v9819 = vld [vmem:[%s9747 + $0x238] sm:$0xff]
        %v9820 = vld [vmem:[%s9747 + $0x240] sm:$0xff]
        %v9821 = vld [vmem:[%s9747 + $0x248] sm:$0xff]
        %v9822 = vld [vmem:[%s9747 + $0x250] sm:$0xff]
        %v9823 = vld [vmem:[%s9747 + $0x258] sm:$0xff]
        %v9824 = vld [vmem:[%s9747 + $0x260] sm:$0xff]
        %v9825 = vld [vmem:[%s9747 + $0x268] sm:$0xff]
        %v9826 = vld [vmem:[%s9747 + $0x270] sm:$0xff]
        %v9827 = vld [vmem:[%s9747 + $0x278] sm:$0xff]
        %v9828 = vld [vmem:[%s9747 + $0x280] sm:$0xff]
        %v9829 = vld [vmem:[%s9747 + $0x288] sm:$0xff]
        %v9830 = vld [vmem:[%s9747 + $0x290] sm:$0xff]
        %v9831 = vld [vmem:[%s9747 + $0x298] sm:$0xff]
        %v9832 = vld [vmem:[%s9747 + $0x2a0] sm:$0xff]
        %v9833 = vld [vmem:[%s9747 + $0x2a8] sm:$0xff]
        %v9834 = vld [vmem:[%s9747 + $0x2b0] sm:$0xff]
        %v9835 = vld [vmem:[%s9747 + $0x2b8] sm:$0xff]
        %v9836 = vld [vmem:[%s9747 + $0x2c0] sm:$0xff]
        %v9837 = vld [vmem:[%s9747 + $0x2c8] sm:$0xff]
        %v9838 = vld [vmem:[%s9747 + $0x2d0] sm:$0xff]
        %v9839 = vld [vmem:[%s9747 + $0x2d8] sm:$0xff]
        %v9840 = vld [vmem:[%s9747 + $0x2e0] sm:$0xff]
        %v9841 = vld [vmem:[%s9747 + $0x2e8] sm:$0xff]
        %v9842 = vld [vmem:[%s9747 + $0x2f0] sm:$0xff]
        %v9843 = vld [vmem:[%s9747 + $0x2f8] sm:$0xff]
        %v9844 = vld [vmem:[%s9747 + $0x300] sm:$0xff]
        %v9845 = vld [vmem:[%s9747 + $0x308] sm:$0xff]
        %v9846 = vld [vmem:[%s9747 + $0x310] sm:$0xff]
        %v9847 = vld [vmem:[%s9747 + $0x318] sm:$0xff]
        %v9848 = vld [vmem:[%s9747 + $0x320] sm:$0xff]
        %v9849 = vld [vmem:[%s9747 + $0x328] sm:$0xff]
        %v9850 = vld [vmem:[%s9747 + $0x330] sm:$0xff]
        %v9851 = vld [vmem:[%s9747 + $0x338] sm:$0xff]
        %v9852 = vld [vmem:[%s9747 + $0x340] sm:$0xff]
        %v9853 = vld [vmem:[%s9747 + $0x348] sm:$0xff]
        %v9854 = vld [vmem:[%s9747 + $0x350] sm:$0xff]
        %v9855 = vld [vmem:[%s9747 + $0x358] sm:$0xff]
        %v9856 = vld [vmem:[%s9747 + $0x360] sm:$0xff]
        %v9857 = vld [vmem:[%s9747 + $0x368] sm:$0xff]
        %v9858 = vld [vmem:[%s9747 + $0x370] sm:$0xff]
        %v9859 = vld [vmem:[%s9747 + $0x378] sm:$0xff]
        %v9860 = vld [vmem:[%s9747 + $0x380] sm:$0xff]
        %v9861 = vld [vmem:[%s9747 + $0x388] sm:$0xff]
        %v9862 = vld [vmem:[%s9747 + $0x390] sm:$0xff]
        %v9863 = vld [vmem:[%s9747 + $0x398] sm:$0xff]
        %v9864 = vld [vmem:[%s9747 + $0x3a0] sm:$0xff]
        %v9865 = vld [vmem:[%s9747 + $0x3a8] sm:$0xff]
        %v9866 = vld [vmem:[%s9747 + $0x3b0] sm:$0xff]
        %v9867 = vld [vmem:[%s9747 + $0x3b8] sm:$0xff]
        %v9868 = vld [vmem:[%s9747 + $0x3c0] sm:$0xff]
        %v9869 = vld [vmem:[%s9747 + $0x3c8] sm:$0xff]
        %v9870 = vld [vmem:[%s9747 + $0x3d0] sm:$0xff]
        %v9871 = vld [vmem:[%s9747 + $0x3d8] sm:$0xff]
        %v9872 = vld [vmem:[%s9747 + $0x3e0] sm:$0xff]
        %v9873 = vld [vmem:[%s9747 + $0x3e8] sm:$0xff]
        %v9874 = vld [vmem:[%s9747 + $0x3f0] sm:$0xff]
        %v9875 = vld [vmem:[%s9747 + $0x3f8] sm:$0xff]
        %9876 = vset.pattern.permute.xlu0 2
        %9877 = vperm.xlu0 %9876, %v7503
        %v9878 = vpop.permute.xlu0 %9877
        %9880 = vset.pattern.permute.xlu0 2
        %9881 = vperm.xlu0 %9880, %v7504
        %v9882 = vpop.permute.xlu0 %9881
        %9884 = vset.pattern.permute.xlu0 2
        %9885 = vperm.xlu0 %9884, %v7505
        %v9886 = vpop.permute.xlu0 %9885
        %9888 = vset.pattern.permute.xlu0 2
        %9889 = vperm.xlu0 %9888, %v7506
        %v9890 = vpop.permute.xlu0 %9889
        %9892 = vset.pattern.permute.xlu0 2
        %9893 = vperm.xlu0 %9892, %v7507
        %v9894 = vpop.permute.xlu0 %9893
        %9896 = vset.pattern.permute.xlu0 2
        %9897 = vperm.xlu0 %9896, %v7508
        %v9898 = vpop.permute.xlu0 %9897
        %9900 = vset.pattern.permute.xlu0 2
        %9901 = vperm.xlu0 %9900, %v7509
        %v9902 = vpop.permute.xlu0 %9901
        %9904 = vset.pattern.permute.xlu0 2
        %9905 = vperm.xlu0 %9904, %v7510
        %v9906 = vpop.permute.xlu0 %9905
        %9908 = vset.pattern.permute.xlu0 2
        %9909 = vperm.xlu0 %9908, %v7511
        %v9910 = vpop.permute.xlu0 %9909
        %9912 = vset.pattern.permute.xlu0 2
        %9913 = vperm.xlu0 %9912, %v7512
        %v9914 = vpop.permute.xlu0 %9913
        %9916 = vset.pattern.permute.xlu0 2
        %9917 = vperm.xlu0 %9916, %v7513
        %v9918 = vpop.permute.xlu0 %9917
        %9920 = vset.pattern.permute.xlu0 2
        %9921 = vperm.xlu0 %9920, %v7514
        %v9922 = vpop.permute.xlu0 %9921
        %9924 = vset.pattern.permute.xlu0 2
        %9925 = vperm.xlu0 %9924, %v7515
        %v9926 = vpop.permute.xlu0 %9925
        %9928 = vset.pattern.permute.xlu0 2
        %9929 = vperm.xlu0 %9928, %v7516
        %v9930 = vpop.permute.xlu0 %9929
        %9932 = vset.pattern.permute.xlu0 2
        %9933 = vperm.xlu0 %9932, %v7517
        %v9934 = vpop.permute.xlu0 %9933
        %9936 = vset.pattern.permute.xlu0 2
        %9937 = vperm.xlu0 %9936, %v7518
        %v9938 = vpop.permute.xlu0 %9937
        %9940 = vset.pattern.permute.xlu0 2
        %9941 = vperm.xlu0 %9940, %v7519
        %v9942 = vpop.permute.xlu0 %9941
        %9944 = vset.pattern.permute.xlu0 2
        %9945 = vperm.xlu0 %9944, %v7520
        %v9946 = vpop.permute.xlu0 %9945
        %9948 = vset.pattern.permute.xlu0 2
        %9949 = vperm.xlu0 %9948, %v7521
        %v9950 = vpop.permute.xlu0 %9949
        %9952 = vset.pattern.permute.xlu0 2
        %9953 = vperm.xlu0 %9952, %v7522
        %v9954 = vpop.permute.xlu0 %9953
        %9956 = vset.pattern.permute.xlu0 2
        %9957 = vperm.xlu0 %9956, %v7523
        %v9958 = vpop.permute.xlu0 %9957
        %9960 = vset.pattern.permute.xlu0 2
        %9961 = vperm.xlu0 %9960, %v7524
        %v9962 = vpop.permute.xlu0 %9961
        %9964 = vset.pattern.permute.xlu0 2
        %9965 = vperm.xlu0 %9964, %v7525
        %v9966 = vpop.permute.xlu0 %9965
        %9968 = vset.pattern.permute.xlu0 2
        %9969 = vperm.xlu0 %9968, %v7526
        %v9970 = vpop.permute.xlu0 %9969
        %9972 = vset.pattern.permute.xlu0 2
        %9973 = vperm.xlu0 %9972, %v7527
        %v9974 = vpop.permute.xlu0 %9973
        %9976 = vset.pattern.permute.xlu0 2
        %9977 = vperm.xlu0 %9976, %v7528
        %v9978 = vpop.permute.xlu0 %9977
        %9980 = vset.pattern.permute.xlu0 2
        %9981 = vperm.xlu0 %9980, %v7529
        %v9982 = vpop.permute.xlu0 %9981
        %9984 = vset.pattern.permute.xlu0 2
        %9985 = vperm.xlu0 %9984, %v7530
        %v9986 = vpop.permute.xlu0 %9985
        %9988 = vset.pattern.permute.xlu0 2
        %9989 = vperm.xlu0 %9988, %v7531
        %v9990 = vpop.permute.xlu0 %9989
        %9992 = vset.pattern.permute.xlu0 2
        %9993 = vperm.xlu0 %9992, %v7532
        %v9994 = vpop.permute.xlu0 %9993
        %9996 = vset.pattern.permute.xlu0 2
        %9997 = vperm.xlu0 %9996, %v7533
        %v9998 = vpop.permute.xlu0 %9997
        %10000 = vset.pattern.permute.xlu0 2
        %10001 = vperm.xlu0 %10000, %v7534
        %v10002 = vpop.permute.xlu0 %10001
        %10004 = vset.pattern.permute.xlu0 2
        %10005 = vperm.xlu0 %10004, %v7535
        %v10006 = vpop.permute.xlu0 %10005
        %10008 = vset.pattern.permute.xlu0 2
        %10009 = vperm.xlu0 %10008, %v7536
        %v10010 = vpop.permute.xlu0 %10009
        %10012 = vset.pattern.permute.xlu0 2
        %10013 = vperm.xlu0 %10012, %v7537
        %v10014 = vpop.permute.xlu0 %10013
        %10016 = vset.pattern.permute.xlu0 2
        %10017 = vperm.xlu0 %10016, %v7538
        %v10018 = vpop.permute.xlu0 %10017
        %10020 = vset.pattern.permute.xlu0 2
        %10021 = vperm.xlu0 %10020, %v7539
        %v10022 = vpop.permute.xlu0 %10021
        %10024 = vset.pattern.permute.xlu0 2
        %10025 = vperm.xlu0 %10024, %v7540
        %v10026 = vpop.permute.xlu0 %10025
        %10028 = vset.pattern.permute.xlu0 2
        %10029 = vperm.xlu0 %10028, %v7541
        %v10030 = vpop.permute.xlu0 %10029
        %10032 = vset.pattern.permute.xlu0 2
        %10033 = vperm.xlu0 %10032, %v7542
        %v10034 = vpop.permute.xlu0 %10033
        %10036 = vset.pattern.permute.xlu0 2
        %10037 = vperm.xlu0 %10036, %v7543
        %v10038 = vpop.permute.xlu0 %10037
        %10040 = vset.pattern.permute.xlu0 2
        %10041 = vperm.xlu0 %10040, %v7544
        %v10042 = vpop.permute.xlu0 %10041
        %10044 = vset.pattern.permute.xlu0 2
        %10045 = vperm.xlu0 %10044, %v7545
        %v10046 = vpop.permute.xlu0 %10045
        %10048 = vset.pattern.permute.xlu0 2
        %10049 = vperm.xlu0 %10048, %v7546
        %v10050 = vpop.permute.xlu0 %10049
        %10052 = vset.pattern.permute.xlu0 2
        %10053 = vperm.xlu0 %10052, %v7547
        %v10054 = vpop.permute.xlu0 %10053
        %10056 = vset.pattern.permute.xlu0 2
        %10057 = vperm.xlu0 %10056, %v7548
        %v10058 = vpop.permute.xlu0 %10057
        %10060 = vset.pattern.permute.xlu0 2
        %10061 = vperm.xlu0 %10060, %v7549
        %v10062 = vpop.permute.xlu0 %10061
        %10064 = vset.pattern.permute.xlu0 2
        %10065 = vperm.xlu0 %10064, %v7550
        %v10066 = vpop.permute.xlu0 %10065
        %10068 = vset.pattern.permute.xlu0 2
        %10069 = vperm.xlu0 %10068, %v7551
        %v10070 = vpop.permute.xlu0 %10069
        %10072 = vset.pattern.permute.xlu0 2
        %10073 = vperm.xlu0 %10072, %v7552
        %v10074 = vpop.permute.xlu0 %10073
        %10076 = vset.pattern.permute.xlu0 2
        %10077 = vperm.xlu0 %10076, %v7553
        %v10078 = vpop.permute.xlu0 %10077
        %10080 = vset.pattern.permute.xlu0 2
        %10081 = vperm.xlu0 %10080, %v7554
        %v10082 = vpop.permute.xlu0 %10081
        %10084 = vset.pattern.permute.xlu0 2
        %10085 = vperm.xlu0 %10084, %v7555
        %v10086 = vpop.permute.xlu0 %10085
        %10088 = vset.pattern.permute.xlu0 2
        %10089 = vperm.xlu0 %10088, %v7556
        %v10090 = vpop.permute.xlu0 %10089
        %10092 = vset.pattern.permute.xlu0 2
        %10093 = vperm.xlu0 %10092, %v7557
        %v10094 = vpop.permute.xlu0 %10093
        %10096 = vset.pattern.permute.xlu0 2
        %10097 = vperm.xlu0 %10096, %v7558
        %v10098 = vpop.permute.xlu0 %10097
        %10100 = vset.pattern.permute.xlu0 2
        %10101 = vperm.xlu0 %10100, %v7559
        %v10102 = vpop.permute.xlu0 %10101
        %10104 = vset.pattern.permute.xlu0 2
        %10105 = vperm.xlu0 %10104, %v7560
        %v10106 = vpop.permute.xlu0 %10105
        %10108 = vset.pattern.permute.xlu0 2
        %10109 = vperm.xlu0 %10108, %v7561
        %v10110 = vpop.permute.xlu0 %10109
        %10112 = vset.pattern.permute.xlu0 2
        %10113 = vperm.xlu0 %10112, %v7562
        %v10114 = vpop.permute.xlu0 %10113
        %10116 = vset.pattern.permute.xlu0 2
        %10117 = vperm.xlu0 %10116, %v7563
        %v10118 = vpop.permute.xlu0 %10117
        %10120 = vset.pattern.permute.xlu0 2
        %10121 = vperm.xlu0 %10120, %v7564
        %v10122 = vpop.permute.xlu0 %10121
        %10124 = vset.pattern.permute.xlu0 2
        %10125 = vperm.xlu0 %10124, %v7565
        %v10126 = vpop.permute.xlu0 %10125
        %10128 = vset.pattern.permute.xlu0 2
        %10129 = vperm.xlu0 %10128, %v7566
        %v10130 = vpop.permute.xlu0 %10129
        %v10260 = vunpack.c.l.b16 %v9748
        %v10261 = vunpack.c.h.b16 %v9748
        %v10262 = vunpack.c.l.b16 %v9749
        %v10263 = vunpack.c.h.b16 %v9749
        %v10264 = vunpack.c.l.b16 %v9750
        %v10265 = vunpack.c.h.b16 %v9750
        %v10266 = vunpack.c.l.b16 %v9751
        %v10267 = vunpack.c.h.b16 %v9751
        %v10268 = vunpack.c.l.b16 %v9752
        %v10269 = vunpack.c.h.b16 %v9752
        %v10270 = vunpack.c.l.b16 %v9753
        %v10271 = vunpack.c.h.b16 %v9753
        %v10272 = vunpack.c.l.b16 %v9754
        %v10273 = vunpack.c.h.b16 %v9754
        %v10274 = vunpack.c.l.b16 %v9755
        %v10275 = vunpack.c.h.b16 %v9755
        %v10276 = vunpack.c.l.b16 %v9756
        %v10277 = vunpack.c.h.b16 %v9756
        %v10278 = vunpack.c.l.b16 %v9757
        %v10279 = vunpack.c.h.b16 %v9757
        %v10280 = vunpack.c.l.b16 %v9758
        %v10281 = vunpack.c.h.b16 %v9758
        %v10282 = vunpack.c.l.b16 %v9759
        %v10283 = vunpack.c.h.b16 %v9759
        %v10284 = vunpack.c.l.b16 %v9760
        %v10285 = vunpack.c.h.b16 %v9760
        %v10286 = vunpack.c.l.b16 %v9761
        %v10287 = vunpack.c.h.b16 %v9761
        %v10288 = vunpack.c.l.b16 %v9762
        %v10289 = vunpack.c.h.b16 %v9762
        %v10290 = vunpack.c.l.b16 %v9763
        %v10291 = vunpack.c.h.b16 %v9763
        %v10292 = vunpack.c.l.b16 %v9764
        %v10293 = vunpack.c.h.b16 %v9764
        %v10294 = vunpack.c.l.b16 %v9765
        %v10295 = vunpack.c.h.b16 %v9765
        %v10296 = vunpack.c.l.b16 %v9766
        %v10297 = vunpack.c.h.b16 %v9766
        %v10298 = vunpack.c.l.b16 %v9767
        %v10299 = vunpack.c.h.b16 %v9767
        %v10300 = vunpack.c.l.b16 %v9768
        %v10301 = vunpack.c.h.b16 %v9768
        %v10302 = vunpack.c.l.b16 %v9769
        %v10303 = vunpack.c.h.b16 %v9769
        %v10304 = vunpack.c.l.b16 %v9770
        %v10305 = vunpack.c.h.b16 %v9770
        %v10306 = vunpack.c.l.b16 %v9771
        %v10307 = vunpack.c.h.b16 %v9771
        %v10308 = vunpack.c.l.b16 %v9772
        %v10309 = vunpack.c.h.b16 %v9772
        %v10310 = vunpack.c.l.b16 %v9773
        %v10311 = vunpack.c.h.b16 %v9773
        %v10312 = vunpack.c.l.b16 %v9774
        %v10313 = vunpack.c.h.b16 %v9774
        %v10314 = vunpack.c.l.b16 %v9775
        %v10315 = vunpack.c.h.b16 %v9775
        %v10316 = vunpack.c.l.b16 %v9776
        %v10317 = vunpack.c.h.b16 %v9776
        %v10318 = vunpack.c.l.b16 %v9777
        %v10319 = vunpack.c.h.b16 %v9777
        %v10320 = vunpack.c.l.b16 %v9778
        %v10321 = vunpack.c.h.b16 %v9778
        %v10322 = vunpack.c.l.b16 %v9779
        %v10323 = vunpack.c.h.b16 %v9779
        %v10324 = vunpack.c.l.b16 %v9780
        %v10325 = vunpack.c.h.b16 %v9780
        %v10326 = vunpack.c.l.b16 %v9781
        %v10327 = vunpack.c.h.b16 %v9781
        %v10328 = vunpack.c.l.b16 %v9782
        %v10329 = vunpack.c.h.b16 %v9782
        %v10330 = vunpack.c.l.b16 %v9783
        %v10331 = vunpack.c.h.b16 %v9783
        %v10332 = vunpack.c.l.b16 %v9784
        %v10333 = vunpack.c.h.b16 %v9784
        %v10334 = vunpack.c.l.b16 %v9785
        %v10335 = vunpack.c.h.b16 %v9785
        %v10336 = vunpack.c.l.b16 %v9786
        %v10337 = vunpack.c.h.b16 %v9786
        %v10338 = vunpack.c.l.b16 %v9787
        %v10339 = vunpack.c.h.b16 %v9787
        %v10340 = vunpack.c.l.b16 %v9788
        %v10341 = vunpack.c.h.b16 %v9788
        %v10342 = vunpack.c.l.b16 %v9789
        %v10343 = vunpack.c.h.b16 %v9789
        %v10344 = vunpack.c.l.b16 %v9790
        %v10345 = vunpack.c.h.b16 %v9790
        %v10346 = vunpack.c.l.b16 %v9791
        %v10347 = vunpack.c.h.b16 %v9791
        %v10348 = vunpack.c.l.b16 %v9792
        %v10349 = vunpack.c.h.b16 %v9792
        %v10350 = vunpack.c.l.b16 %v9793
        %v10351 = vunpack.c.h.b16 %v9793
        %v10352 = vunpack.c.l.b16 %v9794
        %v10353 = vunpack.c.h.b16 %v9794
        %v10354 = vunpack.c.l.b16 %v9795
        %v10355 = vunpack.c.h.b16 %v9795
        %v10356 = vunpack.c.l.b16 %v9796
        %v10357 = vunpack.c.h.b16 %v9796
        %v10358 = vunpack.c.l.b16 %v9797
        %v10359 = vunpack.c.h.b16 %v9797
        %v10360 = vunpack.c.l.b16 %v9798
        %v10361 = vunpack.c.h.b16 %v9798
        %v10362 = vunpack.c.l.b16 %v9799
        %v10363 = vunpack.c.h.b16 %v9799
        %v10364 = vunpack.c.l.b16 %v9800
        %v10365 = vunpack.c.h.b16 %v9800
        %v10366 = vunpack.c.l.b16 %v9801
        %v10367 = vunpack.c.h.b16 %v9801
        %v10368 = vunpack.c.l.b16 %v9802
        %v10369 = vunpack.c.h.b16 %v9802
        %v10370 = vunpack.c.l.b16 %v9803
        %v10371 = vunpack.c.h.b16 %v9803
        %v10372 = vunpack.c.l.b16 %v9804
        %v10373 = vunpack.c.h.b16 %v9804
        %v10374 = vunpack.c.l.b16 %v9805
        %v10375 = vunpack.c.h.b16 %v9805
        %v10376 = vunpack.c.l.b16 %v9806
        %v10377 = vunpack.c.h.b16 %v9806
        %v10378 = vunpack.c.l.b16 %v9807
        %v10379 = vunpack.c.h.b16 %v9807
        %v10380 = vunpack.c.l.b16 %v9808
        %v10381 = vunpack.c.h.b16 %v9808
        %v10382 = vunpack.c.l.b16 %v9809
        %v10383 = vunpack.c.h.b16 %v9809
        %v10384 = vunpack.c.l.b16 %v9810
        %v10385 = vunpack.c.h.b16 %v9810
        %v10386 = vunpack.c.l.b16 %v9811
        %v10387 = vunpack.c.h.b16 %v9811
        %v10388 = vunpack.c.l.b16 %v9812
        %v10389 = vunpack.c.h.b16 %v9812
        %v10390 = vunpack.c.l.b16 %v9813
        %v10391 = vunpack.c.h.b16 %v9813
        %v10392 = vunpack.c.l.b16 %v9814
        %v10393 = vunpack.c.h.b16 %v9814
        %v10394 = vunpack.c.l.b16 %v9815
        %v10395 = vunpack.c.h.b16 %v9815
        %v10396 = vunpack.c.l.b16 %v9816
        %v10397 = vunpack.c.h.b16 %v9816
        %v10398 = vunpack.c.l.b16 %v9817
        %v10399 = vunpack.c.h.b16 %v9817
        %v10400 = vunpack.c.l.b16 %v9818
        %v10401 = vunpack.c.h.b16 %v9818
        %v10402 = vunpack.c.l.b16 %v9819
        %v10403 = vunpack.c.h.b16 %v9819
        %v10404 = vunpack.c.l.b16 %v9820
        %v10405 = vunpack.c.h.b16 %v9820
        %v10406 = vunpack.c.l.b16 %v9821
        %v10407 = vunpack.c.h.b16 %v9821
        %v10408 = vunpack.c.l.b16 %v9822
        %v10409 = vunpack.c.h.b16 %v9822
        %v10410 = vunpack.c.l.b16 %v9823
        %v10411 = vunpack.c.h.b16 %v9823
        %v10412 = vunpack.c.l.b16 %v9824
        %v10413 = vunpack.c.h.b16 %v9824
        %v10414 = vunpack.c.l.b16 %v9825
        %v10415 = vunpack.c.h.b16 %v9825
        %v10416 = vunpack.c.l.b16 %v9826
        %v10417 = vunpack.c.h.b16 %v9826
        %v10418 = vunpack.c.l.b16 %v9827
        %v10419 = vunpack.c.h.b16 %v9827
        %v10420 = vunpack.c.l.b16 %v9828
        %v10421 = vunpack.c.h.b16 %v9828
        %v10422 = vunpack.c.l.b16 %v9829
        %v10423 = vunpack.c.h.b16 %v9829
        %v10424 = vunpack.c.l.b16 %v9830
        %v10425 = vunpack.c.h.b16 %v9830
        %v10426 = vunpack.c.l.b16 %v9831
        %v10427 = vunpack.c.h.b16 %v9831
        %v10428 = vunpack.c.l.b16 %v9832
        %v10429 = vunpack.c.h.b16 %v9832
        %v10430 = vunpack.c.l.b16 %v9833
        %v10431 = vunpack.c.h.b16 %v9833
        %v10432 = vunpack.c.l.b16 %v9834
        %v10433 = vunpack.c.h.b16 %v9834
        %v10434 = vunpack.c.l.b16 %v9835
        %v10435 = vunpack.c.h.b16 %v9835
        %v10436 = vunpack.c.l.b16 %v9836
        %v10437 = vunpack.c.h.b16 %v9836
        %v10438 = vunpack.c.l.b16 %v9837
        %v10439 = vunpack.c.h.b16 %v9837
        %v10440 = vunpack.c.l.b16 %v9838
        %v10441 = vunpack.c.h.b16 %v9838
        %v10442 = vunpack.c.l.b16 %v9839
        %v10443 = vunpack.c.h.b16 %v9839
        %v10444 = vunpack.c.l.b16 %v9840
        %v10445 = vunpack.c.h.b16 %v9840
        %v10446 = vunpack.c.l.b16 %v9841
        %v10447 = vunpack.c.h.b16 %v9841
        %v10448 = vunpack.c.l.b16 %v9842
        %v10449 = vunpack.c.h.b16 %v9842
        %v10450 = vunpack.c.l.b16 %v9843
        %v10451 = vunpack.c.h.b16 %v9843
        %v10452 = vunpack.c.l.b16 %v9844
        %v10453 = vunpack.c.h.b16 %v9844
        %v10454 = vunpack.c.l.b16 %v9845
        %v10455 = vunpack.c.h.b16 %v9845
        %v10456 = vunpack.c.l.b16 %v9846
        %v10457 = vunpack.c.h.b16 %v9846
        %v10458 = vunpack.c.l.b16 %v9847
        %v10459 = vunpack.c.h.b16 %v9847
        %v10460 = vunpack.c.l.b16 %v9848
        %v10461 = vunpack.c.h.b16 %v9848
        %v10462 = vunpack.c.l.b16 %v9849
        %v10463 = vunpack.c.h.b16 %v9849
        %v10464 = vunpack.c.l.b16 %v9850
        %v10465 = vunpack.c.h.b16 %v9850
        %v10466 = vunpack.c.l.b16 %v9851
        %v10467 = vunpack.c.h.b16 %v9851
        %v10468 = vunpack.c.l.b16 %v9852
        %v10469 = vunpack.c.h.b16 %v9852
        %v10470 = vunpack.c.l.b16 %v9853
        %v10471 = vunpack.c.h.b16 %v9853
        %v10472 = vunpack.c.l.b16 %v9854
        %v10473 = vunpack.c.h.b16 %v9854
        %v10474 = vunpack.c.l.b16 %v9855
        %v10475 = vunpack.c.h.b16 %v9855
        %v10476 = vunpack.c.l.b16 %v9856
        %v10477 = vunpack.c.h.b16 %v9856
        %v10478 = vunpack.c.l.b16 %v9857
        %v10479 = vunpack.c.h.b16 %v9857
        %v10480 = vunpack.c.l.b16 %v9858
        %v10481 = vunpack.c.h.b16 %v9858
        %v10482 = vunpack.c.l.b16 %v9859
        %v10483 = vunpack.c.h.b16 %v9859
        %v10484 = vunpack.c.l.b16 %v9860
        %v10485 = vunpack.c.h.b16 %v9860
        %v10486 = vunpack.c.l.b16 %v9861
        %v10487 = vunpack.c.h.b16 %v9861
        %v10488 = vunpack.c.l.b16 %v9862
        %v10489 = vunpack.c.h.b16 %v9862
        %v10490 = vunpack.c.l.b16 %v9863
        %v10491 = vunpack.c.h.b16 %v9863
        %v10492 = vunpack.c.l.b16 %v9864
        %v10493 = vunpack.c.h.b16 %v9864
        %v10494 = vunpack.c.l.b16 %v9865
        %v10495 = vunpack.c.h.b16 %v9865
        %v10496 = vunpack.c.l.b16 %v9866
        %v10497 = vunpack.c.h.b16 %v9866
        %v10498 = vunpack.c.l.b16 %v9867
        %v10499 = vunpack.c.h.b16 %v9867
        %v10500 = vunpack.c.l.b16 %v9868
        %v10501 = vunpack.c.h.b16 %v9868
        %v10502 = vunpack.c.l.b16 %v9869
        %v10503 = vunpack.c.h.b16 %v9869
        %v10504 = vunpack.c.l.b16 %v9870
        %v10505 = vunpack.c.h.b16 %v9870
        %v10506 = vunpack.c.l.b16 %v9871
        %v10507 = vunpack.c.h.b16 %v9871
        %v10508 = vunpack.c.l.b16 %v9872
        %v10509 = vunpack.c.h.b16 %v9872
        %v10510 = vunpack.c.l.b16 %v9873
        %v10511 = vunpack.c.h.b16 %v9873
        %v10512 = vunpack.c.l.b16 %v9874
        %v10513 = vunpack.c.h.b16 %v9874
        %v10514 = vunpack.c.l.b16 %v9875
        %v10515 = vunpack.c.h.b16 %v9875
        %v10516 = vpack.c.b16 %v10264, %v10260
        %v10517 = vpack.c.b16 %v10265, %v10261
        %v10518 = vpack.c.b16 %v10266, %v10262
        %v10519 = vpack.c.b16 %v10267, %v10263
        %v10520 = vpack.c.b16 %v10272, %v10268
        %v10521 = vpack.c.b16 %v10273, %v10269
        %v10522 = vpack.c.b16 %v10274, %v10270
        %v10523 = vpack.c.b16 %v10275, %v10271
        %v10524 = vpack.c.b16 %v10280, %v10276
        %v10525 = vpack.c.b16 %v10281, %v10277
        %v10526 = vpack.c.b16 %v10282, %v10278
        %v10527 = vpack.c.b16 %v10283, %v10279
        %v10528 = vpack.c.b16 %v10288, %v10284
        %v10529 = vpack.c.b16 %v10289, %v10285
        %v10530 = vpack.c.b16 %v10290, %v10286
        %v10531 = vpack.c.b16 %v10291, %v10287
        %v10532 = vpack.c.b16 %v10296, %v10292
        %v10533 = vpack.c.b16 %v10297, %v10293
        %v10534 = vpack.c.b16 %v10298, %v10294
        %v10535 = vpack.c.b16 %v10299, %v10295
        %v10536 = vpack.c.b16 %v10304, %v10300
        %v10537 = vpack.c.b16 %v10305, %v10301
        %v10538 = vpack.c.b16 %v10306, %v10302
        %v10539 = vpack.c.b16 %v10307, %v10303
        %v10540 = vpack.c.b16 %v10312, %v10308
        %v10541 = vpack.c.b16 %v10313, %v10309
        %v10542 = vpack.c.b16 %v10314, %v10310
        %v10543 = vpack.c.b16 %v10315, %v10311
        %v10544 = vpack.c.b16 %v10320, %v10316
        %v10545 = vpack.c.b16 %v10321, %v10317
        %v10546 = vpack.c.b16 %v10322, %v10318
        %v10547 = vpack.c.b16 %v10323, %v10319
        %v10548 = vpack.c.b16 %v10328, %v10324
        %v10549 = vpack.c.b16 %v10329, %v10325
        %v10550 = vpack.c.b16 %v10330, %v10326
        %v10551 = vpack.c.b16 %v10331, %v10327
        %v10552 = vpack.c.b16 %v10336, %v10332
        %v10553 = vpack.c.b16 %v10337, %v10333
        %v10554 = vpack.c.b16 %v10338, %v10334
        %v10555 = vpack.c.b16 %v10339, %v10335
        %v10556 = vpack.c.b16 %v10344, %v10340
        %v10557 = vpack.c.b16 %v10345, %v10341
        %v10558 = vpack.c.b16 %v10346, %v10342
        %v10559 = vpack.c.b16 %v10347, %v10343
        %v10560 = vpack.c.b16 %v10352, %v10348
        %v10561 = vpack.c.b16 %v10353, %v10349
        %v10562 = vpack.c.b16 %v10354, %v10350
        %v10563 = vpack.c.b16 %v10355, %v10351
        %v10564 = vpack.c.b16 %v10360, %v10356
        %v10565 = vpack.c.b16 %v10361, %v10357
        %v10566 = vpack.c.b16 %v10362, %v10358
        %v10567 = vpack.c.b16 %v10363, %v10359
        %v10568 = vpack.c.b16 %v10368, %v10364
        %v10569 = vpack.c.b16 %v10369, %v10365
        %v10570 = vpack.c.b16 %v10370, %v10366
        %v10571 = vpack.c.b16 %v10371, %v10367
        %v10572 = vpack.c.b16 %v10376, %v10372
        %v10573 = vpack.c.b16 %v10377, %v10373
        %v10574 = vpack.c.b16 %v10378, %v10374
        %v10575 = vpack.c.b16 %v10379, %v10375
        %v10576 = vpack.c.b16 %v10384, %v10380
        %v10577 = vpack.c.b16 %v10385, %v10381
        %v10578 = vpack.c.b16 %v10386, %v10382
        %v10579 = vpack.c.b16 %v10387, %v10383
        %v10580 = vpack.c.b16 %v10392, %v10388
        %v10581 = vpack.c.b16 %v10393, %v10389
        %v10582 = vpack.c.b16 %v10394, %v10390
        %v10583 = vpack.c.b16 %v10395, %v10391
        %v10584 = vpack.c.b16 %v10400, %v10396
        %v10585 = vpack.c.b16 %v10401, %v10397
        %v10586 = vpack.c.b16 %v10402, %v10398
        %v10587 = vpack.c.b16 %v10403, %v10399
        %v10588 = vpack.c.b16 %v10408, %v10404
        %v10589 = vpack.c.b16 %v10409, %v10405
        %v10590 = vpack.c.b16 %v10410, %v10406
        %v10591 = vpack.c.b16 %v10411, %v10407
        %v10592 = vpack.c.b16 %v10416, %v10412
        %v10593 = vpack.c.b16 %v10417, %v10413
        %v10594 = vpack.c.b16 %v10418, %v10414
        %v10595 = vpack.c.b16 %v10419, %v10415
        %v10596 = vpack.c.b16 %v10424, %v10420
        %v10597 = vpack.c.b16 %v10425, %v10421
        %v10598 = vpack.c.b16 %v10426, %v10422
        %v10599 = vpack.c.b16 %v10427, %v10423
        %v10600 = vpack.c.b16 %v10432, %v10428
        %v10601 = vpack.c.b16 %v10433, %v10429
        %v10602 = vpack.c.b16 %v10434, %v10430
        %v10603 = vpack.c.b16 %v10435, %v10431
        %v10604 = vpack.c.b16 %v10440, %v10436
        %v10605 = vpack.c.b16 %v10441, %v10437
        %v10606 = vpack.c.b16 %v10442, %v10438
        %v10607 = vpack.c.b16 %v10443, %v10439
        %v10608 = vpack.c.b16 %v10448, %v10444
        %v10609 = vpack.c.b16 %v10449, %v10445
        %v10610 = vpack.c.b16 %v10450, %v10446
        %v10611 = vpack.c.b16 %v10451, %v10447
        %v10612 = vpack.c.b16 %v10456, %v10452
        %v10613 = vpack.c.b16 %v10457, %v10453
        %v10614 = vpack.c.b16 %v10458, %v10454
        %v10615 = vpack.c.b16 %v10459, %v10455
        %v10616 = vpack.c.b16 %v10464, %v10460
        %v10617 = vpack.c.b16 %v10465, %v10461
        %v10618 = vpack.c.b16 %v10466, %v10462
        %v10619 = vpack.c.b16 %v10467, %v10463
        %v10620 = vpack.c.b16 %v10472, %v10468
        %v10621 = vpack.c.b16 %v10473, %v10469
        %v10622 = vpack.c.b16 %v10474, %v10470
        %v10623 = vpack.c.b16 %v10475, %v10471
        %v10624 = vpack.c.b16 %v10480, %v10476
        %v10625 = vpack.c.b16 %v10481, %v10477
        %v10626 = vpack.c.b16 %v10482, %v10478
        %v10627 = vpack.c.b16 %v10483, %v10479
        %v10628 = vpack.c.b16 %v10488, %v10484
        %v10629 = vpack.c.b16 %v10489, %v10485
        %v10630 = vpack.c.b16 %v10490, %v10486
        %v10631 = vpack.c.b16 %v10491, %v10487
        %v10632 = vpack.c.b16 %v10496, %v10492
        %v10633 = vpack.c.b16 %v10497, %v10493
        %v10634 = vpack.c.b16 %v10498, %v10494
        %v10635 = vpack.c.b16 %v10499, %v10495
        %v10636 = vpack.c.b16 %v10504, %v10500
        %v10637 = vpack.c.b16 %v10505, %v10501
        %v10638 = vpack.c.b16 %v10506, %v10502
        %v10639 = vpack.c.b16 %v10507, %v10503
        %v10640 = vpack.c.b16 %v10512, %v10508
        %v10641 = vpack.c.b16 %v10513, %v10509
        %v10642 = vpack.c.b16 %v10514, %v10510
        %v10643 = vpack.c.b16 %v10515, %v10511
        %10772 = vmatprep.subr.bf16.mxu0 0
        %10773 = vmatpush1.bf16.msra.mxu0 %v9722
        %10774 = vmatprep.subr.bf16.mxu0 0
        %10775 = vmatpush1.bf16.msra.mxu0 %v9721
        %10776 = vmatprep.subr.bf16.mxu0 0
        %10777 = vmatpush1.bf16.msra.mxu0 %v9720
        %10778 = vmatprep.subr.bf16.mxu0 0
        %10779 = vmatpush1.bf16.msra.mxu0 %v9719
        %10780 = vmatprep.subr.bf16.mxu0 0
        %10781 = vmatpush1.bf16.msra.mxu0 %v9718
        %10782 = vmatprep.subr.bf16.mxu0 0
        %10783 = vmatpush1.bf16.msra.mxu0 %v9717
        %10784 = vmatprep.subr.bf16.mxu0 0
        %10785 = vmatpush1.bf16.msra.mxu0 %v9716
        %10786 = vmatprep.subr.bf16.mxu0 0
        %10787 = vmatpush1.bf16.msra.mxu0 %v9715
        %10788 = vmatprep.subr.bf16.mxu0 0
        %10789 = vmatpush2.bf16.msra.mxu0 %v9730
        %10790 = vmatprep.subr.bf16.mxu0 0
        %10791 = vmatpush2.bf16.msra.mxu0 %v9729
        %10792 = vmatprep.subr.bf16.mxu0 0
        %10793 = vmatpush2.bf16.msra.mxu0 %v9728
        %10794 = vmatprep.subr.bf16.mxu0 0
        %10795 = vmatpush2.bf16.msra.mxu0 %v9727
        %10796 = vmatprep.subr.bf16.mxu0 0
        %10797 = vmatpush2.bf16.msra.mxu0 %v9726
        %10798 = vmatprep.subr.bf16.mxu0 0
        %10799 = vmatpush2.bf16.msra.mxu0 %v9725
        %10800 = vmatprep.subr.bf16.mxu0 0
        %10801 = vmatpush2.bf16.msra.mxu0 %v9724
        %10802 = vmatprep.subr.bf16.mxu0 0
        %10803 = vmatpush2.bf16.msra.mxu0 %v9723
        %10804 = vmatprep.mubr.bf16.mxu0 %v10517
        %10805 = vmatmul.mubr.bf16.gmra.mxu0 %v10516
        %v10806 = vpop.f32.mrf.mxu0
        %v10807 = vadd.f32 %v9878, %v10806
        %v10808 = vpop.f32.mrf.mxu0
        %v10809 = vpop.f32.mrf.mxu0
        %v10810 = vadd.f32 %v9882, %v10809
        %v10811 = vpop.f32.mrf.mxu0
        %10812 = vmatprep.mubr.bf16.mxu0 %v10521
        %10813 = vmatmul.mubr.bf16.gmra.mxu0 %v10520
        %v10814 = vpop.f32.mrf.mxu0
        %v10815 = vadd.f32 %v9886, %v10814
        %v10816 = vpop.f32.mrf.mxu0
        %v10817 = vpop.f32.mrf.mxu0
        %v10818 = vadd.f32 %v9890, %v10817
        %v10819 = vpop.f32.mrf.mxu0
        %10820 = vmatprep.mubr.bf16.mxu0 %v10525
        %10821 = vmatmul.mubr.bf16.gmra.mxu0 %v10524
        %v10822 = vpop.f32.mrf.mxu0
        %v10823 = vadd.f32 %v9894, %v10822
        %v10824 = vpop.f32.mrf.mxu0
        %v10825 = vpop.f32.mrf.mxu0
        %v10826 = vadd.f32 %v9898, %v10825
        %v10827 = vpop.f32.mrf.mxu0
        %10828 = vmatprep.mubr.bf16.mxu0 %v10529
        %10829 = vmatmul.mubr.bf16.gmra.mxu0 %v10528
        %v10830 = vpop.f32.mrf.mxu0
        %v10831 = vadd.f32 %v9902, %v10830
        %v10832 = vpop.f32.mrf.mxu0
        %v10833 = vpop.f32.mrf.mxu0
        %v10834 = vadd.f32 %v9906, %v10833
        %v10835 = vpop.f32.mrf.mxu0
        %10836 = vmatprep.mubr.bf16.mxu0 %v10533
        %10837 = vmatmul.mubr.bf16.gmra.mxu0 %v10532
        %v10838 = vpop.f32.mrf.mxu0
        %v10839 = vadd.f32 %v9910, %v10838
        %v10840 = vpop.f32.mrf.mxu0
        %v10841 = vpop.f32.mrf.mxu0
        %v10842 = vadd.f32 %v9914, %v10841
        %v10843 = vpop.f32.mrf.mxu0
        %10844 = vmatprep.mubr.bf16.mxu0 %v10537
        %10845 = vmatmul.mubr.bf16.gmra.mxu0 %v10536
        %v10846 = vpop.f32.mrf.mxu0
        %v10847 = vadd.f32 %v9918, %v10846
        %v10848 = vpop.f32.mrf.mxu0
        %v10849 = vpop.f32.mrf.mxu0
        %v10850 = vadd.f32 %v9922, %v10849
        %v10851 = vpop.f32.mrf.mxu0
        %10852 = vmatprep.mubr.bf16.mxu0 %v10541
        %10853 = vmatmul.mubr.bf16.gmra.mxu0 %v10540
        %v10854 = vpop.f32.mrf.mxu0
        %v10855 = vadd.f32 %v9926, %v10854
        %v10856 = vpop.f32.mrf.mxu0
        %v10857 = vpop.f32.mrf.mxu0
        %v10858 = vadd.f32 %v9930, %v10857
        %v10859 = vpop.f32.mrf.mxu0
        %10860 = vmatprep.mubr.bf16.mxu0 %v10545
        %10861 = vmatmul.mubr.bf16.gmra.mxu0 %v10544
        %v10862 = vpop.f32.mrf.mxu0
        %v10863 = vadd.f32 %v9934, %v10862
        %v10864 = vpop.f32.mrf.mxu0
        %v10865 = vpop.f32.mrf.mxu0
        %v10866 = vadd.f32 %v9938, %v10865
        %v10867 = vpop.f32.mrf.mxu0
        %10868 = vmatprep.mubr.bf16.mxu0 %v10549
        %10869 = vmatmul.mubr.bf16.gmra.mxu0 %v10548
        %v10870 = vpop.f32.mrf.mxu0
        %v10871 = vadd.f32 %v9942, %v10870
        %v10872 = vpop.f32.mrf.mxu0
        %v10873 = vpop.f32.mrf.mxu0
        %v10874 = vadd.f32 %v9946, %v10873
        %v10875 = vpop.f32.mrf.mxu0
        %10876 = vmatprep.mubr.bf16.mxu0 %v10553
        %10877 = vmatmul.mubr.bf16.gmra.mxu0 %v10552
        %v10878 = vpop.f32.mrf.mxu0
        %v10879 = vadd.f32 %v9950, %v10878
        %v10880 = vpop.f32.mrf.mxu0
        %v10881 = vpop.f32.mrf.mxu0
        %v10882 = vadd.f32 %v9954, %v10881
        %v10883 = vpop.f32.mrf.mxu0
        %10884 = vmatprep.mubr.bf16.mxu0 %v10557
        %10885 = vmatmul.mubr.bf16.gmra.mxu0 %v10556
        %v10886 = vpop.f32.mrf.mxu0
        %v10887 = vadd.f32 %v9958, %v10886
        %v10888 = vpop.f32.mrf.mxu0
        %v10889 = vpop.f32.mrf.mxu0
        %v10890 = vadd.f32 %v9962, %v10889
        %v10891 = vpop.f32.mrf.mxu0
        %10892 = vmatprep.mubr.bf16.mxu0 %v10561
        %10893 = vmatmul.mubr.bf16.gmra.mxu0 %v10560
        %v10894 = vpop.f32.mrf.mxu0
        %v10895 = vadd.f32 %v9966, %v10894
        %v10896 = vpop.f32.mrf.mxu0
        %v10897 = vpop.f32.mrf.mxu0
        %v10898 = vadd.f32 %v9970, %v10897
        %v10899 = vpop.f32.mrf.mxu0
        %10900 = vmatprep.mubr.bf16.mxu0 %v10565
        %10901 = vmatmul.mubr.bf16.gmra.mxu0 %v10564
        %v10902 = vpop.f32.mrf.mxu0
        %v10903 = vadd.f32 %v9974, %v10902
        %v10904 = vpop.f32.mrf.mxu0
        %v10905 = vpop.f32.mrf.mxu0
        %v10906 = vadd.f32 %v9978, %v10905
        %v10907 = vpop.f32.mrf.mxu0
        %10908 = vmatprep.mubr.bf16.mxu0 %v10569
        %10909 = vmatmul.mubr.bf16.gmra.mxu0 %v10568
        %v10910 = vpop.f32.mrf.mxu0
        %v10911 = vadd.f32 %v9982, %v10910
        %v10912 = vpop.f32.mrf.mxu0
        %v10913 = vpop.f32.mrf.mxu0
        %v10914 = vadd.f32 %v9986, %v10913
        %v10915 = vpop.f32.mrf.mxu0
        %10916 = vmatprep.mubr.bf16.mxu0 %v10573
        %10917 = vmatmul.mubr.bf16.gmra.mxu0 %v10572
        %v10918 = vpop.f32.mrf.mxu0
        %v10919 = vadd.f32 %v9990, %v10918
        %v10920 = vpop.f32.mrf.mxu0
        %v10921 = vpop.f32.mrf.mxu0
        %v10922 = vadd.f32 %v9994, %v10921
        %v10923 = vpop.f32.mrf.mxu0
        %10924 = vmatprep.mubr.bf16.mxu0 %v10577
        %10925 = vmatmul.mubr.bf16.gmra.mxu0 %v10576
        %v10926 = vpop.f32.mrf.mxu0
        %v10927 = vadd.f32 %v9998, %v10926
        %v10928 = vpop.f32.mrf.mxu0
        %v10929 = vpop.f32.mrf.mxu0
        %v10930 = vadd.f32 %v10002, %v10929
        %v10931 = vpop.f32.mrf.mxu0
        %10932 = vmatprep.mubr.bf16.mxu0 %v10581
        %10933 = vmatmul.mubr.bf16.gmra.mxu0 %v10580
        %v10934 = vpop.f32.mrf.mxu0
        %v10935 = vadd.f32 %v10006, %v10934
        %v10936 = vpop.f32.mrf.mxu0
        %v10937 = vpop.f32.mrf.mxu0
        %v10938 = vadd.f32 %v10010, %v10937
        %v10939 = vpop.f32.mrf.mxu0
        %10940 = vmatprep.mubr.bf16.mxu0 %v10585
        %10941 = vmatmul.mubr.bf16.gmra.mxu0 %v10584
        %v10942 = vpop.f32.mrf.mxu0
        %v10943 = vadd.f32 %v10014, %v10942
        %v10944 = vpop.f32.mrf.mxu0
        %v10945 = vpop.f32.mrf.mxu0
        %v10946 = vadd.f32 %v10018, %v10945
        %v10947 = vpop.f32.mrf.mxu0
        %10948 = vmatprep.mubr.bf16.mxu0 %v10589
        %10949 = vmatmul.mubr.bf16.gmra.mxu0 %v10588
        %v10950 = vpop.f32.mrf.mxu0
        %v10951 = vadd.f32 %v10022, %v10950
        %v10952 = vpop.f32.mrf.mxu0
        %v10953 = vpop.f32.mrf.mxu0
        %v10954 = vadd.f32 %v10026, %v10953
        %v10955 = vpop.f32.mrf.mxu0
        %10956 = vmatprep.mubr.bf16.mxu0 %v10593
        %10957 = vmatmul.mubr.bf16.gmra.mxu0 %v10592
        %v10958 = vpop.f32.mrf.mxu0
        %v10959 = vadd.f32 %v10030, %v10958
        %v10960 = vpop.f32.mrf.mxu0
        %v10961 = vpop.f32.mrf.mxu0
        %v10962 = vadd.f32 %v10034, %v10961
        %v10963 = vpop.f32.mrf.mxu0
        %10964 = vmatprep.mubr.bf16.mxu0 %v10597
        %10965 = vmatmul.mubr.bf16.gmra.mxu0 %v10596
        %v10966 = vpop.f32.mrf.mxu0
        %v10967 = vadd.f32 %v10038, %v10966
        %v10968 = vpop.f32.mrf.mxu0
        %v10969 = vpop.f32.mrf.mxu0
        %v10970 = vadd.f32 %v10042, %v10969
        %v10971 = vpop.f32.mrf.mxu0
        %10972 = vmatprep.mubr.bf16.mxu0 %v10601
        %10973 = vmatmul.mubr.bf16.gmra.mxu0 %v10600
        %v10974 = vpop.f32.mrf.mxu0
        %v10975 = vadd.f32 %v10046, %v10974
        %v10976 = vpop.f32.mrf.mxu0
        %v10977 = vpop.f32.mrf.mxu0
        %v10978 = vadd.f32 %v10050, %v10977
        %v10979 = vpop.f32.mrf.mxu0
        %10980 = vmatprep.mubr.bf16.mxu0 %v10605
        %10981 = vmatmul.mubr.bf16.gmra.mxu0 %v10604
        %v10982 = vpop.f32.mrf.mxu0
        %v10983 = vadd.f32 %v10054, %v10982
        %v10984 = vpop.f32.mrf.mxu0
        %v10985 = vpop.f32.mrf.mxu0
        %v10986 = vadd.f32 %v10058, %v10985
        %v10987 = vpop.f32.mrf.mxu0
        %10988 = vmatprep.mubr.bf16.mxu0 %v10609
        %10989 = vmatmul.mubr.bf16.gmra.mxu0 %v10608
        %v10990 = vpop.f32.mrf.mxu0
        %v10991 = vadd.f32 %v10062, %v10990
        %v10992 = vpop.f32.mrf.mxu0
        %v10993 = vpop.f32.mrf.mxu0
        %v10994 = vadd.f32 %v10066, %v10993
        %v10995 = vpop.f32.mrf.mxu0
        %10996 = vmatprep.mubr.bf16.mxu0 %v10613
        %10997 = vmatmul.mubr.bf16.gmra.mxu0 %v10612
        %v10998 = vpop.f32.mrf.mxu0
        %v10999 = vadd.f32 %v10070, %v10998
        %v11000 = vpop.f32.mrf.mxu0
        %v11001 = vpop.f32.mrf.mxu0
        %v11002 = vadd.f32 %v10074, %v11001
        %v11003 = vpop.f32.mrf.mxu0
        %11004 = vmatprep.mubr.bf16.mxu0 %v10617
        %11005 = vmatmul.mubr.bf16.gmra.mxu0 %v10616
        %v11006 = vpop.f32.mrf.mxu0
        %v11007 = vadd.f32 %v10078, %v11006
        %v11008 = vpop.f32.mrf.mxu0
        %v11009 = vpop.f32.mrf.mxu0
        %v11010 = vadd.f32 %v10082, %v11009
        %v11011 = vpop.f32.mrf.mxu0
        %11012 = vmatprep.mubr.bf16.mxu0 %v10621
        %11013 = vmatmul.mubr.bf16.gmra.mxu0 %v10620
        %v11014 = vpop.f32.mrf.mxu0
        %v11015 = vadd.f32 %v10086, %v11014
        %v11016 = vpop.f32.mrf.mxu0
        %v11017 = vpop.f32.mrf.mxu0
        %v11018 = vadd.f32 %v10090, %v11017
        %v11019 = vpop.f32.mrf.mxu0
        %11020 = vmatprep.mubr.bf16.mxu0 %v10625
        %11021 = vmatmul.mubr.bf16.gmra.mxu0 %v10624
        %v11022 = vpop.f32.mrf.mxu0
        %v11023 = vadd.f32 %v10094, %v11022
        %v11024 = vpop.f32.mrf.mxu0
        %v11025 = vpop.f32.mrf.mxu0
        %v11026 = vadd.f32 %v10098, %v11025
        %v11027 = vpop.f32.mrf.mxu0
        %11028 = vmatprep.mubr.bf16.mxu0 %v10629
        %11029 = vmatmul.mubr.bf16.gmra.mxu0 %v10628
        %v11030 = vpop.f32.mrf.mxu0
        %v11031 = vadd.f32 %v10102, %v11030
        %v11032 = vpop.f32.mrf.mxu0
        %v11033 = vpop.f32.mrf.mxu0
        %v11034 = vadd.f32 %v10106, %v11033
        %v11035 = vpop.f32.mrf.mxu0
        %11036 = vmatprep.mubr.bf16.mxu0 %v10633
        %11037 = vmatmul.mubr.bf16.gmra.mxu0 %v10632
        %v11038 = vpop.f32.mrf.mxu0
        %v11039 = vadd.f32 %v10110, %v11038
        %v11040 = vpop.f32.mrf.mxu0
        %v11041 = vpop.f32.mrf.mxu0
        %v11042 = vadd.f32 %v10114, %v11041
        %v11043 = vpop.f32.mrf.mxu0
        %11044 = vmatprep.mubr.bf16.mxu0 %v10637
        %11045 = vmatmul.mubr.bf16.gmra.mxu0 %v10636
        %v11046 = vpop.f32.mrf.mxu0
        %v11047 = vadd.f32 %v10118, %v11046
        %v11048 = vpop.f32.mrf.mxu0
        %v11049 = vpop.f32.mrf.mxu0
        %v11050 = vadd.f32 %v10122, %v11049
        %v11051 = vpop.f32.mrf.mxu0
        %11052 = vmatprep.mubr.bf16.mxu0 %v10641
        %11053 = vmatmul.mubr.bf16.gmra.mxu0 %v10640
        %v11054 = vpop.f32.mrf.mxu0
        %v11055 = vadd.f32 %v10126, %v11054
        %v11056 = vpop.f32.mrf.mxu0
        %v11057 = vpop.f32.mrf.mxu0
        %v11058 = vadd.f32 %v10130, %v11057
        %v11059 = vpop.f32.mrf.mxu0
        %11060 = vdwg.mxu0
        %11061 = vmatprep.subr.bf16.mxu0 0
        %11062 = vmatpush1.bf16.msra.mxu0 %v9738
        %11063 = vmatprep.subr.bf16.mxu0 0
        %11064 = vmatpush1.bf16.msra.mxu0 %v9737
        %11065 = vmatprep.subr.bf16.mxu0 0
        %11066 = vmatpush1.bf16.msra.mxu0 %v9736
        %11067 = vmatprep.subr.bf16.mxu0 0
        %11068 = vmatpush1.bf16.msra.mxu0 %v9735
        %11069 = vmatprep.subr.bf16.mxu0 0
        %11070 = vmatpush1.bf16.msra.mxu0 %v9734
        %11071 = vmatprep.subr.bf16.mxu0 0
        %11072 = vmatpush1.bf16.msra.mxu0 %v9733
        %11073 = vmatprep.subr.bf16.mxu0 0
        %11074 = vmatpush1.bf16.msra.mxu0 %v9732
        %11075 = vmatprep.subr.bf16.mxu0 0
        %11076 = vmatpush1.bf16.msra.mxu0 %v9731
        %11077 = vmatprep.subr.bf16.mxu0 0
        %11078 = vmatpush2.bf16.msra.mxu0 %v9746
        %11079 = vmatprep.subr.bf16.mxu0 0
        %11080 = vmatpush2.bf16.msra.mxu0 %v9745
        %11081 = vmatprep.subr.bf16.mxu0 0
        %11082 = vmatpush2.bf16.msra.mxu0 %v9744
        %11083 = vmatprep.subr.bf16.mxu0 0
        %11084 = vmatpush2.bf16.msra.mxu0 %v9743
        %11085 = vmatprep.subr.bf16.mxu0 0
        %11086 = vmatpush2.bf16.msra.mxu0 %v9742
        %11087 = vmatprep.subr.bf16.mxu0 0
        %11088 = vmatpush2.bf16.msra.mxu0 %v9741
        %11089 = vmatprep.subr.bf16.mxu0 0
        %11090 = vmatpush2.bf16.msra.mxu0 %v9740
        %11091 = vmatprep.subr.bf16.mxu0 0
        %11092 = vmatpush2.bf16.msra.mxu0 %v9739
        %11093 = vmatprep.mubr.bf16.mxu0 %v10519
        %11094 = vmatmul.mubr.bf16.gmra.mxu0 %v10518
        %v11095 = vpop.f32.mrf.mxu0
        %v11096 = vadd.f32 %v10807, %v11095
        %v11097 = vpop.f32.mrf.mxu0
        %v11098 = vpop.f32.mrf.mxu0
        %v11099 = vadd.f32 %v10810, %v11098
        %v11100 = vpop.f32.mrf.mxu0
        %11101 = vmatprep.mubr.bf16.mxu0 %v10523
        %11102 = vmatmul.mubr.bf16.gmra.mxu0 %v10522
        %v11103 = vpop.f32.mrf.mxu0
        %v11104 = vadd.f32 %v10815, %v11103
        %v11105 = vpop.f32.mrf.mxu0
        %v11106 = vpop.f32.mrf.mxu0
        %v11107 = vadd.f32 %v10818, %v11106
        %v11108 = vpop.f32.mrf.mxu0
        %11109 = vmatprep.mubr.bf16.mxu0 %v10527
        %11110 = vmatmul.mubr.bf16.gmra.mxu0 %v10526
        %v11111 = vpop.f32.mrf.mxu0
        %v11112 = vadd.f32 %v10823, %v11111
        %v11113 = vpop.f32.mrf.mxu0
        %v11114 = vpop.f32.mrf.mxu0
        %v11115 = vadd.f32 %v10826, %v11114
        %v11116 = vpop.f32.mrf.mxu0
        %11117 = vmatprep.mubr.bf16.mxu0 %v10531
        %11118 = vmatmul.mubr.bf16.gmra.mxu0 %v10530
        %v11119 = vpop.f32.mrf.mxu0
        %v11120 = vadd.f32 %v10831, %v11119
        %v11121 = vpop.f32.mrf.mxu0
        %v11122 = vpop.f32.mrf.mxu0
        %v11123 = vadd.f32 %v10834, %v11122
        %v11124 = vpop.f32.mrf.mxu0
        %11125 = vmatprep.mubr.bf16.mxu0 %v10535
        %11126 = vmatmul.mubr.bf16.gmra.mxu0 %v10534
        %v11127 = vpop.f32.mrf.mxu0
        %v11128 = vadd.f32 %v10839, %v11127
        %v11129 = vpop.f32.mrf.mxu0
        %v11130 = vpop.f32.mrf.mxu0
        %v11131 = vadd.f32 %v10842, %v11130
        %v11132 = vpop.f32.mrf.mxu0
        %11133 = vmatprep.mubr.bf16.mxu0 %v10539
        %11134 = vmatmul.mubr.bf16.gmra.mxu0 %v10538
        %v11135 = vpop.f32.mrf.mxu0
        %v11136 = vadd.f32 %v10847, %v11135
        %v11137 = vpop.f32.mrf.mxu0
        %v11138 = vpop.f32.mrf.mxu0
        %v11139 = vadd.f32 %v10850, %v11138
        %v11140 = vpop.f32.mrf.mxu0
        %11141 = vmatprep.mubr.bf16.mxu0 %v10543
        %11142 = vmatmul.mubr.bf16.gmra.mxu0 %v10542
        %v11143 = vpop.f32.mrf.mxu0
        %v11144 = vadd.f32 %v10855, %v11143
        %v11145 = vpop.f32.mrf.mxu0
        %v11146 = vpop.f32.mrf.mxu0
        %v11147 = vadd.f32 %v10858, %v11146
        %v11148 = vpop.f32.mrf.mxu0
        %11149 = vmatprep.mubr.bf16.mxu0 %v10547
        %11150 = vmatmul.mubr.bf16.gmra.mxu0 %v10546
        %v11151 = vpop.f32.mrf.mxu0
        %v11152 = vadd.f32 %v10863, %v11151
        %v11153 = vpop.f32.mrf.mxu0
        %v11154 = vpop.f32.mrf.mxu0
        %v11155 = vadd.f32 %v10866, %v11154
        %v11156 = vpop.f32.mrf.mxu0
        %11157 = vmatprep.mubr.bf16.mxu0 %v10551
        %11158 = vmatmul.mubr.bf16.gmra.mxu0 %v10550
        %v11159 = vpop.f32.mrf.mxu0
        %v11160 = vadd.f32 %v10871, %v11159
        %v11161 = vpop.f32.mrf.mxu0
        %v11162 = vpop.f32.mrf.mxu0
        %v11163 = vadd.f32 %v10874, %v11162
        %v11164 = vpop.f32.mrf.mxu0
        %11165 = vmatprep.mubr.bf16.mxu0 %v10555
        %11166 = vmatmul.mubr.bf16.gmra.mxu0 %v10554
        %v11167 = vpop.f32.mrf.mxu0
        %v11168 = vadd.f32 %v10879, %v11167
        %v11169 = vpop.f32.mrf.mxu0
        %v11170 = vpop.f32.mrf.mxu0
        %v11171 = vadd.f32 %v10882, %v11170
        %v11172 = vpop.f32.mrf.mxu0
        %11173 = vmatprep.mubr.bf16.mxu0 %v10559
        %11174 = vmatmul.mubr.bf16.gmra.mxu0 %v10558
        %v11175 = vpop.f32.mrf.mxu0
        %v11176 = vadd.f32 %v10887, %v11175
        %v11177 = vpop.f32.mrf.mxu0
        %v11178 = vpop.f32.mrf.mxu0
        %v11179 = vadd.f32 %v10890, %v11178
        %v11180 = vpop.f32.mrf.mxu0
        %11181 = vmatprep.mubr.bf16.mxu0 %v10563
        %11182 = vmatmul.mubr.bf16.gmra.mxu0 %v10562
        %v11183 = vpop.f32.mrf.mxu0
        %v11184 = vadd.f32 %v10895, %v11183
        %v11185 = vpop.f32.mrf.mxu0
        %v11186 = vpop.f32.mrf.mxu0
        %v11187 = vadd.f32 %v10898, %v11186
        %v11188 = vpop.f32.mrf.mxu0
        %11189 = vmatprep.mubr.bf16.mxu0 %v10567
        %11190 = vmatmul.mubr.bf16.gmra.mxu0 %v10566
        %v11191 = vpop.f32.mrf.mxu0
        %v11192 = vadd.f32 %v10903, %v11191
        %v11193 = vpop.f32.mrf.mxu0
        %v11194 = vpop.f32.mrf.mxu0
        %v11195 = vadd.f32 %v10906, %v11194
        %v11196 = vpop.f32.mrf.mxu0
        %11197 = vmatprep.mubr.bf16.mxu0 %v10571
        %11198 = vmatmul.mubr.bf16.gmra.mxu0 %v10570
        %v11199 = vpop.f32.mrf.mxu0
        %v11200 = vadd.f32 %v10911, %v11199
        %v11201 = vpop.f32.mrf.mxu0
        %v11202 = vpop.f32.mrf.mxu0
        %v11203 = vadd.f32 %v10914, %v11202
        %v11204 = vpop.f32.mrf.mxu0
        %11205 = vmatprep.mubr.bf16.mxu0 %v10575
        %11206 = vmatmul.mubr.bf16.gmra.mxu0 %v10574
        %v11207 = vpop.f32.mrf.mxu0
        %v11208 = vadd.f32 %v10919, %v11207
        %v11209 = vpop.f32.mrf.mxu0
        %v11210 = vpop.f32.mrf.mxu0
        %v11211 = vadd.f32 %v10922, %v11210
        %v11212 = vpop.f32.mrf.mxu0
        %11213 = vmatprep.mubr.bf16.mxu0 %v10579
        %11214 = vmatmul.mubr.bf16.gmra.mxu0 %v10578
        %v11215 = vpop.f32.mrf.mxu0
        %v11216 = vadd.f32 %v10927, %v11215
        %v11217 = vpop.f32.mrf.mxu0
        %v11218 = vpop.f32.mrf.mxu0
        %v11219 = vadd.f32 %v10930, %v11218
        %v11220 = vpop.f32.mrf.mxu0
        %11221 = vmatprep.mubr.bf16.mxu0 %v10583
        %11222 = vmatmul.mubr.bf16.gmra.mxu0 %v10582
        %v11223 = vpop.f32.mrf.mxu0
        %v11224 = vadd.f32 %v10935, %v11223
        %v11225 = vpop.f32.mrf.mxu0
        %v11226 = vpop.f32.mrf.mxu0
        %v11227 = vadd.f32 %v10938, %v11226
        %v11228 = vpop.f32.mrf.mxu0
        %11229 = vmatprep.mubr.bf16.mxu0 %v10587
        %11230 = vmatmul.mubr.bf16.gmra.mxu0 %v10586
        %v11231 = vpop.f32.mrf.mxu0
        %v11232 = vadd.f32 %v10943, %v11231
        %v11233 = vpop.f32.mrf.mxu0
        %v11234 = vpop.f32.mrf.mxu0
        %v11235 = vadd.f32 %v10946, %v11234
        %v11236 = vpop.f32.mrf.mxu0
        %11237 = vmatprep.mubr.bf16.mxu0 %v10591
        %11238 = vmatmul.mubr.bf16.gmra.mxu0 %v10590
        %v11239 = vpop.f32.mrf.mxu0
        %v11240 = vadd.f32 %v10951, %v11239
        %v11241 = vpop.f32.mrf.mxu0
        %v11242 = vpop.f32.mrf.mxu0
        %v11243 = vadd.f32 %v10954, %v11242
        %v11244 = vpop.f32.mrf.mxu0
        %11245 = vmatprep.mubr.bf16.mxu0 %v10595
        %11246 = vmatmul.mubr.bf16.gmra.mxu0 %v10594
        %v11247 = vpop.f32.mrf.mxu0
        %v11248 = vadd.f32 %v10959, %v11247
        %v11249 = vpop.f32.mrf.mxu0
        %v11250 = vpop.f32.mrf.mxu0
        %v11251 = vadd.f32 %v10962, %v11250
        %v11252 = vpop.f32.mrf.mxu0
        %11253 = vmatprep.mubr.bf16.mxu0 %v10599
        %11254 = vmatmul.mubr.bf16.gmra.mxu0 %v10598
        %v11255 = vpop.f32.mrf.mxu0
        %v11256 = vadd.f32 %v10967, %v11255
        %v11257 = vpop.f32.mrf.mxu0
        %v11258 = vpop.f32.mrf.mxu0
        %v11259 = vadd.f32 %v10970, %v11258
        %v11260 = vpop.f32.mrf.mxu0
        %11261 = vmatprep.mubr.bf16.mxu0 %v10603
        %11262 = vmatmul.mubr.bf16.gmra.mxu0 %v10602
        %v11263 = vpop.f32.mrf.mxu0
        %v11264 = vadd.f32 %v10975, %v11263
        %v11265 = vpop.f32.mrf.mxu0
        %v11266 = vpop.f32.mrf.mxu0
        %v11267 = vadd.f32 %v10978, %v11266
        %v11268 = vpop.f32.mrf.mxu0
        %11269 = vmatprep.mubr.bf16.mxu0 %v10607
        %11270 = vmatmul.mubr.bf16.gmra.mxu0 %v10606
        %v11271 = vpop.f32.mrf.mxu0
        %v11272 = vadd.f32 %v10983, %v11271
        %v11273 = vpop.f32.mrf.mxu0
        %v11274 = vpop.f32.mrf.mxu0
        %v11275 = vadd.f32 %v10986, %v11274
        %v11276 = vpop.f32.mrf.mxu0
        %11277 = vmatprep.mubr.bf16.mxu0 %v10611
        %11278 = vmatmul.mubr.bf16.gmra.mxu0 %v10610
        %v11279 = vpop.f32.mrf.mxu0
        %v11280 = vadd.f32 %v10991, %v11279
        %v11281 = vpop.f32.mrf.mxu0
        %v11282 = vpop.f32.mrf.mxu0
        %v11283 = vadd.f32 %v10994, %v11282
        %v11284 = vpop.f32.mrf.mxu0
        %11285 = vmatprep.mubr.bf16.mxu0 %v10615
        %11286 = vmatmul.mubr.bf16.gmra.mxu0 %v10614
        %v11287 = vpop.f32.mrf.mxu0
        %v11288 = vadd.f32 %v10999, %v11287
        %v11289 = vpop.f32.mrf.mxu0
        %v11290 = vpop.f32.mrf.mxu0
        %v11291 = vadd.f32 %v11002, %v11290
        %v11292 = vpop.f32.mrf.mxu0
        %11293 = vmatprep.mubr.bf16.mxu0 %v10619
        %11294 = vmatmul.mubr.bf16.gmra.mxu0 %v10618
        %v11295 = vpop.f32.mrf.mxu0
        %v11296 = vadd.f32 %v11007, %v11295
        %v11297 = vpop.f32.mrf.mxu0
        %v11298 = vpop.f32.mrf.mxu0
        %v11299 = vadd.f32 %v11010, %v11298
        %v11300 = vpop.f32.mrf.mxu0
        %11301 = vmatprep.mubr.bf16.mxu0 %v10623
        %11302 = vmatmul.mubr.bf16.gmra.mxu0 %v10622
        %v11303 = vpop.f32.mrf.mxu0
        %v11304 = vadd.f32 %v11015, %v11303
        %v11305 = vpop.f32.mrf.mxu0
        %v11306 = vpop.f32.mrf.mxu0
        %v11307 = vadd.f32 %v11018, %v11306
        %v11308 = vpop.f32.mrf.mxu0
        %11309 = vmatprep.mubr.bf16.mxu0 %v10627
        %11310 = vmatmul.mubr.bf16.gmra.mxu0 %v10626
        %v11311 = vpop.f32.mrf.mxu0
        %v11312 = vadd.f32 %v11023, %v11311
        %v11313 = vpop.f32.mrf.mxu0
        %v11314 = vpop.f32.mrf.mxu0
        %v11315 = vadd.f32 %v11026, %v11314
        %v11316 = vpop.f32.mrf.mxu0
        %11317 = vmatprep.mubr.bf16.mxu0 %v10631
        %11318 = vmatmul.mubr.bf16.gmra.mxu0 %v10630
        %v11319 = vpop.f32.mrf.mxu0
        %v11320 = vadd.f32 %v11031, %v11319
        %v11321 = vpop.f32.mrf.mxu0
        %v11322 = vpop.f32.mrf.mxu0
        %v11323 = vadd.f32 %v11034, %v11322
        %v11324 = vpop.f32.mrf.mxu0
        %11325 = vmatprep.mubr.bf16.mxu0 %v10635
        %11326 = vmatmul.mubr.bf16.gmra.mxu0 %v10634
        %v11327 = vpop.f32.mrf.mxu0
        %v11328 = vadd.f32 %v11039, %v11327
        %v11329 = vpop.f32.mrf.mxu0
        %v11330 = vpop.f32.mrf.mxu0
        %v11331 = vadd.f32 %v11042, %v11330
        %v11332 = vpop.f32.mrf.mxu0
        %11333 = vmatprep.mubr.bf16.mxu0 %v10639
        %11334 = vmatmul.mubr.bf16.gmra.mxu0 %v10638
        %v11335 = vpop.f32.mrf.mxu0
        %v11336 = vadd.f32 %v11047, %v11335
        %v11337 = vpop.f32.mrf.mxu0
        %v11338 = vpop.f32.mrf.mxu0
        %v11339 = vadd.f32 %v11050, %v11338
        %v11340 = vpop.f32.mrf.mxu0
        %11341 = vmatprep.mubr.bf16.mxu0 %v10643
        %11342 = vmatmul.mubr.bf16.gmra.mxu0 %v10642
        %v11343 = vpop.f32.mrf.mxu0
        %v11344 = vadd.f32 %v11055, %v11343
        %v11345 = vpop.f32.mrf.mxu0
        %v11346 = vpop.f32.mrf.mxu0
        %v11347 = vadd.f32 %v11058, %v11346
        %v11348 = vpop.f32.mrf.mxu0
        %11349 = vdwg.mxu0
        %v11350 = vmax.f32 %v11096, 0.0
        %v11351 = vmax.f32 %v11099, 0.0
        %v11352 = vmax.f32 %v11104, 0.0
        %v11353 = vmax.f32 %v11107, 0.0
        %v11354 = vmax.f32 %v11112, 0.0
        %v11355 = vmax.f32 %v11115, 0.0
        %v11356 = vmax.f32 %v11120, 0.0
        %v11357 = vmax.f32 %v11123, 0.0
        %v11358 = vmax.f32 %v11128, 0.0
        %v11359 = vmax.f32 %v11131, 0.0
        %v11360 = vmax.f32 %v11136, 0.0
        %v11361 = vmax.f32 %v11139, 0.0
        %v11362 = vmax.f32 %v11144, 0.0
        %v11363 = vmax.f32 %v11147, 0.0
        %v11364 = vmax.f32 %v11152, 0.0
        %v11365 = vmax.f32 %v11155, 0.0
        %v11366 = vmax.f32 %v11160, 0.0
        %v11367 = vmax.f32 %v11163, 0.0
        %v11368 = vmax.f32 %v11168, 0.0
        %v11369 = vmax.f32 %v11171, 0.0
        %v11370 = vmax.f32 %v11176, 0.0
        %v11371 = vmax.f32 %v11179, 0.0
        %v11372 = vmax.f32 %v11184, 0.0
        %v11373 = vmax.f32 %v11187, 0.0
        %v11374 = vmax.f32 %v11192, 0.0
        %v11375 = vmax.f32 %v11195, 0.0
        %v11376 = vmax.f32 %v11200, 0.0
        %v11377 = vmax.f32 %v11203, 0.0
        %v11378 = vmax.f32 %v11208, 0.0
        %v11379 = vmax.f32 %v11211, 0.0
        %v11380 = vmax.f32 %v11216, 0.0
        %v11381 = vmax.f32 %v11219, 0.0
        %v11382 = vmax.f32 %v11224, 0.0
        %v11383 = vmax.f32 %v11227, 0.0
        %v11384 = vmax.f32 %v11232, 0.0
        %v11385 = vmax.f32 %v11235, 0.0
        %v11386 = vmax.f32 %v11240, 0.0
        %v11387 = vmax.f32 %v11243, 0.0
        %v11388 = vmax.f32 %v11248, 0.0
        %v11389 = vmax.f32 %v11251, 0.0
        %v11390 = vmax.f32 %v11256, 0.0
        %v11391 = vmax.f32 %v11259, 0.0
        %v11392 = vmax.f32 %v11264, 0.0
        %v11393 = vmax.f32 %v11267, 0.0
        %v11394 = vmax.f32 %v11272, 0.0
        %v11395 = vmax.f32 %v11275, 0.0
        %v11396 = vmax.f32 %v11280, 0.0
        %v11397 = vmax.f32 %v11283, 0.0
        %v11398 = vmax.f32 %v11288, 0.0
        %v11399 = vmax.f32 %v11291, 0.0
        %v11400 = vmax.f32 %v11296, 0.0
        %v11401 = vmax.f32 %v11299, 0.0
        %v11402 = vmax.f32 %v11304, 0.0
        %v11403 = vmax.f32 %v11307, 0.0
        %v11404 = vmax.f32 %v11312, 0.0
        %v11405 = vmax.f32 %v11315, 0.0
        %v11406 = vmax.f32 %v11320, 0.0
        %v11407 = vmax.f32 %v11323, 0.0
        %v11408 = vmax.f32 %v11328, 0.0
        %v11409 = vmax.f32 %v11331, 0.0
        %v11410 = vmax.f32 %v11336, 0.0
        %v11411 = vmax.f32 %v11339, 0.0
        %v11412 = vmax.f32 %v11344, 0.0
        %v11413 = vmax.f32 %v11347, 0.0
        %v11414 = vpack.c.bf16 %v11351, %v11350
        %v11415 = vpack.c.bf16 %v11353, %v11352
        %v11416 = vpack.c.bf16 %v11355, %v11354
        %v11417 = vpack.c.bf16 %v11357, %v11356
        %v11418 = vpack.c.bf16 %v11359, %v11358
        %v11419 = vpack.c.bf16 %v11361, %v11360
        %v11420 = vpack.c.bf16 %v11363, %v11362
        %v11421 = vpack.c.bf16 %v11365, %v11364
        %v11422 = vpack.c.bf16 %v11367, %v11366
        %v11423 = vpack.c.bf16 %v11369, %v11368
        %v11424 = vpack.c.bf16 %v11371, %v11370
        %v11425 = vpack.c.bf16 %v11373, %v11372
        %v11426 = vpack.c.bf16 %v11375, %v11374
        %v11427 = vpack.c.bf16 %v11377, %v11376
        %v11428 = vpack.c.bf16 %v11379, %v11378
        %v11429 = vpack.c.bf16 %v11381, %v11380
        %v11430 = vpack.c.bf16 %v11383, %v11382
        %v11431 = vpack.c.bf16 %v11385, %v11384
        %v11432 = vpack.c.bf16 %v11387, %v11386
        %v11433 = vpack.c.bf16 %v11389, %v11388
        %v11434 = vpack.c.bf16 %v11391, %v11390
        %v11435 = vpack.c.bf16 %v11393, %v11392
        %v11436 = vpack.c.bf16 %v11395, %v11394
        %v11437 = vpack.c.bf16 %v11397, %v11396
        %v11438 = vpack.c.bf16 %v11399, %v11398
        %v11439 = vpack.c.bf16 %v11401, %v11400
        %v11440 = vpack.c.bf16 %v11403, %v11402
        %v11441 = vpack.c.bf16 %v11405, %v11404
        %v11442 = vpack.c.bf16 %v11407, %v11406
        %v11443 = vpack.c.bf16 %v11409, %v11408
        %v11444 = vpack.c.bf16 %v11411, %v11410
        %v11445 = vpack.c.bf16 %v11413, %v11412
        %s11446 = scalar_lea.vmem %s4, 16
        %v11447 = vld [vmem:[%s11446] sm:$0xff]
        %v11448 = vld [vmem:[%s11446 + $0x8] sm:$0xff]
        %v11451 = vunpack.c.l.b16 %v11447
        %v11452 = vunpack.c.h.b16 %v11447
        %v11453 = vunpack.c.l.b16 %v11448
        %v11454 = vunpack.c.h.b16 %v11448
        %v11455 = vpack.c.b16 %v11451, %v11451
        %v11456 = vpack.c.b16 %v11452, %v11452
        %v11457 = vpack.c.b16 %v11453, %v11453
        %v11458 = vpack.c.b16 %v11454, %v11454
        %11463 = vmatprep.subr.bf16.mxu0 0
        %11464 = vmatpush1.bf16.msra.mxu0 %v11421
        %11465 = vmatprep.subr.bf16.mxu0 0
        %11466 = vmatpush1.bf16.msra.mxu0 %v11420
        %11467 = vmatprep.subr.bf16.mxu0 0
        %11468 = vmatpush1.bf16.msra.mxu0 %v11419
        %11469 = vmatprep.subr.bf16.mxu0 0
        %11470 = vmatpush1.bf16.msra.mxu0 %v11418
        %11471 = vmatprep.subr.bf16.mxu0 0
        %11472 = vmatpush1.bf16.msra.mxu0 %v11417
        %11473 = vmatprep.subr.bf16.mxu0 0
        %11474 = vmatpush1.bf16.msra.mxu0 %v11416
        %11475 = vmatprep.subr.bf16.mxu0 0
        %11476 = vmatpush1.bf16.msra.mxu0 %v11415
        %11477 = vmatprep.subr.bf16.mxu0 0
        %11478 = vmatpush1.bf16.msra.mxu0 %v11414
        %11479 = vmatprep.subr.bf16.mxu0 0
        %11480 = vmatpush2.bf16.msra.mxu0 %v11429
        %11481 = vmatprep.subr.bf16.mxu0 0
        %11482 = vmatpush2.bf16.msra.mxu0 %v11428
        %11483 = vmatprep.subr.bf16.mxu0 0
        %11484 = vmatpush2.bf16.msra.mxu0 %v11427
        %11485 = vmatprep.subr.bf16.mxu0 0
        %11486 = vmatpush2.bf16.msra.mxu0 %v11426
        %11487 = vmatprep.subr.bf16.mxu0 0
        %11488 = vmatpush2.bf16.msra.mxu0 %v11425
        %11489 = vmatprep.subr.bf16.mxu0 0
        %11490 = vmatpush2.bf16.msra.mxu0 %v11424
        %11491 = vmatprep.subr.bf16.mxu0 0
        %11492 = vmatpush2.bf16.msra.mxu0 %v11423
        %11493 = vmatprep.subr.bf16.mxu0 0
        %11494 = vmatpush2.bf16.msra.mxu0 %v11422
        %11495 = vmatprep.mubr.bf16.mxu0 %v11456
        %11496 = vmatmul.mubr.bf16.gmra.mxu0 %v11455
        %v11497 = vpop.f32.mrf.mxu0
        %v11498 = vadd.f32 0.0, %v11497
        %v11499 = vpop.f32.mrf.mxu0
        %v11500 = vpop.f32.mrf.mxu0
        %v11501 = vpop.f32.mrf.mxu0
        %11502 = vdwg.mxu0
        %11503 = vmatprep.subr.bf16.mxu0 0
        %11504 = vmatpush1.bf16.msra.mxu0 %v11437
        %11505 = vmatprep.subr.bf16.mxu0 0
        %11506 = vmatpush1.bf16.msra.mxu0 %v11436
        %11507 = vmatprep.subr.bf16.mxu0 0
        %11508 = vmatpush1.bf16.msra.mxu0 %v11435
        %11509 = vmatprep.subr.bf16.mxu0 0
        %11510 = vmatpush1.bf16.msra.mxu0 %v11434
        %11511 = vmatprep.subr.bf16.mxu0 0
        %11512 = vmatpush1.bf16.msra.mxu0 %v11433
        %11513 = vmatprep.subr.bf16.mxu0 0
        %11514 = vmatpush1.bf16.msra.mxu0 %v11432
        %11515 = vmatprep.subr.bf16.mxu0 0
        %11516 = vmatpush1.bf16.msra.mxu0 %v11431
        %11517 = vmatprep.subr.bf16.mxu0 0
        %11518 = vmatpush1.bf16.msra.mxu0 %v11430
        %11519 = vmatprep.subr.bf16.mxu0 0
        %11520 = vmatpush2.bf16.msra.mxu0 %v11445
        %11521 = vmatprep.subr.bf16.mxu0 0
        %11522 = vmatpush2.bf16.msra.mxu0 %v11444
        %11523 = vmatprep.subr.bf16.mxu0 0
        %11524 = vmatpush2.bf16.msra.mxu0 %v11443
        %11525 = vmatprep.subr.bf16.mxu0 0
        %11526 = vmatpush2.bf16.msra.mxu0 %v11442
        %11527 = vmatprep.subr.bf16.mxu0 0
        %11528 = vmatpush2.bf16.msra.mxu0 %v11441
        %11529 = vmatprep.subr.bf16.mxu0 0
        %11530 = vmatpush2.bf16.msra.mxu0 %v11440
        %11531 = vmatprep.subr.bf16.mxu0 0
        %11532 = vmatpush2.bf16.msra.mxu0 %v11439
        %11533 = vmatprep.subr.bf16.mxu0 0
        %11534 = vmatpush2.bf16.msra.mxu0 %v11438
        %11535 = vmatprep.mubr.bf16.mxu0 %v11458
        %11536 = vmatmul.mubr.bf16.gmra.mxu0 %v11457
        %v11537 = vpop.f32.mrf.mxu0
        %v11538 = vadd.f32 %v11498, %v11537
        %v11539 = vpop.f32.mrf.mxu0
        %v11540 = vpop.f32.mrf.mxu0
        %v11541 = vpop.f32.mrf.mxu0
        %11542 = vdwg.mxu0
        %11544 = vset.pattern.permute.xlu0 3
        %11545 = vperm.xlu0 %11544, %v7567
        %v11546 = vpop.permute.xlu0 %11545
        %v11548 = vadd.f32 %v11538, %v11546
        %11549 = vst [vmem:[%s574 + $0x1] sm:$0x1] %v11548
        %p11550 = scmp.lt.s32.totalorder %s19, 1
        %s11551 = scalar_select %p11550, %s19, 1
        %s11552 = smul.addr %s11551, 2
        %s11553 = scalar_lea.vmem %s6, %s11552
        // Predicated region
        $region94: #{qnetwork_forward.1} parent=80 // pred_check
          %p11554 = pneg %p168
        $region95: #{qnetwork_forward.1} parent=80 // pred_check_branch
          %11556 = sbr.rel (%p11554) target = $region97
        $region96: #{qnetwork_forward.1} parent=80 // pred_region
          _
        $region97: #{qnetwork_forward.1} parent=80 // pred_fallthru
          _
      $region81: #{qnetwork_forward.1} parent=5 // pred_fallthru
        _
      %p11557 = scmp.le.s32.totalorder 2, %s14
      // Predicated region
      $region98: #{qnetwork_forward.1} parent=5 // pred_check
        %p11558 = pneg %p11557
      $region99: #{qnetwork_forward.1} parent=5 // pred_check_branch
        %11560 = sbr.rel (%p11558) target = $region101
      $region100: #{qnetwork_forward.1} parent=5 // pred_region
        %s11561 = ssub.s32 %s14, 2
        // Predicated region
        $region102: #{qnetwork_forward.1} parent=100 // pred_check
          %p11562 = pneg %p174
        $region103: #{qnetwork_forward.1} parent=100 // pred_check_branch
          %11564 = sbr.rel (%p11562) target = $region105
        $region104: #{qnetwork_forward.1} parent=100 // pred_region
          %p11565 = scmp.lt.s32.totalorder %s20, 1
          %s11566 = scalar_select %p11565, %s20, 1
          %s11567 = smul.addr %s11566, 2
          %s11568 = scalar_lea.vmem %s6, %s11567
        $region105: #{qnetwork_forward.1} parent=100 // pred_fallthru
          _
      $region101: #{qnetwork_forward.1} parent=5 // pred_fallthru
        _
    $region6: #{qnetwork_forward.1} parent=1 // loop_footer
      %s18 = sadd.s32 1, %s14
    $region7: #{qnetwork_forward.1} parent=1 // loop_footer_branch
      %13 = sbr.rel target = $region3
    $region8: #{qnetwork_forward.1} parent=1 // loop_exit
      _
    %11569 = vsyncpa [#allocation4], 1
    %s11570 = scalar_lea.sflag [#allocation4], 1
    %11571 = vsyncpa %s11570, 1
    %11572 = vsyncpa [#allocation6], 1

</llo_original>
